<compile_context>
chip_gen: v6e
topology: v6e:2x2x1
jax: 0.10.0
libtpu: 0.0.40
codegen_flags: <defaults>
</compile_context>

<pallas_src>
import jax
import jax.numpy as jnp
from jax.experimental import pallas as pl
from jax.experimental.pallas import tpu as pltpu

LANE = 128      # TPU lane width (last dim)
SUBLANE = 8     # TPU sublane width (second-to-last dim)


def _round_up(x, m):
    return (x + m - 1) // m * m


def _matmul_bias_relu_kernel(p_ref, w_ref, b_ref, o_ref):
    # p_ref: (Mp, Kp) bf16 patches; w_ref: (Kp, Cp) bf16 BN-folded weights;
    # b_ref: (1, Cp) f32 folded bias.  acc in f32 on the MXU.
    acc = jnp.dot(p_ref[...], w_ref[...], preferred_element_type=jnp.float32)
    o_ref[...] = jnp.maximum(acc + b_ref[...], 0.0).astype(o_ref.dtype)


def _im2col(x_nhwc, ksize, stride, padding):
    """Extract conv patches (pure indexing glue, no arithmetic)."""
    n, h, w, c = x_nhwc.shape
    if padding > 0:
        x_nhwc = jnp.pad(
            x_nhwc, ((0, 0), (padding, padding), (padding, padding), (0, 0)))
    hp, wp = h + 2 * padding, w + 2 * padding
    ho = (hp - ksize) // stride + 1
    wo = (wp - ksize) // stride + 1
    cols = []
    for kh in range(ksize):
        for kw in range(ksize):
            sl = x_nhwc[:,
                        kh:kh + stride * (ho - 1) + 1:stride,
                        kw:kw + stride * (wo - 1) + 1:stride,
                        :]
            cols.append(sl)
    patches = jnp.concatenate(cols, axis=-1)              # (N, Ho, Wo, K*K*C)
    return patches.reshape(n * ho * wo, ksize * ksize * c), (n, ho, wo)


def conv_bn_relu(x_nhwc, w_mat, bias_row, ksize, stride, padding):
    """One BN_Conv2d block as a single-step Pallas matmul kernel."""
    k_pad, cout_pad = w_mat.shape
    patches, (n, ho, wo) = _im2col(
        x_nhwc.astype(jnp.bfloat16), ksize, stride, padding)
    m, k = patches.shape
    m_pad = _round_up(m, SUBLANE)
    patches = jnp.pad(patches, ((0, m_pad - m), (0, k_pad - k)))

    out = pl.pallas_call(
        _matmul_bias_relu_kernel,
        out_shape=jax.ShapeDtypeStruct((m_pad, cout_pad), jnp.float32),
        grid=(1,),
        in_specs=[
            pl.BlockSpec((m_pad, k_pad), lambda i: (0, 0)),
            pl.BlockSpec((k_pad, cout_pad), lambda i: (0, 0)),
            pl.BlockSpec((1, cout_pad), lambda i: (0, 0)),
        ],
        out_specs=pl.BlockSpec((m_pad, cout_pad), lambda i: (0, 0)),
        compiler_params=pltpu.CompilerParams(
            dimension_semantics=("arbitrary",)),
    )(patches, w_mat, bias_row)

    return out[:m].reshape(n, ho, wo, cout_pad)


# (in_channels, out_channels, kernel, stride, padding) — mirrors Stem_Res1.__init__
_LAYER_CFG = [
    (3, 32, 3, 1, 0),
    (32, 64, 3, 1, 1),
    (64, 80, 1, 1, 0),
    (80, 192, 3, 1, 0),
    (192, 256, 3, 2, 0),
]
_BN_EPS = 1e-5


def init_raw_params(key):
    """PyTorch-style raw parameters: (w_oihw, gamma, beta, run_mean, run_var)."""
    raw = []
    for (cin, cout, ks, _, _) in _LAYER_CFG:
        key, k1, k2, k3, k4, k5 = jax.random.split(key, 6)
        fan_in = cin * ks * ks
        w = jax.random.normal(k1, (cout, cin, ks, ks), jnp.float32) / jnp.sqrt(
            jnp.float32(fan_in))
        gamma = 1.0 + 0.1 * jax.random.normal(k2, (cout,), jnp.float32)
        beta = 0.1 * jax.random.normal(k3, (cout,), jnp.float32)
        rmean = 0.1 * jax.random.normal(k4, (cout,), jnp.float32)
        rvar = jnp.abs(1.0 + 0.1 * jax.random.normal(k5, (cout,), jnp.float32))
        raw.append((w, gamma, beta, rmean, rvar))
    return raw


def fold_params(raw_params):
    """One-time prep: fold BN into weights, pad to MXU/lane-friendly shapes."""
    prepared = []
    cin_pad = _LAYER_CFG[0][0]          # layer-1 input channels (3), unpadded
    for (w, gamma, beta, rmean, rvar), (cin, cout, ks, stride, pad) in zip(
            raw_params, _LAYER_CFG):
        scale = gamma / jnp.sqrt(rvar + _BN_EPS)
        bias = beta - rmean * scale
        w_fold = w * scale[:, None, None, None]            # fold BN scale
        cout_pad = _round_up(cout, LANE)

        # (Cout,Cin,Kh,Kw) -> (Kh,Kw,Cin,Cout), embedded in a channel-padded
        # block so row order matches im2col on the channel-padded activation.
        w_full = jnp.zeros((ks, ks, cin_pad, cout_pad), jnp.float32)
        w_full = w_full.at[:, :, :cin, :cout].set(
            jnp.transpose(w_fold, (2, 3, 1, 0)))
        k = ks * ks * cin_pad
        k_pad = _round_up(k, LANE)
        w_mat = jnp.pad(w_full.reshape(k, cout_pad),
                        ((0, k_pad - k), (0, 0))).astype(jnp.bfloat16)

        bias_row = jnp.zeros((1, cout_pad), jnp.float32)
        bias_row = bias_row.at[0, :cout].set(bias)          # padded chans stay 0

        prepared.append((w_mat, bias_row, ks, stride, pad))
        cin_pad = cout_pad                                  # flows to next layer
    return prepared


def stem_res1(x_nchw, prepared):
    y = jnp.transpose(x_nchw, (0, 2, 3, 1))                 # NCHW -> NHWC
    for (w_mat, bias_row, ks, stride, pad) in prepared:
        y = conv_bn_relu(y, w_mat, bias_row, ks, stride, pad)
    y = y[..., :_LAYER_CFG[-1][1]]                          # drop channel pad (no-op: 256)
    return jnp.transpose(y, (0, 3, 1, 2))                   # NHWC -> NCHW


if __name__ == "__main__":
    key = jax.random.PRNGKey(0)
    kx, kp = jax.random.split(key)
    # PyTorch-style NCHW input; Cin must be 3 for this stem.
    x = jax.random.normal(kx, (2, 3, 16, 16), jnp.float32)
    prepared = fold_params(init_raw_params(kp))

    run = jax.jit(lambda xx: stem_res1(xx, prepared))
    out = run(x)
    jax.block_until_ready(out)

    # 16 ->(3x3,s1,p0) 14 ->(p1) 14 ->(1x1) 14 ->(3x3,s1,p0) 12 ->(3x3,s2,p0) 5
    assert out.shape == (2, 256, 5, 5), out.shape
    assert bool(jnp.all(out >= 0.0))  # ReLU epilogue
    print("KERNEL_OK")
</pallas_src>

<mosaic_0001>
module attributes {stable_mosaic.version = 11 : i64} {
  func.func @_matmul_bias_relu_kernel(%arg0: i32, %arg1: memref<392x128xbf16, #tpu.memory_space<vmem>>, %arg2: memref<128x128xbf16, #tpu.memory_space<vmem>>, %arg3: memref<1x128xf32, #tpu.memory_space<vmem>>, %arg4: memref<392x128xf32, #tpu.memory_space<vmem>>) attributes {dimension_semantics = [#tpu.dimension_semantics<arbitrary>], iteration_bounds = array<i64: 1>, scalar_prefetch = 0 : i64, scratch_operands = 0 : i64, tpu.core_type = #tpu.core_type<tc>, window_params = [{pipeline_mode = #tpu.pipeline_mode<synchronous>, transform_indices = @transform_0, window_bounds = array<i64: 392, 128>}, {pipeline_mode = #tpu.pipeline_mode<synchronous>, transform_indices = @transform_1, window_bounds = array<i64: 128, 128>}, {pipeline_mode = #tpu.pipeline_mode<synchronous>, transform_indices = @transform_2, window_bounds = array<i64: 1, 128>}, {pipeline_mode = #tpu.pipeline_mode<synchronous>, transform_indices = @transform_3, window_bounds = array<i64: 392, 128>}]} {
    %c0 = arith.constant 0 : index
    %c0_0 = arith.constant 0 : index
    %0 = vector.load %arg1[%c0, %c0_0] : memref<392x128xbf16, #tpu.memory_space<vmem>>, vector<392x128xbf16>
    %c0_1 = arith.constant 0 : index
    %c0_2 = arith.constant 0 : index
    %1 = vector.load %arg2[%c0_1, %c0_2] : memref<128x128xbf16, #tpu.memory_space<vmem>>, vector<128x128xbf16>
    %cst = arith.constant dense<0.000000e+00> : vector<392x128xf32>
    %2 = tpu.matmul %0, %1, %cst {dimension_numbers = #tpu.dot_dimension_numbers<[1], [0], [0], [1], [0, 0, 1, 1], [], []>} : vector<392x128xbf16>, vector<128x128xbf16>, vector<392x128xf32> -> vector<392x128xf32>
    %c0_3 = arith.constant 0 : index
    %c0_4 = arith.constant 0 : index
    %3 = vector.load %arg3[%c0_3, %c0_4] : memref<1x128xf32, #tpu.memory_space<vmem>>, vector<1x128xf32>
    %4 = vector.broadcast %3 : vector<1x128xf32> to vector<392x128xf32>
    %5 = arith.addf %2, %4 : vector<392x128xf32>
    %cst_5 = arith.constant 0.000000e+00 : f32
    %6 = vector.broadcast %cst_5 : f32 to vector<392x128xf32>
    %7 = arith.maximumf %5, %6 : vector<392x128xf32>
    %c0_6 = arith.constant 0 : index
    %c0_7 = arith.constant 0 : index
    %8 = vector.load %arg4[%c0_6, %c0_7] : memref<392x128xf32, #tpu.memory_space<vmem>>, vector<392x128xf32>
    tpu.vector_store %arg4[%c0_6, %c0_7], %7 {strides = array<i32>} : memref<392x128xf32, #tpu.memory_space<vmem>>, vector<392x128xf32>,
    return
  }
  func.func @transform_0(%arg0: i32) -> (i32, i32) {
    %c0_i32 = arith.constant 0 : i32
    %c0_i32_0 = arith.constant 0 : i32
    %c0_i32_1 = arith.constant 0 : i32
    return %c0_i32, %c0_i32_0 : i32, i32
  }
  func.func @transform_1(%arg0: i32) -> (i32, i32) {
    %c0_i32 = arith.constant 0 : i32
    %c0_i32_0 = arith.constant 0 : i32
    %c0_i32_1 = arith.constant 0 : i32
    return %c0_i32, %c0_i32_0 : i32, i32
  }
  func.func @transform_2(%arg0: i32) -> (i32, i32) {
    %c0_i32 = arith.constant 0 : i32
    %c0_i32_0 = arith.constant 0 : i32
    %c0_i32_1 = arith.constant 0 : i32
    return %c0_i32, %c0_i32_0 : i32, i32
  }
  func.func @transform_3(%arg0: i32) -> (i32, i32) {
    %c0_i32 = arith.constant 0 : i32
    %c0_i32_0 = arith.constant 0 : i32
    %c0_i32_1 = arith.constant 0 : i32
    return %c0_i32, %c0_i32_0 : i32, i32
  }
}

module attributes {stable_mosaic.version = 11 : i64} {
  func.func @_matmul_bias_relu_kernel(%arg0: i32, %arg1: memref<392x1152xbf16, #tpu.memory_space<vmem>>, %arg2: memref<1152x128xbf16, #tpu.memory_space<vmem>>, %arg3: memref<1x128xf32, #tpu.memory_space<vmem>>, %arg4: memref<392x128xf32, #tpu.memory_space<vmem>>) attributes {dimension_semantics = [#tpu.dimension_semantics<arbitrary>], iteration_bounds = array<i64: 1>, scalar_prefetch = 0 : i64, scratch_operands = 0 : i64, tpu.core_type = #tpu.core_type<tc>, window_params = [{pipeline_mode = #tpu.pipeline_mode<synchronous>, transform_indices = @transform_0, window_bounds = array<i64: 392, 1152>}, {pipeline_mode = #tpu.pipeline_mode<synchronous>, transform_indices = @transform_1, window_bounds = array<i64: 1152, 128>}, {pipeline_mode = #tpu.pipeline_mode<synchronous>, transform_indices = @transform_2, window_bounds = array<i64: 1, 128>}, {pipeline_mode = #tpu.pipeline_mode<synchronous>, transform_indices = @transform_3, window_bounds = array<i64: 392, 128>}]} {
    %c0 = arith.constant 0 : index
    %c0_0 = arith.constant 0 : index
    %0 = vector.load %arg1[%c0, %c0_0] : memref<392x1152xbf16, #tpu.memory_space<vmem>>, vector<392x1152xbf16>
    %c0_1 = arith.constant 0 : index
    %c0_2 = arith.constant 0 : index
    %1 = vector.load %arg2[%c0_1, %c0_2] : memref<1152x128xbf16, #tpu.memory_space<vmem>>, vector<1152x128xbf16>
    %cst = arith.constant dense<0.000000e+00> : vector<392x128xf32>
    %2 = tpu.matmul %0, %1, %cst {dimension_numbers = #tpu.dot_dimension_numbers<[1], [0], [0], [1], [0, 0, 1, 1], [], []>} : vector<392x1152xbf16>, vector<1152x128xbf16>, vector<392x128xf32> -> vector<392x128xf32>
    %c0_3 = arith.constant 0 : index
    %c0_4 = arith.constant 0 : index
    %3 = vector.load %arg3[%c0_3, %c0_4] : memref<1x128xf32, #tpu.memory_space<vmem>>, vector<1x128xf32>
    %4 = vector.broadcast %3 : vector<1x128xf32> to vector<392x128xf32>
    %5 = arith.addf %2, %4 : vector<392x128xf32>
    %cst_5 = arith.constant 0.000000e+00 : f32
    %6 = vector.broadcast %cst_5 : f32 to vector<392x128xf32>
    %7 = arith.maximumf %5, %6 : vector<392x128xf32>
    %c0_6 = arith.constant 0 : index
    %c0_7 = arith.constant 0 : index
    %8 = vector.load %arg4[%c0_6, %c0_7] : memref<392x128xf32, #tpu.memory_space<vmem>>, vector<392x128xf32>
    tpu.vector_store %arg4[%c0_6, %c0_7], %7 {strides = array<i32>} : memref<392x128xf32, #tpu.memory_space<vmem>>, vector<392x128xf32>,
    return
  }
  func.func @transform_0(%arg0: i32) -> (i32, i32) {
    %c0_i32 = arith.constant 0 : i32
    %c0_i32_0 = arith.constant 0 : i32
    %c0_i32_1 = arith.constant 0 : i32
    return %c0_i32, %c0_i32_0 : i32, i32
  }
  func.func @transform_1(%arg0: i32) -> (i32, i32) {
    %c0_i32 = arith.constant 0 : i32
    %c0_i32_0 = arith.constant 0 : i32
    %c0_i32_1 = arith.constant 0 : i32
    return %c0_i32, %c0_i32_0 : i32, i32
  }
  func.func @transform_2(%arg0: i32) -> (i32, i32) {
    %c0_i32 = arith.constant 0 : i32
    %c0_i32_0 = arith.constant 0 : i32
    %c0_i32_1 = arith.constant 0 : i32
    return %c0_i32, %c0_i32_0 : i32, i32
  }
  func.func @transform_3(%arg0: i32) -> (i32, i32) {
    %c0_i32 = arith.constant 0 : i32
    %c0_i32_0 = arith.constant 0 : i32
    %c0_i32_1 = arith.constant 0 : i32
    return %c0_i32, %c0_i32_0 : i32, i32
  }
}

module attributes {stable_mosaic.version = 11 : i64} {
  func.func @_matmul_bias_relu_kernel(%arg0: i32, %arg1: memref<288x1152xbf16, #tpu.memory_space<vmem>>, %arg2: memref<1152x256xbf16, #tpu.memory_space<vmem>>, %arg3: memref<1x256xf32, #tpu.memory_space<vmem>>, %arg4: memref<288x256xf32, #tpu.memory_space<vmem>>) attributes {dimension_semantics = [#tpu.dimension_semantics<arbitrary>], iteration_bounds = array<i64: 1>, scalar_prefetch = 0 : i64, scratch_operands = 0 : i64, tpu.core_type = #tpu.core_type<tc>, window_params = [{pipeline_mode = #tpu.pipeline_mode<synchronous>, transform_indices = @transform_0, window_bounds = array<i64: 288, 1152>}, {pipeline_mode = #tpu.pipeline_mode<synchronous>, transform_indices = @transform_1, window_bounds = array<i64: 1152, 256>}, {pipeline_mode = #tpu.pipeline_mode<synchronous>, transform_indices = @transform_2, window_bounds = array<i64: 1, 256>}, {pipeline_mode = #tpu.pipeline_mode<synchronous>, transform_indices = @transform_3, window_bounds = array<i64: 288, 256>}]} {
    %c0 = arith.constant 0 : index
    %c0_0 = arith.constant 0 : index
    %0 = vector.load %arg1[%c0, %c0_0] : memref<288x1152xbf16, #tpu.memory_space<vmem>>, vector<288x1152xbf16>
    %c0_1 = arith.constant 0 : index
    %c0_2 = arith.constant 0 : index
    %1 = vector.load %arg2[%c0_1, %c0_2] : memref<1152x256xbf16, #tpu.memory_space<vmem>>, vector<1152x256xbf16>
    %cst = arith.constant dense<0.000000e+00> : vector<288x256xf32>
    %2 = tpu.matmul %0, %1, %cst {dimension_numbers = #tpu.dot_dimension_numbers<[1], [0], [0], [1], [0, 0, 1, 1], [], []>} : vector<288x1152xbf16>, vector<1152x256xbf16>, vector<288x256xf32> -> vector<288x256xf32>
    %c0_3 = arith.constant 0 : index
    %c0_4 = arith.constant 0 : index
    %3 = vector.load %arg3[%c0_3, %c0_4] : memref<1x256xf32, #tpu.memory_space<vmem>>, vector<1x256xf32>
    %4 = vector.broadcast %3 : vector<1x256xf32> to vector<288x256xf32>
    %5 = arith.addf %2, %4 : vector<288x256xf32>
    %cst_5 = arith.constant 0.000000e+00 : f32
    %6 = vector.broadcast %cst_5 : f32 to vector<288x256xf32>
    %7 = arith.maximumf %5, %6 : vector<288x256xf32>
    %c0_6 = arith.constant 0 : index
    %c0_7 = arith.constant 0 : index
    %8 = vector.load %arg4[%c0_6, %c0_7] : memref<288x256xf32, #tpu.memory_space<vmem>>, vector<288x256xf32>
    tpu.vector_store %arg4[%c0_6, %c0_7], %7 {strides = array<i32>} : memref<288x256xf32, #tpu.memory_space<vmem>>, vector<288x256xf32>,
    return
  }
  func.func @transform_0(%arg0: i32) -> (i32, i32) {
    %c0_i32 = arith.constant 0 : i32
    %c0_i32_0 = arith.constant 0 : i32
    %c0_i32_1 = arith.constant 0 : i32
    return %c0_i32, %c0_i32_0 : i32, i32
  }
  func.func @transform_1(%arg0: i32) -> (i32, i32) {
    %c0_i32 = arith.constant 0 : i32
    %c0_i32_0 = arith.constant 0 : i32
    %c0_i32_1 = arith.constant 0 : i32
    return %c0_i32, %c0_i32_0 : i32, i32
  }
  func.func @transform_2(%arg0: i32) -> (i32, i32) {
    %c0_i32 = arith.constant 0 : i32
    %c0_i32_0 = arith.constant 0 : i32
    %c0_i32_1 = arith.constant 0 : i32
    return %c0_i32, %c0_i32_0 : i32, i32
  }
  func.func @transform_3(%arg0: i32) -> (i32, i32) {
    %c0_i32 = arith.constant 0 : i32
    %c0_i32_0 = arith.constant 0 : i32
    %c0_i32_1 = arith.constant 0 : i32
    return %c0_i32, %c0_i32_0 : i32, i32
  }
}

module attributes {stable_mosaic.version = 11 : i64} {
  func.func @_matmul_bias_relu_kernel(%arg0: i32, %arg1: memref<56x2304xbf16, #tpu.memory_space<vmem>>, %arg2: memref<2304x256xbf16, #tpu.memory_space<vmem>>, %arg3: memref<1x256xf32, #tpu.memory_space<vmem>>, %arg4: memref<56x256xf32, #tpu.memory_space<vmem>>) attributes {dimension_semantics = [#tpu.dimension_semantics<arbitrary>], iteration_bounds = array<i64: 1>, scalar_prefetch = 0 : i64, scratch_operands = 0 : i64, tpu.core_type = #tpu.core_type<tc>, window_params = [{pipeline_mode = #tpu.pipeline_mode<synchronous>, transform_indices = @transform_0, window_bounds = array<i64: 56, 2304>}, {pipeline_mode = #tpu.pipeline_mode<synchronous>, transform_indices = @transform_1, window_bounds = array<i64: 2304, 256>}, {pipeline_mode = #tpu.pipeline_mode<synchronous>, transform_indices = @transform_2, window_bounds = array<i64: 1, 256>}, {pipeline_mode = #tpu.pipeline_mode<synchronous>, transform_indices = @transform_3, window_bounds = array<i64: 56, 256>}]} {
    %c0 = arith.constant 0 : index
    %c0_0 = arith.constant 0 : index
    %0 = vector.load %arg1[%c0, %c0_0] : memref<56x2304xbf16, #tpu.memory_space<vmem>>, vector<56x2304xbf16>
    %c0_1 = arith.constant 0 : index
    %c0_2 = arith.constant 0 : index
    %1 = vector.load %arg2[%c0_1, %c0_2] : memref<2304x256xbf16, #tpu.memory_space<vmem>>, vector<2304x256xbf16>
    %cst = arith.constant dense<0.000000e+00> : vector<56x256xf32>
    %2 = tpu.matmul %0, %1, %cst {dimension_numbers = #tpu.dot_dimension_numbers<[1], [0], [0], [1], [0, 0, 1, 1], [], []>} : vector<56x2304xbf16>, vector<2304x256xbf16>, vector<56x256xf32> -> vector<56x256xf32>
    %c0_3 = arith.constant 0 : index
    %c0_4 = arith.constant 0 : index
    %3 = vector.load %arg3[%c0_3, %c0_4] : memref<1x256xf32, #tpu.memory_space<vmem>>, vector<1x256xf32>
    %4 = vector.broadcast %3 : vector<1x256xf32> to vector<56x256xf32>
    %5 = arith.addf %2, %4 : vector<56x256xf32>
    %cst_5 = arith.constant 0.000000e+00 : f32
    %6 = vector.broadcast %cst_5 : f32 to vector<56x256xf32>
    %7 = arith.maximumf %5, %6 : vector<56x256xf32>
    %c0_6 = arith.constant 0 : index
    %c0_7 = arith.constant 0 : index
    %8 = vector.load %arg4[%c0_6, %c0_7] : memref<56x256xf32, #tpu.memory_space<vmem>>, vector<56x256xf32>
    tpu.vector_store %arg4[%c0_6, %c0_7], %7 {strides = array<i32>} : memref<56x256xf32, #tpu.memory_space<vmem>>, vector<56x256xf32>,
    return
  }
  func.func @transform_0(%arg0: i32) -> (i32, i32) {
    %c0_i32 = arith.constant 0 : i32
    %c0_i32_0 = arith.constant 0 : i32
    %c0_i32_1 = arith.constant 0 : i32
    return %c0_i32, %c0_i32_0 : i32, i32
  }
  func.func @transform_1(%arg0: i32) -> (i32, i32) {
    %c0_i32 = arith.constant 0 : i32
    %c0_i32_0 = arith.constant 0 : i32
    %c0_i32_1 = arith.constant 0 : i32
    return %c0_i32, %c0_i32_0 : i32, i32
  }
  func.func @transform_2(%arg0: i32) -> (i32, i32) {
    %c0_i32 = arith.constant 0 : i32
    %c0_i32_0 = arith.constant 0 : i32
    %c0_i32_1 = arith.constant 0 : i32
    return %c0_i32, %c0_i32_0 : i32, i32
  }
  func.func @transform_3(%arg0: i32) -> (i32, i32) {
    %c0_i32 = arith.constant 0 : i32
    %c0_i32_0 = arith.constant 0 : i32
    %c0_i32_1 = arith.constant 0 : i32
    return %c0_i32, %c0_i32_0 : i32, i32
  }
}

</mosaic_0001>

<llo_original>
// kernel: _lambda_.5
$region0: #{_lambda_.5}
  #allocation0 [shape = 'u32[]', space=smem, size = 0x4, offset = 0x4, fixed_abs, tag = 'smem constant byte address 0x4 - core index']
  #allocation1 [shape = 'u32[144,128]{1,0:T(1,128)}', space=vmem, size = 0x12000, scoped, tag = 'internal scratch']
  %s0 = inlined_call_operand.vmem [shape: bf16[392,128], index: 0, kind: input, shape index: {}]
  %s1 = inlined_call_operand.vmem [shape: bf16[128,128], index: 1, kind: input, shape index: {}]
  %s2 = inlined_call_operand.vmem [shape: f32[1,128], index: 2, kind: input, shape index: {}]
  %s3 = inlined_call_operand.vmem [shape: f32[392,128], index: 3, kind: output, shape index: {}]
  %s4 = sld [smem:[#allocation0]]
  $region22: #{_lambda_.5} parent=0
    _
  %s6 = ssub.s32 1, %s4
  %s7 = scalar_select 0, %s6, %s4
  // Predicated region
  $region2: #{_lambda_.5} parent=0 // pred_check
    _
  $region3: #{_lambda_.5} parent=0 // pred_check_branch
    %9 = sbr.rel (0) target = $region5
  $region4: #{_lambda_.5} parent=0 // pred_region
    _
  $region5: #{_lambda_.5} parent=0 // pred_fallthru
    _
  // Predicated region
  $region6: #{_lambda_.5} parent=0 // pred_check
    _
  $region7: #{_lambda_.5} parent=0 // pred_check_branch
    %11 = sbr.rel (0) target = $region9
  $region8: #{_lambda_.5} parent=0 // pred_region
    _
  $region9: #{_lambda_.5} parent=0 // pred_fallthru
    _
  // Predicated region
  $region10: #{_lambda_.5} parent=0 // pred_check
    _
  $region11: #{_lambda_.5} parent=0 // pred_check_branch
    %13 = sbr.rel (0) target = $region13
  $region12: #{_lambda_.5} parent=0 // pred_region
    _
  $region13: #{_lambda_.5} parent=0 // pred_fallthru
    _
  %v15 = vld [vmem:[%s0] sm:$0xf]
  %v16 = vld [vmem:[%s0 + $0x4] sm:$0xf]
  %v17 = vld [vmem:[%s0 + $0x8] sm:$0xf]
  %v18 = vld [vmem:[%s0 + $0xc] sm:$0xf]
  %v19 = vld [vmem:[%s0 + $0x10] sm:$0xf]
  %v20 = vld [vmem:[%s0 + $0x14] sm:$0xf]
  %v21 = vld [vmem:[%s0 + $0x18] sm:$0xf]
  %v22 = vld [vmem:[%s0 + $0x1c] sm:$0xf]
  %v23 = vld [vmem:[%s0 + $0x20] sm:$0xf]
  %v24 = vld [vmem:[%s0 + $0x24] sm:$0xf]
  %v25 = vld [vmem:[%s0 + $0x28] sm:$0xf]
  %v26 = vld [vmem:[%s0 + $0x2c] sm:$0xf]
  %v27 = vld [vmem:[%s0 + $0x30] sm:$0xf]
  %v28 = vld [vmem:[%s0 + $0x34] sm:$0xf]
  %v29 = vld [vmem:[%s0 + $0x38] sm:$0xf]
  %v30 = vld [vmem:[%s0 + $0x3c] sm:$0xf]
  %v31 = vld [vmem:[%s0 + $0x40] sm:$0xf]
  %v32 = vld [vmem:[%s0 + $0x44] sm:$0xf]
  %v33 = vld [vmem:[%s0 + $0x48] sm:$0xf]
  %v34 = vld [vmem:[%s0 + $0x4c] sm:$0xf]
  %v35 = vld [vmem:[%s0 + $0x50] sm:$0xf]
  %v36 = vld [vmem:[%s0 + $0x54] sm:$0xf]
  %v37 = vld [vmem:[%s0 + $0x58] sm:$0xf]
  %v38 = vld [vmem:[%s0 + $0x5c] sm:$0xf]
  %v39 = vld [vmem:[%s0 + $0x60] sm:$0xf]
  %v40 = vld [vmem:[%s0 + $0x64] sm:$0xf]
  %v41 = vld [vmem:[%s0 + $0x68] sm:$0xf]
  %v42 = vld [vmem:[%s0 + $0x6c] sm:$0xf]
  %v43 = vld [vmem:[%s0 + $0x70] sm:$0xf]
  %v44 = vld [vmem:[%s0 + $0x74] sm:$0xf]
  %v45 = vld [vmem:[%s0 + $0x78] sm:$0xf]
  %v46 = vld [vmem:[%s0 + $0x7c] sm:$0xf]
  %v47 = vld [vmem:[%s0 + $0x80] sm:$0xf]
  %v48 = vld [vmem:[%s0 + $0x84] sm:$0xf]
  %v49 = vld [vmem:[%s0 + $0x88] sm:$0xf]
  %v50 = vld [vmem:[%s0 + $0x8c] sm:$0xf]
  %v51 = vld [vmem:[%s0 + $0x90] sm:$0xf]
  %v52 = vld [vmem:[%s0 + $0x94] sm:$0xf]
  %v53 = vld [vmem:[%s0 + $0x98] sm:$0xf]
  %v54 = vld [vmem:[%s0 + $0x9c] sm:$0xf]
  %v55 = vld [vmem:[%s0 + $0xa0] sm:$0xf]
  %v56 = vld [vmem:[%s0 + $0xa4] sm:$0xf]
  %v57 = vld [vmem:[%s0 + $0xa8] sm:$0xf]
  %v58 = vld [vmem:[%s0 + $0xac] sm:$0xf]
  %v59 = vld [vmem:[%s0 + $0xb0] sm:$0xf]
  %v60 = vld [vmem:[%s0 + $0xb4] sm:$0xf]
  %v61 = vld [vmem:[%s0 + $0xb8] sm:$0xf]
  %v62 = vld [vmem:[%s0 + $0xbc] sm:$0xf]
  %v63 = vld [vmem:[%s0 + $0xc0] sm:$0xf]
  %v64 = vld [vmem:[%s1] sm:$0xf]
  %v65 = vld [vmem:[%s1 + $0x4] sm:$0xf]
  %v66 = vld [vmem:[%s1 + $0x8] sm:$0xf]
  %v67 = vld [vmem:[%s1 + $0xc] sm:$0xf]
  %v68 = vld [vmem:[%s1 + $0x10] sm:$0xf]
  %v69 = vld [vmem:[%s1 + $0x14] sm:$0xf]
  %v70 = vld [vmem:[%s1 + $0x18] sm:$0xf]
  %v71 = vld [vmem:[%s1 + $0x1c] sm:$0xf]
  %v72 = vld [vmem:[%s1 + $0x20] sm:$0xf]
  %v73 = vld [vmem:[%s1 + $0x24] sm:$0xf]
  %v74 = vld [vmem:[%s1 + $0x28] sm:$0xf]
  %v75 = vld [vmem:[%s1 + $0x2c] sm:$0xf]
  %v76 = vld [vmem:[%s1 + $0x30] sm:$0xf]
  %v77 = vld [vmem:[%s1 + $0x34] sm:$0xf]
  %v78 = vld [vmem:[%s1 + $0x38] sm:$0xf]
  %v79 = vld [vmem:[%s1 + $0x3c] sm:$0xf]
  %v80 = vld [vmem:[%s2] sm:$0x1]
  %v82 = vlaneseq
  %v83 = vshrl.u32 %v82, 7
  %v84 = vsub.s32 0, %v83
  %v85 = vrot.slane %v80, %v84
  %v136 = vunpack.c.l.b16 %v15
  %v137 = vunpack.c.l.b16 %v16
  %v138 = vunpack.c.l.b16 %v17
  %v139 = vunpack.c.l.b16 %v18
  %v140 = vunpack.c.l.b16 %v19
  %v141 = vunpack.c.l.b16 %v20
  %v142 = vunpack.c.l.b16 %v21
  %v143 = vunpack.c.l.b16 %v22
  %v144 = vunpack.c.l.b16 %v23
  %v145 = vunpack.c.l.b16 %v24
  %v146 = vunpack.c.l.b16 %v25
  %v147 = vunpack.c.l.b16 %v26
  %v148 = vunpack.c.l.b16 %v27
  %v149 = vunpack.c.l.b16 %v28
  %v150 = vunpack.c.l.b16 %v29
  %v151 = vunpack.c.l.b16 %v30
  %v152 = vunpack.c.l.b16 %v31
  %v153 = vunpack.c.l.b16 %v32
  %v154 = vunpack.c.l.b16 %v33
  %v155 = vunpack.c.l.b16 %v34
  %v156 = vunpack.c.l.b16 %v35
  %v157 = vunpack.c.l.b16 %v36
  %v158 = vunpack.c.l.b16 %v37
  %v159 = vunpack.c.l.b16 %v38
  %v160 = vunpack.c.l.b16 %v39
  %v161 = vunpack.c.l.b16 %v40
  %v162 = vunpack.c.l.b16 %v41
  %v163 = vunpack.c.l.b16 %v42
  %v164 = vunpack.c.l.b16 %v43
  %v165 = vunpack.c.l.b16 %v44
  %v166 = vunpack.c.l.b16 %v45
  %v167 = vunpack.c.l.b16 %v46
  %v168 = vunpack.c.l.b16 %v47
  %v169 = vunpack.c.l.b16 %v48
  %v170 = vunpack.c.l.b16 %v49
  %v171 = vunpack.c.l.b16 %v50
  %v172 = vunpack.c.l.b16 %v51
  %v173 = vunpack.c.l.b16 %v52
  %v174 = vunpack.c.l.b16 %v53
  %v175 = vunpack.c.l.b16 %v54
  %v176 = vunpack.c.l.b16 %v55
  %v177 = vunpack.c.l.b16 %v56
  %v178 = vunpack.c.l.b16 %v57
  %v179 = vunpack.c.l.b16 %v58
  %v180 = vunpack.c.l.b16 %v59
  %v181 = vunpack.c.l.b16 %v60
  %v182 = vunpack.c.l.b16 %v61
  %v183 = vunpack.c.l.b16 %v62
  %v184 = vunpack.c.l.b16 %v63
  %v185 = vpack.c.b16 %v137, %v136
  %v186 = vpack.c.b16 %v139, %v138
  %v187 = vpack.c.b16 %v141, %v140
  %v188 = vpack.c.b16 %v143, %v142
  %v189 = vpack.c.b16 %v145, %v144
  %v190 = vpack.c.b16 %v147, %v146
  %v191 = vpack.c.b16 %v149, %v148
  %v192 = vpack.c.b16 %v151, %v150
  %v193 = vpack.c.b16 %v153, %v152
  %v194 = vpack.c.b16 %v155, %v154
  %v195 = vpack.c.b16 %v157, %v156
  %v196 = vpack.c.b16 %v159, %v158
  %v197 = vpack.c.b16 %v161, %v160
  %v198 = vpack.c.b16 %v163, %v162
  %v199 = vpack.c.b16 %v165, %v164
  %v200 = vpack.c.b16 %v167, %v166
  %v201 = vpack.c.b16 %v169, %v168
  %v202 = vpack.c.b16 %v171, %v170
  %v203 = vpack.c.b16 %v173, %v172
  %v204 = vpack.c.b16 %v175, %v174
  %v205 = vpack.c.b16 %v177, %v176
  %v206 = vpack.c.b16 %v179, %v178
  %v207 = vpack.c.b16 %v181, %v180
  %v208 = vpack.c.b16 %v183, %v182
  %v209 = vpack.c.b16 %v184, %v184
  %v251 = vunpack.c.l.b16 %v64
  %v252 = vunpack.c.l.b16 %v65
  %v253 = vunpack.c.l.b16 %v66
  %v254 = vunpack.c.l.b16 %v67
  %v255 = vunpack.c.l.b16 %v68
  %v256 = vunpack.c.l.b16 %v69
  %v257 = vunpack.c.l.b16 %v70
  %v258 = vunpack.c.l.b16 %v71
  %v259 = vunpack.c.l.b16 %v72
  %v260 = vunpack.c.l.b16 %v73
  %v261 = vunpack.c.l.b16 %v74
  %v262 = vunpack.c.l.b16 %v75
  %v263 = vunpack.c.l.b16 %v76
  %v264 = vunpack.c.l.b16 %v77
  %v265 = vunpack.c.l.b16 %v78
  %v266 = vunpack.c.l.b16 %v79
  %v267 = vpack.c.b16 %v252, %v251
  %v268 = vpack.c.b16 %v254, %v253
  %v269 = vpack.c.b16 %v256, %v255
  %v270 = vpack.c.b16 %v258, %v257
  %v271 = vpack.c.b16 %v260, %v259
  %v272 = vpack.c.b16 %v262, %v261
  %v273 = vpack.c.b16 %v264, %v263
  %v274 = vpack.c.b16 %v266, %v265
  %283 = vmatprep.subr.bf16.mxu0 0
  %284 = vmatpush1.bf16.msra.mxu0 %v274
  %285 = vmatprep.subr.bf16.mxu0 0
  %286 = vmatpush1.bf16.msra.mxu0 %v273
  %287 = vmatprep.subr.bf16.mxu0 0
  %288 = vmatpush1.bf16.msra.mxu0 %v272
  %289 = vmatprep.subr.bf16.mxu0 0
  %290 = vmatpush1.bf16.msra.mxu0 %v271
  %291 = vmatprep.subr.bf16.mxu0 0
  %292 = vmatpush1.bf16.msra.mxu0 %v270
  %293 = vmatprep.subr.bf16.mxu0 0
  %294 = vmatpush1.bf16.msra.mxu0 %v269
  %295 = vmatprep.subr.bf16.mxu0 0
  %296 = vmatpush1.bf16.msra.mxu0 %v268
  %297 = vmatprep.subr.bf16.mxu0 0
  %298 = vmatpush1.bf16.msra.mxu0 %v267
  %299 = vmatprep.subr.bf16.mxu0 0
  %300 = vmatpush2.bf16.msra.mxu0 0
  %301 = vmatprep.subr.bf16.mxu0 0
  %302 = vmatpush2.bf16.msra.mxu0 0
  %303 = vmatprep.subr.bf16.mxu0 0
  %304 = vmatpush2.bf16.msra.mxu0 0
  %305 = vmatprep.subr.bf16.mxu0 0
  %306 = vmatpush2.bf16.msra.mxu0 0
  %307 = vmatprep.subr.bf16.mxu0 0
  %308 = vmatpush2.bf16.msra.mxu0 0
  %309 = vmatprep.subr.bf16.mxu0 0
  %310 = vmatpush2.bf16.msra.mxu0 0
  %311 = vmatprep.subr.bf16.mxu0 0
  %312 = vmatpush2.bf16.msra.mxu0 0
  %313 = vmatprep.subr.bf16.mxu0 0
  %314 = vmatpush2.bf16.msra.mxu0 0
  %315 = vmatprep.mubr.bf16.mxu0 0
  %316 = vmatmul.mubr.bf16.gmra.mxu0 %v185
  %v317 = vpop.f32.mrf.mxu0
  %v318 = vadd.f32 %v85, %v317
  %v319 = vpop.f32.mrf.mxu0
  %v320 = vpop.f32.mrf.mxu0
  %v321 = vadd.f32 %v85, %v320
  %v322 = vpop.f32.mrf.mxu0
  %323 = vmatprep.mubr.bf16.mxu0 0
  %324 = vmatmul.mubr.bf16.gmra.mxu0 %v186
  %v325 = vpop.f32.mrf.mxu0
  %v326 = vadd.f32 %v85, %v325
  %v327 = vpop.f32.mrf.mxu0
  %v328 = vpop.f32.mrf.mxu0
  %v329 = vadd.f32 %v85, %v328
  %v330 = vpop.f32.mrf.mxu0
  %331 = vmatprep.mubr.bf16.mxu0 0
  %332 = vmatmul.mubr.bf16.gmra.mxu0 %v187
  %v333 = vpop.f32.mrf.mxu0
  %v334 = vadd.f32 %v85, %v333
  %v335 = vpop.f32.mrf.mxu0
  %v336 = vpop.f32.mrf.mxu0
  %v337 = vadd.f32 %v85, %v336
  %v338 = vpop.f32.mrf.mxu0
  %339 = vmatprep.mubr.bf16.mxu0 0
  %340 = vmatmul.mubr.bf16.gmra.mxu0 %v188
  %v341 = vpop.f32.mrf.mxu0
  %v342 = vadd.f32 %v85, %v341
  %v343 = vpop.f32.mrf.mxu0
  %v344 = vpop.f32.mrf.mxu0
  %v345 = vadd.f32 %v85, %v344
  %v346 = vpop.f32.mrf.mxu0
  %347 = vmatprep.mubr.bf16.mxu0 0
  %348 = vmatmul.mubr.bf16.gmra.mxu0 %v189
  %v349 = vpop.f32.mrf.mxu0
  %v350 = vadd.f32 %v85, %v349
  %v351 = vpop.f32.mrf.mxu0
  %v352 = vpop.f32.mrf.mxu0
  %v353 = vadd.f32 %v85, %v352
  %v354 = vpop.f32.mrf.mxu0
  %355 = vmatprep.mubr.bf16.mxu0 0
  %356 = vmatmul.mubr.bf16.gmra.mxu0 %v190
  %v357 = vpop.f32.mrf.mxu0
  %v358 = vadd.f32 %v85, %v357
  %v359 = vpop.f32.mrf.mxu0
  %v360 = vpop.f32.mrf.mxu0
  %v361 = vadd.f32 %v85, %v360
  %v362 = vpop.f32.mrf.mxu0
  %363 = vmatprep.mubr.bf16.mxu0 0
  %364 = vmatmul.mubr.bf16.gmra.mxu0 %v191
  %v365 = vpop.f32.mrf.mxu0
  %v366 = vadd.f32 %v85, %v365
  %v367 = vpop.f32.mrf.mxu0
  %v368 = vpop.f32.mrf.mxu0
  %v369 = vadd.f32 %v85, %v368
  %v370 = vpop.f32.mrf.mxu0
  %371 = vmatprep.mubr.bf16.mxu0 0
  %372 = vmatmul.mubr.bf16.gmra.mxu0 %v192
  %v373 = vpop.f32.mrf.mxu0
  %v374 = vadd.f32 %v85, %v373
  %v375 = vpop.f32.mrf.mxu0
  %v376 = vpop.f32.mrf.mxu0
  %v377 = vadd.f32 %v85, %v376
  %v378 = vpop.f32.mrf.mxu0
  %379 = vmatprep.mubr.bf16.mxu0 0
  %380 = vmatmul.mubr.bf16.gmra.mxu0 %v193
  %v381 = vpop.f32.mrf.mxu0
  %v382 = vadd.f32 %v85, %v381
  %v383 = vpop.f32.mrf.mxu0
  %v384 = vpop.f32.mrf.mxu0
  %v385 = vadd.f32 %v85, %v384
  %v386 = vpop.f32.mrf.mxu0
  %387 = vmatprep.mubr.bf16.mxu0 0
  %388 = vmatmul.mubr.bf16.gmra.mxu0 %v194
  %v389 = vpop.f32.mrf.mxu0
  %v390 = vadd.f32 %v85, %v389
  %v391 = vpop.f32.mrf.mxu0
  %v392 = vpop.f32.mrf.mxu0
  %v393 = vadd.f32 %v85, %v392
  %v394 = vpop.f32.mrf.mxu0
  %395 = vmatprep.mubr.bf16.mxu0 0
  %396 = vmatmul.mubr.bf16.gmra.mxu0 %v195
  %v397 = vpop.f32.mrf.mxu0
  %v398 = vadd.f32 %v85, %v397
  %v399 = vpop.f32.mrf.mxu0
  %v400 = vpop.f32.mrf.mxu0
  %v401 = vadd.f32 %v85, %v400
  %v402 = vpop.f32.mrf.mxu0
  %403 = vmatprep.mubr.bf16.mxu0 0
  %404 = vmatmul.mubr.bf16.gmra.mxu0 %v196
  %v405 = vpop.f32.mrf.mxu0
  %v406 = vadd.f32 %v85, %v405
  %v407 = vpop.f32.mrf.mxu0
  %v408 = vpop.f32.mrf.mxu0
  %v409 = vadd.f32 %v85, %v408
  %v410 = vpop.f32.mrf.mxu0
  %411 = vmatprep.mubr.bf16.mxu0 0
  %412 = vmatmul.mubr.bf16.gmra.mxu0 %v197
  %v413 = vpop.f32.mrf.mxu0
  %v414 = vadd.f32 %v85, %v413
  %v415 = vpop.f32.mrf.mxu0
  %v416 = vpop.f32.mrf.mxu0
  %v417 = vadd.f32 %v85, %v416
  %v418 = vpop.f32.mrf.mxu0
  %419 = vmatprep.mubr.bf16.mxu0 0
  %420 = vmatmul.mubr.bf16.gmra.mxu0 %v198
  %v421 = vpop.f32.mrf.mxu0
  %v422 = vadd.f32 %v85, %v421
  %v423 = vpop.f32.mrf.mxu0
  %v424 = vpop.f32.mrf.mxu0
  %v425 = vadd.f32 %v85, %v424
  %v426 = vpop.f32.mrf.mxu0
  %427 = vmatprep.mubr.bf16.mxu0 0
  %428 = vmatmul.mubr.bf16.gmra.mxu0 %v199
  %v429 = vpop.f32.mrf.mxu0
  %v430 = vadd.f32 %v85, %v429
  %v431 = vpop.f32.mrf.mxu0
  %v432 = vpop.f32.mrf.mxu0
  %v433 = vadd.f32 %v85, %v432
  %v434 = vpop.f32.mrf.mxu0
  %435 = vmatprep.mubr.bf16.mxu0 0
  %436 = vmatmul.mubr.bf16.gmra.mxu0 %v200
  %v437 = vpop.f32.mrf.mxu0
  %v438 = vadd.f32 %v85, %v437
  %v439 = vpop.f32.mrf.mxu0
  %v440 = vpop.f32.mrf.mxu0
  %v441 = vadd.f32 %v85, %v440
  %v442 = vpop.f32.mrf.mxu0
  %443 = vmatprep.mubr.bf16.mxu0 0
  %444 = vmatmul.mubr.bf16.gmra.mxu0 %v201
  %v445 = vpop.f32.mrf.mxu0
  %v446 = vadd.f32 %v85, %v445
  %v447 = vpop.f32.mrf.mxu0
  %v448 = vpop.f32.mrf.mxu0
  %v449 = vadd.f32 %v85, %v448
  %v450 = vpop.f32.mrf.mxu0
  %451 = vmatprep.mubr.bf16.mxu0 0
  %452 = vmatmul.mubr.bf16.gmra.mxu0 %v202
  %v453 = vpop.f32.mrf.mxu0
  %v454 = vadd.f32 %v85, %v453
  %v455 = vpop.f32.mrf.mxu0
  %v456 = vpop.f32.mrf.mxu0
  %v457 = vadd.f32 %v85, %v456
  %v458 = vpop.f32.mrf.mxu0
  %459 = vmatprep.mubr.bf16.mxu0 0
  %460 = vmatmul.mubr.bf16.gmra.mxu0 %v203
  %v461 = vpop.f32.mrf.mxu0
  %v462 = vadd.f32 %v85, %v461
  %v463 = vpop.f32.mrf.mxu0
  %v464 = vpop.f32.mrf.mxu0
  %v465 = vadd.f32 %v85, %v464
  %v466 = vpop.f32.mrf.mxu0
  %467 = vmatprep.mubr.bf16.mxu0 0
  %468 = vmatmul.mubr.bf16.gmra.mxu0 %v204
  %v469 = vpop.f32.mrf.mxu0
  %v470 = vadd.f32 %v85, %v469
  %v471 = vpop.f32.mrf.mxu0
  %v472 = vpop.f32.mrf.mxu0
  %v473 = vadd.f32 %v85, %v472
  %v474 = vpop.f32.mrf.mxu0
  %475 = vmatprep.mubr.bf16.mxu0 0
  %476 = vmatmul.mubr.bf16.gmra.mxu0 %v205
  %v477 = vpop.f32.mrf.mxu0
  %v478 = vadd.f32 %v85, %v477
  %v479 = vpop.f32.mrf.mxu0
  %v480 = vpop.f32.mrf.mxu0
  %v481 = vadd.f32 %v85, %v480
  %v482 = vpop.f32.mrf.mxu0
  %483 = vmatprep.mubr.bf16.mxu0 0
  %484 = vmatmul.mubr.bf16.gmra.mxu0 %v206
  %v485 = vpop.f32.mrf.mxu0
  %v486 = vadd.f32 %v85, %v485
  %v487 = vpop.f32.mrf.mxu0
  %v488 = vpop.f32.mrf.mxu0
  %v489 = vadd.f32 %v85, %v488
  %v490 = vpop.f32.mrf.mxu0
  %491 = vmatprep.mubr.bf16.mxu0 0
  %492 = vmatmul.mubr.bf16.gmra.mxu0 %v207
  %v493 = vpop.f32.mrf.mxu0
  %v494 = vadd.f32 %v85, %v493
  %v495 = vpop.f32.mrf.mxu0
  %v496 = vpop.f32.mrf.mxu0
  %v497 = vadd.f32 %v85, %v496
  %v498 = vpop.f32.mrf.mxu0
  %499 = vmatprep.mubr.bf16.mxu0 0
  %500 = vmatmul.mubr.bf16.gmra.mxu0 %v208
  %v501 = vpop.f32.mrf.mxu0
  %v502 = vadd.f32 %v85, %v501
  %v503 = vpop.f32.mrf.mxu0
  %v504 = vpop.f32.mrf.mxu0
  %v505 = vadd.f32 %v85, %v504
  %v506 = vpop.f32.mrf.mxu0
  %507 = vmatprep.mubr.bf16.mxu0 0
  %508 = vmatmul.mubr.bf16.gmra.mxu0 %v209
  %v509 = vpop.f32.mrf.mxu0
  %v510 = vadd.f32 %v85, %v509
  %v511 = vpop.f32.mrf.mxu0
  %v512 = vpop.f32.mrf.mxu0
  %v513 = vpop.f32.mrf.mxu0
  %514 = vdwg.mxu0
  %v515 = vmax.f32 %v318, 0.0
  %v516 = vmax.f32 %v321, 0.0
  %v517 = vmax.f32 %v326, 0.0
  %v518 = vmax.f32 %v329, 0.0
  %v519 = vmax.f32 %v334, 0.0
  %v520 = vmax.f32 %v337, 0.0
  %v521 = vmax.f32 %v342, 0.0
  %v522 = vmax.f32 %v345, 0.0
  %v523 = vmax.f32 %v350, 0.0
  %v524 = vmax.f32 %v353, 0.0
  %v525 = vmax.f32 %v358, 0.0
  %v526 = vmax.f32 %v361, 0.0
  %v527 = vmax.f32 %v366, 0.0
  %v528 = vmax.f32 %v369, 0.0
  %v529 = vmax.f32 %v374, 0.0
  %v530 = vmax.f32 %v377, 0.0
  %v531 = vmax.f32 %v382, 0.0
  %v532 = vmax.f32 %v385, 0.0
  %v533 = vmax.f32 %v390, 0.0
  %v534 = vmax.f32 %v393, 0.0
  %v535 = vmax.f32 %v398, 0.0
  %v536 = vmax.f32 %v401, 0.0
  %v537 = vmax.f32 %v406, 0.0
  %v538 = vmax.f32 %v409, 0.0
  %v539 = vmax.f32 %v414, 0.0
  %v540 = vmax.f32 %v417, 0.0
  %v541 = vmax.f32 %v422, 0.0
  %v542 = vmax.f32 %v425, 0.0
  %v543 = vmax.f32 %v430, 0.0
  %v544 = vmax.f32 %v433, 0.0
  %v545 = vmax.f32 %v438, 0.0
  %v546 = vmax.f32 %v441, 0.0
  %v547 = vmax.f32 %v446, 0.0
  %v548 = vmax.f32 %v449, 0.0
  %v549 = vmax.f32 %v454, 0.0
  %v550 = vmax.f32 %v457, 0.0
  %v551 = vmax.f32 %v462, 0.0
  %v552 = vmax.f32 %v465, 0.0
  %v553 = vmax.f32 %v470, 0.0
  %v554 = vmax.f32 %v473, 0.0
  %v555 = vmax.f32 %v478, 0.0
  %v556 = vmax.f32 %v481, 0.0
  %v557 = vmax.f32 %v486, 0.0
  %v558 = vmax.f32 %v489, 0.0
  %v559 = vmax.f32 %v494, 0.0
  %v560 = vmax.f32 %v497, 0.0
  %v561 = vmax.f32 %v502, 0.0
  %v562 = vmax.f32 %v505, 0.0
  %v563 = vmax.f32 %v510, 0.0
  %564 = vst [vmem:[%s3] sm:$0xff] %v515
  %565 = vst [vmem:[%s3 + $0x8] sm:$0xff] %v516
  %566 = vst [vmem:[%s3 + $0x10] sm:$0xff] %v517
  %567 = vst [vmem:[%s3 + $0x18] sm:$0xff] %v518
  %568 = vst [vmem:[%s3 + $0x20] sm:$0xff] %v519
  %569 = vst [vmem:[%s3 + $0x28] sm:$0xff] %v520
  %570 = vst [vmem:[%s3 + $0x30] sm:$0xff] %v521
  %571 = vst [vmem:[%s3 + $0x38] sm:$0xff] %v522
  %572 = vst [vmem:[%s3 + $0x40] sm:$0xff] %v523
  %573 = vst [vmem:[%s3 + $0x48] sm:$0xff] %v524
  %574 = vst [vmem:[%s3 + $0x50] sm:$0xff] %v525
  %575 = vst [vmem:[%s3 + $0x58] sm:$0xff] %v526
  %576 = vst [vmem:[%s3 + $0x60] sm:$0xff] %v527
  %577 = vst [vmem:[%s3 + $0x68] sm:$0xff] %v528
  %578 = vst [vmem:[%s3 + $0x70] sm:$0xff] %v529
  %579 = vst [vmem:[%s3 + $0x78] sm:$0xff] %v530
  %580 = vst [vmem:[%s3 + $0x80] sm:$0xff] %v531
  %581 = vst [vmem:[%s3 + $0x88] sm:$0xff] %v532
  %582 = vst [vmem:[%s3 + $0x90] sm:$0xff] %v533
  %583 = vst [vmem:[%s3 + $0x98] sm:$0xff] %v534
  %584 = vst [vmem:[%s3 + $0xa0] sm:$0xff] %v535
  %585 = vst [vmem:[%s3 + $0xa8] sm:$0xff] %v536
  %586 = vst [vmem:[%s3 + $0xb0] sm:$0xff] %v537
  %587 = vst [vmem:[%s3 + $0xb8] sm:$0xff] %v538
  %588 = vst [vmem:[%s3 + $0xc0] sm:$0xff] %v539
  %589 = vst [vmem:[%s3 + $0xc8] sm:$0xff] %v540
  %590 = vst [vmem:[%s3 + $0xd0] sm:$0xff] %v541
  %591 = vst [vmem:[%s3 + $0xd8] sm:$0xff] %v542
  %592 = vst [vmem:[%s3 + $0xe0] sm:$0xff] %v543
  %593 = vst [vmem:[%s3 + $0xe8] sm:$0xff] %v544
  %594 = vst [vmem:[%s3 + $0xf0] sm:$0xff] %v545
  %595 = vst [vmem:[%s3 + $0xf8] sm:$0xff] %v546
  %596 = vst [vmem:[%s3 + $0x100] sm:$0xff] %v547
  %597 = vst [vmem:[%s3 + $0x108] sm:$0xff] %v548
  %598 = vst [vmem:[%s3 + $0x110] sm:$0xff] %v549
  %599 = vst [vmem:[%s3 + $0x118] sm:$0xff] %v550
  %600 = vst [vmem:[%s3 + $0x120] sm:$0xff] %v551
  %601 = vst [vmem:[%s3 + $0x128] sm:$0xff] %v552
  %602 = vst [vmem:[%s3 + $0x130] sm:$0xff] %v553
  %603 = vst [vmem:[%s3 + $0x138] sm:$0xff] %v554
  %604 = vst [vmem:[%s3 + $0x140] sm:$0xff] %v555
  %605 = vst [vmem:[%s3 + $0x148] sm:$0xff] %v556
  %606 = vst [vmem:[%s3 + $0x150] sm:$0xff] %v557
  %607 = vst [vmem:[%s3 + $0x158] sm:$0xff] %v558
  %608 = vst [vmem:[%s3 + $0x160] sm:$0xff] %v559
  %609 = vst [vmem:[%s3 + $0x168] sm:$0xff] %v560
  %610 = vst [vmem:[%s3 + $0x170] sm:$0xff] %v561
  %611 = vst [vmem:[%s3 + $0x178] sm:$0xff] %v562
  %612 = vst [vmem:[%s3 + $0x180] sm:$0xff] %v563
  // Predicated region
  $region14: #{_lambda_.5} parent=0 // pred_check
    _
  $region15: #{_lambda_.5} parent=0 // pred_check_branch
    %614 = sbr.rel (0) target = $region17
  $region16: #{_lambda_.5} parent=0 // pred_region
    _
  $region17: #{_lambda_.5} parent=0 // pred_fallthru
    _
  // Predicated region
  $region18: #{_lambda_.5} parent=0 // pred_check
    _
  $region19: #{_lambda_.5} parent=0 // pred_check_branch
    %616 = sbr.rel (0) target = $region21
  $region20: #{_lambda_.5} parent=0 // pred_region
    _
  $region21: #{_lambda_.5} parent=0 // pred_fallthru
    _

// kernel: _lambda_.6
$region0: #{_lambda_.6}
  #allocation0 [shape = 'u32[]', space=smem, size = 0x4, offset = 0x4, fixed_abs, tag = 'smem constant byte address 0x4 - core index']
  #allocation1 [shape = 'u32[144,128]{1,0:T(1,128)}', space=vmem, size = 0x12000, scoped, tag = 'internal scratch']
  %s0 = inlined_call_operand.vmem [shape: bf16[392,1152], index: 0, kind: input, shape index: {}]
  %s1 = inlined_call_operand.vmem [shape: bf16[1152,128], index: 1, kind: input, shape index: {}]
  %s2 = inlined_call_operand.vmem [shape: f32[1,128], index: 2, kind: input, shape index: {}]
  %s3 = inlined_call_operand.vmem [shape: f32[392,128], index: 3, kind: output, shape index: {}]
  %s4 = sld [smem:[#allocation0]]
  $region22: #{_lambda_.6} parent=0
    _
  %s6 = ssub.s32 1, %s4
  %s7 = scalar_select 0, %s6, %s4
  // Predicated region
  $region2: #{_lambda_.6} parent=0 // pred_check
    _
  $region3: #{_lambda_.6} parent=0 // pred_check_branch
    %9 = sbr.rel (0) target = $region5
  $region4: #{_lambda_.6} parent=0 // pred_region
    _
  $region5: #{_lambda_.6} parent=0 // pred_fallthru
    _
  // Predicated region
  $region6: #{_lambda_.6} parent=0 // pred_check
    _
  $region7: #{_lambda_.6} parent=0 // pred_check_branch
    %11 = sbr.rel (0) target = $region9
  $region8: #{_lambda_.6} parent=0 // pred_region
    _
  $region9: #{_lambda_.6} parent=0 // pred_fallthru
    _
  // Predicated region
  $region10: #{_lambda_.6} parent=0 // pred_check
    _
  $region11: #{_lambda_.6} parent=0 // pred_check_branch
    %13 = sbr.rel (0) target = $region13
  $region12: #{_lambda_.6} parent=0 // pred_region
    _
  $region13: #{_lambda_.6} parent=0 // pred_fallthru
    _
  %v15 = vld [vmem:[%s0] sm:$0xff]
  %v16 = vld [vmem:[%s0 + $0x8] sm:$0xff]
  %v17 = vld [vmem:[%s0 + $0x10] sm:$0xff]
  %v18 = vld [vmem:[%s0 + $0x18] sm:$0xff]
  %v19 = vld [vmem:[%s0 + $0x20] sm:$0xf]
  %v20 = vld [vmem:[%s0 + $0x24] sm:$0xff]
  %v21 = vld [vmem:[%s0 + $0x2c] sm:$0xff]
  %v22 = vld [vmem:[%s0 + $0x34] sm:$0xff]
  %v23 = vld [vmem:[%s0 + $0x3c] sm:$0xff]
  %v24 = vld [vmem:[%s0 + $0x44] sm:$0xf]
  %v25 = vld [vmem:[%s0 + $0x48] sm:$0xff]
  %v26 = vld [vmem:[%s0 + $0x50] sm:$0xff]
  %v27 = vld [vmem:[%s0 + $0x58] sm:$0xff]
  %v28 = vld [vmem:[%s0 + $0x60] sm:$0xff]
  %v29 = vld [vmem:[%s0 + $0x68] sm:$0xf]
  %v30 = vld [vmem:[%s0 + $0x6c] sm:$0xff]
  %v31 = vld [vmem:[%s0 + $0x74] sm:$0xff]
  %v32 = vld [vmem:[%s0 + $0x7c] sm:$0xff]
  %v33 = vld [vmem:[%s0 + $0x84] sm:$0xff]
  %v34 = vld [vmem:[%s0 + $0x8c] sm:$0xf]
  %v35 = vld [vmem:[%s0 + $0x90] sm:$0xff]
  %v36 = vld [vmem:[%s0 + $0x98] sm:$0xff]
  %v37 = vld [vmem:[%s0 + $0xa0] sm:$0xff]
  %v38 = vld [vmem:[%s0 + $0xa8] sm:$0xff]
  %v39 = vld [vmem:[%s0 + $0xb0] sm:$0xf]
  %v40 = vld [vmem:[%s0 + $0xb4] sm:$0xff]
  %v41 = vld [vmem:[%s0 + $0xbc] sm:$0xff]
  %v42 = vld [vmem:[%s0 + $0xc4] sm:$0xff]
  %v43 = vld [vmem:[%s0 + $0xcc] sm:$0xff]
  %v44 = vld [vmem:[%s0 + $0xd4] sm:$0xf]
  %v45 = vld [vmem:[%s0 + $0xd8] sm:$0xff]
  %v46 = vld [vmem:[%s0 + $0xe0] sm:$0xff]
  %v47 = vld [vmem:[%s0 + $0xe8] sm:$0xff]
  %v48 = vld [vmem:[%s0 + $0xf0] sm:$0xff]
  %v49 = vld [vmem:[%s0 + $0xf8] sm:$0xf]
  %v50 = vld [vmem:[%s0 + $0xfc] sm:$0xff]
  %v51 = vld [vmem:[%s0 + $0x104] sm:$0xff]
  %v52 = vld [vmem:[%s0 + $0x10c] sm:$0xff]
  %v53 = vld [vmem:[%s0 + $0x114] sm:$0xff]
  %v54 = vld [vmem:[%s0 + $0x11c] sm:$0xf]
  %v55 = vld [vmem:[%s0 + $0x120] sm:$0xff]
  %v56 = vld [vmem:[%s0 + $0x128] sm:$0xff]
  %v57 = vld [vmem:[%s0 + $0x130] sm:$0xff]
  %v58 = vld [vmem:[%s0 + $0x138] sm:$0xff]
  %v59 = vld [vmem:[%s0 + $0x140] sm:$0xf]
  %v60 = vld [vmem:[%s0 + $0x144] sm:$0xff]
  %v61 = vld [vmem:[%s0 + $0x14c] sm:$0xff]
  %v62 = vld [vmem:[%s0 + $0x154] sm:$0xff]
  %v63 = vld [vmem:[%s0 + $0x15c] sm:$0xff]
  %v64 = vld [vmem:[%s0 + $0x164] sm:$0xf]
  %v65 = vld [vmem:[%s0 + $0x168] sm:$0xff]
  %v66 = vld [vmem:[%s0 + $0x170] sm:$0xff]
  %v67 = vld [vmem:[%s0 + $0x178] sm:$0xff]
  %v68 = vld [vmem:[%s0 + $0x180] sm:$0xff]
  %v69 = vld [vmem:[%s0 + $0x188] sm:$0xf]
  %v70 = vld [vmem:[%s0 + $0x18c] sm:$0xff]
  %v71 = vld [vmem:[%s0 + $0x194] sm:$0xff]
  %v72 = vld [vmem:[%s0 + $0x19c] sm:$0xff]
  %v73 = vld [vmem:[%s0 + $0x1a4] sm:$0xff]
  %v74 = vld [vmem:[%s0 + $0x1ac] sm:$0xf]
  %v75 = vld [vmem:[%s0 + $0x1b0] sm:$0xff]
  %v76 = vld [vmem:[%s0 + $0x1b8] sm:$0xff]
  %v77 = vld [vmem:[%s0 + $0x1c0] sm:$0xff]
  %v78 = vld [vmem:[%s0 + $0x1c8] sm:$0xff]
  %v79 = vld [vmem:[%s0 + $0x1d0] sm:$0xf]
  %v80 = vld [vmem:[%s0 + $0x1d4] sm:$0xff]
  %v81 = vld [vmem:[%s0 + $0x1dc] sm:$0xff]
  %v82 = vld [vmem:[%s0 + $0x1e4] sm:$0xff]
  %v83 = vld [vmem:[%s0 + $0x1ec] sm:$0xff]
  %v84 = vld [vmem:[%s0 + $0x1f4] sm:$0xf]
  %v85 = vld [vmem:[%s0 + $0x1f8] sm:$0xff]
  %v86 = vld [vmem:[%s0 + $0x200] sm:$0xff]
  %v87 = vld [vmem:[%s0 + $0x208] sm:$0xff]
  %v88 = vld [vmem:[%s0 + $0x210] sm:$0xff]
  %v89 = vld [vmem:[%s0 + $0x218] sm:$0xf]
  %v90 = vld [vmem:[%s0 + $0x21c] sm:$0xff]
  %v91 = vld [vmem:[%s0 + $0x224] sm:$0xff]
  %v92 = vld [vmem:[%s0 + $0x22c] sm:$0xff]
  %v93 = vld [vmem:[%s0 + $0x234] sm:$0xff]
  %v94 = vld [vmem:[%s0 + $0x23c] sm:$0xf]
  %v95 = vld [vmem:[%s0 + $0x240] sm:$0xff]
  %v96 = vld [vmem:[%s0 + $0x248] sm:$0xff]
  %v97 = vld [vmem:[%s0 + $0x250] sm:$0xff]
  %v98 = vld [vmem:[%s0 + $0x258] sm:$0xff]
  %v99 = vld [vmem:[%s0 + $0x260] sm:$0xf]
  %v100 = vld [vmem:[%s0 + $0x264] sm:$0xff]
  %v101 = vld [vmem:[%s0 + $0x26c] sm:$0xff]
  %v102 = vld [vmem:[%s0 + $0x274] sm:$0xff]
  %v103 = vld [vmem:[%s0 + $0x27c] sm:$0xff]
  %v104 = vld [vmem:[%s0 + $0x284] sm:$0xf]
  %v105 = vld [vmem:[%s0 + $0x288] sm:$0xff]
  %v106 = vld [vmem:[%s0 + $0x290] sm:$0xff]
  %v107 = vld [vmem:[%s0 + $0x298] sm:$0xff]
  %v108 = vld [vmem:[%s0 + $0x2a0] sm:$0xff]
  %v109 = vld [vmem:[%s0 + $0x2a8] sm:$0xf]
  %v110 = vld [vmem:[%s0 + $0x2ac] sm:$0xff]
  %v111 = vld [vmem:[%s0 + $0x2b4] sm:$0xff]
  %v112 = vld [vmem:[%s0 + $0x2bc] sm:$0xff]
  %v113 = vld [vmem:[%s0 + $0x2c4] sm:$0xff]
  %v114 = vld [vmem:[%s0 + $0x2cc] sm:$0xf]
  %v115 = vld [vmem:[%s0 + $0x2d0] sm:$0xff]
  %v116 = vld [vmem:[%s0 + $0x2d8] sm:$0xff]
  %v117 = vld [vmem:[%s0 + $0x2e0] sm:$0xff]
  %v118 = vld [vmem:[%s0 + $0x2e8] sm:$0xff]
  %v119 = vld [vmem:[%s0 + $0x2f0] sm:$0xf]
  %v120 = vld [vmem:[%s0 + $0x2f4] sm:$0xff]
  %v121 = vld [vmem:[%s0 + $0x2fc] sm:$0xff]
  %v122 = vld [vmem:[%s0 + $0x304] sm:$0xff]
  %v123 = vld [vmem:[%s0 + $0x30c] sm:$0xff]
  %v124 = vld [vmem:[%s0 + $0x314] sm:$0xf]
  %v125 = vld [vmem:[%s0 + $0x318] sm:$0xff]
  %v126 = vld [vmem:[%s0 + $0x320] sm:$0xff]
  %v127 = vld [vmem:[%s0 + $0x328] sm:$0xff]
  %v128 = vld [vmem:[%s0 + $0x330] sm:$0xff]
  %v129 = vld [vmem:[%s0 + $0x338] sm:$0xf]
  %v130 = vld [vmem:[%s0 + $0x33c] sm:$0xff]
  %v131 = vld [vmem:[%s0 + $0x344] sm:$0xff]
  %v132 = vld [vmem:[%s0 + $0x34c] sm:$0xff]
  %v133 = vld [vmem:[%s0 + $0x354] sm:$0xff]
  %v134 = vld [vmem:[%s0 + $0x35c] sm:$0xf]
  %v135 = vld [vmem:[%s0 + $0x360] sm:$0xff]
  %v136 = vld [vmem:[%s0 + $0x368] sm:$0xff]
  %v137 = vld [vmem:[%s0 + $0x370] sm:$0xff]
  %v138 = vld [vmem:[%s0 + $0x378] sm:$0xff]
  %v139 = vld [vmem:[%s0 + $0x380] sm:$0xf]
  %v140 = vld [vmem:[%s0 + $0x384] sm:$0xff]
  %v141 = vld [vmem:[%s0 + $0x38c] sm:$0xff]
  %v142 = vld [vmem:[%s0 + $0x394] sm:$0xff]
  %v143 = vld [vmem:[%s0 + $0x39c] sm:$0xff]
  %v144 = vld [vmem:[%s0 + $0x3a4] sm:$0xf]
  %v145 = vld [vmem:[%s0 + $0x3a8] sm:$0xff]
  %v146 = vld [vmem:[%s0 + $0x3b0] sm:$0xff]
  %v147 = vld [vmem:[%s0 + $0x3b8] sm:$0xff]
  %v148 = vld [vmem:[%s0 + $0x3c0] sm:$0xff]
  %v149 = vld [vmem:[%s0 + $0x3c8] sm:$0xf]
  %v150 = vld [vmem:[%s0 + $0x3cc] sm:$0xff]
  %v151 = vld [vmem:[%s0 + $0x3d4] sm:$0xff]
  %v152 = vld [vmem:[%s0 + $0x3dc] sm:$0xff]
  %v153 = vld [vmem:[%s0 + $0x3e4] sm:$0xff]
  %v154 = vld [vmem:[%s0 + $0x3ec] sm:$0xf]
  %v155 = vld [vmem:[%s0 + $0x3f0] sm:$0xff]
  %v156 = vld [vmem:[%s0 + $0x3f8] sm:$0xff]
  %v157 = vld [vmem:[%s0 + $0x400] sm:$0xff]
  %v158 = vld [vmem:[%s0 + $0x408] sm:$0xff]
  %v159 = vld [vmem:[%s0 + $0x410] sm:$0xf]
  %v160 = vld [vmem:[%s0 + $0x414] sm:$0xff]
  %v161 = vld [vmem:[%s0 + $0x41c] sm:$0xff]
  %v162 = vld [vmem:[%s0 + $0x424] sm:$0xff]
  %v163 = vld [vmem:[%s0 + $0x42c] sm:$0xff]
  %v164 = vld [vmem:[%s0 + $0x434] sm:$0xf]
  %v165 = vld [vmem:[%s0 + $0x438] sm:$0xff]
  %v166 = vld [vmem:[%s0 + $0x440] sm:$0xff]
  %v167 = vld [vmem:[%s0 + $0x448] sm:$0xff]
  %v168 = vld [vmem:[%s0 + $0x450] sm:$0xff]
  %v169 = vld [vmem:[%s0 + $0x458] sm:$0xf]
  %v170 = vld [vmem:[%s0 + $0x45c] sm:$0xff]
  %v171 = vld [vmem:[%s0 + $0x464] sm:$0xff]
  %v172 = vld [vmem:[%s0 + $0x46c] sm:$0xff]
  %v173 = vld [vmem:[%s0 + $0x474] sm:$0xff]
  %v174 = vld [vmem:[%s0 + $0x47c] sm:$0xf]
  %v175 = vld [vmem:[%s0 + $0x480] sm:$0xff]
  %v176 = vld [vmem:[%s0 + $0x488] sm:$0xff]
  %v177 = vld [vmem:[%s0 + $0x490] sm:$0xff]
  %v178 = vld [vmem:[%s0 + $0x498] sm:$0xff]
  %v179 = vld [vmem:[%s0 + $0x4a0] sm:$0xf]
  %v180 = vld [vmem:[%s0 + $0x4a4] sm:$0xff]
  %v181 = vld [vmem:[%s0 + $0x4ac] sm:$0xff]
  %v182 = vld [vmem:[%s0 + $0x4b4] sm:$0xff]
  %v183 = vld [vmem:[%s0 + $0x4bc] sm:$0xff]
  %v184 = vld [vmem:[%s0 + $0x4c4] sm:$0xf]
  %v185 = vld [vmem:[%s0 + $0x4c8] sm:$0xff]
  %v186 = vld [vmem:[%s0 + $0x4d0] sm:$0xff]
  %v187 = vld [vmem:[%s0 + $0x4d8] sm:$0xff]
  %v188 = vld [vmem:[%s0 + $0x4e0] sm:$0xff]
  %v189 = vld [vmem:[%s0 + $0x4e8] sm:$0xf]
  %v190 = vld [vmem:[%s0 + $0x4ec] sm:$0xff]
  %v191 = vld [vmem:[%s0 + $0x4f4] sm:$0xff]
  %v192 = vld [vmem:[%s0 + $0x4fc] sm:$0xff]
  %v193 = vld [vmem:[%s0 + $0x504] sm:$0xff]
  %v194 = vld [vmem:[%s0 + $0x50c] sm:$0xf]
  %v195 = vld [vmem:[%s0 + $0x510] sm:$0xff]
  %v196 = vld [vmem:[%s0 + $0x518] sm:$0xff]
  %v197 = vld [vmem:[%s0 + $0x520] sm:$0xff]
  %v198 = vld [vmem:[%s0 + $0x528] sm:$0xff]
  %v199 = vld [vmem:[%s0 + $0x530] sm:$0xf]
  %v200 = vld [vmem:[%s0 + $0x534] sm:$0xff]
  %v201 = vld [vmem:[%s0 + $0x53c] sm:$0xff]
  %v202 = vld [vmem:[%s0 + $0x544] sm:$0xff]
  %v203 = vld [vmem:[%s0 + $0x54c] sm:$0xff]
  %v204 = vld [vmem:[%s0 + $0x554] sm:$0xf]
  %v205 = vld [vmem:[%s0 + $0x558] sm:$0xff]
  %v206 = vld [vmem:[%s0 + $0x560] sm:$0xff]
  %v207 = vld [vmem:[%s0 + $0x568] sm:$0xff]
  %v208 = vld [vmem:[%s0 + $0x570] sm:$0xff]
  %v209 = vld [vmem:[%s0 + $0x578] sm:$0xf]
  %v210 = vld [vmem:[%s0 + $0x57c] sm:$0xff]
  %v211 = vld [vmem:[%s0 + $0x584] sm:$0xff]
  %v212 = vld [vmem:[%s0 + $0x58c] sm:$0xff]
  %v213 = vld [vmem:[%s0 + $0x594] sm:$0xff]
  %v214 = vld [vmem:[%s0 + $0x59c] sm:$0xf]
  %v215 = vld [vmem:[%s0 + $0x5a0] sm:$0xff]
  %v216 = vld [vmem:[%s0 + $0x5a8] sm:$0xff]
  %v217 = vld [vmem:[%s0 + $0x5b0] sm:$0xff]
  %v218 = vld [vmem:[%s0 + $0x5b8] sm:$0xff]
  %v219 = vld [vmem:[%s0 + $0x5c0] sm:$0xf]
  %v220 = vld [vmem:[%s0 + $0x5c4] sm:$0xff]
  %v221 = vld [vmem:[%s0 + $0x5cc] sm:$0xff]
  %v222 = vld [vmem:[%s0 + $0x5d4] sm:$0xff]
  %v223 = vld [vmem:[%s0 + $0x5dc] sm:$0xff]
  %v224 = vld [vmem:[%s0 + $0x5e4] sm:$0xf]
  %v225 = vld [vmem:[%s0 + $0x5e8] sm:$0xff]
  %v226 = vld [vmem:[%s0 + $0x5f0] sm:$0xff]
  %v227 = vld [vmem:[%s0 + $0x5f8] sm:$0xff]
  %v228 = vld [vmem:[%s0 + $0x600] sm:$0xff]
  %v229 = vld [vmem:[%s0 + $0x608] sm:$0xf]
  %v230 = vld [vmem:[%s0 + $0x60c] sm:$0xff]
  %v231 = vld [vmem:[%s0 + $0x614] sm:$0xff]
  %v232 = vld [vmem:[%s0 + $0x61c] sm:$0xff]
  %v233 = vld [vmem:[%s0 + $0x624] sm:$0xff]
  %v234 = vld [vmem:[%s0 + $0x62c] sm:$0xf]
  %v235 = vld [vmem:[%s0 + $0x630] sm:$0xff]
  %v236 = vld [vmem:[%s0 + $0x638] sm:$0xff]
  %v237 = vld [vmem:[%s0 + $0x640] sm:$0xff]
  %v238 = vld [vmem:[%s0 + $0x648] sm:$0xff]
  %v239 = vld [vmem:[%s0 + $0x650] sm:$0xf]
  %v240 = vld [vmem:[%s0 + $0x654] sm:$0xff]
  %v241 = vld [vmem:[%s0 + $0x65c] sm:$0xff]
  %v242 = vld [vmem:[%s0 + $0x664] sm:$0xff]
  %v243 = vld [vmem:[%s0 + $0x66c] sm:$0xff]
  %v244 = vld [vmem:[%s0 + $0x674] sm:$0xf]
  %v245 = vld [vmem:[%s0 + $0x678] sm:$0xff]
  %v246 = vld [vmem:[%s0 + $0x680] sm:$0xff]
  %v247 = vld [vmem:[%s0 + $0x688] sm:$0xff]
  %v248 = vld [vmem:[%s0 + $0x690] sm:$0xff]
  %v249 = vld [vmem:[%s0 + $0x698] sm:$0xf]
  %v250 = vld [vmem:[%s0 + $0x69c] sm:$0xff]
  %v251 = vld [vmem:[%s0 + $0x6a4] sm:$0xff]
  %v252 = vld [vmem:[%s0 + $0x6ac] sm:$0xff]
  %v253 = vld [vmem:[%s0 + $0x6b4] sm:$0xff]
  %v254 = vld [vmem:[%s0 + $0x6bc] sm:$0xf]
  %v255 = vld [vmem:[%s0 + $0x6c0] sm:$0xff]
  %v256 = vld [vmem:[%s0 + $0x6c8] sm:$0xff]
  %v257 = vld [vmem:[%s0 + $0x6d0] sm:$0xff]
  %v258 = vld [vmem:[%s0 + $0x6d8] sm:$0xff]
  %v259 = vld [vmem:[%s0 + $0x6e0] sm:$0xf]
  %v260 = vld [vmem:[%s1] sm:$0xf]
  %v261 = vld [vmem:[%s1 + $0x4] sm:$0xf]
  %v262 = vld [vmem:[%s1 + $0x8] sm:$0xf]
  %v263 = vld [vmem:[%s1 + $0xc] sm:$0xf]
  %v264 = vld [vmem:[%s1 + $0x10] sm:$0xf]
  %v265 = vld [vmem:[%s1 + $0x14] sm:$0xf]
  %v266 = vld [vmem:[%s1 + $0x18] sm:$0xf]
  %v267 = vld [vmem:[%s1 + $0x1c] sm:$0xf]
  %v268 = vld [vmem:[%s1 + $0x20] sm:$0xf]
  %v269 = vld [vmem:[%s1 + $0x24] sm:$0xf]
  %v270 = vld [vmem:[%s1 + $0x28] sm:$0xf]
  %v271 = vld [vmem:[%s1 + $0x2c] sm:$0xf]
  %v272 = vld [vmem:[%s1 + $0x30] sm:$0xf]
  %v273 = vld [vmem:[%s1 + $0x34] sm:$0xf]
  %v274 = vld [vmem:[%s1 + $0x38] sm:$0xf]
  %v275 = vld [vmem:[%s1 + $0x3c] sm:$0xf]
  %v276 = vld [vmem:[%s1 + $0x40] sm:$0xf]
  %v277 = vld [vmem:[%s1 + $0x44] sm:$0xf]
  %v278 = vld [vmem:[%s1 + $0x48] sm:$0xf]
  %v279 = vld [vmem:[%s1 + $0x4c] sm:$0xf]
  %v280 = vld [vmem:[%s1 + $0x50] sm:$0xf]
  %v281 = vld [vmem:[%s1 + $0x54] sm:$0xf]
  %v282 = vld [vmem:[%s1 + $0x58] sm:$0xf]
  %v283 = vld [vmem:[%s1 + $0x5c] sm:$0xf]
  %v284 = vld [vmem:[%s1 + $0x60] sm:$0xf]
  %v285 = vld [vmem:[%s1 + $0x64] sm:$0xf]
  %v286 = vld [vmem:[%s1 + $0x68] sm:$0xf]
  %v287 = vld [vmem:[%s1 + $0x6c] sm:$0xf]
  %v288 = vld [vmem:[%s1 + $0x70] sm:$0xf]
  %v289 = vld [vmem:[%s1 + $0x74] sm:$0xf]
  %v290 = vld [vmem:[%s1 + $0x78] sm:$0xf]
  %v291 = vld [vmem:[%s1 + $0x7c] sm:$0xf]
  %v292 = vld [vmem:[%s1 + $0x80] sm:$0xf]
  %v293 = vld [vmem:[%s1 + $0x84] sm:$0xf]
  %v294 = vld [vmem:[%s1 + $0x88] sm:$0xf]
  %v295 = vld [vmem:[%s1 + $0x8c] sm:$0xf]
  %v296 = vld [vmem:[%s1 + $0x90] sm:$0xf]
  %v297 = vld [vmem:[%s1 + $0x94] sm:$0xf]
  %v298 = vld [vmem:[%s1 + $0x98] sm:$0xf]
  %v299 = vld [vmem:[%s1 + $0x9c] sm:$0xf]
  %v300 = vld [vmem:[%s1 + $0xa0] sm:$0xf]
  %v301 = vld [vmem:[%s1 + $0xa4] sm:$0xf]
  %v302 = vld [vmem:[%s1 + $0xa8] sm:$0xf]
  %v303 = vld [vmem:[%s1 + $0xac] sm:$0xf]
  %v304 = vld [vmem:[%s1 + $0xb0] sm:$0xf]
  %v305 = vld [vmem:[%s1 + $0xb4] sm:$0xf]
  %v306 = vld [vmem:[%s1 + $0xb8] sm:$0xf]
  %v307 = vld [vmem:[%s1 + $0xbc] sm:$0xf]
  %v308 = vld [vmem:[%s1 + $0xc0] sm:$0xf]
  %v309 = vld [vmem:[%s1 + $0xc4] sm:$0xf]
  %v310 = vld [vmem:[%s1 + $0xc8] sm:$0xf]
  %v311 = vld [vmem:[%s1 + $0xcc] sm:$0xf]
  %v312 = vld [vmem:[%s1 + $0xd0] sm:$0xf]
  %v313 = vld [vmem:[%s1 + $0xd4] sm:$0xf]
  %v314 = vld [vmem:[%s1 + $0xd8] sm:$0xf]
  %v315 = vld [vmem:[%s1 + $0xdc] sm:$0xf]
  %v316 = vld [vmem:[%s1 + $0xe0] sm:$0xf]
  %v317 = vld [vmem:[%s1 + $0xe4] sm:$0xf]
  %v318 = vld [vmem:[%s1 + $0xe8] sm:$0xf]
  %v319 = vld [vmem:[%s1 + $0xec] sm:$0xf]
  %v320 = vld [vmem:[%s1 + $0xf0] sm:$0xf]
  %v321 = vld [vmem:[%s1 + $0xf4] sm:$0xf]
  %v322 = vld [vmem:[%s1 + $0xf8] sm:$0xf]
  %v323 = vld [vmem:[%s1 + $0xfc] sm:$0xf]
  %v324 = vld [vmem:[%s1 + $0x100] sm:$0xf]
  %v325 = vld [vmem:[%s1 + $0x104] sm:$0xf]
  %v326 = vld [vmem:[%s1 + $0x108] sm:$0xf]
  %v327 = vld [vmem:[%s1 + $0x10c] sm:$0xf]
  %v328 = vld [vmem:[%s1 + $0x110] sm:$0xf]
  %v329 = vld [vmem:[%s1 + $0x114] sm:$0xf]
  %v330 = vld [vmem:[%s1 + $0x118] sm:$0xf]
  %v331 = vld [vmem:[%s1 + $0x11c] sm:$0xf]
  %v332 = vld [vmem:[%s1 + $0x120] sm:$0xf]
  %v333 = vld [vmem:[%s1 + $0x124] sm:$0xf]
  %v334 = vld [vmem:[%s1 + $0x128] sm:$0xf]
  %v335 = vld [vmem:[%s1 + $0x12c] sm:$0xf]
  %v336 = vld [vmem:[%s1 + $0x130] sm:$0xf]
  %v337 = vld [vmem:[%s1 + $0x134] sm:$0xf]
  %v338 = vld [vmem:[%s1 + $0x138] sm:$0xf]
  %v339 = vld [vmem:[%s1 + $0x13c] sm:$0xf]
  %v340 = vld [vmem:[%s1 + $0x140] sm:$0xf]
  %v341 = vld [vmem:[%s1 + $0x144] sm:$0xf]
  %v342 = vld [vmem:[%s1 + $0x148] sm:$0xf]
  %v343 = vld [vmem:[%s1 + $0x14c] sm:$0xf]
  %v344 = vld [vmem:[%s1 + $0x150] sm:$0xf]
  %v345 = vld [vmem:[%s1 + $0x154] sm:$0xf]
  %v346 = vld [vmem:[%s1 + $0x158] sm:$0xf]
  %v347 = vld [vmem:[%s1 + $0x15c] sm:$0xf]
  %v348 = vld [vmem:[%s1 + $0x160] sm:$0xf]
  %v349 = vld [vmem:[%s1 + $0x164] sm:$0xf]
  %v350 = vld [vmem:[%s1 + $0x168] sm:$0xf]
  %v351 = vld [vmem:[%s1 + $0x16c] sm:$0xf]
  %v352 = vld [vmem:[%s1 + $0x170] sm:$0xf]
  %v353 = vld [vmem:[%s1 + $0x174] sm:$0xf]
  %v354 = vld [vmem:[%s1 + $0x178] sm:$0xf]
  %v355 = vld [vmem:[%s1 + $0x17c] sm:$0xf]
  %v356 = vld [vmem:[%s1 + $0x180] sm:$0xf]
  %v357 = vld [vmem:[%s1 + $0x184] sm:$0xf]
  %v358 = vld [vmem:[%s1 + $0x188] sm:$0xf]
  %v359 = vld [vmem:[%s1 + $0x18c] sm:$0xf]
  %v360 = vld [vmem:[%s1 + $0x190] sm:$0xf]
  %v361 = vld [vmem:[%s1 + $0x194] sm:$0xf]
  %v362 = vld [vmem:[%s1 + $0x198] sm:$0xf]
  %v363 = vld [vmem:[%s1 + $0x19c] sm:$0xf]
  %v364 = vld [vmem:[%s1 + $0x1a0] sm:$0xf]
  %v365 = vld [vmem:[%s1 + $0x1a4] sm:$0xf]
  %v366 = vld [vmem:[%s1 + $0x1a8] sm:$0xf]
  %v367 = vld [vmem:[%s1 + $0x1ac] sm:$0xf]
  %v368 = vld [vmem:[%s1 + $0x1b0] sm:$0xf]
  %v369 = vld [vmem:[%s1 + $0x1b4] sm:$0xf]
  %v370 = vld [vmem:[%s1 + $0x1b8] sm:$0xf]
  %v371 = vld [vmem:[%s1 + $0x1bc] sm:$0xf]
  %v372 = vld [vmem:[%s1 + $0x1c0] sm:$0xf]
  %v373 = vld [vmem:[%s1 + $0x1c4] sm:$0xf]
  %v374 = vld [vmem:[%s1 + $0x1c8] sm:$0xf]
  %v375 = vld [vmem:[%s1 + $0x1cc] sm:$0xf]
  %v376 = vld [vmem:[%s1 + $0x1d0] sm:$0xf]
  %v377 = vld [vmem:[%s1 + $0x1d4] sm:$0xf]
  %v378 = vld [vmem:[%s1 + $0x1d8] sm:$0xf]
  %v379 = vld [vmem:[%s1 + $0x1dc] sm:$0xf]
  %v380 = vld [vmem:[%s1 + $0x1e0] sm:$0xf]
  %v381 = vld [vmem:[%s1 + $0x1e4] sm:$0xf]
  %v382 = vld [vmem:[%s1 + $0x1e8] sm:$0xf]
  %v383 = vld [vmem:[%s1 + $0x1ec] sm:$0xf]
  %v384 = vld [vmem:[%s1 + $0x1f0] sm:$0xf]
  %v385 = vld [vmem:[%s1 + $0x1f4] sm:$0xf]
  %v386 = vld [vmem:[%s1 + $0x1f8] sm:$0xf]
  %v387 = vld [vmem:[%s1 + $0x1fc] sm:$0xf]
  %v388 = vld [vmem:[%s1 + $0x200] sm:$0xf]
  %v389 = vld [vmem:[%s1 + $0x204] sm:$0xf]
  %v390 = vld [vmem:[%s1 + $0x208] sm:$0xf]
  %v391 = vld [vmem:[%s1 + $0x20c] sm:$0xf]
  %v392 = vld [vmem:[%s1 + $0x210] sm:$0xf]
  %v393 = vld [vmem:[%s1 + $0x214] sm:$0xf]
  %v394 = vld [vmem:[%s1 + $0x218] sm:$0xf]
  %v395 = vld [vmem:[%s1 + $0x21c] sm:$0xf]
  %v396 = vld [vmem:[%s1 + $0x220] sm:$0xf]
  %v397 = vld [vmem:[%s1 + $0x224] sm:$0xf]
  %v398 = vld [vmem:[%s1 + $0x228] sm:$0xf]
  %v399 = vld [vmem:[%s1 + $0x22c] sm:$0xf]
  %v400 = vld [vmem:[%s1 + $0x230] sm:$0xf]
  %v401 = vld [vmem:[%s1 + $0x234] sm:$0xf]
  %v402 = vld [vmem:[%s1 + $0x238] sm:$0xf]
  %v403 = vld [vmem:[%s1 + $0x23c] sm:$0xf]
  %v404 = vld [vmem:[%s2] sm:$0x1]
  %v406 = vlaneseq
  %v407 = vshrl.u32 %v406, 7
  %v408 = vsub.s32 0, %v407
  %v409 = vrot.slane %v404, %v408
  %v656 = vunpack.c.l.b16 %v15
  %v657 = vunpack.c.h.b16 %v15
  %v658 = vunpack.c.l.b16 %v16
  %v659 = vunpack.c.h.b16 %v16
  %v660 = vunpack.c.l.b16 %v17
  %v661 = vunpack.c.h.b16 %v17
  %v662 = vunpack.c.l.b16 %v18
  %v663 = vunpack.c.h.b16 %v18
  %v664 = vunpack.c.l.b16 %v19
  %v665 = vunpack.c.l.b16 %v20
  %v666 = vunpack.c.h.b16 %v20
  %v667 = vunpack.c.l.b16 %v21
  %v668 = vunpack.c.h.b16 %v21
  %v669 = vunpack.c.l.b16 %v22
  %v670 = vunpack.c.h.b16 %v22
  %v671 = vunpack.c.l.b16 %v23
  %v672 = vunpack.c.h.b16 %v23
  %v673 = vunpack.c.l.b16 %v24
  %v674 = vunpack.c.l.b16 %v25
  %v675 = vunpack.c.h.b16 %v25
  %v676 = vunpack.c.l.b16 %v26
  %v677 = vunpack.c.h.b16 %v26
  %v678 = vunpack.c.l.b16 %v27
  %v679 = vunpack.c.h.b16 %v27
  %v680 = vunpack.c.l.b16 %v28
  %v681 = vunpack.c.h.b16 %v28
  %v682 = vunpack.c.l.b16 %v29
  %v683 = vunpack.c.l.b16 %v30
  %v684 = vunpack.c.h.b16 %v30
  %v685 = vunpack.c.l.b16 %v31
  %v686 = vunpack.c.h.b16 %v31
  %v687 = vunpack.c.l.b16 %v32
  %v688 = vunpack.c.h.b16 %v32
  %v689 = vunpack.c.l.b16 %v33
  %v690 = vunpack.c.h.b16 %v33
  %v691 = vunpack.c.l.b16 %v34
  %v692 = vunpack.c.l.b16 %v35
  %v693 = vunpack.c.h.b16 %v35
  %v694 = vunpack.c.l.b16 %v36
  %v695 = vunpack.c.h.b16 %v36
  %v696 = vunpack.c.l.b16 %v37
  %v697 = vunpack.c.h.b16 %v37
  %v698 = vunpack.c.l.b16 %v38
  %v699 = vunpack.c.h.b16 %v38
  %v700 = vunpack.c.l.b16 %v39
  %v701 = vunpack.c.l.b16 %v40
  %v702 = vunpack.c.h.b16 %v40
  %v703 = vunpack.c.l.b16 %v41
  %v704 = vunpack.c.h.b16 %v41
  %v705 = vunpack.c.l.b16 %v42
  %v706 = vunpack.c.h.b16 %v42
  %v707 = vunpack.c.l.b16 %v43
  %v708 = vunpack.c.h.b16 %v43
  %v709 = vunpack.c.l.b16 %v44
  %v710 = vunpack.c.l.b16 %v45
  %v711 = vunpack.c.h.b16 %v45
  %v712 = vunpack.c.l.b16 %v46
  %v713 = vunpack.c.h.b16 %v46
  %v714 = vunpack.c.l.b16 %v47
  %v715 = vunpack.c.h.b16 %v47
  %v716 = vunpack.c.l.b16 %v48
  %v717 = vunpack.c.h.b16 %v48
  %v718 = vunpack.c.l.b16 %v49
  %v719 = vunpack.c.l.b16 %v50
  %v720 = vunpack.c.h.b16 %v50
  %v721 = vunpack.c.l.b16 %v51
  %v722 = vunpack.c.h.b16 %v51
  %v723 = vunpack.c.l.b16 %v52
  %v724 = vunpack.c.h.b16 %v52
  %v725 = vunpack.c.l.b16 %v53
  %v726 = vunpack.c.h.b16 %v53
  %v727 = vunpack.c.l.b16 %v54
  %v728 = vunpack.c.l.b16 %v55
  %v729 = vunpack.c.h.b16 %v55
  %v730 = vunpack.c.l.b16 %v56
  %v731 = vunpack.c.h.b16 %v56
  %v732 = vunpack.c.l.b16 %v57
  %v733 = vunpack.c.h.b16 %v57
  %v734 = vunpack.c.l.b16 %v58
  %v735 = vunpack.c.h.b16 %v58
  %v736 = vunpack.c.l.b16 %v59
  %v737 = vunpack.c.l.b16 %v60
  %v738 = vunpack.c.h.b16 %v60
  %v739 = vunpack.c.l.b16 %v61
  %v740 = vunpack.c.h.b16 %v61
  %v741 = vunpack.c.l.b16 %v62
  %v742 = vunpack.c.h.b16 %v62
  %v743 = vunpack.c.l.b16 %v63
  %v744 = vunpack.c.h.b16 %v63
  %v745 = vunpack.c.l.b16 %v64
  %v746 = vunpack.c.l.b16 %v65
  %v747 = vunpack.c.h.b16 %v65
  %v748 = vunpack.c.l.b16 %v66
  %v749 = vunpack.c.h.b16 %v66
  %v750 = vunpack.c.l.b16 %v67
  %v751 = vunpack.c.h.b16 %v67
  %v752 = vunpack.c.l.b16 %v68
  %v753 = vunpack.c.h.b16 %v68
  %v754 = vunpack.c.l.b16 %v69
  %v755 = vunpack.c.l.b16 %v70
  %v756 = vunpack.c.h.b16 %v70
  %v757 = vunpack.c.l.b16 %v71
  %v758 = vunpack.c.h.b16 %v71
  %v759 = vunpack.c.l.b16 %v72
  %v760 = vunpack.c.h.b16 %v72
  %v761 = vunpack.c.l.b16 %v73
  %v762 = vunpack.c.h.b16 %v73
  %v763 = vunpack.c.l.b16 %v74
  %v764 = vunpack.c.l.b16 %v75
  %v765 = vunpack.c.h.b16 %v75
  %v766 = vunpack.c.l.b16 %v76
  %v767 = vunpack.c.h.b16 %v76
  %v768 = vunpack.c.l.b16 %v77
  %v769 = vunpack.c.h.b16 %v77
  %v770 = vunpack.c.l.b16 %v78
  %v771 = vunpack.c.h.b16 %v78
  %v772 = vunpack.c.l.b16 %v79
  %v773 = vunpack.c.l.b16 %v80
  %v774 = vunpack.c.h.b16 %v80
  %v775 = vunpack.c.l.b16 %v81
  %v776 = vunpack.c.h.b16 %v81
  %v777 = vunpack.c.l.b16 %v82
  %v778 = vunpack.c.h.b16 %v82
  %v779 = vunpack.c.l.b16 %v83
  %v780 = vunpack.c.h.b16 %v83
  %v781 = vunpack.c.l.b16 %v84
  %v782 = vunpack.c.l.b16 %v85
  %v783 = vunpack.c.h.b16 %v85
  %v784 = vunpack.c.l.b16 %v86
  %v785 = vunpack.c.h.b16 %v86
  %v786 = vunpack.c.l.b16 %v87
  %v787 = vunpack.c.h.b16 %v87
  %v788 = vunpack.c.l.b16 %v88
  %v789 = vunpack.c.h.b16 %v88
  %v790 = vunpack.c.l.b16 %v89
  %v791 = vunpack.c.l.b16 %v90
  %v792 = vunpack.c.h.b16 %v90
  %v793 = vunpack.c.l.b16 %v91
  %v794 = vunpack.c.h.b16 %v91
  %v795 = vunpack.c.l.b16 %v92
  %v796 = vunpack.c.h.b16 %v92
  %v797 = vunpack.c.l.b16 %v93
  %v798 = vunpack.c.h.b16 %v93
  %v799 = vunpack.c.l.b16 %v94
  %v800 = vunpack.c.l.b16 %v95
  %v801 = vunpack.c.h.b16 %v95
  %v802 = vunpack.c.l.b16 %v96
  %v803 = vunpack.c.h.b16 %v96
  %v804 = vunpack.c.l.b16 %v97
  %v805 = vunpack.c.h.b16 %v97
  %v806 = vunpack.c.l.b16 %v98
  %v807 = vunpack.c.h.b16 %v98
  %v808 = vunpack.c.l.b16 %v99
  %v809 = vunpack.c.l.b16 %v100
  %v810 = vunpack.c.h.b16 %v100
  %v811 = vunpack.c.l.b16 %v101
  %v812 = vunpack.c.h.b16 %v101
  %v813 = vunpack.c.l.b16 %v102
  %v814 = vunpack.c.h.b16 %v102
  %v815 = vunpack.c.l.b16 %v103
  %v816 = vunpack.c.h.b16 %v103
  %v817 = vunpack.c.l.b16 %v104
  %v818 = vunpack.c.l.b16 %v105
  %v819 = vunpack.c.h.b16 %v105
  %v820 = vunpack.c.l.b16 %v106
  %v821 = vunpack.c.h.b16 %v106
  %v822 = vunpack.c.l.b16 %v107
  %v823 = vunpack.c.h.b16 %v107
  %v824 = vunpack.c.l.b16 %v108
  %v825 = vunpack.c.h.b16 %v108
  %v826 = vunpack.c.l.b16 %v109
  %v827 = vunpack.c.l.b16 %v110
  %v828 = vunpack.c.h.b16 %v110
  %v829 = vunpack.c.l.b16 %v111
  %v830 = vunpack.c.h.b16 %v111
  %v831 = vunpack.c.l.b16 %v112
  %v832 = vunpack.c.h.b16 %v112
  %v833 = vunpack.c.l.b16 %v113
  %v834 = vunpack.c.h.b16 %v113
  %v835 = vunpack.c.l.b16 %v114
  %v836 = vunpack.c.l.b16 %v115
  %v837 = vunpack.c.h.b16 %v115
  %v838 = vunpack.c.l.b16 %v116
  %v839 = vunpack.c.h.b16 %v116
  %v840 = vunpack.c.l.b16 %v117
  %v841 = vunpack.c.h.b16 %v117
  %v842 = vunpack.c.l.b16 %v118
  %v843 = vunpack.c.h.b16 %v118
  %v844 = vunpack.c.l.b16 %v119
  %v845 = vunpack.c.l.b16 %v120
  %v846 = vunpack.c.h.b16 %v120
  %v847 = vunpack.c.l.b16 %v121
  %v848 = vunpack.c.h.b16 %v121
  %v849 = vunpack.c.l.b16 %v122
  %v850 = vunpack.c.h.b16 %v122
  %v851 = vunpack.c.l.b16 %v123
  %v852 = vunpack.c.h.b16 %v123
  %v853 = vunpack.c.l.b16 %v124
  %v854 = vunpack.c.l.b16 %v125
  %v855 = vunpack.c.h.b16 %v125
  %v856 = vunpack.c.l.b16 %v126
  %v857 = vunpack.c.h.b16 %v126
  %v858 = vunpack.c.l.b16 %v127
  %v859 = vunpack.c.h.b16 %v127
  %v860 = vunpack.c.l.b16 %v128
  %v861 = vunpack.c.h.b16 %v128
  %v862 = vunpack.c.l.b16 %v129
  %v863 = vunpack.c.l.b16 %v130
  %v864 = vunpack.c.h.b16 %v130
  %v865 = vunpack.c.l.b16 %v131
  %v866 = vunpack.c.h.b16 %v131
  %v867 = vunpack.c.l.b16 %v132
  %v868 = vunpack.c.h.b16 %v132
  %v869 = vunpack.c.l.b16 %v133
  %v870 = vunpack.c.h.b16 %v133
  %v871 = vunpack.c.l.b16 %v134
  %v872 = vunpack.c.l.b16 %v135
  %v873 = vunpack.c.h.b16 %v135
  %v874 = vunpack.c.l.b16 %v136
  %v875 = vunpack.c.h.b16 %v136
  %v876 = vunpack.c.l.b16 %v137
  %v877 = vunpack.c.h.b16 %v137
  %v878 = vunpack.c.l.b16 %v138
  %v879 = vunpack.c.h.b16 %v138
  %v880 = vunpack.c.l.b16 %v139
  %v881 = vunpack.c.l.b16 %v140
  %v882 = vunpack.c.h.b16 %v140
  %v883 = vunpack.c.l.b16 %v141
  %v884 = vunpack.c.h.b16 %v141
  %v885 = vunpack.c.l.b16 %v142
  %v886 = vunpack.c.h.b16 %v142
  %v887 = vunpack.c.l.b16 %v143
  %v888 = vunpack.c.h.b16 %v143
  %v889 = vunpack.c.l.b16 %v144
  %v890 = vunpack.c.l.b16 %v145
  %v891 = vunpack.c.h.b16 %v145
  %v892 = vunpack.c.l.b16 %v146
  %v893 = vunpack.c.h.b16 %v146
  %v894 = vunpack.c.l.b16 %v147
  %v895 = vunpack.c.h.b16 %v147
  %v896 = vunpack.c.l.b16 %v148
  %v897 = vunpack.c.h.b16 %v148
  %v898 = vunpack.c.l.b16 %v149
  %v899 = vunpack.c.l.b16 %v150
  %v900 = vunpack.c.h.b16 %v150
  %v901 = vunpack.c.l.b16 %v151
  %v902 = vunpack.c.h.b16 %v151
  %v903 = vunpack.c.l.b16 %v152
  %v904 = vunpack.c.h.b16 %v152
  %v905 = vunpack.c.l.b16 %v153
  %v906 = vunpack.c.h.b16 %v153
  %v907 = vunpack.c.l.b16 %v154
  %v908 = vunpack.c.l.b16 %v155
  %v909 = vunpack.c.h.b16 %v155
  %v910 = vunpack.c.l.b16 %v156
  %v911 = vunpack.c.h.b16 %v156
  %v912 = vunpack.c.l.b16 %v157
  %v913 = vunpack.c.h.b16 %v157
  %v914 = vunpack.c.l.b16 %v158
  %v915 = vunpack.c.h.b16 %v158
  %v916 = vunpack.c.l.b16 %v159
  %v917 = vunpack.c.l.b16 %v160
  %v918 = vunpack.c.h.b16 %v160
  %v919 = vunpack.c.l.b16 %v161
  %v920 = vunpack.c.h.b16 %v161
  %v921 = vunpack.c.l.b16 %v162
  %v922 = vunpack.c.h.b16 %v162
  %v923 = vunpack.c.l.b16 %v163
  %v924 = vunpack.c.h.b16 %v163
  %v925 = vunpack.c.l.b16 %v164
  %v926 = vunpack.c.l.b16 %v165
  %v927 = vunpack.c.h.b16 %v165
  %v928 = vunpack.c.l.b16 %v166
  %v929 = vunpack.c.h.b16 %v166
  %v930 = vunpack.c.l.b16 %v167
  %v931 = vunpack.c.h.b16 %v167
  %v932 = vunpack.c.l.b16 %v168
  %v933 = vunpack.c.h.b16 %v168
  %v934 = vunpack.c.l.b16 %v169
  %v935 = vunpack.c.l.b16 %v170
  %v936 = vunpack.c.h.b16 %v170
  %v937 = vunpack.c.l.b16 %v171
  %v938 = vunpack.c.h.b16 %v171
  %v939 = vunpack.c.l.b16 %v172
  %v940 = vunpack.c.h.b16 %v172
  %v941 = vunpack.c.l.b16 %v173
  %v942 = vunpack.c.h.b16 %v173
  %v943 = vunpack.c.l.b16 %v174
  %v944 = vunpack.c.l.b16 %v175
  %v945 = vunpack.c.h.b16 %v175
  %v946 = vunpack.c.l.b16 %v176
  %v947 = vunpack.c.h.b16 %v176
  %v948 = vunpack.c.l.b16 %v177
  %v949 = vunpack.c.h.b16 %v177
  %v950 = vunpack.c.l.b16 %v178
  %v951 = vunpack.c.h.b16 %v178
  %v952 = vunpack.c.l.b16 %v179
  %v953 = vunpack.c.l.b16 %v180
  %v954 = vunpack.c.h.b16 %v180
  %v955 = vunpack.c.l.b16 %v181
  %v956 = vunpack.c.h.b16 %v181
  %v957 = vunpack.c.l.b16 %v182
  %v958 = vunpack.c.h.b16 %v182
  %v959 = vunpack.c.l.b16 %v183
  %v960 = vunpack.c.h.b16 %v183
  %v961 = vunpack.c.l.b16 %v184
  %v962 = vunpack.c.l.b16 %v185
  %v963 = vunpack.c.h.b16 %v185
  %v964 = vunpack.c.l.b16 %v186
  %v965 = vunpack.c.h.b16 %v186
  %v966 = vunpack.c.l.b16 %v187
  %v967 = vunpack.c.h.b16 %v187
  %v968 = vunpack.c.l.b16 %v188
  %v969 = vunpack.c.h.b16 %v188
  %v970 = vunpack.c.l.b16 %v189
  %v971 = vunpack.c.l.b16 %v190
  %v972 = vunpack.c.h.b16 %v190
  %v973 = vunpack.c.l.b16 %v191
  %v974 = vunpack.c.h.b16 %v191
  %v975 = vunpack.c.l.b16 %v192
  %v976 = vunpack.c.h.b16 %v192
  %v977 = vunpack.c.l.b16 %v193
  %v978 = vunpack.c.h.b16 %v193
  %v979 = vunpack.c.l.b16 %v194
  %v980 = vunpack.c.l.b16 %v195
  %v981 = vunpack.c.h.b16 %v195
  %v982 = vunpack.c.l.b16 %v196
  %v983 = vunpack.c.h.b16 %v196
  %v984 = vunpack.c.l.b16 %v197
  %v985 = vunpack.c.h.b16 %v197
  %v986 = vunpack.c.l.b16 %v198
  %v987 = vunpack.c.h.b16 %v198
  %v988 = vunpack.c.l.b16 %v199
  %v989 = vunpack.c.l.b16 %v200
  %v990 = vunpack.c.h.b16 %v200
  %v991 = vunpack.c.l.b16 %v201
  %v992 = vunpack.c.h.b16 %v201
  %v993 = vunpack.c.l.b16 %v202
  %v994 = vunpack.c.h.b16 %v202
  %v995 = vunpack.c.l.b16 %v203
  %v996 = vunpack.c.h.b16 %v203
  %v997 = vunpack.c.l.b16 %v204
  %v998 = vunpack.c.l.b16 %v205
  %v999 = vunpack.c.h.b16 %v205
  %v1000 = vunpack.c.l.b16 %v206
  %v1001 = vunpack.c.h.b16 %v206
  %v1002 = vunpack.c.l.b16 %v207
  %v1003 = vunpack.c.h.b16 %v207
  %v1004 = vunpack.c.l.b16 %v208
  %v1005 = vunpack.c.h.b16 %v208
  %v1006 = vunpack.c.l.b16 %v209
  %v1007 = vunpack.c.l.b16 %v210
  %v1008 = vunpack.c.h.b16 %v210
  %v1009 = vunpack.c.l.b16 %v211
  %v1010 = vunpack.c.h.b16 %v211
  %v1011 = vunpack.c.l.b16 %v212
  %v1012 = vunpack.c.h.b16 %v212
  %v1013 = vunpack.c.l.b16 %v213
  %v1014 = vunpack.c.h.b16 %v213
  %v1015 = vunpack.c.l.b16 %v214
  %v1016 = vunpack.c.l.b16 %v215
  %v1017 = vunpack.c.h.b16 %v215
  %v1018 = vunpack.c.l.b16 %v216
  %v1019 = vunpack.c.h.b16 %v216
  %v1020 = vunpack.c.l.b16 %v217
  %v1021 = vunpack.c.h.b16 %v217
  %v1022 = vunpack.c.l.b16 %v218
  %v1023 = vunpack.c.h.b16 %v218
  %v1024 = vunpack.c.l.b16 %v219
  %v1025 = vunpack.c.l.b16 %v220
  %v1026 = vunpack.c.h.b16 %v220
  %v1027 = vunpack.c.l.b16 %v221
  %v1028 = vunpack.c.h.b16 %v221
  %v1029 = vunpack.c.l.b16 %v222
  %v1030 = vunpack.c.h.b16 %v222
  %v1031 = vunpack.c.l.b16 %v223
  %v1032 = vunpack.c.h.b16 %v223
  %v1033 = vunpack.c.l.b16 %v224
  %v1034 = vunpack.c.l.b16 %v225
  %v1035 = vunpack.c.h.b16 %v225
  %v1036 = vunpack.c.l.b16 %v226
  %v1037 = vunpack.c.h.b16 %v226
  %v1038 = vunpack.c.l.b16 %v227
  %v1039 = vunpack.c.h.b16 %v227
  %v1040 = vunpack.c.l.b16 %v228
  %v1041 = vunpack.c.h.b16 %v228
  %v1042 = vunpack.c.l.b16 %v229
  %v1043 = vunpack.c.l.b16 %v230
  %v1044 = vunpack.c.h.b16 %v230
  %v1045 = vunpack.c.l.b16 %v231
  %v1046 = vunpack.c.h.b16 %v231
  %v1047 = vunpack.c.l.b16 %v232
  %v1048 = vunpack.c.h.b16 %v232
  %v1049 = vunpack.c.l.b16 %v233
  %v1050 = vunpack.c.h.b16 %v233
  %v1051 = vunpack.c.l.b16 %v234
  %v1052 = vunpack.c.l.b16 %v235
  %v1053 = vunpack.c.h.b16 %v235
  %v1054 = vunpack.c.l.b16 %v236
  %v1055 = vunpack.c.h.b16 %v236
  %v1056 = vunpack.c.l.b16 %v237
  %v1057 = vunpack.c.h.b16 %v237
  %v1058 = vunpack.c.l.b16 %v238
  %v1059 = vunpack.c.h.b16 %v238
  %v1060 = vunpack.c.l.b16 %v239
  %v1061 = vunpack.c.l.b16 %v240
  %v1062 = vunpack.c.h.b16 %v240
  %v1063 = vunpack.c.l.b16 %v241
  %v1064 = vunpack.c.h.b16 %v241
  %v1065 = vunpack.c.l.b16 %v242
  %v1066 = vunpack.c.h.b16 %v242
  %v1067 = vunpack.c.l.b16 %v243
  %v1068 = vunpack.c.h.b16 %v243
  %v1069 = vunpack.c.l.b16 %v244
  %v1070 = vunpack.c.l.b16 %v245
  %v1071 = vunpack.c.h.b16 %v245
  %v1072 = vunpack.c.l.b16 %v246
  %v1073 = vunpack.c.h.b16 %v246
  %v1074 = vunpack.c.l.b16 %v247
  %v1075 = vunpack.c.h.b16 %v247
  %v1076 = vunpack.c.l.b16 %v248
  %v1077 = vunpack.c.h.b16 %v248
  %v1078 = vunpack.c.l.b16 %v249
  %v1079 = vunpack.c.l.b16 %v250
  %v1080 = vunpack.c.h.b16 %v250
  %v1081 = vunpack.c.l.b16 %v251
  %v1082 = vunpack.c.h.b16 %v251
  %v1083 = vunpack.c.l.b16 %v252
  %v1084 = vunpack.c.h.b16 %v252
  %v1085 = vunpack.c.l.b16 %v253
  %v1086 = vunpack.c.h.b16 %v253
  %v1087 = vunpack.c.l.b16 %v254
  %v1088 = vunpack.c.l.b16 %v255
  %v1089 = vunpack.c.h.b16 %v255
  %v1090 = vunpack.c.l.b16 %v256
  %v1091 = vunpack.c.h.b16 %v256
  %v1092 = vunpack.c.l.b16 %v257
  %v1093 = vunpack.c.h.b16 %v257
  %v1094 = vunpack.c.l.b16 %v258
  %v1095 = vunpack.c.h.b16 %v258
  %v1096 = vunpack.c.l.b16 %v259
  %v1097 = vpack.c.b16 %v665, %v656
  %v1098 = vpack.c.b16 %v666, %v657
  %v1099 = vpack.c.b16 %v667, %v658
  %v1100 = vpack.c.b16 %v668, %v659
  %v1101 = vpack.c.b16 %v669, %v660
  %v1102 = vpack.c.b16 %v670, %v661
  %v1103 = vpack.c.b16 %v671, %v662
  %v1104 = vpack.c.b16 %v672, %v663
  %v1105 = vpack.c.b16 %v673, %v664
  %v1106 = vpack.c.b16 %v683, %v674
  %v1107 = vpack.c.b16 %v684, %v675
  %v1108 = vpack.c.b16 %v685, %v676
  %v1109 = vpack.c.b16 %v686, %v677
  %v1110 = vpack.c.b16 %v687, %v678
  %v1111 = vpack.c.b16 %v688, %v679
  %v1112 = vpack.c.b16 %v689, %v680
  %v1113 = vpack.c.b16 %v690, %v681
  %v1114 = vpack.c.b16 %v691, %v682
  %v1115 = vpack.c.b16 %v701, %v692
  %v1116 = vpack.c.b16 %v702, %v693
  %v1117 = vpack.c.b16 %v703, %v694
  %v1118 = vpack.c.b16 %v704, %v695
  %v1119 = vpack.c.b16 %v705, %v696
  %v1120 = vpack.c.b16 %v706, %v697
  %v1121 = vpack.c.b16 %v707, %v698
  %v1122 = vpack.c.b16 %v708, %v699
  %v1123 = vpack.c.b16 %v709, %v700
  %v1124 = vpack.c.b16 %v719, %v710
  %v1125 = vpack.c.b16 %v720, %v711
  %v1126 = vpack.c.b16 %v721, %v712
  %v1127 = vpack.c.b16 %v722, %v713
  %v1128 = vpack.c.b16 %v723, %v714
  %v1129 = vpack.c.b16 %v724, %v715
  %v1130 = vpack.c.b16 %v725, %v716
  %v1131 = vpack.c.b16 %v726, %v717
  %v1132 = vpack.c.b16 %v727, %v718
  %v1133 = vpack.c.b16 %v737, %v728
  %v1134 = vpack.c.b16 %v738, %v729
  %v1135 = vpack.c.b16 %v739, %v730
  %v1136 = vpack.c.b16 %v740, %v731
  %v1137 = vpack.c.b16 %v741, %v732
  %v1138 = vpack.c.b16 %v742, %v733
  %v1139 = vpack.c.b16 %v743, %v734
  %v1140 = vpack.c.b16 %v744, %v735
  %v1141 = vpack.c.b16 %v745, %v736
  %v1142 = vpack.c.b16 %v755, %v746
  %v1143 = vpack.c.b16 %v756, %v747
  %v1144 = vpack.c.b16 %v757, %v748
  %v1145 = vpack.c.b16 %v758, %v749
  %v1146 = vpack.c.b16 %v759, %v750
  %v1147 = vpack.c.b16 %v760, %v751
  %v1148 = vpack.c.b16 %v761, %v752
  %v1149 = vpack.c.b16 %v762, %v753
  %v1150 = vpack.c.b16 %v763, %v754
  %v1151 = vpack.c.b16 %v773, %v764
  %v1152 = vpack.c.b16 %v774, %v765
  %v1153 = vpack.c.b16 %v775, %v766
  %v1154 = vpack.c.b16 %v776, %v767
  %v1155 = vpack.c.b16 %v777, %v768
  %v1156 = vpack.c.b16 %v778, %v769
  %v1157 = vpack.c.b16 %v779, %v770
  %v1158 = vpack.c.b16 %v780, %v771
  %v1159 = vpack.c.b16 %v781, %v772
  %v1160 = vpack.c.b16 %v791, %v782
  %v1161 = vpack.c.b16 %v792, %v783
  %v1162 = vpack.c.b16 %v793, %v784
  %v1163 = vpack.c.b16 %v794, %v785
  %v1164 = vpack.c.b16 %v795, %v786
  %v1165 = vpack.c.b16 %v796, %v787
  %v1166 = vpack.c.b16 %v797, %v788
  %v1167 = vpack.c.b16 %v798, %v789
  %v1168 = vpack.c.b16 %v799, %v790
  %v1169 = vpack.c.b16 %v809, %v800
  %v1170 = vpack.c.b16 %v810, %v801
  %v1171 = vpack.c.b16 %v811, %v802
  %v1172 = vpack.c.b16 %v812, %v803
  %v1173 = vpack.c.b16 %v813, %v804
  %v1174 = vpack.c.b16 %v814, %v805
  %v1175 = vpack.c.b16 %v815, %v806
  %v1176 = vpack.c.b16 %v816, %v807
  %v1177 = vpack.c.b16 %v817, %v808
  %v1178 = vpack.c.b16 %v827, %v818
  %v1179 = vpack.c.b16 %v828, %v819
  %v1180 = vpack.c.b16 %v829, %v820
  %v1181 = vpack.c.b16 %v830, %v821
  %v1182 = vpack.c.b16 %v831, %v822
  %v1183 = vpack.c.b16 %v832, %v823
  %v1184 = vpack.c.b16 %v833, %v824
  %v1185 = vpack.c.b16 %v834, %v825
  %v1186 = vpack.c.b16 %v835, %v826
  %v1187 = vpack.c.b16 %v845, %v836
  %v1188 = vpack.c.b16 %v846, %v837
  %v1189 = vpack.c.b16 %v847, %v838
  %v1190 = vpack.c.b16 %v848, %v839
  %v1191 = vpack.c.b16 %v849, %v840
  %v1192 = vpack.c.b16 %v850, %v841
  %v1193 = vpack.c.b16 %v851, %v842
  %v1194 = vpack.c.b16 %v852, %v843
  %v1195 = vpack.c.b16 %v853, %v844
  %v1196 = vpack.c.b16 %v863, %v854
  %v1197 = vpack.c.b16 %v864, %v855
  %v1198 = vpack.c.b16 %v865, %v856
  %v1199 = vpack.c.b16 %v866, %v857
  %v1200 = vpack.c.b16 %v867, %v858
  %v1201 = vpack.c.b16 %v868, %v859
  %v1202 = vpack.c.b16 %v869, %v860
  %v1203 = vpack.c.b16 %v870, %v861
  %v1204 = vpack.c.b16 %v871, %v862
  %v1205 = vpack.c.b16 %v881, %v872
  %v1206 = vpack.c.b16 %v882, %v873
  %v1207 = vpack.c.b16 %v883, %v874
  %v1208 = vpack.c.b16 %v884, %v875
  %v1209 = vpack.c.b16 %v885, %v876
  %v1210 = vpack.c.b16 %v886, %v877
  %v1211 = vpack.c.b16 %v887, %v878
  %v1212 = vpack.c.b16 %v888, %v879
  %v1213 = vpack.c.b16 %v889, %v880
  %v1214 = vpack.c.b16 %v899, %v890
  %v1215 = vpack.c.b16 %v900, %v891
  %v1216 = vpack.c.b16 %v901, %v892
  %v1217 = vpack.c.b16 %v902, %v893
  %v1218 = vpack.c.b16 %v903, %v894
  %v1219 = vpack.c.b16 %v904, %v895
  %v1220 = vpack.c.b16 %v905, %v896
  %v1221 = vpack.c.b16 %v906, %v897
  %v1222 = vpack.c.b16 %v907, %v898
  %v1223 = vpack.c.b16 %v917, %v908
  %v1224 = vpack.c.b16 %v918, %v909
  %v1225 = vpack.c.b16 %v919, %v910
  %v1226 = vpack.c.b16 %v920, %v911
  %v1227 = vpack.c.b16 %v921, %v912
  %v1228 = vpack.c.b16 %v922, %v913
  %v1229 = vpack.c.b16 %v923, %v914
  %v1230 = vpack.c.b16 %v924, %v915
  %v1231 = vpack.c.b16 %v925, %v916
  %v1232 = vpack.c.b16 %v935, %v926
  %v1233 = vpack.c.b16 %v936, %v927
  %v1234 = vpack.c.b16 %v937, %v928
  %v1235 = vpack.c.b16 %v938, %v929
  %v1236 = vpack.c.b16 %v939, %v930
  %v1237 = vpack.c.b16 %v940, %v931
  %v1238 = vpack.c.b16 %v941, %v932
  %v1239 = vpack.c.b16 %v942, %v933
  %v1240 = vpack.c.b16 %v943, %v934
  %v1241 = vpack.c.b16 %v953, %v944
  %v1242 = vpack.c.b16 %v954, %v945
  %v1243 = vpack.c.b16 %v955, %v946
  %v1244 = vpack.c.b16 %v956, %v947
  %v1245 = vpack.c.b16 %v957, %v948
  %v1246 = vpack.c.b16 %v958, %v949
  %v1247 = vpack.c.b16 %v959, %v950
  %v1248 = vpack.c.b16 %v960, %v951
  %v1249 = vpack.c.b16 %v961, %v952
  %v1250 = vpack.c.b16 %v971, %v962
  %v1251 = vpack.c.b16 %v972, %v963
  %v1252 = vpack.c.b16 %v973, %v964
  %v1253 = vpack.c.b16 %v974, %v965
  %v1254 = vpack.c.b16 %v975, %v966
  %v1255 = vpack.c.b16 %v976, %v967
  %v1256 = vpack.c.b16 %v977, %v968
  %v1257 = vpack.c.b16 %v978, %v969
  %v1258 = vpack.c.b16 %v979, %v970
  %v1259 = vpack.c.b16 %v989, %v980
  %v1260 = vpack.c.b16 %v990, %v981
  %v1261 = vpack.c.b16 %v991, %v982
  %v1262 = vpack.c.b16 %v992, %v983
  %v1263 = vpack.c.b16 %v993, %v984
  %v1264 = vpack.c.b16 %v994, %v985
  %v1265 = vpack.c.b16 %v995, %v986
  %v1266 = vpack.c.b16 %v996, %v987
  %v1267 = vpack.c.b16 %v997, %v988
  %v1268 = vpack.c.b16 %v1007, %v998
  %v1269 = vpack.c.b16 %v1008, %v999
  %v1270 = vpack.c.b16 %v1009, %v1000
  %v1271 = vpack.c.b16 %v1010, %v1001
  %v1272 = vpack.c.b16 %v1011, %v1002
  %v1273 = vpack.c.b16 %v1012, %v1003
  %v1274 = vpack.c.b16 %v1013, %v1004
  %v1275 = vpack.c.b16 %v1014, %v1005
  %v1276 = vpack.c.b16 %v1015, %v1006
  %v1277 = vpack.c.b16 %v1025, %v1016
  %v1278 = vpack.c.b16 %v1026, %v1017
  %v1279 = vpack.c.b16 %v1027, %v1018
  %v1280 = vpack.c.b16 %v1028, %v1019
  %v1281 = vpack.c.b16 %v1029, %v1020
  %v1282 = vpack.c.b16 %v1030, %v1021
  %v1283 = vpack.c.b16 %v1031, %v1022
  %v1284 = vpack.c.b16 %v1032, %v1023
  %v1285 = vpack.c.b16 %v1033, %v1024
  %v1286 = vpack.c.b16 %v1043, %v1034
  %v1287 = vpack.c.b16 %v1044, %v1035
  %v1288 = vpack.c.b16 %v1045, %v1036
  %v1289 = vpack.c.b16 %v1046, %v1037
  %v1290 = vpack.c.b16 %v1047, %v1038
  %v1291 = vpack.c.b16 %v1048, %v1039
  %v1292 = vpack.c.b16 %v1049, %v1040
  %v1293 = vpack.c.b16 %v1050, %v1041
  %v1294 = vpack.c.b16 %v1051, %v1042
  %v1295 = vpack.c.b16 %v1061, %v1052
  %v1296 = vpack.c.b16 %v1062, %v1053
  %v1297 = vpack.c.b16 %v1063, %v1054
  %v1298 = vpack.c.b16 %v1064, %v1055
  %v1299 = vpack.c.b16 %v1065, %v1056
  %v1300 = vpack.c.b16 %v1066, %v1057
  %v1301 = vpack.c.b16 %v1067, %v1058
  %v1302 = vpack.c.b16 %v1068, %v1059
  %v1303 = vpack.c.b16 %v1069, %v1060
  %v1304 = vpack.c.b16 %v1079, %v1070
  %v1305 = vpack.c.b16 %v1080, %v1071
  %v1306 = vpack.c.b16 %v1081, %v1072
  %v1307 = vpack.c.b16 %v1082, %v1073
  %v1308 = vpack.c.b16 %v1083, %v1074
  %v1309 = vpack.c.b16 %v1084, %v1075
  %v1310 = vpack.c.b16 %v1085, %v1076
  %v1311 = vpack.c.b16 %v1086, %v1077
  %v1312 = vpack.c.b16 %v1087, %v1078
  %v1313 = vpack.c.b16 %v1088, %v1088
  %v1314 = vpack.c.b16 %v1089, %v1089
  %v1315 = vpack.c.b16 %v1090, %v1090
  %v1316 = vpack.c.b16 %v1091, %v1091
  %v1317 = vpack.c.b16 %v1092, %v1092
  %v1318 = vpack.c.b16 %v1093, %v1093
  %v1319 = vpack.c.b16 %v1094, %v1094
  %v1320 = vpack.c.b16 %v1095, %v1095
  %v1321 = vpack.c.b16 %v1096, %v1096
  %v1691 = vunpack.c.l.b16 %v260
  %v1692 = vunpack.c.l.b16 %v261
  %v1693 = vunpack.c.l.b16 %v262
  %v1694 = vunpack.c.l.b16 %v263
  %v1695 = vunpack.c.l.b16 %v264
  %v1696 = vunpack.c.l.b16 %v265
  %v1697 = vunpack.c.l.b16 %v266
  %v1698 = vunpack.c.l.b16 %v267
  %v1699 = vunpack.c.l.b16 %v268
  %v1700 = vunpack.c.l.b16 %v269
  %v1701 = vunpack.c.l.b16 %v270
  %v1702 = vunpack.c.l.b16 %v271
  %v1703 = vunpack.c.l.b16 %v272
  %v1704 = vunpack.c.l.b16 %v273
  %v1705 = vunpack.c.l.b16 %v274
  %v1706 = vunpack.c.l.b16 %v275
  %v1707 = vunpack.c.l.b16 %v276
  %v1708 = vunpack.c.l.b16 %v277
  %v1709 = vunpack.c.l.b16 %v278
  %v1710 = vunpack.c.l.b16 %v279
  %v1711 = vunpack.c.l.b16 %v280
  %v1712 = vunpack.c.l.b16 %v281
  %v1713 = vunpack.c.l.b16 %v282
  %v1714 = vunpack.c.l.b16 %v283
  %v1715 = vunpack.c.l.b16 %v284
  %v1716 = vunpack.c.l.b16 %v285
  %v1717 = vunpack.c.l.b16 %v286
  %v1718 = vunpack.c.l.b16 %v287
  %v1719 = vunpack.c.l.b16 %v288
  %v1720 = vunpack.c.l.b16 %v289
  %v1721 = vunpack.c.l.b16 %v290
  %v1722 = vunpack.c.l.b16 %v291
  %v1723 = vunpack.c.l.b16 %v292
  %v1724 = vunpack.c.l.b16 %v293
  %v1725 = vunpack.c.l.b16 %v294
  %v1726 = vunpack.c.l.b16 %v295
  %v1727 = vunpack.c.l.b16 %v296
  %v1728 = vunpack.c.l.b16 %v297
  %v1729 = vunpack.c.l.b16 %v298
  %v1730 = vunpack.c.l.b16 %v299
  %v1731 = vunpack.c.l.b16 %v300
  %v1732 = vunpack.c.l.b16 %v301
  %v1733 = vunpack.c.l.b16 %v302
  %v1734 = vunpack.c.l.b16 %v303
  %v1735 = vunpack.c.l.b16 %v304
  %v1736 = vunpack.c.l.b16 %v305
  %v1737 = vunpack.c.l.b16 %v306
  %v1738 = vunpack.c.l.b16 %v307
  %v1739 = vunpack.c.l.b16 %v308
  %v1740 = vunpack.c.l.b16 %v309
  %v1741 = vunpack.c.l.b16 %v310
  %v1742 = vunpack.c.l.b16 %v311
  %v1743 = vunpack.c.l.b16 %v312
  %v1744 = vunpack.c.l.b16 %v313
  %v1745 = vunpack.c.l.b16 %v314
  %v1746 = vunpack.c.l.b16 %v315
  %v1747 = vunpack.c.l.b16 %v316
  %v1748 = vunpack.c.l.b16 %v317
  %v1749 = vunpack.c.l.b16 %v318
  %v1750 = vunpack.c.l.b16 %v319
  %v1751 = vunpack.c.l.b16 %v320
  %v1752 = vunpack.c.l.b16 %v321
  %v1753 = vunpack.c.l.b16 %v322
  %v1754 = vunpack.c.l.b16 %v323
  %v1755 = vunpack.c.l.b16 %v324
  %v1756 = vunpack.c.l.b16 %v325
  %v1757 = vunpack.c.l.b16 %v326
  %v1758 = vunpack.c.l.b16 %v327
  %v1759 = vunpack.c.l.b16 %v328
  %v1760 = vunpack.c.l.b16 %v329
  %v1761 = vunpack.c.l.b16 %v330
  %v1762 = vunpack.c.l.b16 %v331
  %v1763 = vunpack.c.l.b16 %v332
  %v1764 = vunpack.c.l.b16 %v333
  %v1765 = vunpack.c.l.b16 %v334
  %v1766 = vunpack.c.l.b16 %v335
  %v1767 = vunpack.c.l.b16 %v336
  %v1768 = vunpack.c.l.b16 %v337
  %v1769 = vunpack.c.l.b16 %v338
  %v1770 = vunpack.c.l.b16 %v339
  %v1771 = vunpack.c.l.b16 %v340
  %v1772 = vunpack.c.l.b16 %v341
  %v1773 = vunpack.c.l.b16 %v342
  %v1774 = vunpack.c.l.b16 %v343
  %v1775 = vunpack.c.l.b16 %v344
  %v1776 = vunpack.c.l.b16 %v345
  %v1777 = vunpack.c.l.b16 %v346
  %v1778 = vunpack.c.l.b16 %v347
  %v1779 = vunpack.c.l.b16 %v348
  %v1780 = vunpack.c.l.b16 %v349
  %v1781 = vunpack.c.l.b16 %v350
  %v1782 = vunpack.c.l.b16 %v351
  %v1783 = vunpack.c.l.b16 %v352
  %v1784 = vunpack.c.l.b16 %v353
  %v1785 = vunpack.c.l.b16 %v354
  %v1786 = vunpack.c.l.b16 %v355
  %v1787 = vunpack.c.l.b16 %v356
  %v1788 = vunpack.c.l.b16 %v357
  %v1789 = vunpack.c.l.b16 %v358
  %v1790 = vunpack.c.l.b16 %v359
  %v1791 = vunpack.c.l.b16 %v360
  %v1792 = vunpack.c.l.b16 %v361
  %v1793 = vunpack.c.l.b16 %v362
  %v1794 = vunpack.c.l.b16 %v363
  %v1795 = vunpack.c.l.b16 %v364
  %v1796 = vunpack.c.l.b16 %v365
  %v1797 = vunpack.c.l.b16 %v366
  %v1798 = vunpack.c.l.b16 %v367
  %v1799 = vunpack.c.l.b16 %v368
  %v1800 = vunpack.c.l.b16 %v369
  %v1801 = vunpack.c.l.b16 %v370
  %v1802 = vunpack.c.l.b16 %v371
  %v1803 = vunpack.c.l.b16 %v372
  %v1804 = vunpack.c.l.b16 %v373
  %v1805 = vunpack.c.l.b16 %v374
  %v1806 = vunpack.c.l.b16 %v375
  %v1807 = vunpack.c.l.b16 %v376
  %v1808 = vunpack.c.l.b16 %v377
  %v1809 = vunpack.c.l.b16 %v378
  %v1810 = vunpack.c.l.b16 %v379
  %v1811 = vunpack.c.l.b16 %v380
  %v1812 = vunpack.c.l.b16 %v381
  %v1813 = vunpack.c.l.b16 %v382
  %v1814 = vunpack.c.l.b16 %v383
  %v1815 = vunpack.c.l.b16 %v384
  %v1816 = vunpack.c.l.b16 %v385
  %v1817 = vunpack.c.l.b16 %v386
  %v1818 = vunpack.c.l.b16 %v387
  %v1819 = vunpack.c.l.b16 %v388
  %v1820 = vunpack.c.l.b16 %v389
  %v1821 = vunpack.c.l.b16 %v390
  %v1822 = vunpack.c.l.b16 %v391
  %v1823 = vunpack.c.l.b16 %v392
  %v1824 = vunpack.c.l.b16 %v393
  %v1825 = vunpack.c.l.b16 %v394
  %v1826 = vunpack.c.l.b16 %v395
  %v1827 = vunpack.c.l.b16 %v396
  %v1828 = vunpack.c.l.b16 %v397
  %v1829 = vunpack.c.l.b16 %v398
  %v1830 = vunpack.c.l.b16 %v399
  %v1831 = vunpack.c.l.b16 %v400
  %v1832 = vunpack.c.l.b16 %v401
  %v1833 = vunpack.c.l.b16 %v402
  %v1834 = vunpack.c.l.b16 %v403
  %v1835 = vpack.c.b16 %v1692, %v1691
  %v1836 = vpack.c.b16 %v1694, %v1693
  %v1837 = vpack.c.b16 %v1696, %v1695
  %v1838 = vpack.c.b16 %v1698, %v1697
  %v1839 = vpack.c.b16 %v1700, %v1699
  %v1840 = vpack.c.b16 %v1702, %v1701
  %v1841 = vpack.c.b16 %v1704, %v1703
  %v1842 = vpack.c.b16 %v1706, %v1705
  %v1843 = vpack.c.b16 %v1708, %v1707
  %v1844 = vpack.c.b16 %v1710, %v1709
  %v1845 = vpack.c.b16 %v1712, %v1711
  %v1846 = vpack.c.b16 %v1714, %v1713
  %v1847 = vpack.c.b16 %v1716, %v1715
  %v1848 = vpack.c.b16 %v1718, %v1717
  %v1849 = vpack.c.b16 %v1720, %v1719
  %v1850 = vpack.c.b16 %v1722, %v1721
  %v1851 = vpack.c.b16 %v1724, %v1723
  %v1852 = vpack.c.b16 %v1726, %v1725
  %v1853 = vpack.c.b16 %v1728, %v1727
  %v1854 = vpack.c.b16 %v1730, %v1729
  %v1855 = vpack.c.b16 %v1732, %v1731
  %v1856 = vpack.c.b16 %v1734, %v1733
  %v1857 = vpack.c.b16 %v1736, %v1735
  %v1858 = vpack.c.b16 %v1738, %v1737
  %v1859 = vpack.c.b16 %v1740, %v1739
  %v1860 = vpack.c.b16 %v1742, %v1741
  %v1861 = vpack.c.b16 %v1744, %v1743
  %v1862 = vpack.c.b16 %v1746, %v1745
  %v1863 = vpack.c.b16 %v1748, %v1747
  %v1864 = vpack.c.b16 %v1750, %v1749
  %v1865 = vpack.c.b16 %v1752, %v1751
  %v1866 = vpack.c.b16 %v1754, %v1753
  %v1867 = vpack.c.b16 %v1756, %v1755
  %v1868 = vpack.c.b16 %v1758, %v1757
  %v1869 = vpack.c.b16 %v1760, %v1759
  %v1870 = vpack.c.b16 %v1762, %v1761
  %v1871 = vpack.c.b16 %v1764, %v1763
  %v1872 = vpack.c.b16 %v1766, %v1765
  %v1873 = vpack.c.b16 %v1768, %v1767
  %v1874 = vpack.c.b16 %v1770, %v1769
  %v1875 = vpack.c.b16 %v1772, %v1771
  %v1876 = vpack.c.b16 %v1774, %v1773
  %v1877 = vpack.c.b16 %v1776, %v1775
  %v1878 = vpack.c.b16 %v1778, %v1777
  %v1879 = vpack.c.b16 %v1780, %v1779
  %v1880 = vpack.c.b16 %v1782, %v1781
  %v1881 = vpack.c.b16 %v1784, %v1783
  %v1882 = vpack.c.b16 %v1786, %v1785
  %v1883 = vpack.c.b16 %v1788, %v1787
  %v1884 = vpack.c.b16 %v1790, %v1789
  %v1885 = vpack.c.b16 %v1792, %v1791
  %v1886 = vpack.c.b16 %v1794, %v1793
  %v1887 = vpack.c.b16 %v1796, %v1795
  %v1888 = vpack.c.b16 %v1798, %v1797
  %v1889 = vpack.c.b16 %v1800, %v1799
  %v1890 = vpack.c.b16 %v1802, %v1801
  %v1891 = vpack.c.b16 %v1804, %v1803
  %v1892 = vpack.c.b16 %v1806, %v1805
  %v1893 = vpack.c.b16 %v1808, %v1807
  %v1894 = vpack.c.b16 %v1810, %v1809
  %v1895 = vpack.c.b16 %v1812, %v1811
  %v1896 = vpack.c.b16 %v1814, %v1813
  %v1897 = vpack.c.b16 %v1816, %v1815
  %v1898 = vpack.c.b16 %v1818, %v1817
  %v1899 = vpack.c.b16 %v1820, %v1819
  %v1900 = vpack.c.b16 %v1822, %v1821
  %v1901 = vpack.c.b16 %v1824, %v1823
  %v1902 = vpack.c.b16 %v1826, %v1825
  %v1903 = vpack.c.b16 %v1828, %v1827
  %v1904 = vpack.c.b16 %v1830, %v1829
  %v1905 = vpack.c.b16 %v1832, %v1831
  %v1906 = vpack.c.b16 %v1834, %v1833
  %1979 = vmatprep.subr.bf16.mxu0 0
  %1980 = vmatpush1.bf16.msra.mxu0 %v1842
  %1981 = vmatprep.subr.bf16.mxu0 0
  %1982 = vmatpush1.bf16.msra.mxu0 %v1841
  %1983 = vmatprep.subr.bf16.mxu0 0
  %1984 = vmatpush1.bf16.msra.mxu0 %v1840
  %1985 = vmatprep.subr.bf16.mxu0 0
  %1986 = vmatpush1.bf16.msra.mxu0 %v1839
  %1987 = vmatprep.subr.bf16.mxu0 0
  %1988 = vmatpush1.bf16.msra.mxu0 %v1838
  %1989 = vmatprep.subr.bf16.mxu0 0
  %1990 = vmatpush1.bf16.msra.mxu0 %v1837
  %1991 = vmatprep.subr.bf16.mxu0 0
  %1992 = vmatpush1.bf16.msra.mxu0 %v1836
  %1993 = vmatprep.subr.bf16.mxu0 0
  %1994 = vmatpush1.bf16.msra.mxu0 %v1835
  %1995 = vmatprep.subr.bf16.mxu0 0
  %1996 = vmatpush2.bf16.msra.mxu0 %v1850
  %1997 = vmatprep.subr.bf16.mxu0 0
  %1998 = vmatpush2.bf16.msra.mxu0 %v1849
  %1999 = vmatprep.subr.bf16.mxu0 0
  %2000 = vmatpush2.bf16.msra.mxu0 %v1848
  %2001 = vmatprep.subr.bf16.mxu0 0
  %2002 = vmatpush2.bf16.msra.mxu0 %v1847
  %2003 = vmatprep.subr.bf16.mxu0 0
  %2004 = vmatpush2.bf16.msra.mxu0 %v1846
  %2005 = vmatprep.subr.bf16.mxu0 0
  %2006 = vmatpush2.bf16.msra.mxu0 %v1845
  %2007 = vmatprep.subr.bf16.mxu0 0
  %2008 = vmatpush2.bf16.msra.mxu0 %v1844
  %2009 = vmatprep.subr.bf16.mxu0 0
  %2010 = vmatpush2.bf16.msra.mxu0 %v1843
  %2011 = vmatprep.mubr.bf16.mxu0 %v1098
  %2012 = vmatmul.mubr.bf16.gmra.mxu0 %v1097
  %v2013 = vpop.f32.mrf.mxu0
  %v2014 = vadd.f32 %v409, %v2013
  %v2015 = vpop.f32.mrf.mxu0
  %v2016 = vpop.f32.mrf.mxu0
  %v2017 = vadd.f32 %v409, %v2016
  %v2018 = vpop.f32.mrf.mxu0
  %2019 = vmatprep.mubr.bf16.mxu0 %v1107
  %2020 = vmatmul.mubr.bf16.gmra.mxu0 %v1106
  %v2021 = vpop.f32.mrf.mxu0
  %v2022 = vadd.f32 %v409, %v2021
  %v2023 = vpop.f32.mrf.mxu0
  %v2024 = vpop.f32.mrf.mxu0
  %v2025 = vadd.f32 %v409, %v2024
  %v2026 = vpop.f32.mrf.mxu0
  %2027 = vmatprep.mubr.bf16.mxu0 %v1116
  %2028 = vmatmul.mubr.bf16.gmra.mxu0 %v1115
  %v2029 = vpop.f32.mrf.mxu0
  %v2030 = vadd.f32 %v409, %v2029
  %v2031 = vpop.f32.mrf.mxu0
  %v2032 = vpop.f32.mrf.mxu0
  %v2033 = vadd.f32 %v409, %v2032
  %v2034 = vpop.f32.mrf.mxu0
  %2035 = vmatprep.mubr.bf16.mxu0 %v1125
  %2036 = vmatmul.mubr.bf16.gmra.mxu0 %v1124
  %v2037 = vpop.f32.mrf.mxu0
  %v2038 = vadd.f32 %v409, %v2037
  %v2039 = vpop.f32.mrf.mxu0
  %v2040 = vpop.f32.mrf.mxu0
  %v2041 = vadd.f32 %v409, %v2040
  %v2042 = vpop.f32.mrf.mxu0
  %2043 = vmatprep.mubr.bf16.mxu0 %v1134
  %2044 = vmatmul.mubr.bf16.gmra.mxu0 %v1133
  %v2045 = vpop.f32.mrf.mxu0
  %v2046 = vadd.f32 %v409, %v2045
  %v2047 = vpop.f32.mrf.mxu0
  %v2048 = vpop.f32.mrf.mxu0
  %v2049 = vadd.f32 %v409, %v2048
  %v2050 = vpop.f32.mrf.mxu0
  %2051 = vmatprep.mubr.bf16.mxu0 %v1143
  %2052 = vmatmul.mubr.bf16.gmra.mxu0 %v1142
  %v2053 = vpop.f32.mrf.mxu0
  %v2054 = vadd.f32 %v409, %v2053
  %v2055 = vpop.f32.mrf.mxu0
  %v2056 = vpop.f32.mrf.mxu0
  %v2057 = vadd.f32 %v409, %v2056
  %v2058 = vpop.f32.mrf.mxu0
  %2059 = vmatprep.mubr.bf16.mxu0 %v1152
  %2060 = vmatmul.mubr.bf16.gmra.mxu0 %v1151
  %v2061 = vpop.f32.mrf.mxu0
  %v2062 = vadd.f32 %v409, %v2061
  %v2063 = vpop.f32.mrf.mxu0
  %v2064 = vpop.f32.mrf.mxu0
  %v2065 = vadd.f32 %v409, %v2064
  %v2066 = vpop.f32.mrf.mxu0
  %2067 = vmatprep.mubr.bf16.mxu0 %v1161
  %2068 = vmatmul.mubr.bf16.gmra.mxu0 %v1160
  %v2069 = vpop.f32.mrf.mxu0
  %v2070 = vadd.f32 %v409, %v2069
  %v2071 = vpop.f32.mrf.mxu0
  %v2072 = vpop.f32.mrf.mxu0
  %v2073 = vadd.f32 %v409, %v2072
  %v2074 = vpop.f32.mrf.mxu0
  %2075 = vmatprep.mubr.bf16.mxu0 %v1170
  %2076 = vmatmul.mubr.bf16.gmra.mxu0 %v1169
  %v2077 = vpop.f32.mrf.mxu0
  %v2078 = vadd.f32 %v409, %v2077
  %v2079 = vpop.f32.mrf.mxu0
  %v2080 = vpop.f32.mrf.mxu0
  %v2081 = vadd.f32 %v409, %v2080
  %v2082 = vpop.f32.mrf.mxu0
  %2083 = vmatprep.mubr.bf16.mxu0 %v1179
  %2084 = vmatmul.mubr.bf16.gmra.mxu0 %v1178
  %v2085 = vpop.f32.mrf.mxu0
  %v2086 = vadd.f32 %v409, %v2085
  %v2087 = vpop.f32.mrf.mxu0
  %v2088 = vpop.f32.mrf.mxu0
  %v2089 = vadd.f32 %v409, %v2088
  %v2090 = vpop.f32.mrf.mxu0
  %2091 = vmatprep.mubr.bf16.mxu0 %v1188
  %2092 = vmatmul.mubr.bf16.gmra.mxu0 %v1187
  %v2093 = vpop.f32.mrf.mxu0
  %v2094 = vadd.f32 %v409, %v2093
  %v2095 = vpop.f32.mrf.mxu0
  %v2096 = vpop.f32.mrf.mxu0
  %v2097 = vadd.f32 %v409, %v2096
  %v2098 = vpop.f32.mrf.mxu0
  %2099 = vmatprep.mubr.bf16.mxu0 %v1197
  %2100 = vmatmul.mubr.bf16.gmra.mxu0 %v1196
  %v2101 = vpop.f32.mrf.mxu0
  %v2102 = vadd.f32 %v409, %v2101
  %v2103 = vpop.f32.mrf.mxu0
  %v2104 = vpop.f32.mrf.mxu0
  %v2105 = vadd.f32 %v409, %v2104
  %v2106 = vpop.f32.mrf.mxu0
  %2107 = vmatprep.mubr.bf16.mxu0 %v1206
  %2108 = vmatmul.mubr.bf16.gmra.mxu0 %v1205
  %v2109 = vpop.f32.mrf.mxu0
  %v2110 = vadd.f32 %v409, %v2109
  %v2111 = vpop.f32.mrf.mxu0
  %v2112 = vpop.f32.mrf.mxu0
  %v2113 = vadd.f32 %v409, %v2112
  %v2114 = vpop.f32.mrf.mxu0
  %2115 = vmatprep.mubr.bf16.mxu0 %v1215
  %2116 = vmatmul.mubr.bf16.gmra.mxu0 %v1214
  %v2117 = vpop.f32.mrf.mxu0
  %v2118 = vadd.f32 %v409, %v2117
  %v2119 = vpop.f32.mrf.mxu0
  %v2120 = vpop.f32.mrf.mxu0
  %v2121 = vadd.f32 %v409, %v2120
  %v2122 = vpop.f32.mrf.mxu0
  %2123 = vmatprep.mubr.bf16.mxu0 %v1224
  %2124 = vmatmul.mubr.bf16.gmra.mxu0 %v1223
  %v2125 = vpop.f32.mrf.mxu0
  %v2126 = vadd.f32 %v409, %v2125
  %v2127 = vpop.f32.mrf.mxu0
  %v2128 = vpop.f32.mrf.mxu0
  %v2129 = vadd.f32 %v409, %v2128
  %v2130 = vpop.f32.mrf.mxu0
  %2131 = vmatprep.mubr.bf16.mxu0 %v1233
  %2132 = vmatmul.mubr.bf16.gmra.mxu0 %v1232
  %v2133 = vpop.f32.mrf.mxu0
  %v2134 = vadd.f32 %v409, %v2133
  %v2135 = vpop.f32.mrf.mxu0
  %v2136 = vpop.f32.mrf.mxu0
  %v2137 = vadd.f32 %v409, %v2136
  %v2138 = vpop.f32.mrf.mxu0
  %2139 = vmatprep.mubr.bf16.mxu0 %v1242
  %2140 = vmatmul.mubr.bf16.gmra.mxu0 %v1241
  %v2141 = vpop.f32.mrf.mxu0
  %v2142 = vadd.f32 %v409, %v2141
  %v2143 = vpop.f32.mrf.mxu0
  %v2144 = vpop.f32.mrf.mxu0
  %v2145 = vadd.f32 %v409, %v2144
  %v2146 = vpop.f32.mrf.mxu0
  %2147 = vmatprep.mubr.bf16.mxu0 %v1251
  %2148 = vmatmul.mubr.bf16.gmra.mxu0 %v1250
  %v2149 = vpop.f32.mrf.mxu0
  %v2150 = vadd.f32 %v409, %v2149
  %v2151 = vpop.f32.mrf.mxu0
  %v2152 = vpop.f32.mrf.mxu0
  %v2153 = vadd.f32 %v409, %v2152
  %v2154 = vpop.f32.mrf.mxu0
  %2155 = vmatprep.mubr.bf16.mxu0 %v1260
  %2156 = vmatmul.mubr.bf16.gmra.mxu0 %v1259
  %v2157 = vpop.f32.mrf.mxu0
  %v2158 = vadd.f32 %v409, %v2157
  %v2159 = vpop.f32.mrf.mxu0
  %v2160 = vpop.f32.mrf.mxu0
  %v2161 = vadd.f32 %v409, %v2160
  %v2162 = vpop.f32.mrf.mxu0
  %2163 = vmatprep.mubr.bf16.mxu0 %v1269
  %2164 = vmatmul.mubr.bf16.gmra.mxu0 %v1268
  %v2165 = vpop.f32.mrf.mxu0
  %v2166 = vadd.f32 %v409, %v2165
  %v2167 = vpop.f32.mrf.mxu0
  %v2168 = vpop.f32.mrf.mxu0
  %v2169 = vadd.f32 %v409, %v2168
  %v2170 = vpop.f32.mrf.mxu0
  %2171 = vmatprep.mubr.bf16.mxu0 %v1278
  %2172 = vmatmul.mubr.bf16.gmra.mxu0 %v1277
  %v2173 = vpop.f32.mrf.mxu0
  %v2174 = vadd.f32 %v409, %v2173
  %v2175 = vpop.f32.mrf.mxu0
  %v2176 = vpop.f32.mrf.mxu0
  %v2177 = vadd.f32 %v409, %v2176
  %v2178 = vpop.f32.mrf.mxu0
  %2179 = vmatprep.mubr.bf16.mxu0 %v1287
  %2180 = vmatmul.mubr.bf16.gmra.mxu0 %v1286
  %v2181 = vpop.f32.mrf.mxu0
  %v2182 = vadd.f32 %v409, %v2181
  %v2183 = vpop.f32.mrf.mxu0
  %v2184 = vpop.f32.mrf.mxu0
  %v2185 = vadd.f32 %v409, %v2184
  %v2186 = vpop.f32.mrf.mxu0
  %2187 = vmatprep.mubr.bf16.mxu0 %v1296
  %2188 = vmatmul.mubr.bf16.gmra.mxu0 %v1295
  %v2189 = vpop.f32.mrf.mxu0
  %v2190 = vadd.f32 %v409, %v2189
  %v2191 = vpop.f32.mrf.mxu0
  %v2192 = vpop.f32.mrf.mxu0
  %v2193 = vadd.f32 %v409, %v2192
  %v2194 = vpop.f32.mrf.mxu0
  %2195 = vmatprep.mubr.bf16.mxu0 %v1305
  %2196 = vmatmul.mubr.bf16.gmra.mxu0 %v1304
  %v2197 = vpop.f32.mrf.mxu0
  %v2198 = vadd.f32 %v409, %v2197
  %v2199 = vpop.f32.mrf.mxu0
  %v2200 = vpop.f32.mrf.mxu0
  %v2201 = vadd.f32 %v409, %v2200
  %v2202 = vpop.f32.mrf.mxu0
  %2203 = vmatprep.mubr.bf16.mxu0 %v1314
  %2204 = vmatmul.mubr.bf16.gmra.mxu0 %v1313
  %v2205 = vpop.f32.mrf.mxu0
  %v2206 = vadd.f32 %v409, %v2205
  %v2207 = vpop.f32.mrf.mxu0
  %v2208 = vpop.f32.mrf.mxu0
  %v2209 = vpop.f32.mrf.mxu0
  %2210 = vdwg.mxu0
  %2211 = vmatprep.subr.bf16.mxu0 0
  %2212 = vmatpush1.bf16.msra.mxu0 %v1858
  %2213 = vmatprep.subr.bf16.mxu0 0
  %2214 = vmatpush1.bf16.msra.mxu0 %v1857
  %2215 = vmatprep.subr.bf16.mxu0 0
  %2216 = vmatpush1.bf16.msra.mxu0 %v1856
  %2217 = vmatprep.subr.bf16.mxu0 0
  %2218 = vmatpush1.bf16.msra.mxu0 %v1855
  %2219 = vmatprep.subr.bf16.mxu0 0
  %2220 = vmatpush1.bf16.msra.mxu0 %v1854
  %2221 = vmatprep.subr.bf16.mxu0 0
  %2222 = vmatpush1.bf16.msra.mxu0 %v1853
  %2223 = vmatprep.subr.bf16.mxu0 0
  %2224 = vmatpush1.bf16.msra.mxu0 %v1852
  %2225 = vmatprep.subr.bf16.mxu0 0
  %2226 = vmatpush1.bf16.msra.mxu0 %v1851
  %2227 = vmatprep.subr.bf16.mxu0 0
  %2228 = vmatpush2.bf16.msra.mxu0 %v1866
  %2229 = vmatprep.subr.bf16.mxu0 0
  %2230 = vmatpush2.bf16.msra.mxu0 %v1865
  %2231 = vmatprep.subr.bf16.mxu0 0
  %2232 = vmatpush2.bf16.msra.mxu0 %v1864
  %2233 = vmatprep.subr.bf16.mxu0 0
  %2234 = vmatpush2.bf16.msra.mxu0 %v1863
  %2235 = vmatprep.subr.bf16.mxu0 0
  %2236 = vmatpush2.bf16.msra.mxu0 %v1862
  %2237 = vmatprep.subr.bf16.mxu0 0
  %2238 = vmatpush2.bf16.msra.mxu0 %v1861
  %2239 = vmatprep.subr.bf16.mxu0 0
  %2240 = vmatpush2.bf16.msra.mxu0 %v1860
  %2241 = vmatprep.subr.bf16.mxu0 0
  %2242 = vmatpush2.bf16.msra.mxu0 %v1859
  %2243 = vmatprep.mubr.bf16.mxu0 %v1100
  %2244 = vmatmul.mubr.bf16.gmra.mxu0 %v1099
  %v2245 = vpop.f32.mrf.mxu0
  %v2246 = vadd.f32 %v2014, %v2245
  %v2247 = vpop.f32.mrf.mxu0
  %v2248 = vpop.f32.mrf.mxu0
  %v2249 = vadd.f32 %v2017, %v2248
  %v2250 = vpop.f32.mrf.mxu0
  %2251 = vmatprep.mubr.bf16.mxu0 %v1109
  %2252 = vmatmul.mubr.bf16.gmra.mxu0 %v1108
  %v2253 = vpop.f32.mrf.mxu0
  %v2254 = vadd.f32 %v2022, %v2253
  %v2255 = vpop.f32.mrf.mxu0
  %v2256 = vpop.f32.mrf.mxu0
  %v2257 = vadd.f32 %v2025, %v2256
  %v2258 = vpop.f32.mrf.mxu0
  %2259 = vmatprep.mubr.bf16.mxu0 %v1118
  %2260 = vmatmul.mubr.bf16.gmra.mxu0 %v1117
  %v2261 = vpop.f32.mrf.mxu0
  %v2262 = vadd.f32 %v2030, %v2261
  %v2263 = vpop.f32.mrf.mxu0
  %v2264 = vpop.f32.mrf.mxu0
  %v2265 = vadd.f32 %v2033, %v2264
  %v2266 = vpop.f32.mrf.mxu0
  %2267 = vmatprep.mubr.bf16.mxu0 %v1127
  %2268 = vmatmul.mubr.bf16.gmra.mxu0 %v1126
  %v2269 = vpop.f32.mrf.mxu0
  %v2270 = vadd.f32 %v2038, %v2269
  %v2271 = vpop.f32.mrf.mxu0
  %v2272 = vpop.f32.mrf.mxu0
  %v2273 = vadd.f32 %v2041, %v2272
  %v2274 = vpop.f32.mrf.mxu0
  %2275 = vmatprep.mubr.bf16.mxu0 %v1136
  %2276 = vmatmul.mubr.bf16.gmra.mxu0 %v1135
  %v2277 = vpop.f32.mrf.mxu0
  %v2278 = vadd.f32 %v2046, %v2277
  %v2279 = vpop.f32.mrf.mxu0
  %v2280 = vpop.f32.mrf.mxu0
  %v2281 = vadd.f32 %v2049, %v2280
  %v2282 = vpop.f32.mrf.mxu0
  %2283 = vmatprep.mubr.bf16.mxu0 %v1145
  %2284 = vmatmul.mubr.bf16.gmra.mxu0 %v1144
  %v2285 = vpop.f32.mrf.mxu0
  %v2286 = vadd.f32 %v2054, %v2285
  %v2287 = vpop.f32.mrf.mxu0
  %v2288 = vpop.f32.mrf.mxu0
  %v2289 = vadd.f32 %v2057, %v2288
  %v2290 = vpop.f32.mrf.mxu0
  %2291 = vmatprep.mubr.bf16.mxu0 %v1154
  %2292 = vmatmul.mubr.bf16.gmra.mxu0 %v1153
  %v2293 = vpop.f32.mrf.mxu0
  %v2294 = vadd.f32 %v2062, %v2293
  %v2295 = vpop.f32.mrf.mxu0
  %v2296 = vpop.f32.mrf.mxu0
  %v2297 = vadd.f32 %v2065, %v2296
  %v2298 = vpop.f32.mrf.mxu0
  %2299 = vmatprep.mubr.bf16.mxu0 %v1163
  %2300 = vmatmul.mubr.bf16.gmra.mxu0 %v1162
  %v2301 = vpop.f32.mrf.mxu0
  %v2302 = vadd.f32 %v2070, %v2301
  %v2303 = vpop.f32.mrf.mxu0
  %v2304 = vpop.f32.mrf.mxu0
  %v2305 = vadd.f32 %v2073, %v2304
  %v2306 = vpop.f32.mrf.mxu0
  %2307 = vmatprep.mubr.bf16.mxu0 %v1172
  %2308 = vmatmul.mubr.bf16.gmra.mxu0 %v1171
  %v2309 = vpop.f32.mrf.mxu0
  %v2310 = vadd.f32 %v2078, %v2309
  %v2311 = vpop.f32.mrf.mxu0
  %v2312 = vpop.f32.mrf.mxu0
  %v2313 = vadd.f32 %v2081, %v2312
  %v2314 = vpop.f32.mrf.mxu0
  %2315 = vmatprep.mubr.bf16.mxu0 %v1181
  %2316 = vmatmul.mubr.bf16.gmra.mxu0 %v1180
  %v2317 = vpop.f32.mrf.mxu0
  %v2318 = vadd.f32 %v2086, %v2317
  %v2319 = vpop.f32.mrf.mxu0
  %v2320 = vpop.f32.mrf.mxu0
  %v2321 = vadd.f32 %v2089, %v2320
  %v2322 = vpop.f32.mrf.mxu0
  %2323 = vmatprep.mubr.bf16.mxu0 %v1190
  %2324 = vmatmul.mubr.bf16.gmra.mxu0 %v1189
  %v2325 = vpop.f32.mrf.mxu0
  %v2326 = vadd.f32 %v2094, %v2325
  %v2327 = vpop.f32.mrf.mxu0
  %v2328 = vpop.f32.mrf.mxu0
  %v2329 = vadd.f32 %v2097, %v2328
  %v2330 = vpop.f32.mrf.mxu0
  %2331 = vmatprep.mubr.bf16.mxu0 %v1199
  %2332 = vmatmul.mubr.bf16.gmra.mxu0 %v1198
  %v2333 = vpop.f32.mrf.mxu0
  %v2334 = vadd.f32 %v2102, %v2333
  %v2335 = vpop.f32.mrf.mxu0
  %v2336 = vpop.f32.mrf.mxu0
  %v2337 = vadd.f32 %v2105, %v2336
  %v2338 = vpop.f32.mrf.mxu0
  %2339 = vmatprep.mubr.bf16.mxu0 %v1208
  %2340 = vmatmul.mubr.bf16.gmra.mxu0 %v1207
  %v2341 = vpop.f32.mrf.mxu0
  %v2342 = vadd.f32 %v2110, %v2341
  %v2343 = vpop.f32.mrf.mxu0
  %v2344 = vpop.f32.mrf.mxu0
  %v2345 = vadd.f32 %v2113, %v2344
  %v2346 = vpop.f32.mrf.mxu0
  %2347 = vmatprep.mubr.bf16.mxu0 %v1217
  %2348 = vmatmul.mubr.bf16.gmra.mxu0 %v1216
  %v2349 = vpop.f32.mrf.mxu0
  %v2350 = vadd.f32 %v2118, %v2349
  %v2351 = vpop.f32.mrf.mxu0
  %v2352 = vpop.f32.mrf.mxu0
  %v2353 = vadd.f32 %v2121, %v2352
  %v2354 = vpop.f32.mrf.mxu0
  %2355 = vmatprep.mubr.bf16.mxu0 %v1226
  %2356 = vmatmul.mubr.bf16.gmra.mxu0 %v1225
  %v2357 = vpop.f32.mrf.mxu0
  %v2358 = vadd.f32 %v2126, %v2357
  %v2359 = vpop.f32.mrf.mxu0
  %v2360 = vpop.f32.mrf.mxu0
  %v2361 = vadd.f32 %v2129, %v2360
  %v2362 = vpop.f32.mrf.mxu0
  %2363 = vmatprep.mubr.bf16.mxu0 %v1235
  %2364 = vmatmul.mubr.bf16.gmra.mxu0 %v1234
  %v2365 = vpop.f32.mrf.mxu0
  %v2366 = vadd.f32 %v2134, %v2365
  %v2367 = vpop.f32.mrf.mxu0
  %v2368 = vpop.f32.mrf.mxu0
  %v2369 = vadd.f32 %v2137, %v2368
  %v2370 = vpop.f32.mrf.mxu0
  %2371 = vmatprep.mubr.bf16.mxu0 %v1244
  %2372 = vmatmul.mubr.bf16.gmra.mxu0 %v1243
  %v2373 = vpop.f32.mrf.mxu0
  %v2374 = vadd.f32 %v2142, %v2373
  %v2375 = vpop.f32.mrf.mxu0
  %v2376 = vpop.f32.mrf.mxu0
  %v2377 = vadd.f32 %v2145, %v2376
  %v2378 = vpop.f32.mrf.mxu0
  %2379 = vmatprep.mubr.bf16.mxu0 %v1253
  %2380 = vmatmul.mubr.bf16.gmra.mxu0 %v1252
  %v2381 = vpop.f32.mrf.mxu0
  %v2382 = vadd.f32 %v2150, %v2381
  %v2383 = vpop.f32.mrf.mxu0
  %v2384 = vpop.f32.mrf.mxu0
  %v2385 = vadd.f32 %v2153, %v2384
  %v2386 = vpop.f32.mrf.mxu0
  %2387 = vmatprep.mubr.bf16.mxu0 %v1262
  %2388 = vmatmul.mubr.bf16.gmra.mxu0 %v1261
  %v2389 = vpop.f32.mrf.mxu0
  %v2390 = vadd.f32 %v2158, %v2389
  %v2391 = vpop.f32.mrf.mxu0
  %v2392 = vpop.f32.mrf.mxu0
  %v2393 = vadd.f32 %v2161, %v2392
  %v2394 = vpop.f32.mrf.mxu0
  %2395 = vmatprep.mubr.bf16.mxu0 %v1271
  %2396 = vmatmul.mubr.bf16.gmra.mxu0 %v1270
  %v2397 = vpop.f32.mrf.mxu0
  %v2398 = vadd.f32 %v2166, %v2397
  %v2399 = vpop.f32.mrf.mxu0
  %v2400 = vpop.f32.mrf.mxu0
  %v2401 = vadd.f32 %v2169, %v2400
  %v2402 = vpop.f32.mrf.mxu0
  %2403 = vmatprep.mubr.bf16.mxu0 %v1280
  %2404 = vmatmul.mubr.bf16.gmra.mxu0 %v1279
  %v2405 = vpop.f32.mrf.mxu0
  %v2406 = vadd.f32 %v2174, %v2405
  %v2407 = vpop.f32.mrf.mxu0
  %v2408 = vpop.f32.mrf.mxu0
  %v2409 = vadd.f32 %v2177, %v2408
  %v2410 = vpop.f32.mrf.mxu0
  %2411 = vmatprep.mubr.bf16.mxu0 %v1289
  %2412 = vmatmul.mubr.bf16.gmra.mxu0 %v1288
  %v2413 = vpop.f32.mrf.mxu0
  %v2414 = vadd.f32 %v2182, %v2413
  %v2415 = vpop.f32.mrf.mxu0
  %v2416 = vpop.f32.mrf.mxu0
  %v2417 = vadd.f32 %v2185, %v2416
  %v2418 = vpop.f32.mrf.mxu0
  %2419 = vmatprep.mubr.bf16.mxu0 %v1298
  %2420 = vmatmul.mubr.bf16.gmra.mxu0 %v1297
  %v2421 = vpop.f32.mrf.mxu0
  %v2422 = vadd.f32 %v2190, %v2421
  %v2423 = vpop.f32.mrf.mxu0
  %v2424 = vpop.f32.mrf.mxu0
  %v2425 = vadd.f32 %v2193, %v2424
  %v2426 = vpop.f32.mrf.mxu0
  %2427 = vmatprep.mubr.bf16.mxu0 %v1307
  %2428 = vmatmul.mubr.bf16.gmra.mxu0 %v1306
  %v2429 = vpop.f32.mrf.mxu0
  %v2430 = vadd.f32 %v2198, %v2429
  %v2431 = vpop.f32.mrf.mxu0
  %v2432 = vpop.f32.mrf.mxu0
  %v2433 = vadd.f32 %v2201, %v2432
  %v2434 = vpop.f32.mrf.mxu0
  %2435 = vmatprep.mubr.bf16.mxu0 %v1316
  %2436 = vmatmul.mubr.bf16.gmra.mxu0 %v1315
  %v2437 = vpop.f32.mrf.mxu0
  %v2438 = vadd.f32 %v2206, %v2437
  %v2439 = vpop.f32.mrf.mxu0
  %v2440 = vpop.f32.mrf.mxu0
  %v2441 = vpop.f32.mrf.mxu0
  %2442 = vdwg.mxu0
  %2443 = vmatprep.subr.bf16.mxu0 0
  %2444 = vmatpush1.bf16.msra.mxu0 %v1874
  %2445 = vmatprep.subr.bf16.mxu0 0
  %2446 = vmatpush1.bf16.msra.mxu0 %v1873
  %2447 = vmatprep.subr.bf16.mxu0 0
  %2448 = vmatpush1.bf16.msra.mxu0 %v1872
  %2449 = vmatprep.subr.bf16.mxu0 0
  %2450 = vmatpush1.bf16.msra.mxu0 %v1871
  %2451 = vmatprep.subr.bf16.mxu0 0
  %2452 = vmatpush1.bf16.msra.mxu0 %v1870
  %2453 = vmatprep.subr.bf16.mxu0 0
  %2454 = vmatpush1.bf16.msra.mxu0 %v1869
  %2455 = vmatprep.subr.bf16.mxu0 0
  %2456 = vmatpush1.bf16.msra.mxu0 %v1868
  %2457 = vmatprep.subr.bf16.mxu0 0
  %2458 = vmatpush1.bf16.msra.mxu0 %v1867
  %2459 = vmatprep.subr.bf16.mxu0 0
  %2460 = vmatpush2.bf16.msra.mxu0 %v1882
  %2461 = vmatprep.subr.bf16.mxu0 0
  %2462 = vmatpush2.bf16.msra.mxu0 %v1881
  %2463 = vmatprep.subr.bf16.mxu0 0
  %2464 = vmatpush2.bf16.msra.mxu0 %v1880
  %2465 = vmatprep.subr.bf16.mxu0 0
  %2466 = vmatpush2.bf16.msra.mxu0 %v1879
  %2467 = vmatprep.subr.bf16.mxu0 0
  %2468 = vmatpush2.bf16.msra.mxu0 %v1878
  %2469 = vmatprep.subr.bf16.mxu0 0
  %2470 = vmatpush2.bf16.msra.mxu0 %v1877
  %2471 = vmatprep.subr.bf16.mxu0 0
  %2472 = vmatpush2.bf16.msra.mxu0 %v1876
  %2473 = vmatprep.subr.bf16.mxu0 0
  %2474 = vmatpush2.bf16.msra.mxu0 %v1875
  %2475 = vmatprep.mubr.bf16.mxu0 %v1102
  %2476 = vmatmul.mubr.bf16.gmra.mxu0 %v1101
  %v2477 = vpop.f32.mrf.mxu0
  %v2478 = vadd.f32 %v2246, %v2477
  %v2479 = vpop.f32.mrf.mxu0
  %v2480 = vpop.f32.mrf.mxu0
  %v2481 = vadd.f32 %v2249, %v2480
  %v2482 = vpop.f32.mrf.mxu0
  %2483 = vmatprep.mubr.bf16.mxu0 %v1111
  %2484 = vmatmul.mubr.bf16.gmra.mxu0 %v1110
  %v2485 = vpop.f32.mrf.mxu0
  %v2486 = vadd.f32 %v2254, %v2485
  %v2487 = vpop.f32.mrf.mxu0
  %v2488 = vpop.f32.mrf.mxu0
  %v2489 = vadd.f32 %v2257, %v2488
  %v2490 = vpop.f32.mrf.mxu0
  %2491 = vmatprep.mubr.bf16.mxu0 %v1120
  %2492 = vmatmul.mubr.bf16.gmra.mxu0 %v1119
  %v2493 = vpop.f32.mrf.mxu0
  %v2494 = vadd.f32 %v2262, %v2493
  %v2495 = vpop.f32.mrf.mxu0
  %v2496 = vpop.f32.mrf.mxu0
  %v2497 = vadd.f32 %v2265, %v2496
  %v2498 = vpop.f32.mrf.mxu0
  %2499 = vmatprep.mubr.bf16.mxu0 %v1129
  %2500 = vmatmul.mubr.bf16.gmra.mxu0 %v1128
  %v2501 = vpop.f32.mrf.mxu0
  %v2502 = vadd.f32 %v2270, %v2501
  %v2503 = vpop.f32.mrf.mxu0
  %v2504 = vpop.f32.mrf.mxu0
  %v2505 = vadd.f32 %v2273, %v2504
  %v2506 = vpop.f32.mrf.mxu0
  %2507 = vmatprep.mubr.bf16.mxu0 %v1138
  %2508 = vmatmul.mubr.bf16.gmra.mxu0 %v1137
  %v2509 = vpop.f32.mrf.mxu0
  %v2510 = vadd.f32 %v2278, %v2509
  %v2511 = vpop.f32.mrf.mxu0
  %v2512 = vpop.f32.mrf.mxu0
  %v2513 = vadd.f32 %v2281, %v2512
  %v2514 = vpop.f32.mrf.mxu0
  %2515 = vmatprep.mubr.bf16.mxu0 %v1147
  %2516 = vmatmul.mubr.bf16.gmra.mxu0 %v1146
  %v2517 = vpop.f32.mrf.mxu0
  %v2518 = vadd.f32 %v2286, %v2517
  %v2519 = vpop.f32.mrf.mxu0
  %v2520 = vpop.f32.mrf.mxu0
  %v2521 = vadd.f32 %v2289, %v2520
  %v2522 = vpop.f32.mrf.mxu0
  %2523 = vmatprep.mubr.bf16.mxu0 %v1156
  %2524 = vmatmul.mubr.bf16.gmra.mxu0 %v1155
  %v2525 = vpop.f32.mrf.mxu0
  %v2526 = vadd.f32 %v2294, %v2525
  %v2527 = vpop.f32.mrf.mxu0
  %v2528 = vpop.f32.mrf.mxu0
  %v2529 = vadd.f32 %v2297, %v2528
  %v2530 = vpop.f32.mrf.mxu0
  %2531 = vmatprep.mubr.bf16.mxu0 %v1165
  %2532 = vmatmul.mubr.bf16.gmra.mxu0 %v1164
  %v2533 = vpop.f32.mrf.mxu0
  %v2534 = vadd.f32 %v2302, %v2533
  %v2535 = vpop.f32.mrf.mxu0
  %v2536 = vpop.f32.mrf.mxu0
  %v2537 = vadd.f32 %v2305, %v2536
  %v2538 = vpop.f32.mrf.mxu0
  %2539 = vmatprep.mubr.bf16.mxu0 %v1174
  %2540 = vmatmul.mubr.bf16.gmra.mxu0 %v1173
  %v2541 = vpop.f32.mrf.mxu0
  %v2542 = vadd.f32 %v2310, %v2541
  %v2543 = vpop.f32.mrf.mxu0
  %v2544 = vpop.f32.mrf.mxu0
  %v2545 = vadd.f32 %v2313, %v2544
  %v2546 = vpop.f32.mrf.mxu0
  %2547 = vmatprep.mubr.bf16.mxu0 %v1183
  %2548 = vmatmul.mubr.bf16.gmra.mxu0 %v1182
  %v2549 = vpop.f32.mrf.mxu0
  %v2550 = vadd.f32 %v2318, %v2549
  %v2551 = vpop.f32.mrf.mxu0
  %v2552 = vpop.f32.mrf.mxu0
  %v2553 = vadd.f32 %v2321, %v2552
  %v2554 = vpop.f32.mrf.mxu0
  %2555 = vmatprep.mubr.bf16.mxu0 %v1192
  %2556 = vmatmul.mubr.bf16.gmra.mxu0 %v1191
  %v2557 = vpop.f32.mrf.mxu0
  %v2558 = vadd.f32 %v2326, %v2557
  %v2559 = vpop.f32.mrf.mxu0
  %v2560 = vpop.f32.mrf.mxu0
  %v2561 = vadd.f32 %v2329, %v2560
  %v2562 = vpop.f32.mrf.mxu0
  %2563 = vmatprep.mubr.bf16.mxu0 %v1201
  %2564 = vmatmul.mubr.bf16.gmra.mxu0 %v1200
  %v2565 = vpop.f32.mrf.mxu0
  %v2566 = vadd.f32 %v2334, %v2565
  %v2567 = vpop.f32.mrf.mxu0
  %v2568 = vpop.f32.mrf.mxu0
  %v2569 = vadd.f32 %v2337, %v2568
  %v2570 = vpop.f32.mrf.mxu0
  %2571 = vmatprep.mubr.bf16.mxu0 %v1210
  %2572 = vmatmul.mubr.bf16.gmra.mxu0 %v1209
  %v2573 = vpop.f32.mrf.mxu0
  %v2574 = vadd.f32 %v2342, %v2573
  %v2575 = vpop.f32.mrf.mxu0
  %v2576 = vpop.f32.mrf.mxu0
  %v2577 = vadd.f32 %v2345, %v2576
  %v2578 = vpop.f32.mrf.mxu0
  %2579 = vmatprep.mubr.bf16.mxu0 %v1219
  %2580 = vmatmul.mubr.bf16.gmra.mxu0 %v1218
  %v2581 = vpop.f32.mrf.mxu0
  %v2582 = vadd.f32 %v2350, %v2581
  %v2583 = vpop.f32.mrf.mxu0
  %v2584 = vpop.f32.mrf.mxu0
  %v2585 = vadd.f32 %v2353, %v2584
  %v2586 = vpop.f32.mrf.mxu0
  %2587 = vmatprep.mubr.bf16.mxu0 %v1228
  %2588 = vmatmul.mubr.bf16.gmra.mxu0 %v1227
  %v2589 = vpop.f32.mrf.mxu0
  %v2590 = vadd.f32 %v2358, %v2589
  %v2591 = vpop.f32.mrf.mxu0
  %v2592 = vpop.f32.mrf.mxu0
  %v2593 = vadd.f32 %v2361, %v2592
  %v2594 = vpop.f32.mrf.mxu0
  %2595 = vmatprep.mubr.bf16.mxu0 %v1237
  %2596 = vmatmul.mubr.bf16.gmra.mxu0 %v1236
  %v2597 = vpop.f32.mrf.mxu0
  %v2598 = vadd.f32 %v2366, %v2597
  %v2599 = vpop.f32.mrf.mxu0
  %v2600 = vpop.f32.mrf.mxu0
  %v2601 = vadd.f32 %v2369, %v2600
  %v2602 = vpop.f32.mrf.mxu0
  %2603 = vmatprep.mubr.bf16.mxu0 %v1246
  %2604 = vmatmul.mubr.bf16.gmra.mxu0 %v1245
  %v2605 = vpop.f32.mrf.mxu0
  %v2606 = vadd.f32 %v2374, %v2605
  %v2607 = vpop.f32.mrf.mxu0
  %v2608 = vpop.f32.mrf.mxu0
  %v2609 = vadd.f32 %v2377, %v2608
  %v2610 = vpop.f32.mrf.mxu0
  %2611 = vmatprep.mubr.bf16.mxu0 %v1255
  %2612 = vmatmul.mubr.bf16.gmra.mxu0 %v1254
  %v2613 = vpop.f32.mrf.mxu0
  %v2614 = vadd.f32 %v2382, %v2613
  %v2615 = vpop.f32.mrf.mxu0
  %v2616 = vpop.f32.mrf.mxu0
  %v2617 = vadd.f32 %v2385, %v2616
  %v2618 = vpop.f32.mrf.mxu0
  %2619 = vmatprep.mubr.bf16.mxu0 %v1264
  %2620 = vmatmul.mubr.bf16.gmra.mxu0 %v1263
  %v2621 = vpop.f32.mrf.mxu0
  %v2622 = vadd.f32 %v2390, %v2621
  %v2623 = vpop.f32.mrf.mxu0
  %v2624 = vpop.f32.mrf.mxu0
  %v2625 = vadd.f32 %v2393, %v2624
  %v2626 = vpop.f32.mrf.mxu0
  %2627 = vmatprep.mubr.bf16.mxu0 %v1273
  %2628 = vmatmul.mubr.bf16.gmra.mxu0 %v1272
  %v2629 = vpop.f32.mrf.mxu0
  %v2630 = vadd.f32 %v2398, %v2629
  %v2631 = vpop.f32.mrf.mxu0
  %v2632 = vpop.f32.mrf.mxu0
  %v2633 = vadd.f32 %v2401, %v2632
  %v2634 = vpop.f32.mrf.mxu0
  %2635 = vmatprep.mubr.bf16.mxu0 %v1282
  %2636 = vmatmul.mubr.bf16.gmra.mxu0 %v1281
  %v2637 = vpop.f32.mrf.mxu0
  %v2638 = vadd.f32 %v2406, %v2637
  %v2639 = vpop.f32.mrf.mxu0
  %v2640 = vpop.f32.mrf.mxu0
  %v2641 = vadd.f32 %v2409, %v2640
  %v2642 = vpop.f32.mrf.mxu0
  %2643 = vmatprep.mubr.bf16.mxu0 %v1291
  %2644 = vmatmul.mubr.bf16.gmra.mxu0 %v1290
  %v2645 = vpop.f32.mrf.mxu0
  %v2646 = vadd.f32 %v2414, %v2645
  %v2647 = vpop.f32.mrf.mxu0
  %v2648 = vpop.f32.mrf.mxu0
  %v2649 = vadd.f32 %v2417, %v2648
  %v2650 = vpop.f32.mrf.mxu0
  %2651 = vmatprep.mubr.bf16.mxu0 %v1300
  %2652 = vmatmul.mubr.bf16.gmra.mxu0 %v1299
  %v2653 = vpop.f32.mrf.mxu0
  %v2654 = vadd.f32 %v2422, %v2653
  %v2655 = vpop.f32.mrf.mxu0
  %v2656 = vpop.f32.mrf.mxu0
  %v2657 = vadd.f32 %v2425, %v2656
  %v2658 = vpop.f32.mrf.mxu0
  %2659 = vmatprep.mubr.bf16.mxu0 %v1309
  %2660 = vmatmul.mubr.bf16.gmra.mxu0 %v1308
  %v2661 = vpop.f32.mrf.mxu0
  %v2662 = vadd.f32 %v2430, %v2661
  %v2663 = vpop.f32.mrf.mxu0
  %v2664 = vpop.f32.mrf.mxu0
  %v2665 = vadd.f32 %v2433, %v2664
  %v2666 = vpop.f32.mrf.mxu0
  %2667 = vmatprep.mubr.bf16.mxu0 %v1318
  %2668 = vmatmul.mubr.bf16.gmra.mxu0 %v1317
  %v2669 = vpop.f32.mrf.mxu0
  %v2670 = vadd.f32 %v2438, %v2669
  %v2671 = vpop.f32.mrf.mxu0
  %v2672 = vpop.f32.mrf.mxu0
  %v2673 = vpop.f32.mrf.mxu0
  %2674 = vdwg.mxu0
  %2675 = vmatprep.subr.bf16.mxu0 0
  %2676 = vmatpush1.bf16.msra.mxu0 %v1890
  %2677 = vmatprep.subr.bf16.mxu0 0
  %2678 = vmatpush1.bf16.msra.mxu0 %v1889
  %2679 = vmatprep.subr.bf16.mxu0 0
  %2680 = vmatpush1.bf16.msra.mxu0 %v1888
  %2681 = vmatprep.subr.bf16.mxu0 0
  %2682 = vmatpush1.bf16.msra.mxu0 %v1887
  %2683 = vmatprep.subr.bf16.mxu0 0
  %2684 = vmatpush1.bf16.msra.mxu0 %v1886
  %2685 = vmatprep.subr.bf16.mxu0 0
  %2686 = vmatpush1.bf16.msra.mxu0 %v1885
  %2687 = vmatprep.subr.bf16.mxu0 0
  %2688 = vmatpush1.bf16.msra.mxu0 %v1884
  %2689 = vmatprep.subr.bf16.mxu0 0
  %2690 = vmatpush1.bf16.msra.mxu0 %v1883
  %2691 = vmatprep.subr.bf16.mxu0 0
  %2692 = vmatpush2.bf16.msra.mxu0 %v1898
  %2693 = vmatprep.subr.bf16.mxu0 0
  %2694 = vmatpush2.bf16.msra.mxu0 %v1897
  %2695 = vmatprep.subr.bf16.mxu0 0
  %2696 = vmatpush2.bf16.msra.mxu0 %v1896
  %2697 = vmatprep.subr.bf16.mxu0 0
  %2698 = vmatpush2.bf16.msra.mxu0 %v1895
  %2699 = vmatprep.subr.bf16.mxu0 0
  %2700 = vmatpush2.bf16.msra.mxu0 %v1894
  %2701 = vmatprep.subr.bf16.mxu0 0
  %2702 = vmatpush2.bf16.msra.mxu0 %v1893
  %2703 = vmatprep.subr.bf16.mxu0 0
  %2704 = vmatpush2.bf16.msra.mxu0 %v1892
  %2705 = vmatprep.subr.bf16.mxu0 0
  %2706 = vmatpush2.bf16.msra.mxu0 %v1891
  %2707 = vmatprep.mubr.bf16.mxu0 %v1104
  %2708 = vmatmul.mubr.bf16.gmra.mxu0 %v1103
  %v2709 = vpop.f32.mrf.mxu0
  %v2710 = vadd.f32 %v2478, %v2709
  %v2711 = vpop.f32.mrf.mxu0
  %v2712 = vpop.f32.mrf.mxu0
  %v2713 = vadd.f32 %v2481, %v2712
  %v2714 = vpop.f32.mrf.mxu0
  %2715 = vmatprep.mubr.bf16.mxu0 %v1113
  %2716 = vmatmul.mubr.bf16.gmra.mxu0 %v1112
  %v2717 = vpop.f32.mrf.mxu0
  %v2718 = vadd.f32 %v2486, %v2717
  %v2719 = vpop.f32.mrf.mxu0
  %v2720 = vpop.f32.mrf.mxu0
  %v2721 = vadd.f32 %v2489, %v2720
  %v2722 = vpop.f32.mrf.mxu0
  %2723 = vmatprep.mubr.bf16.mxu0 %v1122
  %2724 = vmatmul.mubr.bf16.gmra.mxu0 %v1121
  %v2725 = vpop.f32.mrf.mxu0
  %v2726 = vadd.f32 %v2494, %v2725
  %v2727 = vpop.f32.mrf.mxu0
  %v2728 = vpop.f32.mrf.mxu0
  %v2729 = vadd.f32 %v2497, %v2728
  %v2730 = vpop.f32.mrf.mxu0
  %2731 = vmatprep.mubr.bf16.mxu0 %v1131
  %2732 = vmatmul.mubr.bf16.gmra.mxu0 %v1130
  %v2733 = vpop.f32.mrf.mxu0
  %v2734 = vadd.f32 %v2502, %v2733
  %v2735 = vpop.f32.mrf.mxu0
  %v2736 = vpop.f32.mrf.mxu0
  %v2737 = vadd.f32 %v2505, %v2736
  %v2738 = vpop.f32.mrf.mxu0
  %2739 = vmatprep.mubr.bf16.mxu0 %v1140
  %2740 = vmatmul.mubr.bf16.gmra.mxu0 %v1139
  %v2741 = vpop.f32.mrf.mxu0
  %v2742 = vadd.f32 %v2510, %v2741
  %v2743 = vpop.f32.mrf.mxu0
  %v2744 = vpop.f32.mrf.mxu0
  %v2745 = vadd.f32 %v2513, %v2744
  %v2746 = vpop.f32.mrf.mxu0
  %2747 = vmatprep.mubr.bf16.mxu0 %v1149
  %2748 = vmatmul.mubr.bf16.gmra.mxu0 %v1148
  %v2749 = vpop.f32.mrf.mxu0
  %v2750 = vadd.f32 %v2518, %v2749
  %v2751 = vpop.f32.mrf.mxu0
  %v2752 = vpop.f32.mrf.mxu0
  %v2753 = vadd.f32 %v2521, %v2752
  %v2754 = vpop.f32.mrf.mxu0
  %2755 = vmatprep.mubr.bf16.mxu0 %v1158
  %2756 = vmatmul.mubr.bf16.gmra.mxu0 %v1157
  %v2757 = vpop.f32.mrf.mxu0
  %v2758 = vadd.f32 %v2526, %v2757
  %v2759 = vpop.f32.mrf.mxu0
  %v2760 = vpop.f32.mrf.mxu0
  %v2761 = vadd.f32 %v2529, %v2760
  %v2762 = vpop.f32.mrf.mxu0
  %2763 = vmatprep.mubr.bf16.mxu0 %v1167
  %2764 = vmatmul.mubr.bf16.gmra.mxu0 %v1166
  %v2765 = vpop.f32.mrf.mxu0
  %v2766 = vadd.f32 %v2534, %v2765
  %v2767 = vpop.f32.mrf.mxu0
  %v2768 = vpop.f32.mrf.mxu0
  %v2769 = vadd.f32 %v2537, %v2768
  %v2770 = vpop.f32.mrf.mxu0
  %2771 = vmatprep.mubr.bf16.mxu0 %v1176
  %2772 = vmatmul.mubr.bf16.gmra.mxu0 %v1175
  %v2773 = vpop.f32.mrf.mxu0
  %v2774 = vadd.f32 %v2542, %v2773
  %v2775 = vpop.f32.mrf.mxu0
  %v2776 = vpop.f32.mrf.mxu0
  %v2777 = vadd.f32 %v2545, %v2776
  %v2778 = vpop.f32.mrf.mxu0
  %2779 = vmatprep.mubr.bf16.mxu0 %v1185
  %2780 = vmatmul.mubr.bf16.gmra.mxu0 %v1184
  %v2781 = vpop.f32.mrf.mxu0
  %v2782 = vadd.f32 %v2550, %v2781
  %v2783 = vpop.f32.mrf.mxu0
  %v2784 = vpop.f32.mrf.mxu0
  %v2785 = vadd.f32 %v2553, %v2784
  %v2786 = vpop.f32.mrf.mxu0
  %2787 = vmatprep.mubr.bf16.mxu0 %v1194
  %2788 = vmatmul.mubr.bf16.gmra.mxu0 %v1193
  %v2789 = vpop.f32.mrf.mxu0
  %v2790 = vadd.f32 %v2558, %v2789
  %v2791 = vpop.f32.mrf.mxu0
  %v2792 = vpop.f32.mrf.mxu0
  %v2793 = vadd.f32 %v2561, %v2792
  %v2794 = vpop.f32.mrf.mxu0
  %2795 = vmatprep.mubr.bf16.mxu0 %v1203
  %2796 = vmatmul.mubr.bf16.gmra.mxu0 %v1202
  %v2797 = vpop.f32.mrf.mxu0
  %v2798 = vadd.f32 %v2566, %v2797
  %v2799 = vpop.f32.mrf.mxu0
  %v2800 = vpop.f32.mrf.mxu0
  %v2801 = vadd.f32 %v2569, %v2800
  %v2802 = vpop.f32.mrf.mxu0
  %2803 = vmatprep.mubr.bf16.mxu0 %v1212
  %2804 = vmatmul.mubr.bf16.gmra.mxu0 %v1211
  %v2805 = vpop.f32.mrf.mxu0
  %v2806 = vadd.f32 %v2574, %v2805
  %v2807 = vpop.f32.mrf.mxu0
  %v2808 = vpop.f32.mrf.mxu0
  %v2809 = vadd.f32 %v2577, %v2808
  %v2810 = vpop.f32.mrf.mxu0
  %2811 = vmatprep.mubr.bf16.mxu0 %v1221
  %2812 = vmatmul.mubr.bf16.gmra.mxu0 %v1220
  %v2813 = vpop.f32.mrf.mxu0
  %v2814 = vadd.f32 %v2582, %v2813
  %v2815 = vpop.f32.mrf.mxu0
  %v2816 = vpop.f32.mrf.mxu0
  %v2817 = vadd.f32 %v2585, %v2816
  %v2818 = vpop.f32.mrf.mxu0
  %2819 = vmatprep.mubr.bf16.mxu0 %v1230
  %2820 = vmatmul.mubr.bf16.gmra.mxu0 %v1229
  %v2821 = vpop.f32.mrf.mxu0
  %v2822 = vadd.f32 %v2590, %v2821
  %v2823 = vpop.f32.mrf.mxu0
  %v2824 = vpop.f32.mrf.mxu0
  %v2825 = vadd.f32 %v2593, %v2824
  %v2826 = vpop.f32.mrf.mxu0
  %2827 = vmatprep.mubr.bf16.mxu0 %v1239
  %2828 = vmatmul.mubr.bf16.gmra.mxu0 %v1238
  %v2829 = vpop.f32.mrf.mxu0
  %v2830 = vadd.f32 %v2598, %v2829
  %v2831 = vpop.f32.mrf.mxu0
  %v2832 = vpop.f32.mrf.mxu0
  %v2833 = vadd.f32 %v2601, %v2832
  %v2834 = vpop.f32.mrf.mxu0
  %2835 = vmatprep.mubr.bf16.mxu0 %v1248
  %2836 = vmatmul.mubr.bf16.gmra.mxu0 %v1247
  %v2837 = vpop.f32.mrf.mxu0
  %v2838 = vadd.f32 %v2606, %v2837
  %v2839 = vpop.f32.mrf.mxu0
  %v2840 = vpop.f32.mrf.mxu0
  %v2841 = vadd.f32 %v2609, %v2840
  %v2842 = vpop.f32.mrf.mxu0
  %2843 = vmatprep.mubr.bf16.mxu0 %v1257
  %2844 = vmatmul.mubr.bf16.gmra.mxu0 %v1256
  %v2845 = vpop.f32.mrf.mxu0
  %v2846 = vadd.f32 %v2614, %v2845
  %v2847 = vpop.f32.mrf.mxu0
  %v2848 = vpop.f32.mrf.mxu0
  %v2849 = vadd.f32 %v2617, %v2848
  %v2850 = vpop.f32.mrf.mxu0
  %2851 = vmatprep.mubr.bf16.mxu0 %v1266
  %2852 = vmatmul.mubr.bf16.gmra.mxu0 %v1265
  %v2853 = vpop.f32.mrf.mxu0
  %v2854 = vadd.f32 %v2622, %v2853
  %v2855 = vpop.f32.mrf.mxu0
  %v2856 = vpop.f32.mrf.mxu0
  %v2857 = vadd.f32 %v2625, %v2856
  %v2858 = vpop.f32.mrf.mxu0
  %2859 = vmatprep.mubr.bf16.mxu0 %v1275
  %2860 = vmatmul.mubr.bf16.gmra.mxu0 %v1274
  %v2861 = vpop.f32.mrf.mxu0
  %v2862 = vadd.f32 %v2630, %v2861
  %v2863 = vpop.f32.mrf.mxu0
  %v2864 = vpop.f32.mrf.mxu0
  %v2865 = vadd.f32 %v2633, %v2864
  %v2866 = vpop.f32.mrf.mxu0
  %2867 = vmatprep.mubr.bf16.mxu0 %v1284
  %2868 = vmatmul.mubr.bf16.gmra.mxu0 %v1283
  %v2869 = vpop.f32.mrf.mxu0
  %v2870 = vadd.f32 %v2638, %v2869
  %v2871 = vpop.f32.mrf.mxu0
  %v2872 = vpop.f32.mrf.mxu0
  %v2873 = vadd.f32 %v2641, %v2872
  %v2874 = vpop.f32.mrf.mxu0
  %2875 = vmatprep.mubr.bf16.mxu0 %v1293
  %2876 = vmatmul.mubr.bf16.gmra.mxu0 %v1292
  %v2877 = vpop.f32.mrf.mxu0
  %v2878 = vadd.f32 %v2646, %v2877
  %v2879 = vpop.f32.mrf.mxu0
  %v2880 = vpop.f32.mrf.mxu0
  %v2881 = vadd.f32 %v2649, %v2880
  %v2882 = vpop.f32.mrf.mxu0
  %2883 = vmatprep.mubr.bf16.mxu0 %v1302
  %2884 = vmatmul.mubr.bf16.gmra.mxu0 %v1301
  %v2885 = vpop.f32.mrf.mxu0
  %v2886 = vadd.f32 %v2654, %v2885
  %v2887 = vpop.f32.mrf.mxu0
  %v2888 = vpop.f32.mrf.mxu0
  %v2889 = vadd.f32 %v2657, %v2888
  %v2890 = vpop.f32.mrf.mxu0
  %2891 = vmatprep.mubr.bf16.mxu0 %v1311
  %2892 = vmatmul.mubr.bf16.gmra.mxu0 %v1310
  %v2893 = vpop.f32.mrf.mxu0
  %v2894 = vadd.f32 %v2662, %v2893
  %v2895 = vpop.f32.mrf.mxu0
  %v2896 = vpop.f32.mrf.mxu0
  %v2897 = vadd.f32 %v2665, %v2896
  %v2898 = vpop.f32.mrf.mxu0
  %2899 = vmatprep.mubr.bf16.mxu0 %v1320
  %2900 = vmatmul.mubr.bf16.gmra.mxu0 %v1319
  %v2901 = vpop.f32.mrf.mxu0
  %v2902 = vadd.f32 %v2670, %v2901
  %v2903 = vpop.f32.mrf.mxu0
  %v2904 = vpop.f32.mrf.mxu0
  %v2905 = vpop.f32.mrf.mxu0
  %2906 = vdwg.mxu0
  %2907 = vmatprep.subr.bf16.mxu0 0
  %2908 = vmatpush1.bf16.msra.mxu0 %v1906
  %2909 = vmatprep.subr.bf16.mxu0 0
  %2910 = vmatpush1.bf16.msra.mxu0 %v1905
  %2911 = vmatprep.subr.bf16.mxu0 0
  %2912 = vmatpush1.bf16.msra.mxu0 %v1904
  %2913 = vmatprep.subr.bf16.mxu0 0
  %2914 = vmatpush1.bf16.msra.mxu0 %v1903
  %2915 = vmatprep.subr.bf16.mxu0 0
  %2916 = vmatpush1.bf16.msra.mxu0 %v1902
  %2917 = vmatprep.subr.bf16.mxu0 0
  %2918 = vmatpush1.bf16.msra.mxu0 %v1901
  %2919 = vmatprep.subr.bf16.mxu0 0
  %2920 = vmatpush1.bf16.msra.mxu0 %v1900
  %2921 = vmatprep.subr.bf16.mxu0 0
  %2922 = vmatpush1.bf16.msra.mxu0 %v1899
  %2923 = vmatprep.subr.bf16.mxu0 0
  %2924 = vmatpush2.bf16.msra.mxu0 0
  %2925 = vmatprep.subr.bf16.mxu0 0
  %2926 = vmatpush2.bf16.msra.mxu0 0
  %2927 = vmatprep.subr.bf16.mxu0 0
  %2928 = vmatpush2.bf16.msra.mxu0 0
  %2929 = vmatprep.subr.bf16.mxu0 0
  %2930 = vmatpush2.bf16.msra.mxu0 0
  %2931 = vmatprep.subr.bf16.mxu0 0
  %2932 = vmatpush2.bf16.msra.mxu0 0
  %2933 = vmatprep.subr.bf16.mxu0 0
  %2934 = vmatpush2.bf16.msra.mxu0 0
  %2935 = vmatprep.subr.bf16.mxu0 0
  %2936 = vmatpush2.bf16.msra.mxu0 0
  %2937 = vmatprep.subr.bf16.mxu0 0
  %2938 = vmatpush2.bf16.msra.mxu0 0
  %2939 = vmatprep.mubr.bf16.mxu0 0
  %2940 = vmatmul.mubr.bf16.gmra.mxu0 %v1105
  %v2941 = vpop.f32.mrf.mxu0
  %v2942 = vadd.f32 %v2710, %v2941
  %v2943 = vpop.f32.mrf.mxu0
  %v2944 = vpop.f32.mrf.mxu0
  %v2945 = vadd.f32 %v2713, %v2944
  %v2946 = vpop.f32.mrf.mxu0
  %2947 = vmatprep.mubr.bf16.mxu0 0
  %2948 = vmatmul.mubr.bf16.gmra.mxu0 %v1114
  %v2949 = vpop.f32.mrf.mxu0
  %v2950 = vadd.f32 %v2718, %v2949
  %v2951 = vpop.f32.mrf.mxu0
  %v2952 = vpop.f32.mrf.mxu0
  %v2953 = vadd.f32 %v2721, %v2952
  %v2954 = vpop.f32.mrf.mxu0
  %2955 = vmatprep.mubr.bf16.mxu0 0
  %2956 = vmatmul.mubr.bf16.gmra.mxu0 %v1123
  %v2957 = vpop.f32.mrf.mxu0
  %v2958 = vadd.f32 %v2726, %v2957
  %v2959 = vpop.f32.mrf.mxu0
  %v2960 = vpop.f32.mrf.mxu0
  %v2961 = vadd.f32 %v2729, %v2960
  %v2962 = vpop.f32.mrf.mxu0
  %2963 = vmatprep.mubr.bf16.mxu0 0
  %2964 = vmatmul.mubr.bf16.gmra.mxu0 %v1132
  %v2965 = vpop.f32.mrf.mxu0
  %v2966 = vadd.f32 %v2734, %v2965
  %v2967 = vpop.f32.mrf.mxu0
  %v2968 = vpop.f32.mrf.mxu0
  %v2969 = vadd.f32 %v2737, %v2968
  %v2970 = vpop.f32.mrf.mxu0
  %2971 = vmatprep.mubr.bf16.mxu0 0
  %2972 = vmatmul.mubr.bf16.gmra.mxu0 %v1141
  %v2973 = vpop.f32.mrf.mxu0
  %v2974 = vadd.f32 %v2742, %v2973
  %v2975 = vpop.f32.mrf.mxu0
  %v2976 = vpop.f32.mrf.mxu0
  %v2977 = vadd.f32 %v2745, %v2976
  %v2978 = vpop.f32.mrf.mxu0
  %2979 = vmatprep.mubr.bf16.mxu0 0
  %2980 = vmatmul.mubr.bf16.gmra.mxu0 %v1150
  %v2981 = vpop.f32.mrf.mxu0
  %v2982 = vadd.f32 %v2750, %v2981
  %v2983 = vpop.f32.mrf.mxu0
  %v2984 = vpop.f32.mrf.mxu0
  %v2985 = vadd.f32 %v2753, %v2984
  %v2986 = vpop.f32.mrf.mxu0
  %2987 = vmatprep.mubr.bf16.mxu0 0
  %2988 = vmatmul.mubr.bf16.gmra.mxu0 %v1159
  %v2989 = vpop.f32.mrf.mxu0
  %v2990 = vadd.f32 %v2758, %v2989
  %v2991 = vpop.f32.mrf.mxu0
  %v2992 = vpop.f32.mrf.mxu0
  %v2993 = vadd.f32 %v2761, %v2992
  %v2994 = vpop.f32.mrf.mxu0
  %2995 = vmatprep.mubr.bf16.mxu0 0
  %2996 = vmatmul.mubr.bf16.gmra.mxu0 %v1168
  %v2997 = vpop.f32.mrf.mxu0
  %v2998 = vadd.f32 %v2766, %v2997
  %v2999 = vpop.f32.mrf.mxu0
  %v3000 = vpop.f32.mrf.mxu0
  %v3001 = vadd.f32 %v2769, %v3000
  %v3002 = vpop.f32.mrf.mxu0
  %3003 = vmatprep.mubr.bf16.mxu0 0
  %3004 = vmatmul.mubr.bf16.gmra.mxu0 %v1177
  %v3005 = vpop.f32.mrf.mxu0
  %v3006 = vadd.f32 %v2774, %v3005
  %v3007 = vpop.f32.mrf.mxu0
  %v3008 = vpop.f32.mrf.mxu0
  %v3009 = vadd.f32 %v2777, %v3008
  %v3010 = vpop.f32.mrf.mxu0
  %3011 = vmatprep.mubr.bf16.mxu0 0
  %3012 = vmatmul.mubr.bf16.gmra.mxu0 %v1186
  %v3013 = vpop.f32.mrf.mxu0
  %v3014 = vadd.f32 %v2782, %v3013
  %v3015 = vpop.f32.mrf.mxu0
  %v3016 = vpop.f32.mrf.mxu0
  %v3017 = vadd.f32 %v2785, %v3016
  %v3018 = vpop.f32.mrf.mxu0
  %3019 = vmatprep.mubr.bf16.mxu0 0
  %3020 = vmatmul.mubr.bf16.gmra.mxu0 %v1195
  %v3021 = vpop.f32.mrf.mxu0
  %v3022 = vadd.f32 %v2790, %v3021
  %v3023 = vpop.f32.mrf.mxu0
  %v3024 = vpop.f32.mrf.mxu0
  %v3025 = vadd.f32 %v2793, %v3024
  %v3026 = vpop.f32.mrf.mxu0
  %3027 = vmatprep.mubr.bf16.mxu0 0
  %3028 = vmatmul.mubr.bf16.gmra.mxu0 %v1204
  %v3029 = vpop.f32.mrf.mxu0
  %v3030 = vadd.f32 %v2798, %v3029
  %v3031 = vpop.f32.mrf.mxu0
  %v3032 = vpop.f32.mrf.mxu0
  %v3033 = vadd.f32 %v2801, %v3032
  %v3034 = vpop.f32.mrf.mxu0
  %3035 = vmatprep.mubr.bf16.mxu0 0
  %3036 = vmatmul.mubr.bf16.gmra.mxu0 %v1213
  %v3037 = vpop.f32.mrf.mxu0
  %v3038 = vadd.f32 %v2806, %v3037
  %v3039 = vpop.f32.mrf.mxu0
  %v3040 = vpop.f32.mrf.mxu0
  %v3041 = vadd.f32 %v2809, %v3040
  %v3042 = vpop.f32.mrf.mxu0
  %3043 = vmatprep.mubr.bf16.mxu0 0
  %3044 = vmatmul.mubr.bf16.gmra.mxu0 %v1222
  %v3045 = vpop.f32.mrf.mxu0
  %v3046 = vadd.f32 %v2814, %v3045
  %v3047 = vpop.f32.mrf.mxu0
  %v3048 = vpop.f32.mrf.mxu0
  %v3049 = vadd.f32 %v2817, %v3048
  %v3050 = vpop.f32.mrf.mxu0
  %3051 = vmatprep.mubr.bf16.mxu0 0
  %3052 = vmatmul.mubr.bf16.gmra.mxu0 %v1231
  %v3053 = vpop.f32.mrf.mxu0
  %v3054 = vadd.f32 %v2822, %v3053
  %v3055 = vpop.f32.mrf.mxu0
  %v3056 = vpop.f32.mrf.mxu0
  %v3057 = vadd.f32 %v2825, %v3056
  %v3058 = vpop.f32.mrf.mxu0
  %3059 = vmatprep.mubr.bf16.mxu0 0
  %3060 = vmatmul.mubr.bf16.gmra.mxu0 %v1240
  %v3061 = vpop.f32.mrf.mxu0
  %v3062 = vadd.f32 %v2830, %v3061
  %v3063 = vpop.f32.mrf.mxu0
  %v3064 = vpop.f32.mrf.mxu0
  %v3065 = vadd.f32 %v2833, %v3064
  %v3066 = vpop.f32.mrf.mxu0
  %3067 = vmatprep.mubr.bf16.mxu0 0
  %3068 = vmatmul.mubr.bf16.gmra.mxu0 %v1249
  %v3069 = vpop.f32.mrf.mxu0
  %v3070 = vadd.f32 %v2838, %v3069
  %v3071 = vpop.f32.mrf.mxu0
  %v3072 = vpop.f32.mrf.mxu0
  %v3073 = vadd.f32 %v2841, %v3072
  %v3074 = vpop.f32.mrf.mxu0
  %3075 = vmatprep.mubr.bf16.mxu0 0
  %3076 = vmatmul.mubr.bf16.gmra.mxu0 %v1258
  %v3077 = vpop.f32.mrf.mxu0
  %v3078 = vadd.f32 %v2846, %v3077
  %v3079 = vpop.f32.mrf.mxu0
  %v3080 = vpop.f32.mrf.mxu0
  %v3081 = vadd.f32 %v2849, %v3080
  %v3082 = vpop.f32.mrf.mxu0
  %3083 = vmatprep.mubr.bf16.mxu0 0
  %3084 = vmatmul.mubr.bf16.gmra.mxu0 %v1267
  %v3085 = vpop.f32.mrf.mxu0
  %v3086 = vadd.f32 %v2854, %v3085
  %v3087 = vpop.f32.mrf.mxu0
  %v3088 = vpop.f32.mrf.mxu0
  %v3089 = vadd.f32 %v2857, %v3088
  %v3090 = vpop.f32.mrf.mxu0
  %3091 = vmatprep.mubr.bf16.mxu0 0
  %3092 = vmatmul.mubr.bf16.gmra.mxu0 %v1276
  %v3093 = vpop.f32.mrf.mxu0
  %v3094 = vadd.f32 %v2862, %v3093
  %v3095 = vpop.f32.mrf.mxu0
  %v3096 = vpop.f32.mrf.mxu0
  %v3097 = vadd.f32 %v2865, %v3096
  %v3098 = vpop.f32.mrf.mxu0
  %3099 = vmatprep.mubr.bf16.mxu0 0
  %3100 = vmatmul.mubr.bf16.gmra.mxu0 %v1285
  %v3101 = vpop.f32.mrf.mxu0
  %v3102 = vadd.f32 %v2870, %v3101
  %v3103 = vpop.f32.mrf.mxu0
  %v3104 = vpop.f32.mrf.mxu0
  %v3105 = vadd.f32 %v2873, %v3104
  %v3106 = vpop.f32.mrf.mxu0
  %3107 = vmatprep.mubr.bf16.mxu0 0
  %3108 = vmatmul.mubr.bf16.gmra.mxu0 %v1294
  %v3109 = vpop.f32.mrf.mxu0
  %v3110 = vadd.f32 %v2878, %v3109
  %v3111 = vpop.f32.mrf.mxu0
  %v3112 = vpop.f32.mrf.mxu0
  %v3113 = vadd.f32 %v2881, %v3112
  %v3114 = vpop.f32.mrf.mxu0
  %3115 = vmatprep.mubr.bf16.mxu0 0
  %3116 = vmatmul.mubr.bf16.gmra.mxu0 %v1303
  %v3117 = vpop.f32.mrf.mxu0
  %v3118 = vadd.f32 %v2886, %v3117
  %v3119 = vpop.f32.mrf.mxu0
  %v3120 = vpop.f32.mrf.mxu0
  %v3121 = vadd.f32 %v2889, %v3120
  %v3122 = vpop.f32.mrf.mxu0
  %3123 = vmatprep.mubr.bf16.mxu0 0
  %3124 = vmatmul.mubr.bf16.gmra.mxu0 %v1312
  %v3125 = vpop.f32.mrf.mxu0
  %v3126 = vadd.f32 %v2894, %v3125
  %v3127 = vpop.f32.mrf.mxu0
  %v3128 = vpop.f32.mrf.mxu0
  %v3129 = vadd.f32 %v2897, %v3128
  %v3130 = vpop.f32.mrf.mxu0
  %3131 = vmatprep.mubr.bf16.mxu0 0
  %3132 = vmatmul.mubr.bf16.gmra.mxu0 %v1321
  %v3133 = vpop.f32.mrf.mxu0
  %v3134 = vadd.f32 %v2902, %v3133
  %v3135 = vpop.f32.mrf.mxu0
  %v3136 = vpop.f32.mrf.mxu0
  %v3137 = vpop.f32.mrf.mxu0
  %3138 = vdwg.mxu0
  %v3139 = vmax.f32 %v2942, 0.0
  %v3140 = vmax.f32 %v2945, 0.0
  %v3141 = vmax.f32 %v2950, 0.0
  %v3142 = vmax.f32 %v2953, 0.0
  %v3143 = vmax.f32 %v2958, 0.0
  %v3144 = vmax.f32 %v2961, 0.0
  %v3145 = vmax.f32 %v2966, 0.0
  %v3146 = vmax.f32 %v2969, 0.0
  %v3147 = vmax.f32 %v2974, 0.0
  %v3148 = vmax.f32 %v2977, 0.0
  %v3149 = vmax.f32 %v2982, 0.0
  %v3150 = vmax.f32 %v2985, 0.0
  %v3151 = vmax.f32 %v2990, 0.0
  %v3152 = vmax.f32 %v2993, 0.0
  %v3153 = vmax.f32 %v2998, 0.0
  %v3154 = vmax.f32 %v3001, 0.0
  %v3155 = vmax.f32 %v3006, 0.0
  %v3156 = vmax.f32 %v3009, 0.0
  %v3157 = vmax.f32 %v3014, 0.0
  %v3158 = vmax.f32 %v3017, 0.0
  %v3159 = vmax.f32 %v3022, 0.0
  %v3160 = vmax.f32 %v3025, 0.0
  %v3161 = vmax.f32 %v3030, 0.0
  %v3162 = vmax.f32 %v3033, 0.0
  %v3163 = vmax.f32 %v3038, 0.0
  %v3164 = vmax.f32 %v3041, 0.0
  %v3165 = vmax.f32 %v3046, 0.0
  %v3166 = vmax.f32 %v3049, 0.0
  %v3167 = vmax.f32 %v3054, 0.0
  %v3168 = vmax.f32 %v3057, 0.0
  %v3169 = vmax.f32 %v3062, 0.0
  %v3170 = vmax.f32 %v3065, 0.0
  %v3171 = vmax.f32 %v3070, 0.0
  %v3172 = vmax.f32 %v3073, 0.0
  %v3173 = vmax.f32 %v3078, 0.0
  %v3174 = vmax.f32 %v3081, 0.0
  %v3175 = vmax.f32 %v3086, 0.0
  %v3176 = vmax.f32 %v3089, 0.0
  %v3177 = vmax.f32 %v3094, 0.0
  %v3178 = vmax.f32 %v3097, 0.0
  %v3179 = vmax.f32 %v3102, 0.0
  %v3180 = vmax.f32 %v3105, 0.0
  %v3181 = vmax.f32 %v3110, 0.0
  %v3182 = vmax.f32 %v3113, 0.0
  %v3183 = vmax.f32 %v3118, 0.0
  %v3184 = vmax.f32 %v3121, 0.0
  %v3185 = vmax.f32 %v3126, 0.0
  %v3186 = vmax.f32 %v3129, 0.0
  %v3187 = vmax.f32 %v3134, 0.0
  %3188 = vst [vmem:[%s3] sm:$0xff] %v3139
  %3189 = vst [vmem:[%s3 + $0x8] sm:$0xff] %v3140
  %3190 = vst [vmem:[%s3 + $0x10] sm:$0xff] %v3141
  %3191 = vst [vmem:[%s3 + $0x18] sm:$0xff] %v3142
  %3192 = vst [vmem:[%s3 + $0x20] sm:$0xff] %v3143
  %3193 = vst [vmem:[%s3 + $0x28] sm:$0xff] %v3144
  %3194 = vst [vmem:[%s3 + $0x30] sm:$0xff] %v3145
  %3195 = vst [vmem:[%s3 + $0x38] sm:$0xff] %v3146
  %3196 = vst [vmem:[%s3 + $0x40] sm:$0xff] %v3147
  %3197 = vst [vmem:[%s3 + $0x48] sm:$0xff] %v3148
  %3198 = vst [vmem:[%s3 + $0x50] sm:$0xff] %v3149
  %3199 = vst [vmem:[%s3 + $0x58] sm:$0xff] %v3150
  %3200 = vst [vmem:[%s3 + $0x60] sm:$0xff] %v3151
  %3201 = vst [vmem:[%s3 + $0x68] sm:$0xff] %v3152
  %3202 = vst [vmem:[%s3 + $0x70] sm:$0xff] %v3153
  %3203 = vst [vmem:[%s3 + $0x78] sm:$0xff] %v3154
  %3204 = vst [vmem:[%s3 + $0x80] sm:$0xff] %v3155
  %3205 = vst [vmem:[%s3 + $0x88] sm:$0xff] %v3156
  %3206 = vst [vmem:[%s3 + $0x90] sm:$0xff] %v3157
  %3207 = vst [vmem:[%s3 + $0x98] sm:$0xff] %v3158
  %3208 = vst [vmem:[%s3 + $0xa0] sm:$0xff] %v3159
  %3209 = vst [vmem:[%s3 + $0xa8] sm:$0xff] %v3160
  %3210 = vst [vmem:[%s3 + $0xb0] sm:$0xff] %v3161
  %3211 = vst [vmem:[%s3 + $0xb8] sm:$0xff] %v3162
  %3212 = vst [vmem:[%s3 + $0xc0] sm:$0xff] %v3163
  %3213 = vst [vmem:[%s3 + $0xc8] sm:$0xff] %v3164
  %3214 = vst [vmem:[%s3 + $0xd0] sm:$0xff] %v3165
  %3215 = vst [vmem:[%s3 + $0xd8] sm:$0xff] %v3166
  %3216 = vst [vmem:[%s3 + $0xe0] sm:$0xff] %v3167
  %3217 = vst [vmem:[%s3 + $0xe8] sm:$0xff] %v3168
  %3218 = vst [vmem:[%s3 + $0xf0] sm:$0xff] %v3169
  %3219 = vst [vmem:[%s3 + $0xf8] sm:$0xff] %v3170
  %3220 = vst [vmem:[%s3 + $0x100] sm:$0xff] %v3171
  %3221 = vst [vmem:[%s3 + $0x108] sm:$0xff] %v3172
  %3222 = vst [vmem:[%s3 + $0x110] sm:$0xff] %v3173
  %3223 = vst [vmem:[%s3 + $0x118] sm:$0xff] %v3174
  %3224 = vst [vmem:[%s3 + $0x120] sm:$0xff] %v3175
  %3225 = vst [vmem:[%s3 + $0x128] sm:$0xff] %v3176
  %3226 = vst [vmem:[%s3 + $0x130] sm:$0xff] %v3177
  %3227 = vst [vmem:[%s3 + $0x138] sm:$0xff] %v3178
  %3228 = vst [vmem:[%s3 + $0x140] sm:$0xff] %v3179
  %3229 = vst [vmem:[%s3 + $0x148] sm:$0xff] %v3180
  %3230 = vst [vmem:[%s3 + $0x150] sm:$0xff] %v3181
  %3231 = vst [vmem:[%s3 + $0x158] sm:$0xff] %v3182
  %3232 = vst [vmem:[%s3 + $0x160] sm:$0xff] %v3183
  %3233 = vst [vmem:[%s3 + $0x168] sm:$0xff] %v3184
  %3234 = vst [vmem:[%s3 + $0x170] sm:$0xff] %v3185
  %3235 = vst [vmem:[%s3 + $0x178] sm:$0xff] %v3186
  %3236 = vst [vmem:[%s3 + $0x180] sm:$0xff] %v3187
  // Predicated region
  $region14: #{_lambda_.6} parent=0 // pred_check
    _
  $region15: #{_lambda_.6} parent=0 // pred_check_branch
    %3238 = sbr.rel (0) target = $region17
  $region16: #{_lambda_.6} parent=0 // pred_region
    _
  $region17: #{_lambda_.6} parent=0 // pred_fallthru
    _
  // Predicated region
  $region18: #{_lambda_.6} parent=0 // pred_check
    _
  $region19: #{_lambda_.6} parent=0 // pred_check_branch
    %3240 = sbr.rel (0) target = $region21
  $region20: #{_lambda_.6} parent=0 // pred_region
    _
  $region21: #{_lambda_.6} parent=0 // pred_fallthru
    _

// kernel: _lambda_.8
$region0: #{_lambda_.8}
  #allocation0 [shape = 'u32[]', space=smem, size = 0x4, offset = 0x4, fixed_abs, tag = 'smem constant byte address 0x4 - core index']
  #allocation1 [shape = 'u32[144,128]{1,0:T(1,128)}', space=vmem, size = 0x12000, scoped, tag = 'internal scratch']
  %s0 = inlined_call_operand.vmem [shape: bf16[288,1152], index: 0, kind: input, shape index: {}]
  %s1 = inlined_call_operand.vmem [shape: bf16[1152,256], index: 1, kind: input, shape index: {}]
  %s2 = inlined_call_operand.vmem [shape: f32[1,256], index: 2, kind: input, shape index: {}]
  %s3 = inlined_call_operand.vmem [shape: f32[288,256], index: 3, kind: output, shape index: {}]
  %s4 = sld [smem:[#allocation0]]
  $region22: #{_lambda_.8} parent=0
    _
  %s6 = ssub.s32 1, %s4
  %s7 = scalar_select 0, %s6, %s4
  // Predicated region
  $region2: #{_lambda_.8} parent=0 // pred_check
    _
  $region3: #{_lambda_.8} parent=0 // pred_check_branch
    %9 = sbr.rel (0) target = $region5
  $region4: #{_lambda_.8} parent=0 // pred_region
    _
  $region5: #{_lambda_.8} parent=0 // pred_fallthru
    _
  // Predicated region
  $region6: #{_lambda_.8} parent=0 // pred_check
    _
  $region7: #{_lambda_.8} parent=0 // pred_check_branch
    %11 = sbr.rel (0) target = $region9
  $region8: #{_lambda_.8} parent=0 // pred_region
    _
  $region9: #{_lambda_.8} parent=0 // pred_fallthru
    _
  // Predicated region
  $region10: #{_lambda_.8} parent=0 // pred_check
    _
  $region11: #{_lambda_.8} parent=0 // pred_check_branch
    %13 = sbr.rel (0) target = $region13
  $region12: #{_lambda_.8} parent=0 // pred_region
    _
  $region13: #{_lambda_.8} parent=0 // pred_fallthru
    _
  %v15 = vld [vmem:[%s0] sm:$0xff]
  %v16 = vld [vmem:[%s0 + $0x8] sm:$0xff]
  %v17 = vld [vmem:[%s0 + $0x10] sm:$0xff]
  %v18 = vld [vmem:[%s0 + $0x18] sm:$0xff]
  %v19 = vld [vmem:[%s0 + $0x20] sm:$0xf]
  %v20 = vld [vmem:[%s0 + $0x24] sm:$0xff]
  %v21 = vld [vmem:[%s0 + $0x2c] sm:$0xff]
  %v22 = vld [vmem:[%s0 + $0x34] sm:$0xff]
  %v23 = vld [vmem:[%s0 + $0x3c] sm:$0xff]
  %v24 = vld [vmem:[%s0 + $0x44] sm:$0xf]
  %v25 = vld [vmem:[%s0 + $0x48] sm:$0xff]
  %v26 = vld [vmem:[%s0 + $0x50] sm:$0xff]
  %v27 = vld [vmem:[%s0 + $0x58] sm:$0xff]
  %v28 = vld [vmem:[%s0 + $0x60] sm:$0xff]
  %v29 = vld [vmem:[%s0 + $0x68] sm:$0xf]
  %v30 = vld [vmem:[%s0 + $0x6c] sm:$0xff]
  %v31 = vld [vmem:[%s0 + $0x74] sm:$0xff]
  %v32 = vld [vmem:[%s0 + $0x7c] sm:$0xff]
  %v33 = vld [vmem:[%s0 + $0x84] sm:$0xff]
  %v34 = vld [vmem:[%s0 + $0x8c] sm:$0xf]
  %v35 = vld [vmem:[%s0 + $0x90] sm:$0xff]
  %v36 = vld [vmem:[%s0 + $0x98] sm:$0xff]
  %v37 = vld [vmem:[%s0 + $0xa0] sm:$0xff]
  %v38 = vld [vmem:[%s0 + $0xa8] sm:$0xff]
  %v39 = vld [vmem:[%s0 + $0xb0] sm:$0xf]
  %v40 = vld [vmem:[%s0 + $0xb4] sm:$0xff]
  %v41 = vld [vmem:[%s0 + $0xbc] sm:$0xff]
  %v42 = vld [vmem:[%s0 + $0xc4] sm:$0xff]
  %v43 = vld [vmem:[%s0 + $0xcc] sm:$0xff]
  %v44 = vld [vmem:[%s0 + $0xd4] sm:$0xf]
  %v45 = vld [vmem:[%s0 + $0xd8] sm:$0xff]
  %v46 = vld [vmem:[%s0 + $0xe0] sm:$0xff]
  %v47 = vld [vmem:[%s0 + $0xe8] sm:$0xff]
  %v48 = vld [vmem:[%s0 + $0xf0] sm:$0xff]
  %v49 = vld [vmem:[%s0 + $0xf8] sm:$0xf]
  %v50 = vld [vmem:[%s0 + $0xfc] sm:$0xff]
  %v51 = vld [vmem:[%s0 + $0x104] sm:$0xff]
  %v52 = vld [vmem:[%s0 + $0x10c] sm:$0xff]
  %v53 = vld [vmem:[%s0 + $0x114] sm:$0xff]
  %v54 = vld [vmem:[%s0 + $0x11c] sm:$0xf]
  %v55 = vld [vmem:[%s0 + $0x120] sm:$0xff]
  %v56 = vld [vmem:[%s0 + $0x128] sm:$0xff]
  %v57 = vld [vmem:[%s0 + $0x130] sm:$0xff]
  %v58 = vld [vmem:[%s0 + $0x138] sm:$0xff]
  %v59 = vld [vmem:[%s0 + $0x140] sm:$0xf]
  %v60 = vld [vmem:[%s0 + $0x144] sm:$0xff]
  %v61 = vld [vmem:[%s0 + $0x14c] sm:$0xff]
  %v62 = vld [vmem:[%s0 + $0x154] sm:$0xff]
  %v63 = vld [vmem:[%s0 + $0x15c] sm:$0xff]
  %v64 = vld [vmem:[%s0 + $0x164] sm:$0xf]
  %v65 = vld [vmem:[%s0 + $0x168] sm:$0xff]
  %v66 = vld [vmem:[%s0 + $0x170] sm:$0xff]
  %v67 = vld [vmem:[%s0 + $0x178] sm:$0xff]
  %v68 = vld [vmem:[%s0 + $0x180] sm:$0xff]
  %v69 = vld [vmem:[%s0 + $0x188] sm:$0xf]
  %v70 = vld [vmem:[%s0 + $0x18c] sm:$0xff]
  %v71 = vld [vmem:[%s0 + $0x194] sm:$0xff]
  %v72 = vld [vmem:[%s0 + $0x19c] sm:$0xff]
  %v73 = vld [vmem:[%s0 + $0x1a4] sm:$0xff]
  %v74 = vld [vmem:[%s0 + $0x1ac] sm:$0xf]
  %v75 = vld [vmem:[%s0 + $0x1b0] sm:$0xff]
  %v76 = vld [vmem:[%s0 + $0x1b8] sm:$0xff]
  %v77 = vld [vmem:[%s0 + $0x1c0] sm:$0xff]
  %v78 = vld [vmem:[%s0 + $0x1c8] sm:$0xff]
  %v79 = vld [vmem:[%s0 + $0x1d0] sm:$0xf]
  %v80 = vld [vmem:[%s0 + $0x1d4] sm:$0xff]
  %v81 = vld [vmem:[%s0 + $0x1dc] sm:$0xff]
  %v82 = vld [vmem:[%s0 + $0x1e4] sm:$0xff]
  %v83 = vld [vmem:[%s0 + $0x1ec] sm:$0xff]
  %v84 = vld [vmem:[%s0 + $0x1f4] sm:$0xf]
  %v85 = vld [vmem:[%s0 + $0x1f8] sm:$0xff]
  %v86 = vld [vmem:[%s0 + $0x200] sm:$0xff]
  %v87 = vld [vmem:[%s0 + $0x208] sm:$0xff]
  %v88 = vld [vmem:[%s0 + $0x210] sm:$0xff]
  %v89 = vld [vmem:[%s0 + $0x218] sm:$0xf]
  %v90 = vld [vmem:[%s0 + $0x21c] sm:$0xff]
  %v91 = vld [vmem:[%s0 + $0x224] sm:$0xff]
  %v92 = vld [vmem:[%s0 + $0x22c] sm:$0xff]
  %v93 = vld [vmem:[%s0 + $0x234] sm:$0xff]
  %v94 = vld [vmem:[%s0 + $0x23c] sm:$0xf]
  %v95 = vld [vmem:[%s0 + $0x240] sm:$0xff]
  %v96 = vld [vmem:[%s0 + $0x248] sm:$0xff]
  %v97 = vld [vmem:[%s0 + $0x250] sm:$0xff]
  %v98 = vld [vmem:[%s0 + $0x258] sm:$0xff]
  %v99 = vld [vmem:[%s0 + $0x260] sm:$0xf]
  %v100 = vld [vmem:[%s0 + $0x264] sm:$0xff]
  %v101 = vld [vmem:[%s0 + $0x26c] sm:$0xff]
  %v102 = vld [vmem:[%s0 + $0x274] sm:$0xff]
  %v103 = vld [vmem:[%s0 + $0x27c] sm:$0xff]
  %v104 = vld [vmem:[%s0 + $0x284] sm:$0xf]
  %v105 = vld [vmem:[%s0 + $0x288] sm:$0xff]
  %v106 = vld [vmem:[%s0 + $0x290] sm:$0xff]
  %v107 = vld [vmem:[%s0 + $0x298] sm:$0xff]
  %v108 = vld [vmem:[%s0 + $0x2a0] sm:$0xff]
  %v109 = vld [vmem:[%s0 + $0x2a8] sm:$0xf]
  %v110 = vld [vmem:[%s0 + $0x2ac] sm:$0xff]
  %v111 = vld [vmem:[%s0 + $0x2b4] sm:$0xff]
  %v112 = vld [vmem:[%s0 + $0x2bc] sm:$0xff]
  %v113 = vld [vmem:[%s0 + $0x2c4] sm:$0xff]
  %v114 = vld [vmem:[%s0 + $0x2cc] sm:$0xf]
  %v115 = vld [vmem:[%s0 + $0x2d0] sm:$0xff]
  %v116 = vld [vmem:[%s0 + $0x2d8] sm:$0xff]
  %v117 = vld [vmem:[%s0 + $0x2e0] sm:$0xff]
  %v118 = vld [vmem:[%s0 + $0x2e8] sm:$0xff]
  %v119 = vld [vmem:[%s0 + $0x2f0] sm:$0xf]
  %v120 = vld [vmem:[%s0 + $0x2f4] sm:$0xff]
  %v121 = vld [vmem:[%s0 + $0x2fc] sm:$0xff]
  %v122 = vld [vmem:[%s0 + $0x304] sm:$0xff]
  %v123 = vld [vmem:[%s0 + $0x30c] sm:$0xff]
  %v124 = vld [vmem:[%s0 + $0x314] sm:$0xf]
  %v125 = vld [vmem:[%s0 + $0x318] sm:$0xff]
  %v126 = vld [vmem:[%s0 + $0x320] sm:$0xff]
  %v127 = vld [vmem:[%s0 + $0x328] sm:$0xff]
  %v128 = vld [vmem:[%s0 + $0x330] sm:$0xff]
  %v129 = vld [vmem:[%s0 + $0x338] sm:$0xf]
  %v130 = vld [vmem:[%s0 + $0x33c] sm:$0xff]
  %v131 = vld [vmem:[%s0 + $0x344] sm:$0xff]
  %v132 = vld [vmem:[%s0 + $0x34c] sm:$0xff]
  %v133 = vld [vmem:[%s0 + $0x354] sm:$0xff]
  %v134 = vld [vmem:[%s0 + $0x35c] sm:$0xf]
  %v135 = vld [vmem:[%s0 + $0x360] sm:$0xff]
  %v136 = vld [vmem:[%s0 + $0x368] sm:$0xff]
  %v137 = vld [vmem:[%s0 + $0x370] sm:$0xff]
  %v138 = vld [vmem:[%s0 + $0x378] sm:$0xff]
  %v139 = vld [vmem:[%s0 + $0x380] sm:$0xf]
  %v140 = vld [vmem:[%s0 + $0x384] sm:$0xff]
  %v141 = vld [vmem:[%s0 + $0x38c] sm:$0xff]
  %v142 = vld [vmem:[%s0 + $0x394] sm:$0xff]
  %v143 = vld [vmem:[%s0 + $0x39c] sm:$0xff]
  %v144 = vld [vmem:[%s0 + $0x3a4] sm:$0xf]
  %v145 = vld [vmem:[%s0 + $0x3a8] sm:$0xff]
  %v146 = vld [vmem:[%s0 + $0x3b0] sm:$0xff]
  %v147 = vld [vmem:[%s0 + $0x3b8] sm:$0xff]
  %v148 = vld [vmem:[%s0 + $0x3c0] sm:$0xff]
  %v149 = vld [vmem:[%s0 + $0x3c8] sm:$0xf]
  %v150 = vld [vmem:[%s0 + $0x3cc] sm:$0xff]
  %v151 = vld [vmem:[%s0 + $0x3d4] sm:$0xff]
  %v152 = vld [vmem:[%s0 + $0x3dc] sm:$0xff]
  %v153 = vld [vmem:[%s0 + $0x3e4] sm:$0xff]
  %v154 = vld [vmem:[%s0 + $0x3ec] sm:$0xf]
  %v155 = vld [vmem:[%s0 + $0x3f0] sm:$0xff]
  %v156 = vld [vmem:[%s0 + $0x3f8] sm:$0xff]
  %v157 = vld [vmem:[%s0 + $0x400] sm:$0xff]
  %v158 = vld [vmem:[%s0 + $0x408] sm:$0xff]
  %v159 = vld [vmem:[%s0 + $0x410] sm:$0xf]
  %v160 = vld [vmem:[%s0 + $0x414] sm:$0xff]
  %v161 = vld [vmem:[%s0 + $0x41c] sm:$0xff]
  %v162 = vld [vmem:[%s0 + $0x424] sm:$0xff]
  %v163 = vld [vmem:[%s0 + $0x42c] sm:$0xff]
  %v164 = vld [vmem:[%s0 + $0x434] sm:$0xf]
  %v165 = vld [vmem:[%s0 + $0x438] sm:$0xff]
  %v166 = vld [vmem:[%s0 + $0x440] sm:$0xff]
  %v167 = vld [vmem:[%s0 + $0x448] sm:$0xff]
  %v168 = vld [vmem:[%s0 + $0x450] sm:$0xff]
  %v169 = vld [vmem:[%s0 + $0x458] sm:$0xf]
  %v170 = vld [vmem:[%s0 + $0x45c] sm:$0xff]
  %v171 = vld [vmem:[%s0 + $0x464] sm:$0xff]
  %v172 = vld [vmem:[%s0 + $0x46c] sm:$0xff]
  %v173 = vld [vmem:[%s0 + $0x474] sm:$0xff]
  %v174 = vld [vmem:[%s0 + $0x47c] sm:$0xf]
  %v175 = vld [vmem:[%s0 + $0x480] sm:$0xff]
  %v176 = vld [vmem:[%s0 + $0x488] sm:$0xff]
  %v177 = vld [vmem:[%s0 + $0x490] sm:$0xff]
  %v178 = vld [vmem:[%s0 + $0x498] sm:$0xff]
  %v179 = vld [vmem:[%s0 + $0x4a0] sm:$0xf]
  %v180 = vld [vmem:[%s0 + $0x4a4] sm:$0xff]
  %v181 = vld [vmem:[%s0 + $0x4ac] sm:$0xff]
  %v182 = vld [vmem:[%s0 + $0x4b4] sm:$0xff]
  %v183 = vld [vmem:[%s0 + $0x4bc] sm:$0xff]
  %v184 = vld [vmem:[%s0 + $0x4c4] sm:$0xf]
  %v185 = vld [vmem:[%s0 + $0x4c8] sm:$0xff]
  %v186 = vld [vmem:[%s0 + $0x4d0] sm:$0xff]
  %v187 = vld [vmem:[%s0 + $0x4d8] sm:$0xff]
  %v188 = vld [vmem:[%s0 + $0x4e0] sm:$0xff]
  %v189 = vld [vmem:[%s0 + $0x4e8] sm:$0xf]
  %v190 = vld [vmem:[%s0 + $0x4ec] sm:$0xff]
  %v191 = vld [vmem:[%s0 + $0x4f4] sm:$0xff]
  %v192 = vld [vmem:[%s0 + $0x4fc] sm:$0xff]
  %v193 = vld [vmem:[%s0 + $0x504] sm:$0xff]
  %v194 = vld [vmem:[%s0 + $0x50c] sm:$0xf]
  %v195 = vld [vmem:[%s1] sm:$0xff]
  %v196 = vld [vmem:[%s1 + $0x8] sm:$0xff]
  %v197 = vld [vmem:[%s1 + $0x10] sm:$0xff]
  %v198 = vld [vmem:[%s1 + $0x18] sm:$0xff]
  %v199 = vld [vmem:[%s1 + $0x20] sm:$0xff]
  %v200 = vld [vmem:[%s1 + $0x28] sm:$0xff]
  %v201 = vld [vmem:[%s1 + $0x30] sm:$0xff]
  %v202 = vld [vmem:[%s1 + $0x38] sm:$0xff]
  %v203 = vld [vmem:[%s1 + $0x40] sm:$0xff]
  %v204 = vld [vmem:[%s1 + $0x48] sm:$0xff]
  %v205 = vld [vmem:[%s1 + $0x50] sm:$0xff]
  %v206 = vld [vmem:[%s1 + $0x58] sm:$0xff]
  %v207 = vld [vmem:[%s1 + $0x60] sm:$0xff]
  %v208 = vld [vmem:[%s1 + $0x68] sm:$0xff]
  %v209 = vld [vmem:[%s1 + $0x70] sm:$0xff]
  %v210 = vld [vmem:[%s1 + $0x78] sm:$0xff]
  %v211 = vld [vmem:[%s1 + $0x80] sm:$0xff]
  %v212 = vld [vmem:[%s1 + $0x88] sm:$0xff]
  %v213 = vld [vmem:[%s1 + $0x90] sm:$0xff]
  %v214 = vld [vmem:[%s1 + $0x98] sm:$0xff]
  %v215 = vld [vmem:[%s1 + $0xa0] sm:$0xff]
  %v216 = vld [vmem:[%s1 + $0xa8] sm:$0xff]
  %v217 = vld [vmem:[%s1 + $0xb0] sm:$0xff]
  %v218 = vld [vmem:[%s1 + $0xb8] sm:$0xff]
  %v219 = vld [vmem:[%s1 + $0xc0] sm:$0xff]
  %v220 = vld [vmem:[%s1 + $0xc8] sm:$0xff]
  %v221 = vld [vmem:[%s1 + $0xd0] sm:$0xff]
  %v222 = vld [vmem:[%s1 + $0xd8] sm:$0xff]
  %v223 = vld [vmem:[%s1 + $0xe0] sm:$0xff]
  %v224 = vld [vmem:[%s1 + $0xe8] sm:$0xff]
  %v225 = vld [vmem:[%s1 + $0xf0] sm:$0xff]
  %v226 = vld [vmem:[%s1 + $0xf8] sm:$0xff]
  %v227 = vld [vmem:[%s1 + $0x100] sm:$0xff]
  %v228 = vld [vmem:[%s1 + $0x108] sm:$0xff]
  %v229 = vld [vmem:[%s1 + $0x110] sm:$0xff]
  %v230 = vld [vmem:[%s1 + $0x118] sm:$0xff]
  %v231 = vld [vmem:[%s1 + $0x120] sm:$0xff]
  %v232 = vld [vmem:[%s1 + $0x128] sm:$0xff]
  %v233 = vld [vmem:[%s1 + $0x130] sm:$0xff]
  %v234 = vld [vmem:[%s1 + $0x138] sm:$0xff]
  %v235 = vld [vmem:[%s1 + $0x140] sm:$0xff]
  %v236 = vld [vmem:[%s1 + $0x148] sm:$0xff]
  %v237 = vld [vmem:[%s1 + $0x150] sm:$0xff]
  %v238 = vld [vmem:[%s1 + $0x158] sm:$0xff]
  %v239 = vld [vmem:[%s1 + $0x160] sm:$0xff]
  %v240 = vld [vmem:[%s1 + $0x168] sm:$0xff]
  %v241 = vld [vmem:[%s1 + $0x170] sm:$0xff]
  %v242 = vld [vmem:[%s1 + $0x178] sm:$0xff]
  %v243 = vld [vmem:[%s1 + $0x180] sm:$0xff]
  %v244 = vld [vmem:[%s1 + $0x188] sm:$0xff]
  %v245 = vld [vmem:[%s1 + $0x190] sm:$0xff]
  %v246 = vld [vmem:[%s1 + $0x198] sm:$0xff]
  %v247 = vld [vmem:[%s1 + $0x1a0] sm:$0xff]
  %v248 = vld [vmem:[%s1 + $0x1a8] sm:$0xff]
  %v249 = vld [vmem:[%s1 + $0x1b0] sm:$0xff]
  %v250 = vld [vmem:[%s1 + $0x1b8] sm:$0xff]
  %v251 = vld [vmem:[%s1 + $0x1c0] sm:$0xff]
  %v252 = vld [vmem:[%s1 + $0x1c8] sm:$0xff]
  %v253 = vld [vmem:[%s1 + $0x1d0] sm:$0xff]
  %v254 = vld [vmem:[%s1 + $0x1d8] sm:$0xff]
  %v255 = vld [vmem:[%s1 + $0x1e0] sm:$0xff]
  %v256 = vld [vmem:[%s1 + $0x1e8] sm:$0xff]
  %v257 = vld [vmem:[%s1 + $0x1f0] sm:$0xff]
  %v258 = vld [vmem:[%s1 + $0x1f8] sm:$0xff]
  %v259 = vld [vmem:[%s1 + $0x200] sm:$0xff]
  %v260 = vld [vmem:[%s1 + $0x208] sm:$0xff]
  %v261 = vld [vmem:[%s1 + $0x210] sm:$0xff]
  %v262 = vld [vmem:[%s1 + $0x218] sm:$0xff]
  %v263 = vld [vmem:[%s1 + $0x220] sm:$0xff]
  %v264 = vld [vmem:[%s1 + $0x228] sm:$0xff]
  %v265 = vld [vmem:[%s1 + $0x230] sm:$0xff]
  %v266 = vld [vmem:[%s1 + $0x238] sm:$0xff]
  %v267 = vld [vmem:[%s1 + $0x240] sm:$0xff]
  %v268 = vld [vmem:[%s1 + $0x248] sm:$0xff]
  %v269 = vld [vmem:[%s1 + $0x250] sm:$0xff]
  %v270 = vld [vmem:[%s1 + $0x258] sm:$0xff]
  %v271 = vld [vmem:[%s1 + $0x260] sm:$0xff]
  %v272 = vld [vmem:[%s1 + $0x268] sm:$0xff]
  %v273 = vld [vmem:[%s1 + $0x270] sm:$0xff]
  %v274 = vld [vmem:[%s1 + $0x278] sm:$0xff]
  %v275 = vld [vmem:[%s1 + $0x280] sm:$0xff]
  %v276 = vld [vmem:[%s1 + $0x288] sm:$0xff]
  %v277 = vld [vmem:[%s1 + $0x290] sm:$0xff]
  %v278 = vld [vmem:[%s1 + $0x298] sm:$0xff]
  %v279 = vld [vmem:[%s1 + $0x2a0] sm:$0xff]
  %v280 = vld [vmem:[%s1 + $0x2a8] sm:$0xff]
  %v281 = vld [vmem:[%s1 + $0x2b0] sm:$0xff]
  %v282 = vld [vmem:[%s1 + $0x2b8] sm:$0xff]
  %v283 = vld [vmem:[%s1 + $0x2c0] sm:$0xff]
  %v284 = vld [vmem:[%s1 + $0x2c8] sm:$0xff]
  %v285 = vld [vmem:[%s1 + $0x2d0] sm:$0xff]
  %v286 = vld [vmem:[%s1 + $0x2d8] sm:$0xff]
  %v287 = vld [vmem:[%s1 + $0x2e0] sm:$0xff]
  %v288 = vld [vmem:[%s1 + $0x2e8] sm:$0xff]
  %v289 = vld [vmem:[%s1 + $0x2f0] sm:$0xff]
  %v290 = vld [vmem:[%s1 + $0x2f8] sm:$0xff]
  %v291 = vld [vmem:[%s1 + $0x300] sm:$0xff]
  %v292 = vld [vmem:[%s1 + $0x308] sm:$0xff]
  %v293 = vld [vmem:[%s1 + $0x310] sm:$0xff]
  %v294 = vld [vmem:[%s1 + $0x318] sm:$0xff]
  %v295 = vld [vmem:[%s1 + $0x320] sm:$0xff]
  %v296 = vld [vmem:[%s1 + $0x328] sm:$0xff]
  %v297 = vld [vmem:[%s1 + $0x330] sm:$0xff]
  %v298 = vld [vmem:[%s1 + $0x338] sm:$0xff]
  %v299 = vld [vmem:[%s1 + $0x340] sm:$0xff]
  %v300 = vld [vmem:[%s1 + $0x348] sm:$0xff]
  %v301 = vld [vmem:[%s1 + $0x350] sm:$0xff]
  %v302 = vld [vmem:[%s1 + $0x358] sm:$0xff]
  %v303 = vld [vmem:[%s1 + $0x360] sm:$0xff]
  %v304 = vld [vmem:[%s1 + $0x368] sm:$0xff]
  %v305 = vld [vmem:[%s1 + $0x370] sm:$0xff]
  %v306 = vld [vmem:[%s1 + $0x378] sm:$0xff]
  %v307 = vld [vmem:[%s1 + $0x380] sm:$0xff]
  %v308 = vld [vmem:[%s1 + $0x388] sm:$0xff]
  %v309 = vld [vmem:[%s1 + $0x390] sm:$0xff]
  %v310 = vld [vmem:[%s1 + $0x398] sm:$0xff]
  %v311 = vld [vmem:[%s1 + $0x3a0] sm:$0xff]
  %v312 = vld [vmem:[%s1 + $0x3a8] sm:$0xff]
  %v313 = vld [vmem:[%s1 + $0x3b0] sm:$0xff]
  %v314 = vld [vmem:[%s1 + $0x3b8] sm:$0xff]
  %v315 = vld [vmem:[%s1 + $0x3c0] sm:$0xff]
  %v316 = vld [vmem:[%s1 + $0x3c8] sm:$0xff]
  %v317 = vld [vmem:[%s1 + $0x3d0] sm:$0xff]
  %v318 = vld [vmem:[%s1 + $0x3d8] sm:$0xff]
  %v319 = vld [vmem:[%s1 + $0x3e0] sm:$0xff]
  %v320 = vld [vmem:[%s1 + $0x3e8] sm:$0xff]
  %v321 = vld [vmem:[%s1 + $0x3f0] sm:$0xff]
  %v322 = vld [vmem:[%s1 + $0x3f8] sm:$0xff]
  %v323 = vld [vmem:[%s1 + $0x400] sm:$0xff]
  %v324 = vld [vmem:[%s1 + $0x408] sm:$0xff]
  %v325 = vld [vmem:[%s1 + $0x410] sm:$0xff]
  %v326 = vld [vmem:[%s1 + $0x418] sm:$0xff]
  %v327 = vld [vmem:[%s1 + $0x420] sm:$0xff]
  %v328 = vld [vmem:[%s1 + $0x428] sm:$0xff]
  %v329 = vld [vmem:[%s1 + $0x430] sm:$0xff]
  %v330 = vld [vmem:[%s1 + $0x438] sm:$0xff]
  %v331 = vld [vmem:[%s1 + $0x440] sm:$0xff]
  %v332 = vld [vmem:[%s1 + $0x448] sm:$0xff]
  %v333 = vld [vmem:[%s1 + $0x450] sm:$0xff]
  %v334 = vld [vmem:[%s1 + $0x458] sm:$0xff]
  %v335 = vld [vmem:[%s1 + $0x460] sm:$0xff]
  %v336 = vld [vmem:[%s1 + $0x468] sm:$0xff]
  %v337 = vld [vmem:[%s1 + $0x470] sm:$0xff]
  %v338 = vld [vmem:[%s1 + $0x478] sm:$0xff]
  %v339 = vld [vmem:[%s2] sm:$0x3]
  %v341 = vlaneseq
  %v342 = vshrl.u32 %v341, 7
  %v343 = vsub.s32 0, %v342
  %v344 = vrot.slane %v339, %v343
  %v345 = vlaneseq
  %v346 = vshrl.u32 %v345, 7
  %v347 = vsub.s32 1, %v346
  %v348 = vrot.slane %v339, %v347
  %v531 = vunpack.c.l.b16 %v15
  %v532 = vunpack.c.h.b16 %v15
  %v533 = vunpack.c.l.b16 %v16
  %v534 = vunpack.c.h.b16 %v16
  %v535 = vunpack.c.l.b16 %v17
  %v536 = vunpack.c.h.b16 %v17
  %v537 = vunpack.c.l.b16 %v18
  %v538 = vunpack.c.h.b16 %v18
  %v539 = vunpack.c.l.b16 %v19
  %v540 = vunpack.c.l.b16 %v20
  %v541 = vunpack.c.h.b16 %v20
  %v542 = vunpack.c.l.b16 %v21
  %v543 = vunpack.c.h.b16 %v21
  %v544 = vunpack.c.l.b16 %v22
  %v545 = vunpack.c.h.b16 %v22
  %v546 = vunpack.c.l.b16 %v23
  %v547 = vunpack.c.h.b16 %v23
  %v548 = vunpack.c.l.b16 %v24
  %v549 = vunpack.c.l.b16 %v25
  %v550 = vunpack.c.h.b16 %v25
  %v551 = vunpack.c.l.b16 %v26
  %v552 = vunpack.c.h.b16 %v26
  %v553 = vunpack.c.l.b16 %v27
  %v554 = vunpack.c.h.b16 %v27
  %v555 = vunpack.c.l.b16 %v28
  %v556 = vunpack.c.h.b16 %v28
  %v557 = vunpack.c.l.b16 %v29
  %v558 = vunpack.c.l.b16 %v30
  %v559 = vunpack.c.h.b16 %v30
  %v560 = vunpack.c.l.b16 %v31
  %v561 = vunpack.c.h.b16 %v31
  %v562 = vunpack.c.l.b16 %v32
  %v563 = vunpack.c.h.b16 %v32
  %v564 = vunpack.c.l.b16 %v33
  %v565 = vunpack.c.h.b16 %v33
  %v566 = vunpack.c.l.b16 %v34
  %v567 = vunpack.c.l.b16 %v35
  %v568 = vunpack.c.h.b16 %v35
  %v569 = vunpack.c.l.b16 %v36
  %v570 = vunpack.c.h.b16 %v36
  %v571 = vunpack.c.l.b16 %v37
  %v572 = vunpack.c.h.b16 %v37
  %v573 = vunpack.c.l.b16 %v38
  %v574 = vunpack.c.h.b16 %v38
  %v575 = vunpack.c.l.b16 %v39
  %v576 = vunpack.c.l.b16 %v40
  %v577 = vunpack.c.h.b16 %v40
  %v578 = vunpack.c.l.b16 %v41
  %v579 = vunpack.c.h.b16 %v41
  %v580 = vunpack.c.l.b16 %v42
  %v581 = vunpack.c.h.b16 %v42
  %v582 = vunpack.c.l.b16 %v43
  %v583 = vunpack.c.h.b16 %v43
  %v584 = vunpack.c.l.b16 %v44
  %v585 = vunpack.c.l.b16 %v45
  %v586 = vunpack.c.h.b16 %v45
  %v587 = vunpack.c.l.b16 %v46
  %v588 = vunpack.c.h.b16 %v46
  %v589 = vunpack.c.l.b16 %v47
  %v590 = vunpack.c.h.b16 %v47
  %v591 = vunpack.c.l.b16 %v48
  %v592 = vunpack.c.h.b16 %v48
  %v593 = vunpack.c.l.b16 %v49
  %v594 = vunpack.c.l.b16 %v50
  %v595 = vunpack.c.h.b16 %v50
  %v596 = vunpack.c.l.b16 %v51
  %v597 = vunpack.c.h.b16 %v51
  %v598 = vunpack.c.l.b16 %v52
  %v599 = vunpack.c.h.b16 %v52
  %v600 = vunpack.c.l.b16 %v53
  %v601 = vunpack.c.h.b16 %v53
  %v602 = vunpack.c.l.b16 %v54
  %v603 = vunpack.c.l.b16 %v55
  %v604 = vunpack.c.h.b16 %v55
  %v605 = vunpack.c.l.b16 %v56
  %v606 = vunpack.c.h.b16 %v56
  %v607 = vunpack.c.l.b16 %v57
  %v608 = vunpack.c.h.b16 %v57
  %v609 = vunpack.c.l.b16 %v58
  %v610 = vunpack.c.h.b16 %v58
  %v611 = vunpack.c.l.b16 %v59
  %v612 = vunpack.c.l.b16 %v60
  %v613 = vunpack.c.h.b16 %v60
  %v614 = vunpack.c.l.b16 %v61
  %v615 = vunpack.c.h.b16 %v61
  %v616 = vunpack.c.l.b16 %v62
  %v617 = vunpack.c.h.b16 %v62
  %v618 = vunpack.c.l.b16 %v63
  %v619 = vunpack.c.h.b16 %v63
  %v620 = vunpack.c.l.b16 %v64
  %v621 = vunpack.c.l.b16 %v65
  %v622 = vunpack.c.h.b16 %v65
  %v623 = vunpack.c.l.b16 %v66
  %v624 = vunpack.c.h.b16 %v66
  %v625 = vunpack.c.l.b16 %v67
  %v626 = vunpack.c.h.b16 %v67
  %v627 = vunpack.c.l.b16 %v68
  %v628 = vunpack.c.h.b16 %v68
  %v629 = vunpack.c.l.b16 %v69
  %v630 = vunpack.c.l.b16 %v70
  %v631 = vunpack.c.h.b16 %v70
  %v632 = vunpack.c.l.b16 %v71
  %v633 = vunpack.c.h.b16 %v71
  %v634 = vunpack.c.l.b16 %v72
  %v635 = vunpack.c.h.b16 %v72
  %v636 = vunpack.c.l.b16 %v73
  %v637 = vunpack.c.h.b16 %v73
  %v638 = vunpack.c.l.b16 %v74
  %v639 = vunpack.c.l.b16 %v75
  %v640 = vunpack.c.h.b16 %v75
  %v641 = vunpack.c.l.b16 %v76
  %v642 = vunpack.c.h.b16 %v76
  %v643 = vunpack.c.l.b16 %v77
  %v644 = vunpack.c.h.b16 %v77
  %v645 = vunpack.c.l.b16 %v78
  %v646 = vunpack.c.h.b16 %v78
  %v647 = vunpack.c.l.b16 %v79
  %v648 = vunpack.c.l.b16 %v80
  %v649 = vunpack.c.h.b16 %v80
  %v650 = vunpack.c.l.b16 %v81
  %v651 = vunpack.c.h.b16 %v81
  %v652 = vunpack.c.l.b16 %v82
  %v653 = vunpack.c.h.b16 %v82
  %v654 = vunpack.c.l.b16 %v83
  %v655 = vunpack.c.h.b16 %v83
  %v656 = vunpack.c.l.b16 %v84
  %v657 = vunpack.c.l.b16 %v85
  %v658 = vunpack.c.h.b16 %v85
  %v659 = vunpack.c.l.b16 %v86
  %v660 = vunpack.c.h.b16 %v86
  %v661 = vunpack.c.l.b16 %v87
  %v662 = vunpack.c.h.b16 %v87
  %v663 = vunpack.c.l.b16 %v88
  %v664 = vunpack.c.h.b16 %v88
  %v665 = vunpack.c.l.b16 %v89
  %v666 = vunpack.c.l.b16 %v90
  %v667 = vunpack.c.h.b16 %v90
  %v668 = vunpack.c.l.b16 %v91
  %v669 = vunpack.c.h.b16 %v91
  %v670 = vunpack.c.l.b16 %v92
  %v671 = vunpack.c.h.b16 %v92
  %v672 = vunpack.c.l.b16 %v93
  %v673 = vunpack.c.h.b16 %v93
  %v674 = vunpack.c.l.b16 %v94
  %v675 = vunpack.c.l.b16 %v95
  %v676 = vunpack.c.h.b16 %v95
  %v677 = vunpack.c.l.b16 %v96
  %v678 = vunpack.c.h.b16 %v96
  %v679 = vunpack.c.l.b16 %v97
  %v680 = vunpack.c.h.b16 %v97
  %v681 = vunpack.c.l.b16 %v98
  %v682 = vunpack.c.h.b16 %v98
  %v683 = vunpack.c.l.b16 %v99
  %v684 = vunpack.c.l.b16 %v100
  %v685 = vunpack.c.h.b16 %v100
  %v686 = vunpack.c.l.b16 %v101
  %v687 = vunpack.c.h.b16 %v101
  %v688 = vunpack.c.l.b16 %v102
  %v689 = vunpack.c.h.b16 %v102
  %v690 = vunpack.c.l.b16 %v103
  %v691 = vunpack.c.h.b16 %v103
  %v692 = vunpack.c.l.b16 %v104
  %v693 = vunpack.c.l.b16 %v105
  %v694 = vunpack.c.h.b16 %v105
  %v695 = vunpack.c.l.b16 %v106
  %v696 = vunpack.c.h.b16 %v106
  %v697 = vunpack.c.l.b16 %v107
  %v698 = vunpack.c.h.b16 %v107
  %v699 = vunpack.c.l.b16 %v108
  %v700 = vunpack.c.h.b16 %v108
  %v701 = vunpack.c.l.b16 %v109
  %v702 = vunpack.c.l.b16 %v110
  %v703 = vunpack.c.h.b16 %v110
  %v704 = vunpack.c.l.b16 %v111
  %v705 = vunpack.c.h.b16 %v111
  %v706 = vunpack.c.l.b16 %v112
  %v707 = vunpack.c.h.b16 %v112
  %v708 = vunpack.c.l.b16 %v113
  %v709 = vunpack.c.h.b16 %v113
  %v710 = vunpack.c.l.b16 %v114
  %v711 = vunpack.c.l.b16 %v115
  %v712 = vunpack.c.h.b16 %v115
  %v713 = vunpack.c.l.b16 %v116
  %v714 = vunpack.c.h.b16 %v116
  %v715 = vunpack.c.l.b16 %v117
  %v716 = vunpack.c.h.b16 %v117
  %v717 = vunpack.c.l.b16 %v118
  %v718 = vunpack.c.h.b16 %v118
  %v719 = vunpack.c.l.b16 %v119
  %v720 = vunpack.c.l.b16 %v120
  %v721 = vunpack.c.h.b16 %v120
  %v722 = vunpack.c.l.b16 %v121
  %v723 = vunpack.c.h.b16 %v121
  %v724 = vunpack.c.l.b16 %v122
  %v725 = vunpack.c.h.b16 %v122
  %v726 = vunpack.c.l.b16 %v123
  %v727 = vunpack.c.h.b16 %v123
  %v728 = vunpack.c.l.b16 %v124
  %v729 = vunpack.c.l.b16 %v125
  %v730 = vunpack.c.h.b16 %v125
  %v731 = vunpack.c.l.b16 %v126
  %v732 = vunpack.c.h.b16 %v126
  %v733 = vunpack.c.l.b16 %v127
  %v734 = vunpack.c.h.b16 %v127
  %v735 = vunpack.c.l.b16 %v128
  %v736 = vunpack.c.h.b16 %v128
  %v737 = vunpack.c.l.b16 %v129
  %v738 = vunpack.c.l.b16 %v130
  %v739 = vunpack.c.h.b16 %v130
  %v740 = vunpack.c.l.b16 %v131
  %v741 = vunpack.c.h.b16 %v131
  %v742 = vunpack.c.l.b16 %v132
  %v743 = vunpack.c.h.b16 %v132
  %v744 = vunpack.c.l.b16 %v133
  %v745 = vunpack.c.h.b16 %v133
  %v746 = vunpack.c.l.b16 %v134
  %v747 = vunpack.c.l.b16 %v135
  %v748 = vunpack.c.h.b16 %v135
  %v749 = vunpack.c.l.b16 %v136
  %v750 = vunpack.c.h.b16 %v136
  %v751 = vunpack.c.l.b16 %v137
  %v752 = vunpack.c.h.b16 %v137
  %v753 = vunpack.c.l.b16 %v138
  %v754 = vunpack.c.h.b16 %v138
  %v755 = vunpack.c.l.b16 %v139
  %v756 = vunpack.c.l.b16 %v140
  %v757 = vunpack.c.h.b16 %v140
  %v758 = vunpack.c.l.b16 %v141
  %v759 = vunpack.c.h.b16 %v141
  %v760 = vunpack.c.l.b16 %v142
  %v761 = vunpack.c.h.b16 %v142
  %v762 = vunpack.c.l.b16 %v143
  %v763 = vunpack.c.h.b16 %v143
  %v764 = vunpack.c.l.b16 %v144
  %v765 = vunpack.c.l.b16 %v145
  %v766 = vunpack.c.h.b16 %v145
  %v767 = vunpack.c.l.b16 %v146
  %v768 = vunpack.c.h.b16 %v146
  %v769 = vunpack.c.l.b16 %v147
  %v770 = vunpack.c.h.b16 %v147
  %v771 = vunpack.c.l.b16 %v148
  %v772 = vunpack.c.h.b16 %v148
  %v773 = vunpack.c.l.b16 %v149
  %v774 = vunpack.c.l.b16 %v150
  %v775 = vunpack.c.h.b16 %v150
  %v776 = vunpack.c.l.b16 %v151
  %v777 = vunpack.c.h.b16 %v151
  %v778 = vunpack.c.l.b16 %v152
  %v779 = vunpack.c.h.b16 %v152
  %v780 = vunpack.c.l.b16 %v153
  %v781 = vunpack.c.h.b16 %v153
  %v782 = vunpack.c.l.b16 %v154
  %v783 = vunpack.c.l.b16 %v155
  %v784 = vunpack.c.h.b16 %v155
  %v785 = vunpack.c.l.b16 %v156
  %v786 = vunpack.c.h.b16 %v156
  %v787 = vunpack.c.l.b16 %v157
  %v788 = vunpack.c.h.b16 %v157
  %v789 = vunpack.c.l.b16 %v158
  %v790 = vunpack.c.h.b16 %v158
  %v791 = vunpack.c.l.b16 %v159
  %v792 = vunpack.c.l.b16 %v160
  %v793 = vunpack.c.h.b16 %v160
  %v794 = vunpack.c.l.b16 %v161
  %v795 = vunpack.c.h.b16 %v161
  %v796 = vunpack.c.l.b16 %v162
  %v797 = vunpack.c.h.b16 %v162
  %v798 = vunpack.c.l.b16 %v163
  %v799 = vunpack.c.h.b16 %v163
  %v800 = vunpack.c.l.b16 %v164
  %v801 = vunpack.c.l.b16 %v165
  %v802 = vunpack.c.h.b16 %v165
  %v803 = vunpack.c.l.b16 %v166
  %v804 = vunpack.c.h.b16 %v166
  %v805 = vunpack.c.l.b16 %v167
  %v806 = vunpack.c.h.b16 %v167
  %v807 = vunpack.c.l.b16 %v168
  %v808 = vunpack.c.h.b16 %v168
  %v809 = vunpack.c.l.b16 %v169
  %v810 = vunpack.c.l.b16 %v170
  %v811 = vunpack.c.h.b16 %v170
  %v812 = vunpack.c.l.b16 %v171
  %v813 = vunpack.c.h.b16 %v171
  %v814 = vunpack.c.l.b16 %v172
  %v815 = vunpack.c.h.b16 %v172
  %v816 = vunpack.c.l.b16 %v173
  %v817 = vunpack.c.h.b16 %v173
  %v818 = vunpack.c.l.b16 %v174
  %v819 = vunpack.c.l.b16 %v175
  %v820 = vunpack.c.h.b16 %v175
  %v821 = vunpack.c.l.b16 %v176
  %v822 = vunpack.c.h.b16 %v176
  %v823 = vunpack.c.l.b16 %v177
  %v824 = vunpack.c.h.b16 %v177
  %v825 = vunpack.c.l.b16 %v178
  %v826 = vunpack.c.h.b16 %v178
  %v827 = vunpack.c.l.b16 %v179
  %v828 = vunpack.c.l.b16 %v180
  %v829 = vunpack.c.h.b16 %v180
  %v830 = vunpack.c.l.b16 %v181
  %v831 = vunpack.c.h.b16 %v181
  %v832 = vunpack.c.l.b16 %v182
  %v833 = vunpack.c.h.b16 %v182
  %v834 = vunpack.c.l.b16 %v183
  %v835 = vunpack.c.h.b16 %v183
  %v836 = vunpack.c.l.b16 %v184
  %v837 = vunpack.c.l.b16 %v185
  %v838 = vunpack.c.h.b16 %v185
  %v839 = vunpack.c.l.b16 %v186
  %v840 = vunpack.c.h.b16 %v186
  %v841 = vunpack.c.l.b16 %v187
  %v842 = vunpack.c.h.b16 %v187
  %v843 = vunpack.c.l.b16 %v188
  %v844 = vunpack.c.h.b16 %v188
  %v845 = vunpack.c.l.b16 %v189
  %v846 = vunpack.c.l.b16 %v190
  %v847 = vunpack.c.h.b16 %v190
  %v848 = vunpack.c.l.b16 %v191
  %v849 = vunpack.c.h.b16 %v191
  %v850 = vunpack.c.l.b16 %v192
  %v851 = vunpack.c.h.b16 %v192
  %v852 = vunpack.c.l.b16 %v193
  %v853 = vunpack.c.h.b16 %v193
  %v854 = vunpack.c.l.b16 %v194
  %v855 = vpack.c.b16 %v540, %v531
  %v856 = vpack.c.b16 %v541, %v532
  %v857 = vpack.c.b16 %v542, %v533
  %v858 = vpack.c.b16 %v543, %v534
  %v859 = vpack.c.b16 %v544, %v535
  %v860 = vpack.c.b16 %v545, %v536
  %v861 = vpack.c.b16 %v546, %v537
  %v862 = vpack.c.b16 %v547, %v538
  %v863 = vpack.c.b16 %v548, %v539
  %v864 = vpack.c.b16 %v558, %v549
  %v865 = vpack.c.b16 %v559, %v550
  %v866 = vpack.c.b16 %v560, %v551
  %v867 = vpack.c.b16 %v561, %v552
  %v868 = vpack.c.b16 %v562, %v553
  %v869 = vpack.c.b16 %v563, %v554
  %v870 = vpack.c.b16 %v564, %v555
  %v871 = vpack.c.b16 %v565, %v556
  %v872 = vpack.c.b16 %v566, %v557
  %v873 = vpack.c.b16 %v576, %v567
  %v874 = vpack.c.b16 %v577, %v568
  %v875 = vpack.c.b16 %v578, %v569
  %v876 = vpack.c.b16 %v579, %v570
  %v877 = vpack.c.b16 %v580, %v571
  %v878 = vpack.c.b16 %v581, %v572
  %v879 = vpack.c.b16 %v582, %v573
  %v880 = vpack.c.b16 %v583, %v574
  %v881 = vpack.c.b16 %v584, %v575
  %v882 = vpack.c.b16 %v594, %v585
  %v883 = vpack.c.b16 %v595, %v586
  %v884 = vpack.c.b16 %v596, %v587
  %v885 = vpack.c.b16 %v597, %v588
  %v886 = vpack.c.b16 %v598, %v589
  %v887 = vpack.c.b16 %v599, %v590
  %v888 = vpack.c.b16 %v600, %v591
  %v889 = vpack.c.b16 %v601, %v592
  %v890 = vpack.c.b16 %v602, %v593
  %v891 = vpack.c.b16 %v612, %v603
  %v892 = vpack.c.b16 %v613, %v604
  %v893 = vpack.c.b16 %v614, %v605
  %v894 = vpack.c.b16 %v615, %v606
  %v895 = vpack.c.b16 %v616, %v607
  %v896 = vpack.c.b16 %v617, %v608
  %v897 = vpack.c.b16 %v618, %v609
  %v898 = vpack.c.b16 %v619, %v610
  %v899 = vpack.c.b16 %v620, %v611
  %v900 = vpack.c.b16 %v630, %v621
  %v901 = vpack.c.b16 %v631, %v622
  %v902 = vpack.c.b16 %v632, %v623
  %v903 = vpack.c.b16 %v633, %v624
  %v904 = vpack.c.b16 %v634, %v625
  %v905 = vpack.c.b16 %v635, %v626
  %v906 = vpack.c.b16 %v636, %v627
  %v907 = vpack.c.b16 %v637, %v628
  %v908 = vpack.c.b16 %v638, %v629
  %v909 = vpack.c.b16 %v648, %v639
  %v910 = vpack.c.b16 %v649, %v640
  %v911 = vpack.c.b16 %v650, %v641
  %v912 = vpack.c.b16 %v651, %v642
  %v913 = vpack.c.b16 %v652, %v643
  %v914 = vpack.c.b16 %v653, %v644
  %v915 = vpack.c.b16 %v654, %v645
  %v916 = vpack.c.b16 %v655, %v646
  %v917 = vpack.c.b16 %v656, %v647
  %v918 = vpack.c.b16 %v666, %v657
  %v919 = vpack.c.b16 %v667, %v658
  %v920 = vpack.c.b16 %v668, %v659
  %v921 = vpack.c.b16 %v669, %v660
  %v922 = vpack.c.b16 %v670, %v661
  %v923 = vpack.c.b16 %v671, %v662
  %v924 = vpack.c.b16 %v672, %v663
  %v925 = vpack.c.b16 %v673, %v664
  %v926 = vpack.c.b16 %v674, %v665
  %v927 = vpack.c.b16 %v684, %v675
  %v928 = vpack.c.b16 %v685, %v676
  %v929 = vpack.c.b16 %v686, %v677
  %v930 = vpack.c.b16 %v687, %v678
  %v931 = vpack.c.b16 %v688, %v679
  %v932 = vpack.c.b16 %v689, %v680
  %v933 = vpack.c.b16 %v690, %v681
  %v934 = vpack.c.b16 %v691, %v682
  %v935 = vpack.c.b16 %v692, %v683
  %v936 = vpack.c.b16 %v702, %v693
  %v937 = vpack.c.b16 %v703, %v694
  %v938 = vpack.c.b16 %v704, %v695
  %v939 = vpack.c.b16 %v705, %v696
  %v940 = vpack.c.b16 %v706, %v697
  %v941 = vpack.c.b16 %v707, %v698
  %v942 = vpack.c.b16 %v708, %v699
  %v943 = vpack.c.b16 %v709, %v700
  %v944 = vpack.c.b16 %v710, %v701
  %v945 = vpack.c.b16 %v720, %v711
  %v946 = vpack.c.b16 %v721, %v712
  %v947 = vpack.c.b16 %v722, %v713
  %v948 = vpack.c.b16 %v723, %v714
  %v949 = vpack.c.b16 %v724, %v715
  %v950 = vpack.c.b16 %v725, %v716
  %v951 = vpack.c.b16 %v726, %v717
  %v952 = vpack.c.b16 %v727, %v718
  %v953 = vpack.c.b16 %v728, %v719
  %v954 = vpack.c.b16 %v738, %v729
  %v955 = vpack.c.b16 %v739, %v730
  %v956 = vpack.c.b16 %v740, %v731
  %v957 = vpack.c.b16 %v741, %v732
  %v958 = vpack.c.b16 %v742, %v733
  %v959 = vpack.c.b16 %v743, %v734
  %v960 = vpack.c.b16 %v744, %v735
  %v961 = vpack.c.b16 %v745, %v736
  %v962 = vpack.c.b16 %v746, %v737
  %v963 = vpack.c.b16 %v756, %v747
  %v964 = vpack.c.b16 %v757, %v748
  %v965 = vpack.c.b16 %v758, %v749
  %v966 = vpack.c.b16 %v759, %v750
  %v967 = vpack.c.b16 %v760, %v751
  %v968 = vpack.c.b16 %v761, %v752
  %v969 = vpack.c.b16 %v762, %v753
  %v970 = vpack.c.b16 %v763, %v754
  %v971 = vpack.c.b16 %v764, %v755
  %v972 = vpack.c.b16 %v774, %v765
  %v973 = vpack.c.b16 %v775, %v766
  %v974 = vpack.c.b16 %v776, %v767
  %v975 = vpack.c.b16 %v777, %v768
  %v976 = vpack.c.b16 %v778, %v769
  %v977 = vpack.c.b16 %v779, %v770
  %v978 = vpack.c.b16 %v780, %v771
  %v979 = vpack.c.b16 %v781, %v772
  %v980 = vpack.c.b16 %v782, %v773
  %v981 = vpack.c.b16 %v792, %v783
  %v982 = vpack.c.b16 %v793, %v784
  %v983 = vpack.c.b16 %v794, %v785
  %v984 = vpack.c.b16 %v795, %v786
  %v985 = vpack.c.b16 %v796, %v787
  %v986 = vpack.c.b16 %v797, %v788
  %v987 = vpack.c.b16 %v798, %v789
  %v988 = vpack.c.b16 %v799, %v790
  %v989 = vpack.c.b16 %v800, %v791
  %v990 = vpack.c.b16 %v810, %v801
  %v991 = vpack.c.b16 %v811, %v802
  %v992 = vpack.c.b16 %v812, %v803
  %v993 = vpack.c.b16 %v813, %v804
  %v994 = vpack.c.b16 %v814, %v805
  %v995 = vpack.c.b16 %v815, %v806
  %v996 = vpack.c.b16 %v816, %v807
  %v997 = vpack.c.b16 %v817, %v808
  %v998 = vpack.c.b16 %v818, %v809
  %v999 = vpack.c.b16 %v828, %v819
  %v1000 = vpack.c.b16 %v829, %v820
  %v1001 = vpack.c.b16 %v830, %v821
  %v1002 = vpack.c.b16 %v831, %v822
  %v1003 = vpack.c.b16 %v832, %v823
  %v1004 = vpack.c.b16 %v833, %v824
  %v1005 = vpack.c.b16 %v834, %v825
  %v1006 = vpack.c.b16 %v835, %v826
  %v1007 = vpack.c.b16 %v836, %v827
  %v1008 = vpack.c.b16 %v846, %v837
  %v1009 = vpack.c.b16 %v847, %v838
  %v1010 = vpack.c.b16 %v848, %v839
  %v1011 = vpack.c.b16 %v849, %v840
  %v1012 = vpack.c.b16 %v850, %v841
  %v1013 = vpack.c.b16 %v851, %v842
  %v1014 = vpack.c.b16 %v852, %v843
  %v1015 = vpack.c.b16 %v853, %v844
  %v1016 = vpack.c.b16 %v854, %v845
  %v1323 = vunpack.c.l.b16 %v195
  %v1324 = vunpack.c.h.b16 %v195
  %v1325 = vunpack.c.l.b16 %v196
  %v1326 = vunpack.c.h.b16 %v196
  %v1327 = vunpack.c.l.b16 %v197
  %v1328 = vunpack.c.h.b16 %v197
  %v1329 = vunpack.c.l.b16 %v198
  %v1330 = vunpack.c.h.b16 %v198
  %v1331 = vunpack.c.l.b16 %v199
  %v1332 = vunpack.c.h.b16 %v199
  %v1333 = vunpack.c.l.b16 %v200
  %v1334 = vunpack.c.h.b16 %v200
  %v1335 = vunpack.c.l.b16 %v201
  %v1336 = vunpack.c.h.b16 %v201
  %v1337 = vunpack.c.l.b16 %v202
  %v1338 = vunpack.c.h.b16 %v202
  %v1339 = vunpack.c.l.b16 %v203
  %v1340 = vunpack.c.h.b16 %v203
  %v1341 = vunpack.c.l.b16 %v204
  %v1342 = vunpack.c.h.b16 %v204
  %v1343 = vunpack.c.l.b16 %v205
  %v1344 = vunpack.c.h.b16 %v205
  %v1345 = vunpack.c.l.b16 %v206
  %v1346 = vunpack.c.h.b16 %v206
  %v1347 = vunpack.c.l.b16 %v207
  %v1348 = vunpack.c.h.b16 %v207
  %v1349 = vunpack.c.l.b16 %v208
  %v1350 = vunpack.c.h.b16 %v208
  %v1351 = vunpack.c.l.b16 %v209
  %v1352 = vunpack.c.h.b16 %v209
  %v1353 = vunpack.c.l.b16 %v210
  %v1354 = vunpack.c.h.b16 %v210
  %v1355 = vunpack.c.l.b16 %v211
  %v1356 = vunpack.c.h.b16 %v211
  %v1357 = vunpack.c.l.b16 %v212
  %v1358 = vunpack.c.h.b16 %v212
  %v1359 = vunpack.c.l.b16 %v213
  %v1360 = vunpack.c.h.b16 %v213
  %v1361 = vunpack.c.l.b16 %v214
  %v1362 = vunpack.c.h.b16 %v214
  %v1363 = vunpack.c.l.b16 %v215
  %v1364 = vunpack.c.h.b16 %v215
  %v1365 = vunpack.c.l.b16 %v216
  %v1366 = vunpack.c.h.b16 %v216
  %v1367 = vunpack.c.l.b16 %v217
  %v1368 = vunpack.c.h.b16 %v217
  %v1369 = vunpack.c.l.b16 %v218
  %v1370 = vunpack.c.h.b16 %v218
  %v1371 = vunpack.c.l.b16 %v219
  %v1372 = vunpack.c.h.b16 %v219
  %v1373 = vunpack.c.l.b16 %v220
  %v1374 = vunpack.c.h.b16 %v220
  %v1375 = vunpack.c.l.b16 %v221
  %v1376 = vunpack.c.h.b16 %v221
  %v1377 = vunpack.c.l.b16 %v222
  %v1378 = vunpack.c.h.b16 %v222
  %v1379 = vunpack.c.l.b16 %v223
  %v1380 = vunpack.c.h.b16 %v223
  %v1381 = vunpack.c.l.b16 %v224
  %v1382 = vunpack.c.h.b16 %v224
  %v1383 = vunpack.c.l.b16 %v225
  %v1384 = vunpack.c.h.b16 %v225
  %v1385 = vunpack.c.l.b16 %v226
  %v1386 = vunpack.c.h.b16 %v226
  %v1387 = vunpack.c.l.b16 %v227
  %v1388 = vunpack.c.h.b16 %v227
  %v1389 = vunpack.c.l.b16 %v228
  %v1390 = vunpack.c.h.b16 %v228
  %v1391 = vunpack.c.l.b16 %v229
  %v1392 = vunpack.c.h.b16 %v229
  %v1393 = vunpack.c.l.b16 %v230
  %v1394 = vunpack.c.h.b16 %v230
  %v1395 = vunpack.c.l.b16 %v231
  %v1396 = vunpack.c.h.b16 %v231
  %v1397 = vunpack.c.l.b16 %v232
  %v1398 = vunpack.c.h.b16 %v232
  %v1399 = vunpack.c.l.b16 %v233
  %v1400 = vunpack.c.h.b16 %v233
  %v1401 = vunpack.c.l.b16 %v234
  %v1402 = vunpack.c.h.b16 %v234
  %v1403 = vunpack.c.l.b16 %v235
  %v1404 = vunpack.c.h.b16 %v235
  %v1405 = vunpack.c.l.b16 %v236
  %v1406 = vunpack.c.h.b16 %v236
  %v1407 = vunpack.c.l.b16 %v237
  %v1408 = vunpack.c.h.b16 %v237
  %v1409 = vunpack.c.l.b16 %v238
  %v1410 = vunpack.c.h.b16 %v238
  %v1411 = vunpack.c.l.b16 %v239
  %v1412 = vunpack.c.h.b16 %v239
  %v1413 = vunpack.c.l.b16 %v240
  %v1414 = vunpack.c.h.b16 %v240
  %v1415 = vunpack.c.l.b16 %v241
  %v1416 = vunpack.c.h.b16 %v241
  %v1417 = vunpack.c.l.b16 %v242
  %v1418 = vunpack.c.h.b16 %v242
  %v1419 = vunpack.c.l.b16 %v243
  %v1420 = vunpack.c.h.b16 %v243
  %v1421 = vunpack.c.l.b16 %v244
  %v1422 = vunpack.c.h.b16 %v244
  %v1423 = vunpack.c.l.b16 %v245
  %v1424 = vunpack.c.h.b16 %v245
  %v1425 = vunpack.c.l.b16 %v246
  %v1426 = vunpack.c.h.b16 %v246
  %v1427 = vunpack.c.l.b16 %v247
  %v1428 = vunpack.c.h.b16 %v247
  %v1429 = vunpack.c.l.b16 %v248
  %v1430 = vunpack.c.h.b16 %v248
  %v1431 = vunpack.c.l.b16 %v249
  %v1432 = vunpack.c.h.b16 %v249
  %v1433 = vunpack.c.l.b16 %v250
  %v1434 = vunpack.c.h.b16 %v250
  %v1435 = vunpack.c.l.b16 %v251
  %v1436 = vunpack.c.h.b16 %v251
  %v1437 = vunpack.c.l.b16 %v252
  %v1438 = vunpack.c.h.b16 %v252
  %v1439 = vunpack.c.l.b16 %v253
  %v1440 = vunpack.c.h.b16 %v253
  %v1441 = vunpack.c.l.b16 %v254
  %v1442 = vunpack.c.h.b16 %v254
  %v1443 = vunpack.c.l.b16 %v255
  %v1444 = vunpack.c.h.b16 %v255
  %v1445 = vunpack.c.l.b16 %v256
  %v1446 = vunpack.c.h.b16 %v256
  %v1447 = vunpack.c.l.b16 %v257
  %v1448 = vunpack.c.h.b16 %v257
  %v1449 = vunpack.c.l.b16 %v258
  %v1450 = vunpack.c.h.b16 %v258
  %v1451 = vunpack.c.l.b16 %v259
  %v1452 = vunpack.c.h.b16 %v259
  %v1453 = vunpack.c.l.b16 %v260
  %v1454 = vunpack.c.h.b16 %v260
  %v1455 = vunpack.c.l.b16 %v261
  %v1456 = vunpack.c.h.b16 %v261
  %v1457 = vunpack.c.l.b16 %v262
  %v1458 = vunpack.c.h.b16 %v262
  %v1459 = vunpack.c.l.b16 %v263
  %v1460 = vunpack.c.h.b16 %v263
  %v1461 = vunpack.c.l.b16 %v264
  %v1462 = vunpack.c.h.b16 %v264
  %v1463 = vunpack.c.l.b16 %v265
  %v1464 = vunpack.c.h.b16 %v265
  %v1465 = vunpack.c.l.b16 %v266
  %v1466 = vunpack.c.h.b16 %v266
  %v1467 = vunpack.c.l.b16 %v267
  %v1468 = vunpack.c.h.b16 %v267
  %v1469 = vunpack.c.l.b16 %v268
  %v1470 = vunpack.c.h.b16 %v268
  %v1471 = vunpack.c.l.b16 %v269
  %v1472 = vunpack.c.h.b16 %v269
  %v1473 = vunpack.c.l.b16 %v270
  %v1474 = vunpack.c.h.b16 %v270
  %v1475 = vunpack.c.l.b16 %v271
  %v1476 = vunpack.c.h.b16 %v271
  %v1477 = vunpack.c.l.b16 %v272
  %v1478 = vunpack.c.h.b16 %v272
  %v1479 = vunpack.c.l.b16 %v273
  %v1480 = vunpack.c.h.b16 %v273
  %v1481 = vunpack.c.l.b16 %v274
  %v1482 = vunpack.c.h.b16 %v274
  %v1483 = vunpack.c.l.b16 %v275
  %v1484 = vunpack.c.h.b16 %v275
  %v1485 = vunpack.c.l.b16 %v276
  %v1486 = vunpack.c.h.b16 %v276
  %v1487 = vunpack.c.l.b16 %v277
  %v1488 = vunpack.c.h.b16 %v277
  %v1489 = vunpack.c.l.b16 %v278
  %v1490 = vunpack.c.h.b16 %v278
  %v1491 = vunpack.c.l.b16 %v279
  %v1492 = vunpack.c.h.b16 %v279
  %v1493 = vunpack.c.l.b16 %v280
  %v1494 = vunpack.c.h.b16 %v280
  %v1495 = vunpack.c.l.b16 %v281
  %v1496 = vunpack.c.h.b16 %v281
  %v1497 = vunpack.c.l.b16 %v282
  %v1498 = vunpack.c.h.b16 %v282
  %v1499 = vunpack.c.l.b16 %v283
  %v1500 = vunpack.c.h.b16 %v283
  %v1501 = vunpack.c.l.b16 %v284
  %v1502 = vunpack.c.h.b16 %v284
  %v1503 = vunpack.c.l.b16 %v285
  %v1504 = vunpack.c.h.b16 %v285
  %v1505 = vunpack.c.l.b16 %v286
  %v1506 = vunpack.c.h.b16 %v286
  %v1507 = vunpack.c.l.b16 %v287
  %v1508 = vunpack.c.h.b16 %v287
  %v1509 = vunpack.c.l.b16 %v288
  %v1510 = vunpack.c.h.b16 %v288
  %v1511 = vunpack.c.l.b16 %v289
  %v1512 = vunpack.c.h.b16 %v289
  %v1513 = vunpack.c.l.b16 %v290
  %v1514 = vunpack.c.h.b16 %v290
  %v1515 = vunpack.c.l.b16 %v291
  %v1516 = vunpack.c.h.b16 %v291
  %v1517 = vunpack.c.l.b16 %v292
  %v1518 = vunpack.c.h.b16 %v292
  %v1519 = vunpack.c.l.b16 %v293
  %v1520 = vunpack.c.h.b16 %v293
  %v1521 = vunpack.c.l.b16 %v294
  %v1522 = vunpack.c.h.b16 %v294
  %v1523 = vunpack.c.l.b16 %v295
  %v1524 = vunpack.c.h.b16 %v295
  %v1525 = vunpack.c.l.b16 %v296
  %v1526 = vunpack.c.h.b16 %v296
  %v1527 = vunpack.c.l.b16 %v297
  %v1528 = vunpack.c.h.b16 %v297
  %v1529 = vunpack.c.l.b16 %v298
  %v1530 = vunpack.c.h.b16 %v298
  %v1531 = vunpack.c.l.b16 %v299
  %v1532 = vunpack.c.h.b16 %v299
  %v1533 = vunpack.c.l.b16 %v300
  %v1534 = vunpack.c.h.b16 %v300
  %v1535 = vunpack.c.l.b16 %v301
  %v1536 = vunpack.c.h.b16 %v301
  %v1537 = vunpack.c.l.b16 %v302
  %v1538 = vunpack.c.h.b16 %v302
  %v1539 = vunpack.c.l.b16 %v303
  %v1540 = vunpack.c.h.b16 %v303
  %v1541 = vunpack.c.l.b16 %v304
  %v1542 = vunpack.c.h.b16 %v304
  %v1543 = vunpack.c.l.b16 %v305
  %v1544 = vunpack.c.h.b16 %v305
  %v1545 = vunpack.c.l.b16 %v306
  %v1546 = vunpack.c.h.b16 %v306
  %v1547 = vunpack.c.l.b16 %v307
  %v1548 = vunpack.c.h.b16 %v307
  %v1549 = vunpack.c.l.b16 %v308
  %v1550 = vunpack.c.h.b16 %v308
  %v1551 = vunpack.c.l.b16 %v309
  %v1552 = vunpack.c.h.b16 %v309
  %v1553 = vunpack.c.l.b16 %v310
  %v1554 = vunpack.c.h.b16 %v310
  %v1555 = vunpack.c.l.b16 %v311
  %v1556 = vunpack.c.h.b16 %v311
  %v1557 = vunpack.c.l.b16 %v312
  %v1558 = vunpack.c.h.b16 %v312
  %v1559 = vunpack.c.l.b16 %v313
  %v1560 = vunpack.c.h.b16 %v313
  %v1561 = vunpack.c.l.b16 %v314
  %v1562 = vunpack.c.h.b16 %v314
  %v1563 = vunpack.c.l.b16 %v315
  %v1564 = vunpack.c.h.b16 %v315
  %v1565 = vunpack.c.l.b16 %v316
  %v1566 = vunpack.c.h.b16 %v316
  %v1567 = vunpack.c.l.b16 %v317
  %v1568 = vunpack.c.h.b16 %v317
  %v1569 = vunpack.c.l.b16 %v318
  %v1570 = vunpack.c.h.b16 %v318
  %v1571 = vunpack.c.l.b16 %v319
  %v1572 = vunpack.c.h.b16 %v319
  %v1573 = vunpack.c.l.b16 %v320
  %v1574 = vunpack.c.h.b16 %v320
  %v1575 = vunpack.c.l.b16 %v321
  %v1576 = vunpack.c.h.b16 %v321
  %v1577 = vunpack.c.l.b16 %v322
  %v1578 = vunpack.c.h.b16 %v322
  %v1579 = vunpack.c.l.b16 %v323
  %v1580 = vunpack.c.h.b16 %v323
  %v1581 = vunpack.c.l.b16 %v324
  %v1582 = vunpack.c.h.b16 %v324
  %v1583 = vunpack.c.l.b16 %v325
  %v1584 = vunpack.c.h.b16 %v325
  %v1585 = vunpack.c.l.b16 %v326
  %v1586 = vunpack.c.h.b16 %v326
  %v1587 = vunpack.c.l.b16 %v327
  %v1588 = vunpack.c.h.b16 %v327
  %v1589 = vunpack.c.l.b16 %v328
  %v1590 = vunpack.c.h.b16 %v328
  %v1591 = vunpack.c.l.b16 %v329
  %v1592 = vunpack.c.h.b16 %v329
  %v1593 = vunpack.c.l.b16 %v330
  %v1594 = vunpack.c.h.b16 %v330
  %v1595 = vunpack.c.l.b16 %v331
  %v1596 = vunpack.c.h.b16 %v331
  %v1597 = vunpack.c.l.b16 %v332
  %v1598 = vunpack.c.h.b16 %v332
  %v1599 = vunpack.c.l.b16 %v333
  %v1600 = vunpack.c.h.b16 %v333
  %v1601 = vunpack.c.l.b16 %v334
  %v1602 = vunpack.c.h.b16 %v334
  %v1603 = vunpack.c.l.b16 %v335
  %v1604 = vunpack.c.h.b16 %v335
  %v1605 = vunpack.c.l.b16 %v336
  %v1606 = vunpack.c.h.b16 %v336
  %v1607 = vunpack.c.l.b16 %v337
  %v1608 = vunpack.c.h.b16 %v337
  %v1609 = vunpack.c.l.b16 %v338
  %v1610 = vunpack.c.h.b16 %v338
  %v1611 = vpack.c.b16 %v1325, %v1323
  %v1612 = vpack.c.b16 %v1326, %v1324
  %v1613 = vpack.c.b16 %v1329, %v1327
  %v1614 = vpack.c.b16 %v1330, %v1328
  %v1615 = vpack.c.b16 %v1333, %v1331
  %v1616 = vpack.c.b16 %v1334, %v1332
  %v1617 = vpack.c.b16 %v1337, %v1335
  %v1618 = vpack.c.b16 %v1338, %v1336
  %v1619 = vpack.c.b16 %v1341, %v1339
  %v1620 = vpack.c.b16 %v1342, %v1340
  %v1621 = vpack.c.b16 %v1345, %v1343
  %v1622 = vpack.c.b16 %v1346, %v1344
  %v1623 = vpack.c.b16 %v1349, %v1347
  %v1624 = vpack.c.b16 %v1350, %v1348
  %v1625 = vpack.c.b16 %v1353, %v1351
  %v1626 = vpack.c.b16 %v1354, %v1352
  %v1627 = vpack.c.b16 %v1357, %v1355
  %v1628 = vpack.c.b16 %v1358, %v1356
  %v1629 = vpack.c.b16 %v1361, %v1359
  %v1630 = vpack.c.b16 %v1362, %v1360
  %v1631 = vpack.c.b16 %v1365, %v1363
  %v1632 = vpack.c.b16 %v1366, %v1364
  %v1633 = vpack.c.b16 %v1369, %v1367
  %v1634 = vpack.c.b16 %v1370, %v1368
  %v1635 = vpack.c.b16 %v1373, %v1371
  %v1636 = vpack.c.b16 %v1374, %v1372
  %v1637 = vpack.c.b16 %v1377, %v1375
  %v1638 = vpack.c.b16 %v1378, %v1376
  %v1639 = vpack.c.b16 %v1381, %v1379
  %v1640 = vpack.c.b16 %v1382, %v1380
  %v1641 = vpack.c.b16 %v1385, %v1383
  %v1642 = vpack.c.b16 %v1386, %v1384
  %v1643 = vpack.c.b16 %v1389, %v1387
  %v1644 = vpack.c.b16 %v1390, %v1388
  %v1645 = vpack.c.b16 %v1393, %v1391
  %v1646 = vpack.c.b16 %v1394, %v1392
  %v1647 = vpack.c.b16 %v1397, %v1395
  %v1648 = vpack.c.b16 %v1398, %v1396
  %v1649 = vpack.c.b16 %v1401, %v1399
  %v1650 = vpack.c.b16 %v1402, %v1400
  %v1651 = vpack.c.b16 %v1405, %v1403
  %v1652 = vpack.c.b16 %v1406, %v1404
  %v1653 = vpack.c.b16 %v1409, %v1407
  %v1654 = vpack.c.b16 %v1410, %v1408
  %v1655 = vpack.c.b16 %v1413, %v1411
  %v1656 = vpack.c.b16 %v1414, %v1412
  %v1657 = vpack.c.b16 %v1417, %v1415
  %v1658 = vpack.c.b16 %v1418, %v1416
  %v1659 = vpack.c.b16 %v1421, %v1419
  %v1660 = vpack.c.b16 %v1422, %v1420
  %v1661 = vpack.c.b16 %v1425, %v1423
  %v1662 = vpack.c.b16 %v1426, %v1424
  %v1663 = vpack.c.b16 %v1429, %v1427
  %v1664 = vpack.c.b16 %v1430, %v1428
  %v1665 = vpack.c.b16 %v1433, %v1431
  %v1666 = vpack.c.b16 %v1434, %v1432
  %v1667 = vpack.c.b16 %v1437, %v1435
  %v1668 = vpack.c.b16 %v1438, %v1436
  %v1669 = vpack.c.b16 %v1441, %v1439
  %v1670 = vpack.c.b16 %v1442, %v1440
  %v1671 = vpack.c.b16 %v1445, %v1443
  %v1672 = vpack.c.b16 %v1446, %v1444
  %v1673 = vpack.c.b16 %v1449, %v1447
  %v1674 = vpack.c.b16 %v1450, %v1448
  %v1675 = vpack.c.b16 %v1453, %v1451
  %v1676 = vpack.c.b16 %v1454, %v1452
  %v1677 = vpack.c.b16 %v1457, %v1455
  %v1678 = vpack.c.b16 %v1458, %v1456
  %v1679 = vpack.c.b16 %v1461, %v1459
  %v1680 = vpack.c.b16 %v1462, %v1460
  %v1681 = vpack.c.b16 %v1465, %v1463
  %v1682 = vpack.c.b16 %v1466, %v1464
  %v1683 = vpack.c.b16 %v1469, %v1467
  %v1684 = vpack.c.b16 %v1470, %v1468
  %v1685 = vpack.c.b16 %v1473, %v1471
  %v1686 = vpack.c.b16 %v1474, %v1472
  %v1687 = vpack.c.b16 %v1477, %v1475
  %v1688 = vpack.c.b16 %v1478, %v1476
  %v1689 = vpack.c.b16 %v1481, %v1479
  %v1690 = vpack.c.b16 %v1482, %v1480
  %v1691 = vpack.c.b16 %v1485, %v1483
  %v1692 = vpack.c.b16 %v1486, %v1484
  %v1693 = vpack.c.b16 %v1489, %v1487
  %v1694 = vpack.c.b16 %v1490, %v1488
  %v1695 = vpack.c.b16 %v1493, %v1491
  %v1696 = vpack.c.b16 %v1494, %v1492
  %v1697 = vpack.c.b16 %v1497, %v1495
  %v1698 = vpack.c.b16 %v1498, %v1496
  %v1699 = vpack.c.b16 %v1501, %v1499
  %v1700 = vpack.c.b16 %v1502, %v1500
  %v1701 = vpack.c.b16 %v1505, %v1503
  %v1702 = vpack.c.b16 %v1506, %v1504
  %v1703 = vpack.c.b16 %v1509, %v1507
  %v1704 = vpack.c.b16 %v1510, %v1508
  %v1705 = vpack.c.b16 %v1513, %v1511
  %v1706 = vpack.c.b16 %v1514, %v1512
  %v1707 = vpack.c.b16 %v1517, %v1515
  %v1708 = vpack.c.b16 %v1518, %v1516
  %v1709 = vpack.c.b16 %v1521, %v1519
  %v1710 = vpack.c.b16 %v1522, %v1520
  %v1711 = vpack.c.b16 %v1525, %v1523
  %v1712 = vpack.c.b16 %v1526, %v1524
  %v1713 = vpack.c.b16 %v1529, %v1527
  %v1714 = vpack.c.b16 %v1530, %v1528
  %v1715 = vpack.c.b16 %v1533, %v1531
  %v1716 = vpack.c.b16 %v1534, %v1532
  %v1717 = vpack.c.b16 %v1537, %v1535
  %v1718 = vpack.c.b16 %v1538, %v1536
  %v1719 = vpack.c.b16 %v1541, %v1539
  %v1720 = vpack.c.b16 %v1542, %v1540
  %v1721 = vpack.c.b16 %v1545, %v1543
  %v1722 = vpack.c.b16 %v1546, %v1544
  %v1723 = vpack.c.b16 %v1549, %v1547
  %v1724 = vpack.c.b16 %v1550, %v1548
  %v1725 = vpack.c.b16 %v1553, %v1551
  %v1726 = vpack.c.b16 %v1554, %v1552
  %v1727 = vpack.c.b16 %v1557, %v1555
  %v1728 = vpack.c.b16 %v1558, %v1556
  %v1729 = vpack.c.b16 %v1561, %v1559
  %v1730 = vpack.c.b16 %v1562, %v1560
  %v1731 = vpack.c.b16 %v1565, %v1563
  %v1732 = vpack.c.b16 %v1566, %v1564
  %v1733 = vpack.c.b16 %v1569, %v1567
  %v1734 = vpack.c.b16 %v1570, %v1568
  %v1735 = vpack.c.b16 %v1573, %v1571
  %v1736 = vpack.c.b16 %v1574, %v1572
  %v1737 = vpack.c.b16 %v1577, %v1575
  %v1738 = vpack.c.b16 %v1578, %v1576
  %v1739 = vpack.c.b16 %v1581, %v1579
  %v1740 = vpack.c.b16 %v1582, %v1580
  %v1741 = vpack.c.b16 %v1585, %v1583
  %v1742 = vpack.c.b16 %v1586, %v1584
  %v1743 = vpack.c.b16 %v1589, %v1587
  %v1744 = vpack.c.b16 %v1590, %v1588
  %v1745 = vpack.c.b16 %v1593, %v1591
  %v1746 = vpack.c.b16 %v1594, %v1592
  %v1747 = vpack.c.b16 %v1597, %v1595
  %v1748 = vpack.c.b16 %v1598, %v1596
  %v1749 = vpack.c.b16 %v1601, %v1599
  %v1750 = vpack.c.b16 %v1602, %v1600
  %v1751 = vpack.c.b16 %v1605, %v1603
  %v1752 = vpack.c.b16 %v1606, %v1604
  %v1753 = vpack.c.b16 %v1609, %v1607
  %v1754 = vpack.c.b16 %v1610, %v1608
  %1899 = vmatprep.subr.bf16.mxu0 %v1626
  %1900 = vmatpush1.bf16.msra.mxu0 %v1625
  %1901 = vmatprep.subr.bf16.mxu0 %v1624
  %1902 = vmatpush1.bf16.msra.mxu0 %v1623
  %1903 = vmatprep.subr.bf16.mxu0 %v1622
  %1904 = vmatpush1.bf16.msra.mxu0 %v1621
  %1905 = vmatprep.subr.bf16.mxu0 %v1620
  %1906 = vmatpush1.bf16.msra.mxu0 %v1619
  %1907 = vmatprep.subr.bf16.mxu0 %v1618
  %1908 = vmatpush1.bf16.msra.mxu0 %v1617
  %1909 = vmatprep.subr.bf16.mxu0 %v1616
  %1910 = vmatpush1.bf16.msra.mxu0 %v1615
  %1911 = vmatprep.subr.bf16.mxu0 %v1614
  %1912 = vmatpush1.bf16.msra.mxu0 %v1613
  %1913 = vmatprep.subr.bf16.mxu0 %v1612
  %1914 = vmatpush1.bf16.msra.mxu0 %v1611
  %1915 = vmatprep.subr.bf16.mxu0 %v1642
  %1916 = vmatpush2.bf16.msra.mxu0 %v1641
  %1917 = vmatprep.subr.bf16.mxu0 %v1640
  %1918 = vmatpush2.bf16.msra.mxu0 %v1639
  %1919 = vmatprep.subr.bf16.mxu0 %v1638
  %1920 = vmatpush2.bf16.msra.mxu0 %v1637
  %1921 = vmatprep.subr.bf16.mxu0 %v1636
  %1922 = vmatpush2.bf16.msra.mxu0 %v1635
  %1923 = vmatprep.subr.bf16.mxu0 %v1634
  %1924 = vmatpush2.bf16.msra.mxu0 %v1633
  %1925 = vmatprep.subr.bf16.mxu0 %v1632
  %1926 = vmatpush2.bf16.msra.mxu0 %v1631
  %1927 = vmatprep.subr.bf16.mxu0 %v1630
  %1928 = vmatpush2.bf16.msra.mxu0 %v1629
  %1929 = vmatprep.subr.bf16.mxu0 %v1628
  %1930 = vmatpush2.bf16.msra.mxu0 %v1627
  %1931 = vmatprep.mubr.bf16.mxu0 %v856
  %1932 = vmatmul.mubr.bf16.gmra.mxu0 %v855
  %v1933 = vpop.f32.mrf.mxu0
  %v1934 = vadd.f32 %v344, %v1933
  %v1935 = vpop.f32.mrf.mxu0
  %v1936 = vadd.f32 %v348, %v1935
  %v1937 = vpop.f32.mrf.mxu0
  %v1938 = vadd.f32 %v344, %v1937
  %v1939 = vpop.f32.mrf.mxu0
  %v1940 = vadd.f32 %v348, %v1939
  %1941 = vmatprep.mubr.bf16.mxu0 %v865
  %1942 = vmatmul.mubr.bf16.gmra.mxu0 %v864
  %v1943 = vpop.f32.mrf.mxu0
  %v1944 = vadd.f32 %v344, %v1943
  %v1945 = vpop.f32.mrf.mxu0
  %v1946 = vadd.f32 %v348, %v1945
  %v1947 = vpop.f32.mrf.mxu0
  %v1948 = vadd.f32 %v344, %v1947
  %v1949 = vpop.f32.mrf.mxu0
  %v1950 = vadd.f32 %v348, %v1949
  %1951 = vmatprep.mubr.bf16.mxu0 %v874
  %1952 = vmatmul.mubr.bf16.gmra.mxu0 %v873
  %v1953 = vpop.f32.mrf.mxu0
  %v1954 = vadd.f32 %v344, %v1953
  %v1955 = vpop.f32.mrf.mxu0
  %v1956 = vadd.f32 %v348, %v1955
  %v1957 = vpop.f32.mrf.mxu0
  %v1958 = vadd.f32 %v344, %v1957
  %v1959 = vpop.f32.mrf.mxu0
  %v1960 = vadd.f32 %v348, %v1959
  %1961 = vmatprep.mubr.bf16.mxu0 %v883
  %1962 = vmatmul.mubr.bf16.gmra.mxu0 %v882
  %v1963 = vpop.f32.mrf.mxu0
  %v1964 = vadd.f32 %v344, %v1963
  %v1965 = vpop.f32.mrf.mxu0
  %v1966 = vadd.f32 %v348, %v1965
  %v1967 = vpop.f32.mrf.mxu0
  %v1968 = vadd.f32 %v344, %v1967
  %v1969 = vpop.f32.mrf.mxu0
  %v1970 = vadd.f32 %v348, %v1969
  %1971 = vmatprep.mubr.bf16.mxu0 %v892
  %1972 = vmatmul.mubr.bf16.gmra.mxu0 %v891
  %v1973 = vpop.f32.mrf.mxu0
  %v1974 = vadd.f32 %v344, %v1973
  %v1975 = vpop.f32.mrf.mxu0
  %v1976 = vadd.f32 %v348, %v1975
  %v1977 = vpop.f32.mrf.mxu0
  %v1978 = vadd.f32 %v344, %v1977
  %v1979 = vpop.f32.mrf.mxu0
  %v1980 = vadd.f32 %v348, %v1979
  %1981 = vmatprep.mubr.bf16.mxu0 %v901
  %1982 = vmatmul.mubr.bf16.gmra.mxu0 %v900
  %v1983 = vpop.f32.mrf.mxu0
  %v1984 = vadd.f32 %v344, %v1983
  %v1985 = vpop.f32.mrf.mxu0
  %v1986 = vadd.f32 %v348, %v1985
  %v1987 = vpop.f32.mrf.mxu0
  %v1988 = vadd.f32 %v344, %v1987
  %v1989 = vpop.f32.mrf.mxu0
  %v1990 = vadd.f32 %v348, %v1989
  %1991 = vmatprep.mubr.bf16.mxu0 %v910
  %1992 = vmatmul.mubr.bf16.gmra.mxu0 %v909
  %v1993 = vpop.f32.mrf.mxu0
  %v1994 = vadd.f32 %v344, %v1993
  %v1995 = vpop.f32.mrf.mxu0
  %v1996 = vadd.f32 %v348, %v1995
  %v1997 = vpop.f32.mrf.mxu0
  %v1998 = vadd.f32 %v344, %v1997
  %v1999 = vpop.f32.mrf.mxu0
  %v2000 = vadd.f32 %v348, %v1999
  %2001 = vmatprep.mubr.bf16.mxu0 %v919
  %2002 = vmatmul.mubr.bf16.gmra.mxu0 %v918
  %v2003 = vpop.f32.mrf.mxu0
  %v2004 = vadd.f32 %v344, %v2003
  %v2005 = vpop.f32.mrf.mxu0
  %v2006 = vadd.f32 %v348, %v2005
  %v2007 = vpop.f32.mrf.mxu0
  %v2008 = vadd.f32 %v344, %v2007
  %v2009 = vpop.f32.mrf.mxu0
  %v2010 = vadd.f32 %v348, %v2009
  %2011 = vmatprep.mubr.bf16.mxu0 %v928
  %2012 = vmatmul.mubr.bf16.gmra.mxu0 %v927
  %v2013 = vpop.f32.mrf.mxu0
  %v2014 = vadd.f32 %v344, %v2013
  %v2015 = vpop.f32.mrf.mxu0
  %v2016 = vadd.f32 %v348, %v2015
  %v2017 = vpop.f32.mrf.mxu0
  %v2018 = vadd.f32 %v344, %v2017
  %v2019 = vpop.f32.mrf.mxu0
  %v2020 = vadd.f32 %v348, %v2019
  %2021 = vmatprep.mubr.bf16.mxu0 %v937
  %2022 = vmatmul.mubr.bf16.gmra.mxu0 %v936
  %v2023 = vpop.f32.mrf.mxu0
  %v2024 = vadd.f32 %v344, %v2023
  %v2025 = vpop.f32.mrf.mxu0
  %v2026 = vadd.f32 %v348, %v2025
  %v2027 = vpop.f32.mrf.mxu0
  %v2028 = vadd.f32 %v344, %v2027
  %v2029 = vpop.f32.mrf.mxu0
  %v2030 = vadd.f32 %v348, %v2029
  %2031 = vmatprep.mubr.bf16.mxu0 %v946
  %2032 = vmatmul.mubr.bf16.gmra.mxu0 %v945
  %v2033 = vpop.f32.mrf.mxu0
  %v2034 = vadd.f32 %v344, %v2033
  %v2035 = vpop.f32.mrf.mxu0
  %v2036 = vadd.f32 %v348, %v2035
  %v2037 = vpop.f32.mrf.mxu0
  %v2038 = vadd.f32 %v344, %v2037
  %v2039 = vpop.f32.mrf.mxu0
  %v2040 = vadd.f32 %v348, %v2039
  %2041 = vmatprep.mubr.bf16.mxu0 %v955
  %2042 = vmatmul.mubr.bf16.gmra.mxu0 %v954
  %v2043 = vpop.f32.mrf.mxu0
  %v2044 = vadd.f32 %v344, %v2043
  %v2045 = vpop.f32.mrf.mxu0
  %v2046 = vadd.f32 %v348, %v2045
  %v2047 = vpop.f32.mrf.mxu0
  %v2048 = vadd.f32 %v344, %v2047
  %v2049 = vpop.f32.mrf.mxu0
  %v2050 = vadd.f32 %v348, %v2049
  %2051 = vmatprep.mubr.bf16.mxu0 %v964
  %2052 = vmatmul.mubr.bf16.gmra.mxu0 %v963
  %v2053 = vpop.f32.mrf.mxu0
  %v2054 = vadd.f32 %v344, %v2053
  %v2055 = vpop.f32.mrf.mxu0
  %v2056 = vadd.f32 %v348, %v2055
  %v2057 = vpop.f32.mrf.mxu0
  %v2058 = vadd.f32 %v344, %v2057
  %v2059 = vpop.f32.mrf.mxu0
  %v2060 = vadd.f32 %v348, %v2059
  %2061 = vmatprep.mubr.bf16.mxu0 %v973
  %2062 = vmatmul.mubr.bf16.gmra.mxu0 %v972
  %v2063 = vpop.f32.mrf.mxu0
  %v2064 = vadd.f32 %v344, %v2063
  %v2065 = vpop.f32.mrf.mxu0
  %v2066 = vadd.f32 %v348, %v2065
  %v2067 = vpop.f32.mrf.mxu0
  %v2068 = vadd.f32 %v344, %v2067
  %v2069 = vpop.f32.mrf.mxu0
  %v2070 = vadd.f32 %v348, %v2069
  %2071 = vmatprep.mubr.bf16.mxu0 %v982
  %2072 = vmatmul.mubr.bf16.gmra.mxu0 %v981
  %v2073 = vpop.f32.mrf.mxu0
  %v2074 = vadd.f32 %v344, %v2073
  %v2075 = vpop.f32.mrf.mxu0
  %v2076 = vadd.f32 %v348, %v2075
  %v2077 = vpop.f32.mrf.mxu0
  %v2078 = vadd.f32 %v344, %v2077
  %v2079 = vpop.f32.mrf.mxu0
  %v2080 = vadd.f32 %v348, %v2079
  %2081 = vmatprep.mubr.bf16.mxu0 %v991
  %2082 = vmatmul.mubr.bf16.gmra.mxu0 %v990
  %v2083 = vpop.f32.mrf.mxu0
  %v2084 = vadd.f32 %v344, %v2083
  %v2085 = vpop.f32.mrf.mxu0
  %v2086 = vadd.f32 %v348, %v2085
  %v2087 = vpop.f32.mrf.mxu0
  %v2088 = vadd.f32 %v344, %v2087
  %v2089 = vpop.f32.mrf.mxu0
  %v2090 = vadd.f32 %v348, %v2089
  %2091 = vmatprep.mubr.bf16.mxu0 %v1000
  %2092 = vmatmul.mubr.bf16.gmra.mxu0 %v999
  %v2093 = vpop.f32.mrf.mxu0
  %v2094 = vadd.f32 %v344, %v2093
  %v2095 = vpop.f32.mrf.mxu0
  %v2096 = vadd.f32 %v348, %v2095
  %v2097 = vpop.f32.mrf.mxu0
  %v2098 = vadd.f32 %v344, %v2097
  %v2099 = vpop.f32.mrf.mxu0
  %v2100 = vadd.f32 %v348, %v2099
  %2101 = vmatprep.mubr.bf16.mxu0 %v1009
  %2102 = vmatmul.mubr.bf16.gmra.mxu0 %v1008
  %v2103 = vpop.f32.mrf.mxu0
  %v2104 = vadd.f32 %v344, %v2103
  %v2105 = vpop.f32.mrf.mxu0
  %v2106 = vadd.f32 %v348, %v2105
  %v2107 = vpop.f32.mrf.mxu0
  %v2108 = vadd.f32 %v344, %v2107
  %v2109 = vpop.f32.mrf.mxu0
  %v2110 = vadd.f32 %v348, %v2109
  %2111 = vdwg.mxu0
  %2112 = vmatprep.subr.bf16.mxu0 %v1658
  %2113 = vmatpush1.bf16.msra.mxu0 %v1657
  %2114 = vmatprep.subr.bf16.mxu0 %v1656
  %2115 = vmatpush1.bf16.msra.mxu0 %v1655
  %2116 = vmatprep.subr.bf16.mxu0 %v1654
  %2117 = vmatpush1.bf16.msra.mxu0 %v1653
  %2118 = vmatprep.subr.bf16.mxu0 %v1652
  %2119 = vmatpush1.bf16.msra.mxu0 %v1651
  %2120 = vmatprep.subr.bf16.mxu0 %v1650
  %2121 = vmatpush1.bf16.msra.mxu0 %v1649
  %2122 = vmatprep.subr.bf16.mxu0 %v1648
  %2123 = vmatpush1.bf16.msra.mxu0 %v1647
  %2124 = vmatprep.subr.bf16.mxu0 %v1646
  %2125 = vmatpush1.bf16.msra.mxu0 %v1645
  %2126 = vmatprep.subr.bf16.mxu0 %v1644
  %2127 = vmatpush1.bf16.msra.mxu0 %v1643
  %2128 = vmatprep.subr.bf16.mxu0 %v1674
  %2129 = vmatpush2.bf16.msra.mxu0 %v1673
  %2130 = vmatprep.subr.bf16.mxu0 %v1672
  %2131 = vmatpush2.bf16.msra.mxu0 %v1671
  %2132 = vmatprep.subr.bf16.mxu0 %v1670
  %2133 = vmatpush2.bf16.msra.mxu0 %v1669
  %2134 = vmatprep.subr.bf16.mxu0 %v1668
  %2135 = vmatpush2.bf16.msra.mxu0 %v1667
  %2136 = vmatprep.subr.bf16.mxu0 %v1666
  %2137 = vmatpush2.bf16.msra.mxu0 %v1665
  %2138 = vmatprep.subr.bf16.mxu0 %v1664
  %2139 = vmatpush2.bf16.msra.mxu0 %v1663
  %2140 = vmatprep.subr.bf16.mxu0 %v1662
  %2141 = vmatpush2.bf16.msra.mxu0 %v1661
  %2142 = vmatprep.subr.bf16.mxu0 %v1660
  %2143 = vmatpush2.bf16.msra.mxu0 %v1659
  %2144 = vmatprep.mubr.bf16.mxu0 %v858
  %2145 = vmatmul.mubr.bf16.gmra.mxu0 %v857
  %v2146 = vpop.f32.mrf.mxu0
  %v2147 = vadd.f32 %v1934, %v2146
  %v2148 = vpop.f32.mrf.mxu0
  %v2149 = vadd.f32 %v1936, %v2148
  %v2150 = vpop.f32.mrf.mxu0
  %v2151 = vadd.f32 %v1938, %v2150
  %v2152 = vpop.f32.mrf.mxu0
  %v2153 = vadd.f32 %v1940, %v2152
  %2154 = vmatprep.mubr.bf16.mxu0 %v867
  %2155 = vmatmul.mubr.bf16.gmra.mxu0 %v866
  %v2156 = vpop.f32.mrf.mxu0
  %v2157 = vadd.f32 %v1944, %v2156
  %v2158 = vpop.f32.mrf.mxu0
  %v2159 = vadd.f32 %v1946, %v2158
  %v2160 = vpop.f32.mrf.mxu0
  %v2161 = vadd.f32 %v1948, %v2160
  %v2162 = vpop.f32.mrf.mxu0
  %v2163 = vadd.f32 %v1950, %v2162
  %2164 = vmatprep.mubr.bf16.mxu0 %v876
  %2165 = vmatmul.mubr.bf16.gmra.mxu0 %v875
  %v2166 = vpop.f32.mrf.mxu0
  %v2167 = vadd.f32 %v1954, %v2166
  %v2168 = vpop.f32.mrf.mxu0
  %v2169 = vadd.f32 %v1956, %v2168
  %v2170 = vpop.f32.mrf.mxu0
  %v2171 = vadd.f32 %v1958, %v2170
  %v2172 = vpop.f32.mrf.mxu0
  %v2173 = vadd.f32 %v1960, %v2172
  %2174 = vmatprep.mubr.bf16.mxu0 %v885
  %2175 = vmatmul.mubr.bf16.gmra.mxu0 %v884
  %v2176 = vpop.f32.mrf.mxu0
  %v2177 = vadd.f32 %v1964, %v2176
  %v2178 = vpop.f32.mrf.mxu0
  %v2179 = vadd.f32 %v1966, %v2178
  %v2180 = vpop.f32.mrf.mxu0
  %v2181 = vadd.f32 %v1968, %v2180
  %v2182 = vpop.f32.mrf.mxu0
  %v2183 = vadd.f32 %v1970, %v2182
  %2184 = vmatprep.mubr.bf16.mxu0 %v894
  %2185 = vmatmul.mubr.bf16.gmra.mxu0 %v893
  %v2186 = vpop.f32.mrf.mxu0
  %v2187 = vadd.f32 %v1974, %v2186
  %v2188 = vpop.f32.mrf.mxu0
  %v2189 = vadd.f32 %v1976, %v2188
  %v2190 = vpop.f32.mrf.mxu0
  %v2191 = vadd.f32 %v1978, %v2190
  %v2192 = vpop.f32.mrf.mxu0
  %v2193 = vadd.f32 %v1980, %v2192
  %2194 = vmatprep.mubr.bf16.mxu0 %v903
  %2195 = vmatmul.mubr.bf16.gmra.mxu0 %v902
  %v2196 = vpop.f32.mrf.mxu0
  %v2197 = vadd.f32 %v1984, %v2196
  %v2198 = vpop.f32.mrf.mxu0
  %v2199 = vadd.f32 %v1986, %v2198
  %v2200 = vpop.f32.mrf.mxu0
  %v2201 = vadd.f32 %v1988, %v2200
  %v2202 = vpop.f32.mrf.mxu0
  %v2203 = vadd.f32 %v1990, %v2202
  %2204 = vmatprep.mubr.bf16.mxu0 %v912
  %2205 = vmatmul.mubr.bf16.gmra.mxu0 %v911
  %v2206 = vpop.f32.mrf.mxu0
  %v2207 = vadd.f32 %v1994, %v2206
  %v2208 = vpop.f32.mrf.mxu0
  %v2209 = vadd.f32 %v1996, %v2208
  %v2210 = vpop.f32.mrf.mxu0
  %v2211 = vadd.f32 %v1998, %v2210
  %v2212 = vpop.f32.mrf.mxu0
  %v2213 = vadd.f32 %v2000, %v2212
  %2214 = vmatprep.mubr.bf16.mxu0 %v921
  %2215 = vmatmul.mubr.bf16.gmra.mxu0 %v920
  %v2216 = vpop.f32.mrf.mxu0
  %v2217 = vadd.f32 %v2004, %v2216
  %v2218 = vpop.f32.mrf.mxu0
  %v2219 = vadd.f32 %v2006, %v2218
  %v2220 = vpop.f32.mrf.mxu0
  %v2221 = vadd.f32 %v2008, %v2220
  %v2222 = vpop.f32.mrf.mxu0
  %v2223 = vadd.f32 %v2010, %v2222
  %2224 = vmatprep.mubr.bf16.mxu0 %v930
  %2225 = vmatmul.mubr.bf16.gmra.mxu0 %v929
  %v2226 = vpop.f32.mrf.mxu0
  %v2227 = vadd.f32 %v2014, %v2226
  %v2228 = vpop.f32.mrf.mxu0
  %v2229 = vadd.f32 %v2016, %v2228
  %v2230 = vpop.f32.mrf.mxu0
  %v2231 = vadd.f32 %v2018, %v2230
  %v2232 = vpop.f32.mrf.mxu0
  %v2233 = vadd.f32 %v2020, %v2232
  %2234 = vmatprep.mubr.bf16.mxu0 %v939
  %2235 = vmatmul.mubr.bf16.gmra.mxu0 %v938
  %v2236 = vpop.f32.mrf.mxu0
  %v2237 = vadd.f32 %v2024, %v2236
  %v2238 = vpop.f32.mrf.mxu0
  %v2239 = vadd.f32 %v2026, %v2238
  %v2240 = vpop.f32.mrf.mxu0
  %v2241 = vadd.f32 %v2028, %v2240
  %v2242 = vpop.f32.mrf.mxu0
  %v2243 = vadd.f32 %v2030, %v2242
  %2244 = vmatprep.mubr.bf16.mxu0 %v948
  %2245 = vmatmul.mubr.bf16.gmra.mxu0 %v947
  %v2246 = vpop.f32.mrf.mxu0
  %v2247 = vadd.f32 %v2034, %v2246
  %v2248 = vpop.f32.mrf.mxu0
  %v2249 = vadd.f32 %v2036, %v2248
  %v2250 = vpop.f32.mrf.mxu0
  %v2251 = vadd.f32 %v2038, %v2250
  %v2252 = vpop.f32.mrf.mxu0
  %v2253 = vadd.f32 %v2040, %v2252
  %2254 = vmatprep.mubr.bf16.mxu0 %v957
  %2255 = vmatmul.mubr.bf16.gmra.mxu0 %v956
  %v2256 = vpop.f32.mrf.mxu0
  %v2257 = vadd.f32 %v2044, %v2256
  %v2258 = vpop.f32.mrf.mxu0
  %v2259 = vadd.f32 %v2046, %v2258
  %v2260 = vpop.f32.mrf.mxu0
  %v2261 = vadd.f32 %v2048, %v2260
  %v2262 = vpop.f32.mrf.mxu0
  %v2263 = vadd.f32 %v2050, %v2262
  %2264 = vmatprep.mubr.bf16.mxu0 %v966
  %2265 = vmatmul.mubr.bf16.gmra.mxu0 %v965
  %v2266 = vpop.f32.mrf.mxu0
  %v2267 = vadd.f32 %v2054, %v2266
  %v2268 = vpop.f32.mrf.mxu0
  %v2269 = vadd.f32 %v2056, %v2268
  %v2270 = vpop.f32.mrf.mxu0
  %v2271 = vadd.f32 %v2058, %v2270
  %v2272 = vpop.f32.mrf.mxu0
  %v2273 = vadd.f32 %v2060, %v2272
  %2274 = vmatprep.mubr.bf16.mxu0 %v975
  %2275 = vmatmul.mubr.bf16.gmra.mxu0 %v974
  %v2276 = vpop.f32.mrf.mxu0
  %v2277 = vadd.f32 %v2064, %v2276
  %v2278 = vpop.f32.mrf.mxu0
  %v2279 = vadd.f32 %v2066, %v2278
  %v2280 = vpop.f32.mrf.mxu0
  %v2281 = vadd.f32 %v2068, %v2280
  %v2282 = vpop.f32.mrf.mxu0
  %v2283 = vadd.f32 %v2070, %v2282
  %2284 = vmatprep.mubr.bf16.mxu0 %v984
  %2285 = vmatmul.mubr.bf16.gmra.mxu0 %v983
  %v2286 = vpop.f32.mrf.mxu0
  %v2287 = vadd.f32 %v2074, %v2286
  %v2288 = vpop.f32.mrf.mxu0
  %v2289 = vadd.f32 %v2076, %v2288
  %v2290 = vpop.f32.mrf.mxu0
  %v2291 = vadd.f32 %v2078, %v2290
  %v2292 = vpop.f32.mrf.mxu0
  %v2293 = vadd.f32 %v2080, %v2292
  %2294 = vmatprep.mubr.bf16.mxu0 %v993
  %2295 = vmatmul.mubr.bf16.gmra.mxu0 %v992
  %v2296 = vpop.f32.mrf.mxu0
  %v2297 = vadd.f32 %v2084, %v2296
  %v2298 = vpop.f32.mrf.mxu0
  %v2299 = vadd.f32 %v2086, %v2298
  %v2300 = vpop.f32.mrf.mxu0
  %v2301 = vadd.f32 %v2088, %v2300
  %v2302 = vpop.f32.mrf.mxu0
  %v2303 = vadd.f32 %v2090, %v2302
  %2304 = vmatprep.mubr.bf16.mxu0 %v1002
  %2305 = vmatmul.mubr.bf16.gmra.mxu0 %v1001
  %v2306 = vpop.f32.mrf.mxu0
  %v2307 = vadd.f32 %v2094, %v2306
  %v2308 = vpop.f32.mrf.mxu0
  %v2309 = vadd.f32 %v2096, %v2308
  %v2310 = vpop.f32.mrf.mxu0
  %v2311 = vadd.f32 %v2098, %v2310
  %v2312 = vpop.f32.mrf.mxu0
  %v2313 = vadd.f32 %v2100, %v2312
  %2314 = vmatprep.mubr.bf16.mxu0 %v1011
  %2315 = vmatmul.mubr.bf16.gmra.mxu0 %v1010
  %v2316 = vpop.f32.mrf.mxu0
  %v2317 = vadd.f32 %v2104, %v2316
  %v2318 = vpop.f32.mrf.mxu0
  %v2319 = vadd.f32 %v2106, %v2318
  %v2320 = vpop.f32.mrf.mxu0
  %v2321 = vadd.f32 %v2108, %v2320
  %v2322 = vpop.f32.mrf.mxu0
  %v2323 = vadd.f32 %v2110, %v2322
  %2324 = vdwg.mxu0
  %2325 = vmatprep.subr.bf16.mxu0 %v1690
  %2326 = vmatpush1.bf16.msra.mxu0 %v1689
  %2327 = vmatprep.subr.bf16.mxu0 %v1688
  %2328 = vmatpush1.bf16.msra.mxu0 %v1687
  %2329 = vmatprep.subr.bf16.mxu0 %v1686
  %2330 = vmatpush1.bf16.msra.mxu0 %v1685
  %2331 = vmatprep.subr.bf16.mxu0 %v1684
  %2332 = vmatpush1.bf16.msra.mxu0 %v1683
  %2333 = vmatprep.subr.bf16.mxu0 %v1682
  %2334 = vmatpush1.bf16.msra.mxu0 %v1681
  %2335 = vmatprep.subr.bf16.mxu0 %v1680
  %2336 = vmatpush1.bf16.msra.mxu0 %v1679
  %2337 = vmatprep.subr.bf16.mxu0 %v1678
  %2338 = vmatpush1.bf16.msra.mxu0 %v1677
  %2339 = vmatprep.subr.bf16.mxu0 %v1676
  %2340 = vmatpush1.bf16.msra.mxu0 %v1675
  %2341 = vmatprep.subr.bf16.mxu0 %v1706
  %2342 = vmatpush2.bf16.msra.mxu0 %v1705
  %2343 = vmatprep.subr.bf16.mxu0 %v1704
  %2344 = vmatpush2.bf16.msra.mxu0 %v1703
  %2345 = vmatprep.subr.bf16.mxu0 %v1702
  %2346 = vmatpush2.bf16.msra.mxu0 %v1701
  %2347 = vmatprep.subr.bf16.mxu0 %v1700
  %2348 = vmatpush2.bf16.msra.mxu0 %v1699
  %2349 = vmatprep.subr.bf16.mxu0 %v1698
  %2350 = vmatpush2.bf16.msra.mxu0 %v1697
  %2351 = vmatprep.subr.bf16.mxu0 %v1696
  %2352 = vmatpush2.bf16.msra.mxu0 %v1695
  %2353 = vmatprep.subr.bf16.mxu0 %v1694
  %2354 = vmatpush2.bf16.msra.mxu0 %v1693
  %2355 = vmatprep.subr.bf16.mxu0 %v1692
  %2356 = vmatpush2.bf16.msra.mxu0 %v1691
  %2357 = vmatprep.mubr.bf16.mxu0 %v860
  %2358 = vmatmul.mubr.bf16.gmra.mxu0 %v859
  %v2359 = vpop.f32.mrf.mxu0
  %v2360 = vadd.f32 %v2147, %v2359
  %v2361 = vpop.f32.mrf.mxu0
  %v2362 = vadd.f32 %v2149, %v2361
  %v2363 = vpop.f32.mrf.mxu0
  %v2364 = vadd.f32 %v2151, %v2363
  %v2365 = vpop.f32.mrf.mxu0
  %v2366 = vadd.f32 %v2153, %v2365
  %2367 = vmatprep.mubr.bf16.mxu0 %v869
  %2368 = vmatmul.mubr.bf16.gmra.mxu0 %v868
  %v2369 = vpop.f32.mrf.mxu0
  %v2370 = vadd.f32 %v2157, %v2369
  %v2371 = vpop.f32.mrf.mxu0
  %v2372 = vadd.f32 %v2159, %v2371
  %v2373 = vpop.f32.mrf.mxu0
  %v2374 = vadd.f32 %v2161, %v2373
  %v2375 = vpop.f32.mrf.mxu0
  %v2376 = vadd.f32 %v2163, %v2375
  %2377 = vmatprep.mubr.bf16.mxu0 %v878
  %2378 = vmatmul.mubr.bf16.gmra.mxu0 %v877
  %v2379 = vpop.f32.mrf.mxu0
  %v2380 = vadd.f32 %v2167, %v2379
  %v2381 = vpop.f32.mrf.mxu0
  %v2382 = vadd.f32 %v2169, %v2381
  %v2383 = vpop.f32.mrf.mxu0
  %v2384 = vadd.f32 %v2171, %v2383
  %v2385 = vpop.f32.mrf.mxu0
  %v2386 = vadd.f32 %v2173, %v2385
  %2387 = vmatprep.mubr.bf16.mxu0 %v887
  %2388 = vmatmul.mubr.bf16.gmra.mxu0 %v886
  %v2389 = vpop.f32.mrf.mxu0
  %v2390 = vadd.f32 %v2177, %v2389
  %v2391 = vpop.f32.mrf.mxu0
  %v2392 = vadd.f32 %v2179, %v2391
  %v2393 = vpop.f32.mrf.mxu0
  %v2394 = vadd.f32 %v2181, %v2393
  %v2395 = vpop.f32.mrf.mxu0
  %v2396 = vadd.f32 %v2183, %v2395
  %2397 = vmatprep.mubr.bf16.mxu0 %v896
  %2398 = vmatmul.mubr.bf16.gmra.mxu0 %v895
  %v2399 = vpop.f32.mrf.mxu0
  %v2400 = vadd.f32 %v2187, %v2399
  %v2401 = vpop.f32.mrf.mxu0
  %v2402 = vadd.f32 %v2189, %v2401
  %v2403 = vpop.f32.mrf.mxu0
  %v2404 = vadd.f32 %v2191, %v2403
  %v2405 = vpop.f32.mrf.mxu0
  %v2406 = vadd.f32 %v2193, %v2405
  %2407 = vmatprep.mubr.bf16.mxu0 %v905
  %2408 = vmatmul.mubr.bf16.gmra.mxu0 %v904
  %v2409 = vpop.f32.mrf.mxu0
  %v2410 = vadd.f32 %v2197, %v2409
  %v2411 = vpop.f32.mrf.mxu0
  %v2412 = vadd.f32 %v2199, %v2411
  %v2413 = vpop.f32.mrf.mxu0
  %v2414 = vadd.f32 %v2201, %v2413
  %v2415 = vpop.f32.mrf.mxu0
  %v2416 = vadd.f32 %v2203, %v2415
  %2417 = vmatprep.mubr.bf16.mxu0 %v914
  %2418 = vmatmul.mubr.bf16.gmra.mxu0 %v913
  %v2419 = vpop.f32.mrf.mxu0
  %v2420 = vadd.f32 %v2207, %v2419
  %v2421 = vpop.f32.mrf.mxu0
  %v2422 = vadd.f32 %v2209, %v2421
  %v2423 = vpop.f32.mrf.mxu0
  %v2424 = vadd.f32 %v2211, %v2423
  %v2425 = vpop.f32.mrf.mxu0
  %v2426 = vadd.f32 %v2213, %v2425
  %2427 = vmatprep.mubr.bf16.mxu0 %v923
  %2428 = vmatmul.mubr.bf16.gmra.mxu0 %v922
  %v2429 = vpop.f32.mrf.mxu0
  %v2430 = vadd.f32 %v2217, %v2429
  %v2431 = vpop.f32.mrf.mxu0
  %v2432 = vadd.f32 %v2219, %v2431
  %v2433 = vpop.f32.mrf.mxu0
  %v2434 = vadd.f32 %v2221, %v2433
  %v2435 = vpop.f32.mrf.mxu0
  %v2436 = vadd.f32 %v2223, %v2435
  %2437 = vmatprep.mubr.bf16.mxu0 %v932
  %2438 = vmatmul.mubr.bf16.gmra.mxu0 %v931
  %v2439 = vpop.f32.mrf.mxu0
  %v2440 = vadd.f32 %v2227, %v2439
  %v2441 = vpop.f32.mrf.mxu0
  %v2442 = vadd.f32 %v2229, %v2441
  %v2443 = vpop.f32.mrf.mxu0
  %v2444 = vadd.f32 %v2231, %v2443
  %v2445 = vpop.f32.mrf.mxu0
  %v2446 = vadd.f32 %v2233, %v2445
  %2447 = vmatprep.mubr.bf16.mxu0 %v941
  %2448 = vmatmul.mubr.bf16.gmra.mxu0 %v940
  %v2449 = vpop.f32.mrf.mxu0
  %v2450 = vadd.f32 %v2237, %v2449
  %v2451 = vpop.f32.mrf.mxu0
  %v2452 = vadd.f32 %v2239, %v2451
  %v2453 = vpop.f32.mrf.mxu0
  %v2454 = vadd.f32 %v2241, %v2453
  %v2455 = vpop.f32.mrf.mxu0
  %v2456 = vadd.f32 %v2243, %v2455
  %2457 = vmatprep.mubr.bf16.mxu0 %v950
  %2458 = vmatmul.mubr.bf16.gmra.mxu0 %v949
  %v2459 = vpop.f32.mrf.mxu0
  %v2460 = vadd.f32 %v2247, %v2459
  %v2461 = vpop.f32.mrf.mxu0
  %v2462 = vadd.f32 %v2249, %v2461
  %v2463 = vpop.f32.mrf.mxu0
  %v2464 = vadd.f32 %v2251, %v2463
  %v2465 = vpop.f32.mrf.mxu0
  %v2466 = vadd.f32 %v2253, %v2465
  %2467 = vmatprep.mubr.bf16.mxu0 %v959
  %2468 = vmatmul.mubr.bf16.gmra.mxu0 %v958
  %v2469 = vpop.f32.mrf.mxu0
  %v2470 = vadd.f32 %v2257, %v2469
  %v2471 = vpop.f32.mrf.mxu0
  %v2472 = vadd.f32 %v2259, %v2471
  %v2473 = vpop.f32.mrf.mxu0
  %v2474 = vadd.f32 %v2261, %v2473
  %v2475 = vpop.f32.mrf.mxu0
  %v2476 = vadd.f32 %v2263, %v2475
  %2477 = vmatprep.mubr.bf16.mxu0 %v968
  %2478 = vmatmul.mubr.bf16.gmra.mxu0 %v967
  %v2479 = vpop.f32.mrf.mxu0
  %v2480 = vadd.f32 %v2267, %v2479
  %v2481 = vpop.f32.mrf.mxu0
  %v2482 = vadd.f32 %v2269, %v2481
  %v2483 = vpop.f32.mrf.mxu0
  %v2484 = vadd.f32 %v2271, %v2483
  %v2485 = vpop.f32.mrf.mxu0
  %v2486 = vadd.f32 %v2273, %v2485
  %2487 = vmatprep.mubr.bf16.mxu0 %v977
  %2488 = vmatmul.mubr.bf16.gmra.mxu0 %v976
  %v2489 = vpop.f32.mrf.mxu0
  %v2490 = vadd.f32 %v2277, %v2489
  %v2491 = vpop.f32.mrf.mxu0
  %v2492 = vadd.f32 %v2279, %v2491
  %v2493 = vpop.f32.mrf.mxu0
  %v2494 = vadd.f32 %v2281, %v2493
  %v2495 = vpop.f32.mrf.mxu0
  %v2496 = vadd.f32 %v2283, %v2495
  %2497 = vmatprep.mubr.bf16.mxu0 %v986
  %2498 = vmatmul.mubr.bf16.gmra.mxu0 %v985
  %v2499 = vpop.f32.mrf.mxu0
  %v2500 = vadd.f32 %v2287, %v2499
  %v2501 = vpop.f32.mrf.mxu0
  %v2502 = vadd.f32 %v2289, %v2501
  %v2503 = vpop.f32.mrf.mxu0
  %v2504 = vadd.f32 %v2291, %v2503
  %v2505 = vpop.f32.mrf.mxu0
  %v2506 = vadd.f32 %v2293, %v2505
  %2507 = vmatprep.mubr.bf16.mxu0 %v995
  %2508 = vmatmul.mubr.bf16.gmra.mxu0 %v994
  %v2509 = vpop.f32.mrf.mxu0
  %v2510 = vadd.f32 %v2297, %v2509
  %v2511 = vpop.f32.mrf.mxu0
  %v2512 = vadd.f32 %v2299, %v2511
  %v2513 = vpop.f32.mrf.mxu0
  %v2514 = vadd.f32 %v2301, %v2513
  %v2515 = vpop.f32.mrf.mxu0
  %v2516 = vadd.f32 %v2303, %v2515
  %2517 = vmatprep.mubr.bf16.mxu0 %v1004
  %2518 = vmatmul.mubr.bf16.gmra.mxu0 %v1003
  %v2519 = vpop.f32.mrf.mxu0
  %v2520 = vadd.f32 %v2307, %v2519
  %v2521 = vpop.f32.mrf.mxu0
  %v2522 = vadd.f32 %v2309, %v2521
  %v2523 = vpop.f32.mrf.mxu0
  %v2524 = vadd.f32 %v2311, %v2523
  %v2525 = vpop.f32.mrf.mxu0
  %v2526 = vadd.f32 %v2313, %v2525
  %2527 = vmatprep.mubr.bf16.mxu0 %v1013
  %2528 = vmatmul.mubr.bf16.gmra.mxu0 %v1012
  %v2529 = vpop.f32.mrf.mxu0
  %v2530 = vadd.f32 %v2317, %v2529
  %v2531 = vpop.f32.mrf.mxu0
  %v2532 = vadd.f32 %v2319, %v2531
  %v2533 = vpop.f32.mrf.mxu0
  %v2534 = vadd.f32 %v2321, %v2533
  %v2535 = vpop.f32.mrf.mxu0
  %v2536 = vadd.f32 %v2323, %v2535
  %2537 = vdwg.mxu0
  %2538 = vmatprep.subr.bf16.mxu0 %v1722
  %2539 = vmatpush1.bf16.msra.mxu0 %v1721
  %2540 = vmatprep.subr.bf16.mxu0 %v1720
  %2541 = vmatpush1.bf16.msra.mxu0 %v1719
  %2542 = vmatprep.subr.bf16.mxu0 %v1718
  %2543 = vmatpush1.bf16.msra.mxu0 %v1717
  %2544 = vmatprep.subr.bf16.mxu0 %v1716
  %2545 = vmatpush1.bf16.msra.mxu0 %v1715
  %2546 = vmatprep.subr.bf16.mxu0 %v1714
  %2547 = vmatpush1.bf16.msra.mxu0 %v1713
  %2548 = vmatprep.subr.bf16.mxu0 %v1712
  %2549 = vmatpush1.bf16.msra.mxu0 %v1711
  %2550 = vmatprep.subr.bf16.mxu0 %v1710
  %2551 = vmatpush1.bf16.msra.mxu0 %v1709
  %2552 = vmatprep.subr.bf16.mxu0 %v1708
  %2553 = vmatpush1.bf16.msra.mxu0 %v1707
  %2554 = vmatprep.subr.bf16.mxu0 %v1738
  %2555 = vmatpush2.bf16.msra.mxu0 %v1737
  %2556 = vmatprep.subr.bf16.mxu0 %v1736
  %2557 = vmatpush2.bf16.msra.mxu0 %v1735
  %2558 = vmatprep.subr.bf16.mxu0 %v1734
  %2559 = vmatpush2.bf16.msra.mxu0 %v1733
  %2560 = vmatprep.subr.bf16.mxu0 %v1732
  %2561 = vmatpush2.bf16.msra.mxu0 %v1731
  %2562 = vmatprep.subr.bf16.mxu0 %v1730
  %2563 = vmatpush2.bf16.msra.mxu0 %v1729
  %2564 = vmatprep.subr.bf16.mxu0 %v1728
  %2565 = vmatpush2.bf16.msra.mxu0 %v1727
  %2566 = vmatprep.subr.bf16.mxu0 %v1726
  %2567 = vmatpush2.bf16.msra.mxu0 %v1725
  %2568 = vmatprep.subr.bf16.mxu0 %v1724
  %2569 = vmatpush2.bf16.msra.mxu0 %v1723
  %2570 = vmatprep.mubr.bf16.mxu0 %v862
  %2571 = vmatmul.mubr.bf16.gmra.mxu0 %v861
  %v2572 = vpop.f32.mrf.mxu0
  %v2573 = vadd.f32 %v2360, %v2572
  %v2574 = vpop.f32.mrf.mxu0
  %v2575 = vadd.f32 %v2362, %v2574
  %v2576 = vpop.f32.mrf.mxu0
  %v2577 = vadd.f32 %v2364, %v2576
  %v2578 = vpop.f32.mrf.mxu0
  %v2579 = vadd.f32 %v2366, %v2578
  %2580 = vmatprep.mubr.bf16.mxu0 %v871
  %2581 = vmatmul.mubr.bf16.gmra.mxu0 %v870
  %v2582 = vpop.f32.mrf.mxu0
  %v2583 = vadd.f32 %v2370, %v2582
  %v2584 = vpop.f32.mrf.mxu0
  %v2585 = vadd.f32 %v2372, %v2584
  %v2586 = vpop.f32.mrf.mxu0
  %v2587 = vadd.f32 %v2374, %v2586
  %v2588 = vpop.f32.mrf.mxu0
  %v2589 = vadd.f32 %v2376, %v2588
  %2590 = vmatprep.mubr.bf16.mxu0 %v880
  %2591 = vmatmul.mubr.bf16.gmra.mxu0 %v879
  %v2592 = vpop.f32.mrf.mxu0
  %v2593 = vadd.f32 %v2380, %v2592
  %v2594 = vpop.f32.mrf.mxu0
  %v2595 = vadd.f32 %v2382, %v2594
  %v2596 = vpop.f32.mrf.mxu0
  %v2597 = vadd.f32 %v2384, %v2596
  %v2598 = vpop.f32.mrf.mxu0
  %v2599 = vadd.f32 %v2386, %v2598
  %2600 = vmatprep.mubr.bf16.mxu0 %v889
  %2601 = vmatmul.mubr.bf16.gmra.mxu0 %v888
  %v2602 = vpop.f32.mrf.mxu0
  %v2603 = vadd.f32 %v2390, %v2602
  %v2604 = vpop.f32.mrf.mxu0
  %v2605 = vadd.f32 %v2392, %v2604
  %v2606 = vpop.f32.mrf.mxu0
  %v2607 = vadd.f32 %v2394, %v2606
  %v2608 = vpop.f32.mrf.mxu0
  %v2609 = vadd.f32 %v2396, %v2608
  %2610 = vmatprep.mubr.bf16.mxu0 %v898
  %2611 = vmatmul.mubr.bf16.gmra.mxu0 %v897
  %v2612 = vpop.f32.mrf.mxu0
  %v2613 = vadd.f32 %v2400, %v2612
  %v2614 = vpop.f32.mrf.mxu0
  %v2615 = vadd.f32 %v2402, %v2614
  %v2616 = vpop.f32.mrf.mxu0
  %v2617 = vadd.f32 %v2404, %v2616
  %v2618 = vpop.f32.mrf.mxu0
  %v2619 = vadd.f32 %v2406, %v2618
  %2620 = vmatprep.mubr.bf16.mxu0 %v907
  %2621 = vmatmul.mubr.bf16.gmra.mxu0 %v906
  %v2622 = vpop.f32.mrf.mxu0
  %v2623 = vadd.f32 %v2410, %v2622
  %v2624 = vpop.f32.mrf.mxu0
  %v2625 = vadd.f32 %v2412, %v2624
  %v2626 = vpop.f32.mrf.mxu0
  %v2627 = vadd.f32 %v2414, %v2626
  %v2628 = vpop.f32.mrf.mxu0
  %v2629 = vadd.f32 %v2416, %v2628
  %2630 = vmatprep.mubr.bf16.mxu0 %v916
  %2631 = vmatmul.mubr.bf16.gmra.mxu0 %v915
  %v2632 = vpop.f32.mrf.mxu0
  %v2633 = vadd.f32 %v2420, %v2632
  %v2634 = vpop.f32.mrf.mxu0
  %v2635 = vadd.f32 %v2422, %v2634
  %v2636 = vpop.f32.mrf.mxu0
  %v2637 = vadd.f32 %v2424, %v2636
  %v2638 = vpop.f32.mrf.mxu0
  %v2639 = vadd.f32 %v2426, %v2638
  %2640 = vmatprep.mubr.bf16.mxu0 %v925
  %2641 = vmatmul.mubr.bf16.gmra.mxu0 %v924
  %v2642 = vpop.f32.mrf.mxu0
  %v2643 = vadd.f32 %v2430, %v2642
  %v2644 = vpop.f32.mrf.mxu0
  %v2645 = vadd.f32 %v2432, %v2644
  %v2646 = vpop.f32.mrf.mxu0
  %v2647 = vadd.f32 %v2434, %v2646
  %v2648 = vpop.f32.mrf.mxu0
  %v2649 = vadd.f32 %v2436, %v2648
  %2650 = vmatprep.mubr.bf16.mxu0 %v934
  %2651 = vmatmul.mubr.bf16.gmra.mxu0 %v933
  %v2652 = vpop.f32.mrf.mxu0
  %v2653 = vadd.f32 %v2440, %v2652
  %v2654 = vpop.f32.mrf.mxu0
  %v2655 = vadd.f32 %v2442, %v2654
  %v2656 = vpop.f32.mrf.mxu0
  %v2657 = vadd.f32 %v2444, %v2656
  %v2658 = vpop.f32.mrf.mxu0
  %v2659 = vadd.f32 %v2446, %v2658
  %2660 = vmatprep.mubr.bf16.mxu0 %v943
  %2661 = vmatmul.mubr.bf16.gmra.mxu0 %v942
  %v2662 = vpop.f32.mrf.mxu0
  %v2663 = vadd.f32 %v2450, %v2662
  %v2664 = vpop.f32.mrf.mxu0
  %v2665 = vadd.f32 %v2452, %v2664
  %v2666 = vpop.f32.mrf.mxu0
  %v2667 = vadd.f32 %v2454, %v2666
  %v2668 = vpop.f32.mrf.mxu0
  %v2669 = vadd.f32 %v2456, %v2668
  %2670 = vmatprep.mubr.bf16.mxu0 %v952
  %2671 = vmatmul.mubr.bf16.gmra.mxu0 %v951
  %v2672 = vpop.f32.mrf.mxu0
  %v2673 = vadd.f32 %v2460, %v2672
  %v2674 = vpop.f32.mrf.mxu0
  %v2675 = vadd.f32 %v2462, %v2674
  %v2676 = vpop.f32.mrf.mxu0
  %v2677 = vadd.f32 %v2464, %v2676
  %v2678 = vpop.f32.mrf.mxu0
  %v2679 = vadd.f32 %v2466, %v2678
  %2680 = vmatprep.mubr.bf16.mxu0 %v961
  %2681 = vmatmul.mubr.bf16.gmra.mxu0 %v960
  %v2682 = vpop.f32.mrf.mxu0
  %v2683 = vadd.f32 %v2470, %v2682
  %v2684 = vpop.f32.mrf.mxu0
  %v2685 = vadd.f32 %v2472, %v2684
  %v2686 = vpop.f32.mrf.mxu0
  %v2687 = vadd.f32 %v2474, %v2686
  %v2688 = vpop.f32.mrf.mxu0
  %v2689 = vadd.f32 %v2476, %v2688
  %2690 = vmatprep.mubr.bf16.mxu0 %v970
  %2691 = vmatmul.mubr.bf16.gmra.mxu0 %v969
  %v2692 = vpop.f32.mrf.mxu0
  %v2693 = vadd.f32 %v2480, %v2692
  %v2694 = vpop.f32.mrf.mxu0
  %v2695 = vadd.f32 %v2482, %v2694
  %v2696 = vpop.f32.mrf.mxu0
  %v2697 = vadd.f32 %v2484, %v2696
  %v2698 = vpop.f32.mrf.mxu0
  %v2699 = vadd.f32 %v2486, %v2698
  %2700 = vmatprep.mubr.bf16.mxu0 %v979
  %2701 = vmatmul.mubr.bf16.gmra.mxu0 %v978
  %v2702 = vpop.f32.mrf.mxu0
  %v2703 = vadd.f32 %v2490, %v2702
  %v2704 = vpop.f32.mrf.mxu0
  %v2705 = vadd.f32 %v2492, %v2704
  %v2706 = vpop.f32.mrf.mxu0
  %v2707 = vadd.f32 %v2494, %v2706
  %v2708 = vpop.f32.mrf.mxu0
  %v2709 = vadd.f32 %v2496, %v2708
  %2710 = vmatprep.mubr.bf16.mxu0 %v988
  %2711 = vmatmul.mubr.bf16.gmra.mxu0 %v987
  %v2712 = vpop.f32.mrf.mxu0
  %v2713 = vadd.f32 %v2500, %v2712
  %v2714 = vpop.f32.mrf.mxu0
  %v2715 = vadd.f32 %v2502, %v2714
  %v2716 = vpop.f32.mrf.mxu0
  %v2717 = vadd.f32 %v2504, %v2716
  %v2718 = vpop.f32.mrf.mxu0
  %v2719 = vadd.f32 %v2506, %v2718
  %2720 = vmatprep.mubr.bf16.mxu0 %v997
  %2721 = vmatmul.mubr.bf16.gmra.mxu0 %v996
  %v2722 = vpop.f32.mrf.mxu0
  %v2723 = vadd.f32 %v2510, %v2722
  %v2724 = vpop.f32.mrf.mxu0
  %v2725 = vadd.f32 %v2512, %v2724
  %v2726 = vpop.f32.mrf.mxu0
  %v2727 = vadd.f32 %v2514, %v2726
  %v2728 = vpop.f32.mrf.mxu0
  %v2729 = vadd.f32 %v2516, %v2728
  %2730 = vmatprep.mubr.bf16.mxu0 %v1006
  %2731 = vmatmul.mubr.bf16.gmra.mxu0 %v1005
  %v2732 = vpop.f32.mrf.mxu0
  %v2733 = vadd.f32 %v2520, %v2732
  %v2734 = vpop.f32.mrf.mxu0
  %v2735 = vadd.f32 %v2522, %v2734
  %v2736 = vpop.f32.mrf.mxu0
  %v2737 = vadd.f32 %v2524, %v2736
  %v2738 = vpop.f32.mrf.mxu0
  %v2739 = vadd.f32 %v2526, %v2738
  %2740 = vmatprep.mubr.bf16.mxu0 %v1015
  %2741 = vmatmul.mubr.bf16.gmra.mxu0 %v1014
  %v2742 = vpop.f32.mrf.mxu0
  %v2743 = vadd.f32 %v2530, %v2742
  %v2744 = vpop.f32.mrf.mxu0
  %v2745 = vadd.f32 %v2532, %v2744
  %v2746 = vpop.f32.mrf.mxu0
  %v2747 = vadd.f32 %v2534, %v2746
  %v2748 = vpop.f32.mrf.mxu0
  %v2749 = vadd.f32 %v2536, %v2748
  %2750 = vdwg.mxu0
  %2751 = vmatprep.subr.bf16.mxu0 %v1754
  %2752 = vmatpush1.bf16.msra.mxu0 %v1753
  %2753 = vmatprep.subr.bf16.mxu0 %v1752
  %2754 = vmatpush1.bf16.msra.mxu0 %v1751
  %2755 = vmatprep.subr.bf16.mxu0 %v1750
  %2756 = vmatpush1.bf16.msra.mxu0 %v1749
  %2757 = vmatprep.subr.bf16.mxu0 %v1748
  %2758 = vmatpush1.bf16.msra.mxu0 %v1747
  %2759 = vmatprep.subr.bf16.mxu0 %v1746
  %2760 = vmatpush1.bf16.msra.mxu0 %v1745
  %2761 = vmatprep.subr.bf16.mxu0 %v1744
  %2762 = vmatpush1.bf16.msra.mxu0 %v1743
  %2763 = vmatprep.subr.bf16.mxu0 %v1742
  %2764 = vmatpush1.bf16.msra.mxu0 %v1741
  %2765 = vmatprep.subr.bf16.mxu0 %v1740
  %2766 = vmatpush1.bf16.msra.mxu0 %v1739
  %2767 = vmatprep.subr.bf16.mxu0 0
  %2768 = vmatpush2.bf16.msra.mxu0 0
  %2769 = vmatprep.subr.bf16.mxu0 0
  %2770 = vmatpush2.bf16.msra.mxu0 0
  %2771 = vmatprep.subr.bf16.mxu0 0
  %2772 = vmatpush2.bf16.msra.mxu0 0
  %2773 = vmatprep.subr.bf16.mxu0 0
  %2774 = vmatpush2.bf16.msra.mxu0 0
  %2775 = vmatprep.subr.bf16.mxu0 0
  %2776 = vmatpush2.bf16.msra.mxu0 0
  %2777 = vmatprep.subr.bf16.mxu0 0
  %2778 = vmatpush2.bf16.msra.mxu0 0
  %2779 = vmatprep.subr.bf16.mxu0 0
  %2780 = vmatpush2.bf16.msra.mxu0 0
  %2781 = vmatprep.subr.bf16.mxu0 0
  %2782 = vmatpush2.bf16.msra.mxu0 0
  %2783 = vmatprep.mubr.bf16.mxu0 0
  %2784 = vmatmul.mubr.bf16.gmra.mxu0 %v863
  %v2785 = vpop.f32.mrf.mxu0
  %v2786 = vadd.f32 %v2573, %v2785
  %v2787 = vpop.f32.mrf.mxu0
  %v2788 = vadd.f32 %v2575, %v2787
  %v2789 = vpop.f32.mrf.mxu0
  %v2790 = vadd.f32 %v2577, %v2789
  %v2791 = vpop.f32.mrf.mxu0
  %v2792 = vadd.f32 %v2579, %v2791
  %2793 = vmatprep.mubr.bf16.mxu0 0
  %2794 = vmatmul.mubr.bf16.gmra.mxu0 %v872
  %v2795 = vpop.f32.mrf.mxu0
  %v2796 = vadd.f32 %v2583, %v2795
  %v2797 = vpop.f32.mrf.mxu0
  %v2798 = vadd.f32 %v2585, %v2797
  %v2799 = vpop.f32.mrf.mxu0
  %v2800 = vadd.f32 %v2587, %v2799
  %v2801 = vpop.f32.mrf.mxu0
  %v2802 = vadd.f32 %v2589, %v2801
  %2803 = vmatprep.mubr.bf16.mxu0 0
  %2804 = vmatmul.mubr.bf16.gmra.mxu0 %v881
  %v2805 = vpop.f32.mrf.mxu0
  %v2806 = vadd.f32 %v2593, %v2805
  %v2807 = vpop.f32.mrf.mxu0
  %v2808 = vadd.f32 %v2595, %v2807
  %v2809 = vpop.f32.mrf.mxu0
  %v2810 = vadd.f32 %v2597, %v2809
  %v2811 = vpop.f32.mrf.mxu0
  %v2812 = vadd.f32 %v2599, %v2811
  %2813 = vmatprep.mubr.bf16.mxu0 0
  %2814 = vmatmul.mubr.bf16.gmra.mxu0 %v890
  %v2815 = vpop.f32.mrf.mxu0
  %v2816 = vadd.f32 %v2603, %v2815
  %v2817 = vpop.f32.mrf.mxu0
  %v2818 = vadd.f32 %v2605, %v2817
  %v2819 = vpop.f32.mrf.mxu0
  %v2820 = vadd.f32 %v2607, %v2819
  %v2821 = vpop.f32.mrf.mxu0
  %v2822 = vadd.f32 %v2609, %v2821
  %2823 = vmatprep.mubr.bf16.mxu0 0
  %2824 = vmatmul.mubr.bf16.gmra.mxu0 %v899
  %v2825 = vpop.f32.mrf.mxu0
  %v2826 = vadd.f32 %v2613, %v2825
  %v2827 = vpop.f32.mrf.mxu0
  %v2828 = vadd.f32 %v2615, %v2827
  %v2829 = vpop.f32.mrf.mxu0
  %v2830 = vadd.f32 %v2617, %v2829
  %v2831 = vpop.f32.mrf.mxu0
  %v2832 = vadd.f32 %v2619, %v2831
  %2833 = vmatprep.mubr.bf16.mxu0 0
  %2834 = vmatmul.mubr.bf16.gmra.mxu0 %v908
  %v2835 = vpop.f32.mrf.mxu0
  %v2836 = vadd.f32 %v2623, %v2835
  %v2837 = vpop.f32.mrf.mxu0
  %v2838 = vadd.f32 %v2625, %v2837
  %v2839 = vpop.f32.mrf.mxu0
  %v2840 = vadd.f32 %v2627, %v2839
  %v2841 = vpop.f32.mrf.mxu0
  %v2842 = vadd.f32 %v2629, %v2841
  %2843 = vmatprep.mubr.bf16.mxu0 0
  %2844 = vmatmul.mubr.bf16.gmra.mxu0 %v917
  %v2845 = vpop.f32.mrf.mxu0
  %v2846 = vadd.f32 %v2633, %v2845
  %v2847 = vpop.f32.mrf.mxu0
  %v2848 = vadd.f32 %v2635, %v2847
  %v2849 = vpop.f32.mrf.mxu0
  %v2850 = vadd.f32 %v2637, %v2849
  %v2851 = vpop.f32.mrf.mxu0
  %v2852 = vadd.f32 %v2639, %v2851
  %2853 = vmatprep.mubr.bf16.mxu0 0
  %2854 = vmatmul.mubr.bf16.gmra.mxu0 %v926
  %v2855 = vpop.f32.mrf.mxu0
  %v2856 = vadd.f32 %v2643, %v2855
  %v2857 = vpop.f32.mrf.mxu0
  %v2858 = vadd.f32 %v2645, %v2857
  %v2859 = vpop.f32.mrf.mxu0
  %v2860 = vadd.f32 %v2647, %v2859
  %v2861 = vpop.f32.mrf.mxu0
  %v2862 = vadd.f32 %v2649, %v2861
  %2863 = vmatprep.mubr.bf16.mxu0 0
  %2864 = vmatmul.mubr.bf16.gmra.mxu0 %v935
  %v2865 = vpop.f32.mrf.mxu0
  %v2866 = vadd.f32 %v2653, %v2865
  %v2867 = vpop.f32.mrf.mxu0
  %v2868 = vadd.f32 %v2655, %v2867
  %v2869 = vpop.f32.mrf.mxu0
  %v2870 = vadd.f32 %v2657, %v2869
  %v2871 = vpop.f32.mrf.mxu0
  %v2872 = vadd.f32 %v2659, %v2871
  %2873 = vmatprep.mubr.bf16.mxu0 0
  %2874 = vmatmul.mubr.bf16.gmra.mxu0 %v944
  %v2875 = vpop.f32.mrf.mxu0
  %v2876 = vadd.f32 %v2663, %v2875
  %v2877 = vpop.f32.mrf.mxu0
  %v2878 = vadd.f32 %v2665, %v2877
  %v2879 = vpop.f32.mrf.mxu0
  %v2880 = vadd.f32 %v2667, %v2879
  %v2881 = vpop.f32.mrf.mxu0
  %v2882 = vadd.f32 %v2669, %v2881
  %2883 = vmatprep.mubr.bf16.mxu0 0
  %2884 = vmatmul.mubr.bf16.gmra.mxu0 %v953
  %v2885 = vpop.f32.mrf.mxu0
  %v2886 = vadd.f32 %v2673, %v2885
  %v2887 = vpop.f32.mrf.mxu0
  %v2888 = vadd.f32 %v2675, %v2887
  %v2889 = vpop.f32.mrf.mxu0
  %v2890 = vadd.f32 %v2677, %v2889
  %v2891 = vpop.f32.mrf.mxu0
  %v2892 = vadd.f32 %v2679, %v2891
  %2893 = vmatprep.mubr.bf16.mxu0 0
  %2894 = vmatmul.mubr.bf16.gmra.mxu0 %v962
  %v2895 = vpop.f32.mrf.mxu0
  %v2896 = vadd.f32 %v2683, %v2895
  %v2897 = vpop.f32.mrf.mxu0
  %v2898 = vadd.f32 %v2685, %v2897
  %v2899 = vpop.f32.mrf.mxu0
  %v2900 = vadd.f32 %v2687, %v2899
  %v2901 = vpop.f32.mrf.mxu0
  %v2902 = vadd.f32 %v2689, %v2901
  %2903 = vmatprep.mubr.bf16.mxu0 0
  %2904 = vmatmul.mubr.bf16.gmra.mxu0 %v971
  %v2905 = vpop.f32.mrf.mxu0
  %v2906 = vadd.f32 %v2693, %v2905
  %v2907 = vpop.f32.mrf.mxu0
  %v2908 = vadd.f32 %v2695, %v2907
  %v2909 = vpop.f32.mrf.mxu0
  %v2910 = vadd.f32 %v2697, %v2909
  %v2911 = vpop.f32.mrf.mxu0
  %v2912 = vadd.f32 %v2699, %v2911
  %2913 = vmatprep.mubr.bf16.mxu0 0
  %2914 = vmatmul.mubr.bf16.gmra.mxu0 %v980
  %v2915 = vpop.f32.mrf.mxu0
  %v2916 = vadd.f32 %v2703, %v2915
  %v2917 = vpop.f32.mrf.mxu0
  %v2918 = vadd.f32 %v2705, %v2917
  %v2919 = vpop.f32.mrf.mxu0
  %v2920 = vadd.f32 %v2707, %v2919
  %v2921 = vpop.f32.mrf.mxu0
  %v2922 = vadd.f32 %v2709, %v2921
  %2923 = vmatprep.mubr.bf16.mxu0 0
  %2924 = vmatmul.mubr.bf16.gmra.mxu0 %v989
  %v2925 = vpop.f32.mrf.mxu0
  %v2926 = vadd.f32 %v2713, %v2925
  %v2927 = vpop.f32.mrf.mxu0
  %v2928 = vadd.f32 %v2715, %v2927
  %v2929 = vpop.f32.mrf.mxu0
  %v2930 = vadd.f32 %v2717, %v2929
  %v2931 = vpop.f32.mrf.mxu0
  %v2932 = vadd.f32 %v2719, %v2931
  %2933 = vmatprep.mubr.bf16.mxu0 0
  %2934 = vmatmul.mubr.bf16.gmra.mxu0 %v998
  %v2935 = vpop.f32.mrf.mxu0
  %v2936 = vadd.f32 %v2723, %v2935
  %v2937 = vpop.f32.mrf.mxu0
  %v2938 = vadd.f32 %v2725, %v2937
  %v2939 = vpop.f32.mrf.mxu0
  %v2940 = vadd.f32 %v2727, %v2939
  %v2941 = vpop.f32.mrf.mxu0
  %v2942 = vadd.f32 %v2729, %v2941
  %2943 = vmatprep.mubr.bf16.mxu0 0
  %2944 = vmatmul.mubr.bf16.gmra.mxu0 %v1007
  %v2945 = vpop.f32.mrf.mxu0
  %v2946 = vadd.f32 %v2733, %v2945
  %v2947 = vpop.f32.mrf.mxu0
  %v2948 = vadd.f32 %v2735, %v2947
  %v2949 = vpop.f32.mrf.mxu0
  %v2950 = vadd.f32 %v2737, %v2949
  %v2951 = vpop.f32.mrf.mxu0
  %v2952 = vadd.f32 %v2739, %v2951
  %2953 = vmatprep.mubr.bf16.mxu0 0
  %2954 = vmatmul.mubr.bf16.gmra.mxu0 %v1016
  %v2955 = vpop.f32.mrf.mxu0
  %v2956 = vadd.f32 %v2743, %v2955
  %v2957 = vpop.f32.mrf.mxu0
  %v2958 = vadd.f32 %v2745, %v2957
  %v2959 = vpop.f32.mrf.mxu0
  %v2960 = vadd.f32 %v2747, %v2959
  %v2961 = vpop.f32.mrf.mxu0
  %v2962 = vadd.f32 %v2749, %v2961
  %2963 = vdwg.mxu0
  %v2964 = vmax.f32 %v2786, 0.0
  %v2965 = vmax.f32 %v2788, 0.0
  %v2966 = vmax.f32 %v2790, 0.0
  %v2967 = vmax.f32 %v2792, 0.0
  %v2968 = vmax.f32 %v2796, 0.0
  %v2969 = vmax.f32 %v2798, 0.0
  %v2970 = vmax.f32 %v2800, 0.0
  %v2971 = vmax.f32 %v2802, 0.0
  %v2972 = vmax.f32 %v2806, 0.0
  %v2973 = vmax.f32 %v2808, 0.0
  %v2974 = vmax.f32 %v2810, 0.0
  %v2975 = vmax.f32 %v2812, 0.0
  %v2976 = vmax.f32 %v2816, 0.0
  %v2977 = vmax.f32 %v2818, 0.0
  %v2978 = vmax.f32 %v2820, 0.0
  %v2979 = vmax.f32 %v2822, 0.0
  %v2980 = vmax.f32 %v2826, 0.0
  %v2981 = vmax.f32 %v2828, 0.0
  %v2982 = vmax.f32 %v2830, 0.0
  %v2983 = vmax.f32 %v2832, 0.0
  %v2984 = vmax.f32 %v2836, 0.0
  %v2985 = vmax.f32 %v2838, 0.0
  %v2986 = vmax.f32 %v2840, 0.0
  %v2987 = vmax.f32 %v2842, 0.0
  %v2988 = vmax.f32 %v2846, 0.0
  %v2989 = vmax.f32 %v2848, 0.0
  %v2990 = vmax.f32 %v2850, 0.0
  %v2991 = vmax.f32 %v2852, 0.0
  %v2992 = vmax.f32 %v2856, 0.0
  %v2993 = vmax.f32 %v2858, 0.0
  %v2994 = vmax.f32 %v2860, 0.0
  %v2995 = vmax.f32 %v2862, 0.0
  %v2996 = vmax.f32 %v2866, 0.0
  %v2997 = vmax.f32 %v2868, 0.0
  %v2998 = vmax.f32 %v2870, 0.0
  %v2999 = vmax.f32 %v2872, 0.0
  %v3000 = vmax.f32 %v2876, 0.0
  %v3001 = vmax.f32 %v2878, 0.0
  %v3002 = vmax.f32 %v2880, 0.0
  %v3003 = vmax.f32 %v2882, 0.0
  %v3004 = vmax.f32 %v2886, 0.0
  %v3005 = vmax.f32 %v2888, 0.0
  %v3006 = vmax.f32 %v2890, 0.0
  %v3007 = vmax.f32 %v2892, 0.0
  %v3008 = vmax.f32 %v2896, 0.0
  %v3009 = vmax.f32 %v2898, 0.0
  %v3010 = vmax.f32 %v2900, 0.0
  %v3011 = vmax.f32 %v2902, 0.0
  %v3012 = vmax.f32 %v2906, 0.0
  %v3013 = vmax.f32 %v2908, 0.0
  %v3014 = vmax.f32 %v2910, 0.0
  %v3015 = vmax.f32 %v2912, 0.0
  %v3016 = vmax.f32 %v2916, 0.0
  %v3017 = vmax.f32 %v2918, 0.0
  %v3018 = vmax.f32 %v2920, 0.0
  %v3019 = vmax.f32 %v2922, 0.0
  %v3020 = vmax.f32 %v2926, 0.0
  %v3021 = vmax.f32 %v2928, 0.0
  %v3022 = vmax.f32 %v2930, 0.0
  %v3023 = vmax.f32 %v2932, 0.0
  %v3024 = vmax.f32 %v2936, 0.0
  %v3025 = vmax.f32 %v2938, 0.0
  %v3026 = vmax.f32 %v2940, 0.0
  %v3027 = vmax.f32 %v2942, 0.0
  %v3028 = vmax.f32 %v2946, 0.0
  %v3029 = vmax.f32 %v2948, 0.0
  %v3030 = vmax.f32 %v2950, 0.0
  %v3031 = vmax.f32 %v2952, 0.0
  %v3032 = vmax.f32 %v2956, 0.0
  %v3033 = vmax.f32 %v2958, 0.0
  %v3034 = vmax.f32 %v2960, 0.0
  %v3035 = vmax.f32 %v2962, 0.0
  %3036 = vst [vmem:[%s3] sm:$0xff] %v2964
  %3037 = vst [vmem:[%s3 + $0x8] sm:$0xff] %v2965
  %3038 = vst [vmem:[%s3 + $0x10] sm:$0xff] %v2966
  %3039 = vst [vmem:[%s3 + $0x18] sm:$0xff] %v2967
  %3040 = vst [vmem:[%s3 + $0x20] sm:$0xff] %v2968
  %3041 = vst [vmem:[%s3 + $0x28] sm:$0xff] %v2969
  %3042 = vst [vmem:[%s3 + $0x30] sm:$0xff] %v2970
  %3043 = vst [vmem:[%s3 + $0x38] sm:$0xff] %v2971
  %3044 = vst [vmem:[%s3 + $0x40] sm:$0xff] %v2972
  %3045 = vst [vmem:[%s3 + $0x48] sm:$0xff] %v2973
  %3046 = vst [vmem:[%s3 + $0x50] sm:$0xff] %v2974
  %3047 = vst [vmem:[%s3 + $0x58] sm:$0xff] %v2975
  %3048 = vst [vmem:[%s3 + $0x60] sm:$0xff] %v2976
  %3049 = vst [vmem:[%s3 + $0x68] sm:$0xff] %v2977
  %3050 = vst [vmem:[%s3 + $0x70] sm:$0xff] %v2978
  %3051 = vst [vmem:[%s3 + $0x78] sm:$0xff] %v2979
  %3052 = vst [vmem:[%s3 + $0x80] sm:$0xff] %v2980
  %3053 = vst [vmem:[%s3 + $0x88] sm:$0xff] %v2981
  %3054 = vst [vmem:[%s3 + $0x90] sm:$0xff] %v2982
  %3055 = vst [vmem:[%s3 + $0x98] sm:$0xff] %v2983
  %3056 = vst [vmem:[%s3 + $0xa0] sm:$0xff] %v2984
  %3057 = vst [vmem:[%s3 + $0xa8] sm:$0xff] %v2985
  %3058 = vst [vmem:[%s3 + $0xb0] sm:$0xff] %v2986
  %3059 = vst [vmem:[%s3 + $0xb8] sm:$0xff] %v2987
  %3060 = vst [vmem:[%s3 + $0xc0] sm:$0xff] %v2988
  %3061 = vst [vmem:[%s3 + $0xc8] sm:$0xff] %v2989
  %3062 = vst [vmem:[%s3 + $0xd0] sm:$0xff] %v2990
  %3063 = vst [vmem:[%s3 + $0xd8] sm:$0xff] %v2991
  %3064 = vst [vmem:[%s3 + $0xe0] sm:$0xff] %v2992
  %3065 = vst [vmem:[%s3 + $0xe8] sm:$0xff] %v2993
  %3066 = vst [vmem:[%s3 + $0xf0] sm:$0xff] %v2994
  %3067 = vst [vmem:[%s3 + $0xf8] sm:$0xff] %v2995
  %3068 = vst [vmem:[%s3 + $0x100] sm:$0xff] %v2996
  %3069 = vst [vmem:[%s3 + $0x108] sm:$0xff] %v2997
  %3070 = vst [vmem:[%s3 + $0x110] sm:$0xff] %v2998
  %3071 = vst [vmem:[%s3 + $0x118] sm:$0xff] %v2999
  %3072 = vst [vmem:[%s3 + $0x120] sm:$0xff] %v3000
  %3073 = vst [vmem:[%s3 + $0x128] sm:$0xff] %v3001
  %3074 = vst [vmem:[%s3 + $0x130] sm:$0xff] %v3002
  %3075 = vst [vmem:[%s3 + $0x138] sm:$0xff] %v3003
  %3076 = vst [vmem:[%s3 + $0x140] sm:$0xff] %v3004
  %3077 = vst [vmem:[%s3 + $0x148] sm:$0xff] %v3005
  %3078 = vst [vmem:[%s3 + $0x150] sm:$0xff] %v3006
  %3079 = vst [vmem:[%s3 + $0x158] sm:$0xff] %v3007
  %3080 = vst [vmem:[%s3 + $0x160] sm:$0xff] %v3008
  %3081 = vst [vmem:[%s3 + $0x168] sm:$0xff] %v3009
  %3082 = vst [vmem:[%s3 + $0x170] sm:$0xff] %v3010
  %3083 = vst [vmem:[%s3 + $0x178] sm:$0xff] %v3011
  %3084 = vst [vmem:[%s3 + $0x180] sm:$0xff] %v3012
  %3085 = vst [vmem:[%s3 + $0x188] sm:$0xff] %v3013
  %3086 = vst [vmem:[%s3 + $0x190] sm:$0xff] %v3014
  %3087 = vst [vmem:[%s3 + $0x198] sm:$0xff] %v3015
  %3088 = vst [vmem:[%s3 + $0x1a0] sm:$0xff] %v3016
  %3089 = vst [vmem:[%s3 + $0x1a8] sm:$0xff] %v3017
  %3090 = vst [vmem:[%s3 + $0x1b0] sm:$0xff] %v3018
  %3091 = vst [vmem:[%s3 + $0x1b8] sm:$0xff] %v3019
  %3092 = vst [vmem:[%s3 + $0x1c0] sm:$0xff] %v3020
  %3093 = vst [vmem:[%s3 + $0x1c8] sm:$0xff] %v3021
  %3094 = vst [vmem:[%s3 + $0x1d0] sm:$0xff] %v3022
  %3095 = vst [vmem:[%s3 + $0x1d8] sm:$0xff] %v3023
  %3096 = vst [vmem:[%s3 + $0x1e0] sm:$0xff] %v3024
  %3097 = vst [vmem:[%s3 + $0x1e8] sm:$0xff] %v3025
  %3098 = vst [vmem:[%s3 + $0x1f0] sm:$0xff] %v3026
  %3099 = vst [vmem:[%s3 + $0x1f8] sm:$0xff] %v3027
  %3100 = vst [vmem:[%s3 + $0x200] sm:$0xff] %v3028
  %3101 = vst [vmem:[%s3 + $0x208] sm:$0xff] %v3029
  %3102 = vst [vmem:[%s3 + $0x210] sm:$0xff] %v3030
  %3103 = vst [vmem:[%s3 + $0x218] sm:$0xff] %v3031
  %3104 = vst [vmem:[%s3 + $0x220] sm:$0xff] %v3032
  %3105 = vst [vmem:[%s3 + $0x228] sm:$0xff] %v3033
  %3106 = vst [vmem:[%s3 + $0x230] sm:$0xff] %v3034
  %3107 = vst [vmem:[%s3 + $0x238] sm:$0xff] %v3035
  // Predicated region
  $region14: #{_lambda_.8} parent=0 // pred_check
    _
  $region15: #{_lambda_.8} parent=0 // pred_check_branch
    %3109 = sbr.rel (0) target = $region17
  $region16: #{_lambda_.8} parent=0 // pred_region
    _
  $region17: #{_lambda_.8} parent=0 // pred_fallthru
    _
  // Predicated region
  $region18: #{_lambda_.8} parent=0 // pred_check
    _
  $region19: #{_lambda_.8} parent=0 // pred_check_branch
    %3111 = sbr.rel (0) target = $region21
  $region20: #{_lambda_.8} parent=0 // pred_region
    _
  $region21: #{_lambda_.8} parent=0 // pred_fallthru
    _

// kernel: _lambda_.9
$region0: #{_lambda_.9}
  #allocation0 [shape = 'u32[]', space=smem, size = 0x4, offset = 0x4, fixed_abs, tag = 'smem constant byte address 0x4 - core index']
  #allocation1 [shape = 'u32[144,128]{1,0:T(1,128)}', space=vmem, size = 0x12000, scoped, tag = 'internal scratch']
  %s0 = inlined_call_operand.vmem [shape: bf16[56,2304], index: 0, kind: input, shape index: {}]
  %s1 = inlined_call_operand.vmem [shape: bf16[2304,256], index: 1, kind: input, shape index: {}]
  %s2 = inlined_call_operand.vmem [shape: f32[1,256], index: 2, kind: input, shape index: {}]
  %s3 = inlined_call_operand.vmem [shape: f32[56,256], index: 3, kind: output, shape index: {}]
  %s4 = sld [smem:[#allocation0]]
  $region22: #{_lambda_.9} parent=0
    _
  %s6 = ssub.s32 1, %s4
  %s7 = scalar_select 0, %s6, %s4
  // Predicated region
  $region2: #{_lambda_.9} parent=0 // pred_check
    _
  $region3: #{_lambda_.9} parent=0 // pred_check_branch
    %9 = sbr.rel (0) target = $region5
  $region4: #{_lambda_.9} parent=0 // pred_region
    _
  $region5: #{_lambda_.9} parent=0 // pred_fallthru
    _
  // Predicated region
  $region6: #{_lambda_.9} parent=0 // pred_check
    _
  $region7: #{_lambda_.9} parent=0 // pred_check_branch
    %11 = sbr.rel (0) target = $region9
  $region8: #{_lambda_.9} parent=0 // pred_region
    _
  $region9: #{_lambda_.9} parent=0 // pred_fallthru
    _
  // Predicated region
  $region10: #{_lambda_.9} parent=0 // pred_check
    _
  $region11: #{_lambda_.9} parent=0 // pred_check_branch
    %13 = sbr.rel (0) target = $region13
  $region12: #{_lambda_.9} parent=0 // pred_region
    _
  $region13: #{_lambda_.9} parent=0 // pred_fallthru
    _
  %v14 = vld [vmem:[%s0] sm:$0xff]
  %v15 = vld [vmem:[%s0 + $0x8] sm:$0xff]
  %v16 = vld [vmem:[%s0 + $0x10] sm:$0xff]
  %v17 = vld [vmem:[%s0 + $0x18] sm:$0xff]
  %v18 = vld [vmem:[%s0 + $0x20] sm:$0xff]
  %v19 = vld [vmem:[%s0 + $0x28] sm:$0xff]
  %v20 = vld [vmem:[%s0 + $0x30] sm:$0xff]
  %v21 = vld [vmem:[%s0 + $0x38] sm:$0xff]
  %v22 = vld [vmem:[%s0 + $0x40] sm:$0xff]
  %v23 = vld [vmem:[%s0 + $0x48] sm:$0xff]
  %v24 = vld [vmem:[%s0 + $0x50] sm:$0xff]
  %v25 = vld [vmem:[%s0 + $0x58] sm:$0xff]
  %v26 = vld [vmem:[%s0 + $0x60] sm:$0xff]
  %v27 = vld [vmem:[%s0 + $0x68] sm:$0xff]
  %v28 = vld [vmem:[%s0 + $0x70] sm:$0xff]
  %v29 = vld [vmem:[%s0 + $0x78] sm:$0xff]
  %v30 = vld [vmem:[%s0 + $0x80] sm:$0xff]
  %v31 = vld [vmem:[%s0 + $0x88] sm:$0xff]
  %v32 = vld [vmem:[%s0 + $0x90] sm:$0xff]
  %v33 = vld [vmem:[%s0 + $0x98] sm:$0xff]
  %v34 = vld [vmem:[%s0 + $0xa0] sm:$0xff]
  %v35 = vld [vmem:[%s0 + $0xa8] sm:$0xff]
  %v36 = vld [vmem:[%s0 + $0xb0] sm:$0xff]
  %v37 = vld [vmem:[%s0 + $0xb8] sm:$0xff]
  %v38 = vld [vmem:[%s0 + $0xc0] sm:$0xff]
  %v39 = vld [vmem:[%s0 + $0xc8] sm:$0xff]
  %v40 = vld [vmem:[%s0 + $0xd0] sm:$0xff]
  %v41 = vld [vmem:[%s0 + $0xd8] sm:$0xff]
  %v42 = vld [vmem:[%s0 + $0xe0] sm:$0xff]
  %v43 = vld [vmem:[%s0 + $0xe8] sm:$0xff]
  %v44 = vld [vmem:[%s0 + $0xf0] sm:$0xff]
  %v45 = vld [vmem:[%s0 + $0xf8] sm:$0xff]
  %v46 = vld [vmem:[%s0 + $0x100] sm:$0xff]
  %v47 = vld [vmem:[%s0 + $0x108] sm:$0xff]
  %v48 = vld [vmem:[%s0 + $0x110] sm:$0xff]
  %v49 = vld [vmem:[%s0 + $0x118] sm:$0xff]
  %v50 = vld [vmem:[%s0 + $0x120] sm:$0xff]
  %v51 = vld [vmem:[%s0 + $0x128] sm:$0xff]
  %v52 = vld [vmem:[%s0 + $0x130] sm:$0xff]
  %v53 = vld [vmem:[%s0 + $0x138] sm:$0xff]
  %v54 = vld [vmem:[%s0 + $0x140] sm:$0xff]
  %v55 = vld [vmem:[%s0 + $0x148] sm:$0xff]
  %v56 = vld [vmem:[%s0 + $0x150] sm:$0xff]
  %v57 = vld [vmem:[%s0 + $0x158] sm:$0xff]
  %v58 = vld [vmem:[%s0 + $0x160] sm:$0xff]
  %v59 = vld [vmem:[%s0 + $0x168] sm:$0xff]
  %v60 = vld [vmem:[%s0 + $0x170] sm:$0xff]
  %v61 = vld [vmem:[%s0 + $0x178] sm:$0xff]
  %v62 = vld [vmem:[%s0 + $0x180] sm:$0xff]
  %v63 = vld [vmem:[%s0 + $0x188] sm:$0xff]
  %v64 = vld [vmem:[%s0 + $0x190] sm:$0xff]
  %v65 = vld [vmem:[%s0 + $0x198] sm:$0xff]
  %v66 = vld [vmem:[%s0 + $0x1a0] sm:$0xff]
  %v67 = vld [vmem:[%s0 + $0x1a8] sm:$0xff]
  %v68 = vld [vmem:[%s0 + $0x1b0] sm:$0xff]
  %v69 = vld [vmem:[%s0 + $0x1b8] sm:$0xff]
  %v70 = vld [vmem:[%s0 + $0x1c0] sm:$0xff]
  %v71 = vld [vmem:[%s0 + $0x1c8] sm:$0xff]
  %v72 = vld [vmem:[%s0 + $0x1d0] sm:$0xff]
  %v73 = vld [vmem:[%s0 + $0x1d8] sm:$0xff]
  %v74 = vld [vmem:[%s0 + $0x1e0] sm:$0xff]
  %v75 = vld [vmem:[%s0 + $0x1e8] sm:$0xff]
  %v76 = vld [vmem:[%s0 + $0x1f0] sm:$0xff]
  %v77 = vld [vmem:[%s1] sm:$0xff]
  %v78 = vld [vmem:[%s1 + $0x8] sm:$0xff]
  %v79 = vld [vmem:[%s1 + $0x10] sm:$0xff]
  %v80 = vld [vmem:[%s1 + $0x18] sm:$0xff]
  %v81 = vld [vmem:[%s1 + $0x20] sm:$0xff]
  %v82 = vld [vmem:[%s1 + $0x28] sm:$0xff]
  %v83 = vld [vmem:[%s1 + $0x30] sm:$0xff]
  %v84 = vld [vmem:[%s1 + $0x38] sm:$0xff]
  %v85 = vld [vmem:[%s1 + $0x40] sm:$0xff]
  %v86 = vld [vmem:[%s1 + $0x48] sm:$0xff]
  %v87 = vld [vmem:[%s1 + $0x50] sm:$0xff]
  %v88 = vld [vmem:[%s1 + $0x58] sm:$0xff]
  %v89 = vld [vmem:[%s1 + $0x60] sm:$0xff]
  %v90 = vld [vmem:[%s1 + $0x68] sm:$0xff]
  %v91 = vld [vmem:[%s1 + $0x70] sm:$0xff]
  %v92 = vld [vmem:[%s1 + $0x78] sm:$0xff]
  %v93 = vld [vmem:[%s1 + $0x80] sm:$0xff]
  %v94 = vld [vmem:[%s1 + $0x88] sm:$0xff]
  %v95 = vld [vmem:[%s1 + $0x90] sm:$0xff]
  %v96 = vld [vmem:[%s1 + $0x98] sm:$0xff]
  %v97 = vld [vmem:[%s1 + $0xa0] sm:$0xff]
  %v98 = vld [vmem:[%s1 + $0xa8] sm:$0xff]
  %v99 = vld [vmem:[%s1 + $0xb0] sm:$0xff]
  %v100 = vld [vmem:[%s1 + $0xb8] sm:$0xff]
  %v101 = vld [vmem:[%s1 + $0xc0] sm:$0xff]
  %v102 = vld [vmem:[%s1 + $0xc8] sm:$0xff]
  %v103 = vld [vmem:[%s1 + $0xd0] sm:$0xff]
  %v104 = vld [vmem:[%s1 + $0xd8] sm:$0xff]
  %v105 = vld [vmem:[%s1 + $0xe0] sm:$0xff]
  %v106 = vld [vmem:[%s1 + $0xe8] sm:$0xff]
  %v107 = vld [vmem:[%s1 + $0xf0] sm:$0xff]
  %v108 = vld [vmem:[%s1 + $0xf8] sm:$0xff]
  %v109 = vld [vmem:[%s1 + $0x100] sm:$0xff]
  %v110 = vld [vmem:[%s1 + $0x108] sm:$0xff]
  %v111 = vld [vmem:[%s1 + $0x110] sm:$0xff]
  %v112 = vld [vmem:[%s1 + $0x118] sm:$0xff]
  %v113 = vld [vmem:[%s1 + $0x120] sm:$0xff]
  %v114 = vld [vmem:[%s1 + $0x128] sm:$0xff]
  %v115 = vld [vmem:[%s1 + $0x130] sm:$0xff]
  %v116 = vld [vmem:[%s1 + $0x138] sm:$0xff]
  %v117 = vld [vmem:[%s1 + $0x140] sm:$0xff]
  %v118 = vld [vmem:[%s1 + $0x148] sm:$0xff]
  %v119 = vld [vmem:[%s1 + $0x150] sm:$0xff]
  %v120 = vld [vmem:[%s1 + $0x158] sm:$0xff]
  %v121 = vld [vmem:[%s1 + $0x160] sm:$0xff]
  %v122 = vld [vmem:[%s1 + $0x168] sm:$0xff]
  %v123 = vld [vmem:[%s1 + $0x170] sm:$0xff]
  %v124 = vld [vmem:[%s1 + $0x178] sm:$0xff]
  %v125 = vld [vmem:[%s1 + $0x180] sm:$0xff]
  %v126 = vld [vmem:[%s1 + $0x188] sm:$0xff]
  %v127 = vld [vmem:[%s1 + $0x190] sm:$0xff]
  %v128 = vld [vmem:[%s1 + $0x198] sm:$0xff]
  %v129 = vld [vmem:[%s1 + $0x1a0] sm:$0xff]
  %v130 = vld [vmem:[%s1 + $0x1a8] sm:$0xff]
  %v131 = vld [vmem:[%s1 + $0x1b0] sm:$0xff]
  %v132 = vld [vmem:[%s1 + $0x1b8] sm:$0xff]
  %v133 = vld [vmem:[%s1 + $0x1c0] sm:$0xff]
  %v134 = vld [vmem:[%s1 + $0x1c8] sm:$0xff]
  %v135 = vld [vmem:[%s1 + $0x1d0] sm:$0xff]
  %v136 = vld [vmem:[%s1 + $0x1d8] sm:$0xff]
  %v137 = vld [vmem:[%s1 + $0x1e0] sm:$0xff]
  %v138 = vld [vmem:[%s1 + $0x1e8] sm:$0xff]
  %v139 = vld [vmem:[%s1 + $0x1f0] sm:$0xff]
  %v140 = vld [vmem:[%s1 + $0x1f8] sm:$0xff]
  %v141 = vld [vmem:[%s1 + $0x200] sm:$0xff]
  %v142 = vld [vmem:[%s1 + $0x208] sm:$0xff]
  %v143 = vld [vmem:[%s1 + $0x210] sm:$0xff]
  %v144 = vld [vmem:[%s1 + $0x218] sm:$0xff]
  %v145 = vld [vmem:[%s1 + $0x220] sm:$0xff]
  %v146 = vld [vmem:[%s1 + $0x228] sm:$0xff]
  %v147 = vld [vmem:[%s1 + $0x230] sm:$0xff]
  %v148 = vld [vmem:[%s1 + $0x238] sm:$0xff]
  %v149 = vld [vmem:[%s1 + $0x240] sm:$0xff]
  %v150 = vld [vmem:[%s1 + $0x248] sm:$0xff]
  %v151 = vld [vmem:[%s1 + $0x250] sm:$0xff]
  %v152 = vld [vmem:[%s1 + $0x258] sm:$0xff]
  %v153 = vld [vmem:[%s1 + $0x260] sm:$0xff]
  %v154 = vld [vmem:[%s1 + $0x268] sm:$0xff]
  %v155 = vld [vmem:[%s1 + $0x270] sm:$0xff]
  %v156 = vld [vmem:[%s1 + $0x278] sm:$0xff]
  %v157 = vld [vmem:[%s1 + $0x280] sm:$0xff]
  %v158 = vld [vmem:[%s1 + $0x288] sm:$0xff]
  %v159 = vld [vmem:[%s1 + $0x290] sm:$0xff]
  %v160 = vld [vmem:[%s1 + $0x298] sm:$0xff]
  %v161 = vld [vmem:[%s1 + $0x2a0] sm:$0xff]
  %v162 = vld [vmem:[%s1 + $0x2a8] sm:$0xff]
  %v163 = vld [vmem:[%s1 + $0x2b0] sm:$0xff]
  %v164 = vld [vmem:[%s1 + $0x2b8] sm:$0xff]
  %v165 = vld [vmem:[%s1 + $0x2c0] sm:$0xff]
  %v166 = vld [vmem:[%s1 + $0x2c8] sm:$0xff]
  %v167 = vld [vmem:[%s1 + $0x2d0] sm:$0xff]
  %v168 = vld [vmem:[%s1 + $0x2d8] sm:$0xff]
  %v169 = vld [vmem:[%s1 + $0x2e0] sm:$0xff]
  %v170 = vld [vmem:[%s1 + $0x2e8] sm:$0xff]
  %v171 = vld [vmem:[%s1 + $0x2f0] sm:$0xff]
  %v172 = vld [vmem:[%s1 + $0x2f8] sm:$0xff]
  %v173 = vld [vmem:[%s1 + $0x300] sm:$0xff]
  %v174 = vld [vmem:[%s1 + $0x308] sm:$0xff]
  %v175 = vld [vmem:[%s1 + $0x310] sm:$0xff]
  %v176 = vld [vmem:[%s1 + $0x318] sm:$0xff]
  %v177 = vld [vmem:[%s1 + $0x320] sm:$0xff]
  %v178 = vld [vmem:[%s1 + $0x328] sm:$0xff]
  %v179 = vld [vmem:[%s1 + $0x330] sm:$0xff]
  %v180 = vld [vmem:[%s1 + $0x338] sm:$0xff]
  %v181 = vld [vmem:[%s1 + $0x340] sm:$0xff]
  %v182 = vld [vmem:[%s1 + $0x348] sm:$0xff]
  %v183 = vld [vmem:[%s1 + $0x350] sm:$0xff]
  %v184 = vld [vmem:[%s1 + $0x358] sm:$0xff]
  %v185 = vld [vmem:[%s1 + $0x360] sm:$0xff]
  %v186 = vld [vmem:[%s1 + $0x368] sm:$0xff]
  %v187 = vld [vmem:[%s1 + $0x370] sm:$0xff]
  %v188 = vld [vmem:[%s1 + $0x378] sm:$0xff]
  %v189 = vld [vmem:[%s1 + $0x380] sm:$0xff]
  %v190 = vld [vmem:[%s1 + $0x388] sm:$0xff]
  %v191 = vld [vmem:[%s1 + $0x390] sm:$0xff]
  %v192 = vld [vmem:[%s1 + $0x398] sm:$0xff]
  %v193 = vld [vmem:[%s1 + $0x3a0] sm:$0xff]
  %v194 = vld [vmem:[%s1 + $0x3a8] sm:$0xff]
  %v195 = vld [vmem:[%s1 + $0x3b0] sm:$0xff]
  %v196 = vld [vmem:[%s1 + $0x3b8] sm:$0xff]
  %v197 = vld [vmem:[%s1 + $0x3c0] sm:$0xff]
  %v198 = vld [vmem:[%s1 + $0x3c8] sm:$0xff]
  %v199 = vld [vmem:[%s1 + $0x3d0] sm:$0xff]
  %v200 = vld [vmem:[%s1 + $0x3d8] sm:$0xff]
  %v201 = vld [vmem:[%s1 + $0x3e0] sm:$0xff]
  %v202 = vld [vmem:[%s1 + $0x3e8] sm:$0xff]
  %v203 = vld [vmem:[%s1 + $0x3f0] sm:$0xff]
  %v204 = vld [vmem:[%s1 + $0x3f8] sm:$0xff]
  %v205 = vld [vmem:[%s1 + $0x400] sm:$0xff]
  %v206 = vld [vmem:[%s1 + $0x408] sm:$0xff]
  %v207 = vld [vmem:[%s1 + $0x410] sm:$0xff]
  %v208 = vld [vmem:[%s1 + $0x418] sm:$0xff]
  %v209 = vld [vmem:[%s1 + $0x420] sm:$0xff]
  %v210 = vld [vmem:[%s1 + $0x428] sm:$0xff]
  %v211 = vld [vmem:[%s1 + $0x430] sm:$0xff]
  %v212 = vld [vmem:[%s1 + $0x438] sm:$0xff]
  %v213 = vld [vmem:[%s1 + $0x440] sm:$0xff]
  %v214 = vld [vmem:[%s1 + $0x448] sm:$0xff]
  %v215 = vld [vmem:[%s1 + $0x450] sm:$0xff]
  %v216 = vld [vmem:[%s1 + $0x458] sm:$0xff]
  %v217 = vld [vmem:[%s1 + $0x460] sm:$0xff]
  %v218 = vld [vmem:[%s1 + $0x468] sm:$0xff]
  %v219 = vld [vmem:[%s1 + $0x470] sm:$0xff]
  %v220 = vld [vmem:[%s1 + $0x478] sm:$0xff]
  %v221 = vld [vmem:[%s1 + $0x480] sm:$0xff]
  %v222 = vld [vmem:[%s1 + $0x488] sm:$0xff]
  %v223 = vld [vmem:[%s1 + $0x490] sm:$0xff]
  %v224 = vld [vmem:[%s1 + $0x498] sm:$0xff]
  %v225 = vld [vmem:[%s1 + $0x4a0] sm:$0xff]
  %v226 = vld [vmem:[%s1 + $0x4a8] sm:$0xff]
  %v227 = vld [vmem:[%s1 + $0x4b0] sm:$0xff]
  %v228 = vld [vmem:[%s1 + $0x4b8] sm:$0xff]
  %v229 = vld [vmem:[%s1 + $0x4c0] sm:$0xff]
  %v230 = vld [vmem:[%s1 + $0x4c8] sm:$0xff]
  %v231 = vld [vmem:[%s1 + $0x4d0] sm:$0xff]
  %v232 = vld [vmem:[%s1 + $0x4d8] sm:$0xff]
  %v233 = vld [vmem:[%s1 + $0x4e0] sm:$0xff]
  %v234 = vld [vmem:[%s1 + $0x4e8] sm:$0xff]
  %v235 = vld [vmem:[%s1 + $0x4f0] sm:$0xff]
  %v236 = vld [vmem:[%s1 + $0x4f8] sm:$0xff]
  %v237 = vld [vmem:[%s1 + $0x500] sm:$0xff]
  %v238 = vld [vmem:[%s1 + $0x508] sm:$0xff]
  %v239 = vld [vmem:[%s1 + $0x510] sm:$0xff]
  %v240 = vld [vmem:[%s1 + $0x518] sm:$0xff]
  %v241 = vld [vmem:[%s1 + $0x520] sm:$0xff]
  %v242 = vld [vmem:[%s1 + $0x528] sm:$0xff]
  %v243 = vld [vmem:[%s1 + $0x530] sm:$0xff]
  %v244 = vld [vmem:[%s1 + $0x538] sm:$0xff]
  %v245 = vld [vmem:[%s1 + $0x540] sm:$0xff]
  %v246 = vld [vmem:[%s1 + $0x548] sm:$0xff]
  %v247 = vld [vmem:[%s1 + $0x550] sm:$0xff]
  %v248 = vld [vmem:[%s1 + $0x558] sm:$0xff]
  %v249 = vld [vmem:[%s1 + $0x560] sm:$0xff]
  %v250 = vld [vmem:[%s1 + $0x568] sm:$0xff]
  %v251 = vld [vmem:[%s1 + $0x570] sm:$0xff]
  %v252 = vld [vmem:[%s1 + $0x578] sm:$0xff]
  %v253 = vld [vmem:[%s1 + $0x580] sm:$0xff]
  %v254 = vld [vmem:[%s1 + $0x588] sm:$0xff]
  %v255 = vld [vmem:[%s1 + $0x590] sm:$0xff]
  %v256 = vld [vmem:[%s1 + $0x598] sm:$0xff]
  %v257 = vld [vmem:[%s1 + $0x5a0] sm:$0xff]
  %v258 = vld [vmem:[%s1 + $0x5a8] sm:$0xff]
  %v259 = vld [vmem:[%s1 + $0x5b0] sm:$0xff]
  %v260 = vld [vmem:[%s1 + $0x5b8] sm:$0xff]
  %v261 = vld [vmem:[%s1 + $0x5c0] sm:$0xff]
  %v262 = vld [vmem:[%s1 + $0x5c8] sm:$0xff]
  %v263 = vld [vmem:[%s1 + $0x5d0] sm:$0xff]
  %v264 = vld [vmem:[%s1 + $0x5d8] sm:$0xff]
  %v265 = vld [vmem:[%s1 + $0x5e0] sm:$0xff]
  %v266 = vld [vmem:[%s1 + $0x5e8] sm:$0xff]
  %v267 = vld [vmem:[%s1 + $0x5f0] sm:$0xff]
  %v268 = vld [vmem:[%s1 + $0x5f8] sm:$0xff]
  %v269 = vld [vmem:[%s1 + $0x600] sm:$0xff]
  %v270 = vld [vmem:[%s1 + $0x608] sm:$0xff]
  %v271 = vld [vmem:[%s1 + $0x610] sm:$0xff]
  %v272 = vld [vmem:[%s1 + $0x618] sm:$0xff]
  %v273 = vld [vmem:[%s1 + $0x620] sm:$0xff]
  %v274 = vld [vmem:[%s1 + $0x628] sm:$0xff]
  %v275 = vld [vmem:[%s1 + $0x630] sm:$0xff]
  %v276 = vld [vmem:[%s1 + $0x638] sm:$0xff]
  %v277 = vld [vmem:[%s1 + $0x640] sm:$0xff]
  %v278 = vld [vmem:[%s1 + $0x648] sm:$0xff]
  %v279 = vld [vmem:[%s1 + $0x650] sm:$0xff]
  %v280 = vld [vmem:[%s1 + $0x658] sm:$0xff]
  %v281 = vld [vmem:[%s1 + $0x660] sm:$0xff]
  %v282 = vld [vmem:[%s1 + $0x668] sm:$0xff]
  %v283 = vld [vmem:[%s1 + $0x670] sm:$0xff]
  %v284 = vld [vmem:[%s1 + $0x678] sm:$0xff]
  %v285 = vld [vmem:[%s1 + $0x680] sm:$0xff]
  %v286 = vld [vmem:[%s1 + $0x688] sm:$0xff]
  %v287 = vld [vmem:[%s1 + $0x690] sm:$0xff]
  %v288 = vld [vmem:[%s1 + $0x698] sm:$0xff]
  %v289 = vld [vmem:[%s1 + $0x6a0] sm:$0xff]
  %v290 = vld [vmem:[%s1 + $0x6a8] sm:$0xff]
  %v291 = vld [vmem:[%s1 + $0x6b0] sm:$0xff]
  %v292 = vld [vmem:[%s1 + $0x6b8] sm:$0xff]
  %v293 = vld [vmem:[%s1 + $0x6c0] sm:$0xff]
  %v294 = vld [vmem:[%s1 + $0x6c8] sm:$0xff]
  %v295 = vld [vmem:[%s1 + $0x6d0] sm:$0xff]
  %v296 = vld [vmem:[%s1 + $0x6d8] sm:$0xff]
  %v297 = vld [vmem:[%s1 + $0x6e0] sm:$0xff]
  %v298 = vld [vmem:[%s1 + $0x6e8] sm:$0xff]
  %v299 = vld [vmem:[%s1 + $0x6f0] sm:$0xff]
  %v300 = vld [vmem:[%s1 + $0x6f8] sm:$0xff]
  %v301 = vld [vmem:[%s1 + $0x700] sm:$0xff]
  %v302 = vld [vmem:[%s1 + $0x708] sm:$0xff]
  %v303 = vld [vmem:[%s1 + $0x710] sm:$0xff]
  %v304 = vld [vmem:[%s1 + $0x718] sm:$0xff]
  %v305 = vld [vmem:[%s1 + $0x720] sm:$0xff]
  %v306 = vld [vmem:[%s1 + $0x728] sm:$0xff]
  %v307 = vld [vmem:[%s1 + $0x730] sm:$0xff]
  %v308 = vld [vmem:[%s1 + $0x738] sm:$0xff]
  %v309 = vld [vmem:[%s1 + $0x740] sm:$0xff]
  %v310 = vld [vmem:[%s1 + $0x748] sm:$0xff]
  %v311 = vld [vmem:[%s1 + $0x750] sm:$0xff]
  %v312 = vld [vmem:[%s1 + $0x758] sm:$0xff]
  %v313 = vld [vmem:[%s1 + $0x760] sm:$0xff]
  %v314 = vld [vmem:[%s1 + $0x768] sm:$0xff]
  %v315 = vld [vmem:[%s1 + $0x770] sm:$0xff]
  %v316 = vld [vmem:[%s1 + $0x778] sm:$0xff]
  %v317 = vld [vmem:[%s1 + $0x780] sm:$0xff]
  %v318 = vld [vmem:[%s1 + $0x788] sm:$0xff]
  %v319 = vld [vmem:[%s1 + $0x790] sm:$0xff]
  %v320 = vld [vmem:[%s1 + $0x798] sm:$0xff]
  %v321 = vld [vmem:[%s1 + $0x7a0] sm:$0xff]
  %v322 = vld [vmem:[%s1 + $0x7a8] sm:$0xff]
  %v323 = vld [vmem:[%s1 + $0x7b0] sm:$0xff]
  %v324 = vld [vmem:[%s1 + $0x7b8] sm:$0xff]
  %v325 = vld [vmem:[%s1 + $0x7c0] sm:$0xff]
  %v326 = vld [vmem:[%s1 + $0x7c8] sm:$0xff]
  %v327 = vld [vmem:[%s1 + $0x7d0] sm:$0xff]
  %v328 = vld [vmem:[%s1 + $0x7d8] sm:$0xff]
  %v329 = vld [vmem:[%s1 + $0x7e0] sm:$0xff]
  %v330 = vld [vmem:[%s1 + $0x7e8] sm:$0xff]
  %v331 = vld [vmem:[%s1 + $0x7f0] sm:$0xff]
  %v332 = vld [vmem:[%s1 + $0x7f8] sm:$0xff]
  %v333 = vld [vmem:[%s1 + $0x800] sm:$0xff]
  %v334 = vld [vmem:[%s1 + $0x808] sm:$0xff]
  %v335 = vld [vmem:[%s1 + $0x810] sm:$0xff]
  %v336 = vld [vmem:[%s1 + $0x818] sm:$0xff]
  %v337 = vld [vmem:[%s1 + $0x820] sm:$0xff]
  %v338 = vld [vmem:[%s1 + $0x828] sm:$0xff]
  %v339 = vld [vmem:[%s1 + $0x830] sm:$0xff]
  %v340 = vld [vmem:[%s1 + $0x838] sm:$0xff]
  %v341 = vld [vmem:[%s1 + $0x840] sm:$0xff]
  %v342 = vld [vmem:[%s1 + $0x848] sm:$0xff]
  %v343 = vld [vmem:[%s1 + $0x850] sm:$0xff]
  %v344 = vld [vmem:[%s1 + $0x858] sm:$0xff]
  %v345 = vld [vmem:[%s1 + $0x860] sm:$0xff]
  %v346 = vld [vmem:[%s1 + $0x868] sm:$0xff]
  %v347 = vld [vmem:[%s1 + $0x870] sm:$0xff]
  %v348 = vld [vmem:[%s1 + $0x878] sm:$0xff]
  %v349 = vld [vmem:[%s1 + $0x880] sm:$0xff]
  %v350 = vld [vmem:[%s1 + $0x888] sm:$0xff]
  %v351 = vld [vmem:[%s1 + $0x890] sm:$0xff]
  %v352 = vld [vmem:[%s1 + $0x898] sm:$0xff]
  %v353 = vld [vmem:[%s1 + $0x8a0] sm:$0xff]
  %v354 = vld [vmem:[%s1 + $0x8a8] sm:$0xff]
  %v355 = vld [vmem:[%s1 + $0x8b0] sm:$0xff]
  %v356 = vld [vmem:[%s1 + $0x8b8] sm:$0xff]
  %v357 = vld [vmem:[%s1 + $0x8c0] sm:$0xff]
  %v358 = vld [vmem:[%s1 + $0x8c8] sm:$0xff]
  %v359 = vld [vmem:[%s1 + $0x8d0] sm:$0xff]
  %v360 = vld [vmem:[%s1 + $0x8d8] sm:$0xff]
  %v361 = vld [vmem:[%s1 + $0x8e0] sm:$0xff]
  %v362 = vld [vmem:[%s1 + $0x8e8] sm:$0xff]
  %v363 = vld [vmem:[%s1 + $0x8f0] sm:$0xff]
  %v364 = vld [vmem:[%s1 + $0x8f8] sm:$0xff]
  %v365 = vld [vmem:[%s2] sm:$0x3]
  %v367 = vlaneseq
  %v368 = vshrl.u32 %v367, 7
  %v369 = vsub.s32 0, %v368
  %v370 = vrot.slane %v365, %v369
  %v371 = vlaneseq
  %v372 = vshrl.u32 %v371, 7
  %v373 = vsub.s32 1, %v372
  %v374 = vrot.slane %v365, %v373
  %v440 = vunpack.c.l.b16 %v14
  %v441 = vunpack.c.h.b16 %v14
  %v442 = vunpack.c.l.b16 %v15
  %v443 = vunpack.c.h.b16 %v15
  %v444 = vunpack.c.l.b16 %v16
  %v445 = vunpack.c.h.b16 %v16
  %v446 = vunpack.c.l.b16 %v17
  %v447 = vunpack.c.h.b16 %v17
  %v448 = vunpack.c.l.b16 %v18
  %v449 = vunpack.c.h.b16 %v18
  %v450 = vunpack.c.l.b16 %v19
  %v451 = vunpack.c.h.b16 %v19
  %v452 = vunpack.c.l.b16 %v20
  %v453 = vunpack.c.h.b16 %v20
  %v454 = vunpack.c.l.b16 %v21
  %v455 = vunpack.c.h.b16 %v21
  %v456 = vunpack.c.l.b16 %v22
  %v457 = vunpack.c.h.b16 %v22
  %v458 = vunpack.c.l.b16 %v23
  %v459 = vunpack.c.h.b16 %v23
  %v460 = vunpack.c.l.b16 %v24
  %v461 = vunpack.c.h.b16 %v24
  %v462 = vunpack.c.l.b16 %v25
  %v463 = vunpack.c.h.b16 %v25
  %v464 = vunpack.c.l.b16 %v26
  %v465 = vunpack.c.h.b16 %v26
  %v466 = vunpack.c.l.b16 %v27
  %v467 = vunpack.c.h.b16 %v27
  %v468 = vunpack.c.l.b16 %v28
  %v469 = vunpack.c.h.b16 %v28
  %v470 = vunpack.c.l.b16 %v29
  %v471 = vunpack.c.h.b16 %v29
  %v472 = vunpack.c.l.b16 %v30
  %v473 = vunpack.c.h.b16 %v30
  %v474 = vunpack.c.l.b16 %v31
  %v475 = vunpack.c.h.b16 %v31
  %v476 = vunpack.c.l.b16 %v32
  %v477 = vunpack.c.h.b16 %v32
  %v478 = vunpack.c.l.b16 %v33
  %v479 = vunpack.c.h.b16 %v33
  %v480 = vunpack.c.l.b16 %v34
  %v481 = vunpack.c.h.b16 %v34
  %v482 = vunpack.c.l.b16 %v35
  %v483 = vunpack.c.h.b16 %v35
  %v484 = vunpack.c.l.b16 %v36
  %v485 = vunpack.c.h.b16 %v36
  %v486 = vunpack.c.l.b16 %v37
  %v487 = vunpack.c.h.b16 %v37
  %v488 = vunpack.c.l.b16 %v38
  %v489 = vunpack.c.h.b16 %v38
  %v490 = vunpack.c.l.b16 %v39
  %v491 = vunpack.c.h.b16 %v39
  %v492 = vunpack.c.l.b16 %v40
  %v493 = vunpack.c.h.b16 %v40
  %v494 = vunpack.c.l.b16 %v41
  %v495 = vunpack.c.h.b16 %v41
  %v496 = vunpack.c.l.b16 %v42
  %v497 = vunpack.c.h.b16 %v42
  %v498 = vunpack.c.l.b16 %v43
  %v499 = vunpack.c.h.b16 %v43
  %v500 = vunpack.c.l.b16 %v44
  %v501 = vunpack.c.h.b16 %v44
  %v502 = vunpack.c.l.b16 %v45
  %v503 = vunpack.c.h.b16 %v45
  %v504 = vunpack.c.l.b16 %v46
  %v505 = vunpack.c.h.b16 %v46
  %v506 = vunpack.c.l.b16 %v47
  %v507 = vunpack.c.h.b16 %v47
  %v508 = vunpack.c.l.b16 %v48
  %v509 = vunpack.c.h.b16 %v48
  %v510 = vunpack.c.l.b16 %v49
  %v511 = vunpack.c.h.b16 %v49
  %v512 = vunpack.c.l.b16 %v50
  %v513 = vunpack.c.h.b16 %v50
  %v514 = vunpack.c.l.b16 %v51
  %v515 = vunpack.c.h.b16 %v51
  %v516 = vunpack.c.l.b16 %v52
  %v517 = vunpack.c.h.b16 %v52
  %v518 = vunpack.c.l.b16 %v53
  %v519 = vunpack.c.h.b16 %v53
  %v520 = vunpack.c.l.b16 %v54
  %v521 = vunpack.c.h.b16 %v54
  %v522 = vunpack.c.l.b16 %v55
  %v523 = vunpack.c.h.b16 %v55
  %v524 = vunpack.c.l.b16 %v56
  %v525 = vunpack.c.h.b16 %v56
  %v526 = vunpack.c.l.b16 %v57
  %v527 = vunpack.c.h.b16 %v57
  %v528 = vunpack.c.l.b16 %v58
  %v529 = vunpack.c.h.b16 %v58
  %v530 = vunpack.c.l.b16 %v59
  %v531 = vunpack.c.h.b16 %v59
  %v532 = vunpack.c.l.b16 %v60
  %v533 = vunpack.c.h.b16 %v60
  %v534 = vunpack.c.l.b16 %v61
  %v535 = vunpack.c.h.b16 %v61
  %v536 = vunpack.c.l.b16 %v62
  %v537 = vunpack.c.h.b16 %v62
  %v538 = vunpack.c.l.b16 %v63
  %v539 = vunpack.c.h.b16 %v63
  %v540 = vunpack.c.l.b16 %v64
  %v541 = vunpack.c.h.b16 %v64
  %v542 = vunpack.c.l.b16 %v65
  %v543 = vunpack.c.h.b16 %v65
  %v544 = vunpack.c.l.b16 %v66
  %v545 = vunpack.c.h.b16 %v66
  %v546 = vunpack.c.l.b16 %v67
  %v547 = vunpack.c.h.b16 %v67
  %v548 = vunpack.c.l.b16 %v68
  %v549 = vunpack.c.h.b16 %v68
  %v550 = vunpack.c.l.b16 %v69
  %v551 = vunpack.c.h.b16 %v69
  %v552 = vunpack.c.l.b16 %v70
  %v553 = vunpack.c.h.b16 %v70
  %v554 = vunpack.c.l.b16 %v71
  %v555 = vunpack.c.h.b16 %v71
  %v556 = vunpack.c.l.b16 %v72
  %v557 = vunpack.c.h.b16 %v72
  %v558 = vunpack.c.l.b16 %v73
  %v559 = vunpack.c.h.b16 %v73
  %v560 = vunpack.c.l.b16 %v74
  %v561 = vunpack.c.h.b16 %v74
  %v562 = vunpack.c.l.b16 %v75
  %v563 = vunpack.c.h.b16 %v75
  %v564 = vunpack.c.l.b16 %v76
  %v565 = vunpack.c.h.b16 %v76
  %v566 = vpack.c.b16 %v458, %v440
  %v567 = vpack.c.b16 %v459, %v441
  %v568 = vpack.c.b16 %v460, %v442
  %v569 = vpack.c.b16 %v461, %v443
  %v570 = vpack.c.b16 %v462, %v444
  %v571 = vpack.c.b16 %v463, %v445
  %v572 = vpack.c.b16 %v464, %v446
  %v573 = vpack.c.b16 %v465, %v447
  %v574 = vpack.c.b16 %v466, %v448
  %v575 = vpack.c.b16 %v467, %v449
  %v576 = vpack.c.b16 %v468, %v450
  %v577 = vpack.c.b16 %v469, %v451
  %v578 = vpack.c.b16 %v470, %v452
  %v579 = vpack.c.b16 %v471, %v453
  %v580 = vpack.c.b16 %v472, %v454
  %v581 = vpack.c.b16 %v473, %v455
  %v582 = vpack.c.b16 %v474, %v456
  %v583 = vpack.c.b16 %v475, %v457
  %v584 = vpack.c.b16 %v494, %v476
  %v585 = vpack.c.b16 %v495, %v477
  %v586 = vpack.c.b16 %v496, %v478
  %v587 = vpack.c.b16 %v497, %v479
  %v588 = vpack.c.b16 %v498, %v480
  %v589 = vpack.c.b16 %v499, %v481
  %v590 = vpack.c.b16 %v500, %v482
  %v591 = vpack.c.b16 %v501, %v483
  %v592 = vpack.c.b16 %v502, %v484
  %v593 = vpack.c.b16 %v503, %v485
  %v594 = vpack.c.b16 %v504, %v486
  %v595 = vpack.c.b16 %v505, %v487
  %v596 = vpack.c.b16 %v506, %v488
  %v597 = vpack.c.b16 %v507, %v489
  %v598 = vpack.c.b16 %v508, %v490
  %v599 = vpack.c.b16 %v509, %v491
  %v600 = vpack.c.b16 %v510, %v492
  %v601 = vpack.c.b16 %v511, %v493
  %v602 = vpack.c.b16 %v530, %v512
  %v603 = vpack.c.b16 %v531, %v513
  %v604 = vpack.c.b16 %v532, %v514
  %v605 = vpack.c.b16 %v533, %v515
  %v606 = vpack.c.b16 %v534, %v516
  %v607 = vpack.c.b16 %v535, %v517
  %v608 = vpack.c.b16 %v536, %v518
  %v609 = vpack.c.b16 %v537, %v519
  %v610 = vpack.c.b16 %v538, %v520
  %v611 = vpack.c.b16 %v539, %v521
  %v612 = vpack.c.b16 %v540, %v522
  %v613 = vpack.c.b16 %v541, %v523
  %v614 = vpack.c.b16 %v542, %v524
  %v615 = vpack.c.b16 %v543, %v525
  %v616 = vpack.c.b16 %v544, %v526
  %v617 = vpack.c.b16 %v545, %v527
  %v618 = vpack.c.b16 %v546, %v528
  %v619 = vpack.c.b16 %v547, %v529
  %v620 = vpack.c.b16 %v548, %v548
  %v621 = vpack.c.b16 %v549, %v549
  %v622 = vpack.c.b16 %v550, %v550
  %v623 = vpack.c.b16 %v551, %v551
  %v624 = vpack.c.b16 %v552, %v552
  %v625 = vpack.c.b16 %v553, %v553
  %v626 = vpack.c.b16 %v554, %v554
  %v627 = vpack.c.b16 %v555, %v555
  %v628 = vpack.c.b16 %v556, %v556
  %v629 = vpack.c.b16 %v557, %v557
  %v630 = vpack.c.b16 %v558, %v558
  %v631 = vpack.c.b16 %v559, %v559
  %v632 = vpack.c.b16 %v560, %v560
  %v633 = vpack.c.b16 %v561, %v561
  %v634 = vpack.c.b16 %v562, %v562
  %v635 = vpack.c.b16 %v563, %v563
  %v636 = vpack.c.b16 %v564, %v564
  %v637 = vpack.c.b16 %v565, %v565
  %v998 = vunpack.c.l.b16 %v77
  %v999 = vunpack.c.h.b16 %v77
  %v1000 = vunpack.c.l.b16 %v78
  %v1001 = vunpack.c.h.b16 %v78
  %v1002 = vunpack.c.l.b16 %v79
  %v1003 = vunpack.c.h.b16 %v79
  %v1004 = vunpack.c.l.b16 %v80
  %v1005 = vunpack.c.h.b16 %v80
  %v1006 = vunpack.c.l.b16 %v81
  %v1007 = vunpack.c.h.b16 %v81
  %v1008 = vunpack.c.l.b16 %v82
  %v1009 = vunpack.c.h.b16 %v82
  %v1010 = vunpack.c.l.b16 %v83
  %v1011 = vunpack.c.h.b16 %v83
  %v1012 = vunpack.c.l.b16 %v84
  %v1013 = vunpack.c.h.b16 %v84
  %v1014 = vunpack.c.l.b16 %v85
  %v1015 = vunpack.c.h.b16 %v85
  %v1016 = vunpack.c.l.b16 %v86
  %v1017 = vunpack.c.h.b16 %v86
  %v1018 = vunpack.c.l.b16 %v87
  %v1019 = vunpack.c.h.b16 %v87
  %v1020 = vunpack.c.l.b16 %v88
  %v1021 = vunpack.c.h.b16 %v88
  %v1022 = vunpack.c.l.b16 %v89
  %v1023 = vunpack.c.h.b16 %v89
  %v1024 = vunpack.c.l.b16 %v90
  %v1025 = vunpack.c.h.b16 %v90
  %v1026 = vunpack.c.l.b16 %v91
  %v1027 = vunpack.c.h.b16 %v91
  %v1028 = vunpack.c.l.b16 %v92
  %v1029 = vunpack.c.h.b16 %v92
  %v1030 = vunpack.c.l.b16 %v93
  %v1031 = vunpack.c.h.b16 %v93
  %v1032 = vunpack.c.l.b16 %v94
  %v1033 = vunpack.c.h.b16 %v94
  %v1034 = vunpack.c.l.b16 %v95
  %v1035 = vunpack.c.h.b16 %v95
  %v1036 = vunpack.c.l.b16 %v96
  %v1037 = vunpack.c.h.b16 %v96
  %v1038 = vunpack.c.l.b16 %v97
  %v1039 = vunpack.c.h.b16 %v97
  %v1040 = vunpack.c.l.b16 %v98
  %v1041 = vunpack.c.h.b16 %v98
  %v1042 = vunpack.c.l.b16 %v99
  %v1043 = vunpack.c.h.b16 %v99
  %v1044 = vunpack.c.l.b16 %v100
  %v1045 = vunpack.c.h.b16 %v100
  %v1046 = vunpack.c.l.b16 %v101
  %v1047 = vunpack.c.h.b16 %v101
  %v1048 = vunpack.c.l.b16 %v102
  %v1049 = vunpack.c.h.b16 %v102
  %v1050 = vunpack.c.l.b16 %v103
  %v1051 = vunpack.c.h.b16 %v103
  %v1052 = vunpack.c.l.b16 %v104
  %v1053 = vunpack.c.h.b16 %v104
  %v1054 = vunpack.c.l.b16 %v105
  %v1055 = vunpack.c.h.b16 %v105
  %v1056 = vunpack.c.l.b16 %v106
  %v1057 = vunpack.c.h.b16 %v106
  %v1058 = vunpack.c.l.b16 %v107
  %v1059 = vunpack.c.h.b16 %v107
  %v1060 = vunpack.c.l.b16 %v108
  %v1061 = vunpack.c.h.b16 %v108
  %v1062 = vunpack.c.l.b16 %v109
  %v1063 = vunpack.c.h.b16 %v109
  %v1064 = vunpack.c.l.b16 %v110
  %v1065 = vunpack.c.h.b16 %v110
  %v1066 = vunpack.c.l.b16 %v111
  %v1067 = vunpack.c.h.b16 %v111
  %v1068 = vunpack.c.l.b16 %v112
  %v1069 = vunpack.c.h.b16 %v112
  %v1070 = vunpack.c.l.b16 %v113
  %v1071 = vunpack.c.h.b16 %v113
  %v1072 = vunpack.c.l.b16 %v114
  %v1073 = vunpack.c.h.b16 %v114
  %v1074 = vunpack.c.l.b16 %v115
  %v1075 = vunpack.c.h.b16 %v115
  %v1076 = vunpack.c.l.b16 %v116
  %v1077 = vunpack.c.h.b16 %v116
  %v1078 = vunpack.c.l.b16 %v117
  %v1079 = vunpack.c.h.b16 %v117
  %v1080 = vunpack.c.l.b16 %v118
  %v1081 = vunpack.c.h.b16 %v118
  %v1082 = vunpack.c.l.b16 %v119
  %v1083 = vunpack.c.h.b16 %v119
  %v1084 = vunpack.c.l.b16 %v120
  %v1085 = vunpack.c.h.b16 %v120
  %v1086 = vunpack.c.l.b16 %v121
  %v1087 = vunpack.c.h.b16 %v121
  %v1088 = vunpack.c.l.b16 %v122
  %v1089 = vunpack.c.h.b16 %v122
  %v1090 = vunpack.c.l.b16 %v123
  %v1091 = vunpack.c.h.b16 %v123
  %v1092 = vunpack.c.l.b16 %v124
  %v1093 = vunpack.c.h.b16 %v124
  %v1094 = vunpack.c.l.b16 %v125
  %v1095 = vunpack.c.h.b16 %v125
  %v1096 = vunpack.c.l.b16 %v126
  %v1097 = vunpack.c.h.b16 %v126
  %v1098 = vunpack.c.l.b16 %v127
  %v1099 = vunpack.c.h.b16 %v127
  %v1100 = vunpack.c.l.b16 %v128
  %v1101 = vunpack.c.h.b16 %v128
  %v1102 = vunpack.c.l.b16 %v129
  %v1103 = vunpack.c.h.b16 %v129
  %v1104 = vunpack.c.l.b16 %v130
  %v1105 = vunpack.c.h.b16 %v130
  %v1106 = vunpack.c.l.b16 %v131
  %v1107 = vunpack.c.h.b16 %v131
  %v1108 = vunpack.c.l.b16 %v132
  %v1109 = vunpack.c.h.b16 %v132
  %v1110 = vunpack.c.l.b16 %v133
  %v1111 = vunpack.c.h.b16 %v133
  %v1112 = vunpack.c.l.b16 %v134
  %v1113 = vunpack.c.h.b16 %v134
  %v1114 = vunpack.c.l.b16 %v135
  %v1115 = vunpack.c.h.b16 %v135
  %v1116 = vunpack.c.l.b16 %v136
  %v1117 = vunpack.c.h.b16 %v136
  %v1118 = vunpack.c.l.b16 %v137
  %v1119 = vunpack.c.h.b16 %v137
  %v1120 = vunpack.c.l.b16 %v138
  %v1121 = vunpack.c.h.b16 %v138
  %v1122 = vunpack.c.l.b16 %v139
  %v1123 = vunpack.c.h.b16 %v139
  %v1124 = vunpack.c.l.b16 %v140
  %v1125 = vunpack.c.h.b16 %v140
  %v1126 = vunpack.c.l.b16 %v141
  %v1127 = vunpack.c.h.b16 %v141
  %v1128 = vunpack.c.l.b16 %v142
  %v1129 = vunpack.c.h.b16 %v142
  %v1130 = vunpack.c.l.b16 %v143
  %v1131 = vunpack.c.h.b16 %v143
  %v1132 = vunpack.c.l.b16 %v144
  %v1133 = vunpack.c.h.b16 %v144
  %v1134 = vunpack.c.l.b16 %v145
  %v1135 = vunpack.c.h.b16 %v145
  %v1136 = vunpack.c.l.b16 %v146
  %v1137 = vunpack.c.h.b16 %v146
  %v1138 = vunpack.c.l.b16 %v147
  %v1139 = vunpack.c.h.b16 %v147
  %v1140 = vunpack.c.l.b16 %v148
  %v1141 = vunpack.c.h.b16 %v148
  %v1142 = vunpack.c.l.b16 %v149
  %v1143 = vunpack.c.h.b16 %v149
  %v1144 = vunpack.c.l.b16 %v150
  %v1145 = vunpack.c.h.b16 %v150
  %v1146 = vunpack.c.l.b16 %v151
  %v1147 = vunpack.c.h.b16 %v151
  %v1148 = vunpack.c.l.b16 %v152
  %v1149 = vunpack.c.h.b16 %v152
  %v1150 = vunpack.c.l.b16 %v153
  %v1151 = vunpack.c.h.b16 %v153
  %v1152 = vunpack.c.l.b16 %v154
  %v1153 = vunpack.c.h.b16 %v154
  %v1154 = vunpack.c.l.b16 %v155
  %v1155 = vunpack.c.h.b16 %v155
  %v1156 = vunpack.c.l.b16 %v156
  %v1157 = vunpack.c.h.b16 %v156
  %v1158 = vunpack.c.l.b16 %v157
  %v1159 = vunpack.c.h.b16 %v157
  %v1160 = vunpack.c.l.b16 %v158
  %v1161 = vunpack.c.h.b16 %v158
  %v1162 = vunpack.c.l.b16 %v159
  %v1163 = vunpack.c.h.b16 %v159
  %v1164 = vunpack.c.l.b16 %v160
  %v1165 = vunpack.c.h.b16 %v160
  %v1166 = vunpack.c.l.b16 %v161
  %v1167 = vunpack.c.h.b16 %v161
  %v1168 = vunpack.c.l.b16 %v162
  %v1169 = vunpack.c.h.b16 %v162
  %v1170 = vunpack.c.l.b16 %v163
  %v1171 = vunpack.c.h.b16 %v163
  %v1172 = vunpack.c.l.b16 %v164
  %v1173 = vunpack.c.h.b16 %v164
  %v1174 = vunpack.c.l.b16 %v165
  %v1175 = vunpack.c.h.b16 %v165
  %v1176 = vunpack.c.l.b16 %v166
  %v1177 = vunpack.c.h.b16 %v166
  %v1178 = vunpack.c.l.b16 %v167
  %v1179 = vunpack.c.h.b16 %v167
  %v1180 = vunpack.c.l.b16 %v168
  %v1181 = vunpack.c.h.b16 %v168
  %v1182 = vunpack.c.l.b16 %v169
  %v1183 = vunpack.c.h.b16 %v169
  %v1184 = vunpack.c.l.b16 %v170
  %v1185 = vunpack.c.h.b16 %v170
  %v1186 = vunpack.c.l.b16 %v171
  %v1187 = vunpack.c.h.b16 %v171
  %v1188 = vunpack.c.l.b16 %v172
  %v1189 = vunpack.c.h.b16 %v172
  %v1190 = vunpack.c.l.b16 %v173
  %v1191 = vunpack.c.h.b16 %v173
  %v1192 = vunpack.c.l.b16 %v174
  %v1193 = vunpack.c.h.b16 %v174
  %v1194 = vunpack.c.l.b16 %v175
  %v1195 = vunpack.c.h.b16 %v175
  %v1196 = vunpack.c.l.b16 %v176
  %v1197 = vunpack.c.h.b16 %v176
  %v1198 = vunpack.c.l.b16 %v177
  %v1199 = vunpack.c.h.b16 %v177
  %v1200 = vunpack.c.l.b16 %v178
  %v1201 = vunpack.c.h.b16 %v178
  %v1202 = vunpack.c.l.b16 %v179
  %v1203 = vunpack.c.h.b16 %v179
  %v1204 = vunpack.c.l.b16 %v180
  %v1205 = vunpack.c.h.b16 %v180
  %v1206 = vunpack.c.l.b16 %v181
  %v1207 = vunpack.c.h.b16 %v181
  %v1208 = vunpack.c.l.b16 %v182
  %v1209 = vunpack.c.h.b16 %v182
  %v1210 = vunpack.c.l.b16 %v183
  %v1211 = vunpack.c.h.b16 %v183
  %v1212 = vunpack.c.l.b16 %v184
  %v1213 = vunpack.c.h.b16 %v184
  %v1214 = vunpack.c.l.b16 %v185
  %v1215 = vunpack.c.h.b16 %v185
  %v1216 = vunpack.c.l.b16 %v186
  %v1217 = vunpack.c.h.b16 %v186
  %v1218 = vunpack.c.l.b16 %v187
  %v1219 = vunpack.c.h.b16 %v187
  %v1220 = vunpack.c.l.b16 %v188
  %v1221 = vunpack.c.h.b16 %v188
  %v1222 = vunpack.c.l.b16 %v189
  %v1223 = vunpack.c.h.b16 %v189
  %v1224 = vunpack.c.l.b16 %v190
  %v1225 = vunpack.c.h.b16 %v190
  %v1226 = vunpack.c.l.b16 %v191
  %v1227 = vunpack.c.h.b16 %v191
  %v1228 = vunpack.c.l.b16 %v192
  %v1229 = vunpack.c.h.b16 %v192
  %v1230 = vunpack.c.l.b16 %v193
  %v1231 = vunpack.c.h.b16 %v193
  %v1232 = vunpack.c.l.b16 %v194
  %v1233 = vunpack.c.h.b16 %v194
  %v1234 = vunpack.c.l.b16 %v195
  %v1235 = vunpack.c.h.b16 %v195
  %v1236 = vunpack.c.l.b16 %v196
  %v1237 = vunpack.c.h.b16 %v196
  %v1238 = vunpack.c.l.b16 %v197
  %v1239 = vunpack.c.h.b16 %v197
  %v1240 = vunpack.c.l.b16 %v198
  %v1241 = vunpack.c.h.b16 %v198
  %v1242 = vunpack.c.l.b16 %v199
  %v1243 = vunpack.c.h.b16 %v199
  %v1244 = vunpack.c.l.b16 %v200
  %v1245 = vunpack.c.h.b16 %v200
  %v1246 = vunpack.c.l.b16 %v201
  %v1247 = vunpack.c.h.b16 %v201
  %v1248 = vunpack.c.l.b16 %v202
  %v1249 = vunpack.c.h.b16 %v202
  %v1250 = vunpack.c.l.b16 %v203
  %v1251 = vunpack.c.h.b16 %v203
  %v1252 = vunpack.c.l.b16 %v204
  %v1253 = vunpack.c.h.b16 %v204
  %v1254 = vunpack.c.l.b16 %v205
  %v1255 = vunpack.c.h.b16 %v205
  %v1256 = vunpack.c.l.b16 %v206
  %v1257 = vunpack.c.h.b16 %v206
  %v1258 = vunpack.c.l.b16 %v207
  %v1259 = vunpack.c.h.b16 %v207
  %v1260 = vunpack.c.l.b16 %v208
  %v1261 = vunpack.c.h.b16 %v208
  %v1262 = vunpack.c.l.b16 %v209
  %v1263 = vunpack.c.h.b16 %v209
  %v1264 = vunpack.c.l.b16 %v210
  %v1265 = vunpack.c.h.b16 %v210
  %v1266 = vunpack.c.l.b16 %v211
  %v1267 = vunpack.c.h.b16 %v211
  %v1268 = vunpack.c.l.b16 %v212
  %v1269 = vunpack.c.h.b16 %v212
  %v1270 = vunpack.c.l.b16 %v213
  %v1271 = vunpack.c.h.b16 %v213
  %v1272 = vunpack.c.l.b16 %v214
  %v1273 = vunpack.c.h.b16 %v214
  %v1274 = vunpack.c.l.b16 %v215
  %v1275 = vunpack.c.h.b16 %v215
  %v1276 = vunpack.c.l.b16 %v216
  %v1277 = vunpack.c.h.b16 %v216
  %v1278 = vunpack.c.l.b16 %v217
  %v1279 = vunpack.c.h.b16 %v217
  %v1280 = vunpack.c.l.b16 %v218
  %v1281 = vunpack.c.h.b16 %v218
  %v1282 = vunpack.c.l.b16 %v219
  %v1283 = vunpack.c.h.b16 %v219
  %v1284 = vunpack.c.l.b16 %v220
  %v1285 = vunpack.c.h.b16 %v220
  %v1286 = vunpack.c.l.b16 %v221
  %v1287 = vunpack.c.h.b16 %v221
  %v1288 = vunpack.c.l.b16 %v222
  %v1289 = vunpack.c.h.b16 %v222
  %v1290 = vunpack.c.l.b16 %v223
  %v1291 = vunpack.c.h.b16 %v223
  %v1292 = vunpack.c.l.b16 %v224
  %v1293 = vunpack.c.h.b16 %v224
  %v1294 = vunpack.c.l.b16 %v225
  %v1295 = vunpack.c.h.b16 %v225
  %v1296 = vunpack.c.l.b16 %v226
  %v1297 = vunpack.c.h.b16 %v226
  %v1298 = vunpack.c.l.b16 %v227
  %v1299 = vunpack.c.h.b16 %v227
  %v1300 = vunpack.c.l.b16 %v228
  %v1301 = vunpack.c.h.b16 %v228
  %v1302 = vunpack.c.l.b16 %v229
  %v1303 = vunpack.c.h.b16 %v229
  %v1304 = vunpack.c.l.b16 %v230
  %v1305 = vunpack.c.h.b16 %v230
  %v1306 = vunpack.c.l.b16 %v231
  %v1307 = vunpack.c.h.b16 %v231
  %v1308 = vunpack.c.l.b16 %v232
  %v1309 = vunpack.c.h.b16 %v232
  %v1310 = vunpack.c.l.b16 %v233
  %v1311 = vunpack.c.h.b16 %v233
  %v1312 = vunpack.c.l.b16 %v234
  %v1313 = vunpack.c.h.b16 %v234
  %v1314 = vunpack.c.l.b16 %v235
  %v1315 = vunpack.c.h.b16 %v235
  %v1316 = vunpack.c.l.b16 %v236
  %v1317 = vunpack.c.h.b16 %v236
  %v1318 = vunpack.c.l.b16 %v237
  %v1319 = vunpack.c.h.b16 %v237
  %v1320 = vunpack.c.l.b16 %v238
  %v1321 = vunpack.c.h.b16 %v238
  %v1322 = vunpack.c.l.b16 %v239
  %v1323 = vunpack.c.h.b16 %v239
  %v1324 = vunpack.c.l.b16 %v240
  %v1325 = vunpack.c.h.b16 %v240
  %v1326 = vunpack.c.l.b16 %v241
  %v1327 = vunpack.c.h.b16 %v241
  %v1328 = vunpack.c.l.b16 %v242
  %v1329 = vunpack.c.h.b16 %v242
  %v1330 = vunpack.c.l.b16 %v243
  %v1331 = vunpack.c.h.b16 %v243
  %v1332 = vunpack.c.l.b16 %v244
  %v1333 = vunpack.c.h.b16 %v244
  %v1334 = vunpack.c.l.b16 %v245
  %v1335 = vunpack.c.h.b16 %v245
  %v1336 = vunpack.c.l.b16 %v246
  %v1337 = vunpack.c.h.b16 %v246
  %v1338 = vunpack.c.l.b16 %v247
  %v1339 = vunpack.c.h.b16 %v247
  %v1340 = vunpack.c.l.b16 %v248
  %v1341 = vunpack.c.h.b16 %v248
  %v1342 = vunpack.c.l.b16 %v249
  %v1343 = vunpack.c.h.b16 %v249
  %v1344 = vunpack.c.l.b16 %v250
  %v1345 = vunpack.c.h.b16 %v250
  %v1346 = vunpack.c.l.b16 %v251
  %v1347 = vunpack.c.h.b16 %v251
  %v1348 = vunpack.c.l.b16 %v252
  %v1349 = vunpack.c.h.b16 %v252
  %v1350 = vunpack.c.l.b16 %v253
  %v1351 = vunpack.c.h.b16 %v253
  %v1352 = vunpack.c.l.b16 %v254
  %v1353 = vunpack.c.h.b16 %v254
  %v1354 = vunpack.c.l.b16 %v255
  %v1355 = vunpack.c.h.b16 %v255
  %v1356 = vunpack.c.l.b16 %v256
  %v1357 = vunpack.c.h.b16 %v256
  %v1358 = vunpack.c.l.b16 %v257
  %v1359 = vunpack.c.h.b16 %v257
  %v1360 = vunpack.c.l.b16 %v258
  %v1361 = vunpack.c.h.b16 %v258
  %v1362 = vunpack.c.l.b16 %v259
  %v1363 = vunpack.c.h.b16 %v259
  %v1364 = vunpack.c.l.b16 %v260
  %v1365 = vunpack.c.h.b16 %v260
  %v1366 = vunpack.c.l.b16 %v261
  %v1367 = vunpack.c.h.b16 %v261
  %v1368 = vunpack.c.l.b16 %v262
  %v1369 = vunpack.c.h.b16 %v262
  %v1370 = vunpack.c.l.b16 %v263
  %v1371 = vunpack.c.h.b16 %v263
  %v1372 = vunpack.c.l.b16 %v264
  %v1373 = vunpack.c.h.b16 %v264
  %v1374 = vunpack.c.l.b16 %v265
  %v1375 = vunpack.c.h.b16 %v265
  %v1376 = vunpack.c.l.b16 %v266
  %v1377 = vunpack.c.h.b16 %v266
  %v1378 = vunpack.c.l.b16 %v267
  %v1379 = vunpack.c.h.b16 %v267
  %v1380 = vunpack.c.l.b16 %v268
  %v1381 = vunpack.c.h.b16 %v268
  %v1382 = vunpack.c.l.b16 %v269
  %v1383 = vunpack.c.h.b16 %v269
  %v1384 = vunpack.c.l.b16 %v270
  %v1385 = vunpack.c.h.b16 %v270
  %v1386 = vunpack.c.l.b16 %v271
  %v1387 = vunpack.c.h.b16 %v271
  %v1388 = vunpack.c.l.b16 %v272
  %v1389 = vunpack.c.h.b16 %v272
  %v1390 = vunpack.c.l.b16 %v273
  %v1391 = vunpack.c.h.b16 %v273
  %v1392 = vunpack.c.l.b16 %v274
  %v1393 = vunpack.c.h.b16 %v274
  %v1394 = vunpack.c.l.b16 %v275
  %v1395 = vunpack.c.h.b16 %v275
  %v1396 = vunpack.c.l.b16 %v276
  %v1397 = vunpack.c.h.b16 %v276
  %v1398 = vunpack.c.l.b16 %v277
  %v1399 = vunpack.c.h.b16 %v277
  %v1400 = vunpack.c.l.b16 %v278
  %v1401 = vunpack.c.h.b16 %v278
  %v1402 = vunpack.c.l.b16 %v279
  %v1403 = vunpack.c.h.b16 %v279
  %v1404 = vunpack.c.l.b16 %v280
  %v1405 = vunpack.c.h.b16 %v280
  %v1406 = vunpack.c.l.b16 %v281
  %v1407 = vunpack.c.h.b16 %v281
  %v1408 = vunpack.c.l.b16 %v282
  %v1409 = vunpack.c.h.b16 %v282
  %v1410 = vunpack.c.l.b16 %v283
  %v1411 = vunpack.c.h.b16 %v283
  %v1412 = vunpack.c.l.b16 %v284
  %v1413 = vunpack.c.h.b16 %v284
  %v1414 = vunpack.c.l.b16 %v285
  %v1415 = vunpack.c.h.b16 %v285
  %v1416 = vunpack.c.l.b16 %v286
  %v1417 = vunpack.c.h.b16 %v286
  %v1418 = vunpack.c.l.b16 %v287
  %v1419 = vunpack.c.h.b16 %v287
  %v1420 = vunpack.c.l.b16 %v288
  %v1421 = vunpack.c.h.b16 %v288
  %v1422 = vunpack.c.l.b16 %v289
  %v1423 = vunpack.c.h.b16 %v289
  %v1424 = vunpack.c.l.b16 %v290
  %v1425 = vunpack.c.h.b16 %v290
  %v1426 = vunpack.c.l.b16 %v291
  %v1427 = vunpack.c.h.b16 %v291
  %v1428 = vunpack.c.l.b16 %v292
  %v1429 = vunpack.c.h.b16 %v292
  %v1430 = vunpack.c.l.b16 %v293
  %v1431 = vunpack.c.h.b16 %v293
  %v1432 = vunpack.c.l.b16 %v294
  %v1433 = vunpack.c.h.b16 %v294
  %v1434 = vunpack.c.l.b16 %v295
  %v1435 = vunpack.c.h.b16 %v295
  %v1436 = vunpack.c.l.b16 %v296
  %v1437 = vunpack.c.h.b16 %v296
  %v1438 = vunpack.c.l.b16 %v297
  %v1439 = vunpack.c.h.b16 %v297
  %v1440 = vunpack.c.l.b16 %v298
  %v1441 = vunpack.c.h.b16 %v298
  %v1442 = vunpack.c.l.b16 %v299
  %v1443 = vunpack.c.h.b16 %v299
  %v1444 = vunpack.c.l.b16 %v300
  %v1445 = vunpack.c.h.b16 %v300
  %v1446 = vunpack.c.l.b16 %v301
  %v1447 = vunpack.c.h.b16 %v301
  %v1448 = vunpack.c.l.b16 %v302
  %v1449 = vunpack.c.h.b16 %v302
  %v1450 = vunpack.c.l.b16 %v303
  %v1451 = vunpack.c.h.b16 %v303
  %v1452 = vunpack.c.l.b16 %v304
  %v1453 = vunpack.c.h.b16 %v304
  %v1454 = vunpack.c.l.b16 %v305
  %v1455 = vunpack.c.h.b16 %v305
  %v1456 = vunpack.c.l.b16 %v306
  %v1457 = vunpack.c.h.b16 %v306
  %v1458 = vunpack.c.l.b16 %v307
  %v1459 = vunpack.c.h.b16 %v307
  %v1460 = vunpack.c.l.b16 %v308
  %v1461 = vunpack.c.h.b16 %v308
  %v1462 = vunpack.c.l.b16 %v309
  %v1463 = vunpack.c.h.b16 %v309
  %v1464 = vunpack.c.l.b16 %v310
  %v1465 = vunpack.c.h.b16 %v310
  %v1466 = vunpack.c.l.b16 %v311
  %v1467 = vunpack.c.h.b16 %v311
  %v1468 = vunpack.c.l.b16 %v312
  %v1469 = vunpack.c.h.b16 %v312
  %v1470 = vunpack.c.l.b16 %v313
  %v1471 = vunpack.c.h.b16 %v313
  %v1472 = vunpack.c.l.b16 %v314
  %v1473 = vunpack.c.h.b16 %v314
  %v1474 = vunpack.c.l.b16 %v315
  %v1475 = vunpack.c.h.b16 %v315
  %v1476 = vunpack.c.l.b16 %v316
  %v1477 = vunpack.c.h.b16 %v316
  %v1478 = vunpack.c.l.b16 %v317
  %v1479 = vunpack.c.h.b16 %v317
  %v1480 = vunpack.c.l.b16 %v318
  %v1481 = vunpack.c.h.b16 %v318
  %v1482 = vunpack.c.l.b16 %v319
  %v1483 = vunpack.c.h.b16 %v319
  %v1484 = vunpack.c.l.b16 %v320
  %v1485 = vunpack.c.h.b16 %v320
  %v1486 = vunpack.c.l.b16 %v321
  %v1487 = vunpack.c.h.b16 %v321
  %v1488 = vunpack.c.l.b16 %v322
  %v1489 = vunpack.c.h.b16 %v322
  %v1490 = vunpack.c.l.b16 %v323
  %v1491 = vunpack.c.h.b16 %v323
  %v1492 = vunpack.c.l.b16 %v324
  %v1493 = vunpack.c.h.b16 %v324
  %v1494 = vunpack.c.l.b16 %v325
  %v1495 = vunpack.c.h.b16 %v325
  %v1496 = vunpack.c.l.b16 %v326
  %v1497 = vunpack.c.h.b16 %v326
  %v1498 = vunpack.c.l.b16 %v327
  %v1499 = vunpack.c.h.b16 %v327
  %v1500 = vunpack.c.l.b16 %v328
  %v1501 = vunpack.c.h.b16 %v328
  %v1502 = vunpack.c.l.b16 %v329
  %v1503 = vunpack.c.h.b16 %v329
  %v1504 = vunpack.c.l.b16 %v330
  %v1505 = vunpack.c.h.b16 %v330
  %v1506 = vunpack.c.l.b16 %v331
  %v1507 = vunpack.c.h.b16 %v331
  %v1508 = vunpack.c.l.b16 %v332
  %v1509 = vunpack.c.h.b16 %v332
  %v1510 = vunpack.c.l.b16 %v333
  %v1511 = vunpack.c.h.b16 %v333
  %v1512 = vunpack.c.l.b16 %v334
  %v1513 = vunpack.c.h.b16 %v334
  %v1514 = vunpack.c.l.b16 %v335
  %v1515 = vunpack.c.h.b16 %v335
  %v1516 = vunpack.c.l.b16 %v336
  %v1517 = vunpack.c.h.b16 %v336
  %v1518 = vunpack.c.l.b16 %v337
  %v1519 = vunpack.c.h.b16 %v337
  %v1520 = vunpack.c.l.b16 %v338
  %v1521 = vunpack.c.h.b16 %v338
  %v1522 = vunpack.c.l.b16 %v339
  %v1523 = vunpack.c.h.b16 %v339
  %v1524 = vunpack.c.l.b16 %v340
  %v1525 = vunpack.c.h.b16 %v340
  %v1526 = vunpack.c.l.b16 %v341
  %v1527 = vunpack.c.h.b16 %v341
  %v1528 = vunpack.c.l.b16 %v342
  %v1529 = vunpack.c.h.b16 %v342
  %v1530 = vunpack.c.l.b16 %v343
  %v1531 = vunpack.c.h.b16 %v343
  %v1532 = vunpack.c.l.b16 %v344
  %v1533 = vunpack.c.h.b16 %v344
  %v1534 = vunpack.c.l.b16 %v345
  %v1535 = vunpack.c.h.b16 %v345
  %v1536 = vunpack.c.l.b16 %v346
  %v1537 = vunpack.c.h.b16 %v346
  %v1538 = vunpack.c.l.b16 %v347
  %v1539 = vunpack.c.h.b16 %v347
  %v1540 = vunpack.c.l.b16 %v348
  %v1541 = vunpack.c.h.b16 %v348
  %v1542 = vunpack.c.l.b16 %v349
  %v1543 = vunpack.c.h.b16 %v349
  %v1544 = vunpack.c.l.b16 %v350
  %v1545 = vunpack.c.h.b16 %v350
  %v1546 = vunpack.c.l.b16 %v351
  %v1547 = vunpack.c.h.b16 %v351
  %v1548 = vunpack.c.l.b16 %v352
  %v1549 = vunpack.c.h.b16 %v352
  %v1550 = vunpack.c.l.b16 %v353
  %v1551 = vunpack.c.h.b16 %v353
  %v1552 = vunpack.c.l.b16 %v354
  %v1553 = vunpack.c.h.b16 %v354
  %v1554 = vunpack.c.l.b16 %v355
  %v1555 = vunpack.c.h.b16 %v355
  %v1556 = vunpack.c.l.b16 %v356
  %v1557 = vunpack.c.h.b16 %v356
  %v1558 = vunpack.c.l.b16 %v357
  %v1559 = vunpack.c.h.b16 %v357
  %v1560 = vunpack.c.l.b16 %v358
  %v1561 = vunpack.c.h.b16 %v358
  %v1562 = vunpack.c.l.b16 %v359
  %v1563 = vunpack.c.h.b16 %v359
  %v1564 = vunpack.c.l.b16 %v360
  %v1565 = vunpack.c.h.b16 %v360
  %v1566 = vunpack.c.l.b16 %v361
  %v1567 = vunpack.c.h.b16 %v361
  %v1568 = vunpack.c.l.b16 %v362
  %v1569 = vunpack.c.h.b16 %v362
  %v1570 = vunpack.c.l.b16 %v363
  %v1571 = vunpack.c.h.b16 %v363
  %v1572 = vunpack.c.l.b16 %v364
  %v1573 = vunpack.c.h.b16 %v364
  %v1574 = vpack.c.b16 %v1000, %v998
  %v1575 = vpack.c.b16 %v1001, %v999
  %v1576 = vpack.c.b16 %v1004, %v1002
  %v1577 = vpack.c.b16 %v1005, %v1003
  %v1578 = vpack.c.b16 %v1008, %v1006
  %v1579 = vpack.c.b16 %v1009, %v1007
  %v1580 = vpack.c.b16 %v1012, %v1010
  %v1581 = vpack.c.b16 %v1013, %v1011
  %v1582 = vpack.c.b16 %v1016, %v1014
  %v1583 = vpack.c.b16 %v1017, %v1015
  %v1584 = vpack.c.b16 %v1020, %v1018
  %v1585 = vpack.c.b16 %v1021, %v1019
  %v1586 = vpack.c.b16 %v1024, %v1022
  %v1587 = vpack.c.b16 %v1025, %v1023
  %v1588 = vpack.c.b16 %v1028, %v1026
  %v1589 = vpack.c.b16 %v1029, %v1027
  %v1590 = vpack.c.b16 %v1032, %v1030
  %v1591 = vpack.c.b16 %v1033, %v1031
  %v1592 = vpack.c.b16 %v1036, %v1034
  %v1593 = vpack.c.b16 %v1037, %v1035
  %v1594 = vpack.c.b16 %v1040, %v1038
  %v1595 = vpack.c.b16 %v1041, %v1039
  %v1596 = vpack.c.b16 %v1044, %v1042
  %v1597 = vpack.c.b16 %v1045, %v1043
  %v1598 = vpack.c.b16 %v1048, %v1046
  %v1599 = vpack.c.b16 %v1049, %v1047
  %v1600 = vpack.c.b16 %v1052, %v1050
  %v1601 = vpack.c.b16 %v1053, %v1051
  %v1602 = vpack.c.b16 %v1056, %v1054
  %v1603 = vpack.c.b16 %v1057, %v1055
  %v1604 = vpack.c.b16 %v1060, %v1058
  %v1605 = vpack.c.b16 %v1061, %v1059
  %v1606 = vpack.c.b16 %v1064, %v1062
  %v1607 = vpack.c.b16 %v1065, %v1063
  %v1608 = vpack.c.b16 %v1068, %v1066
  %v1609 = vpack.c.b16 %v1069, %v1067
  %v1610 = vpack.c.b16 %v1072, %v1070
  %v1611 = vpack.c.b16 %v1073, %v1071
  %v1612 = vpack.c.b16 %v1076, %v1074
  %v1613 = vpack.c.b16 %v1077, %v1075
  %v1614 = vpack.c.b16 %v1080, %v1078
  %v1615 = vpack.c.b16 %v1081, %v1079
  %v1616 = vpack.c.b16 %v1084, %v1082
  %v1617 = vpack.c.b16 %v1085, %v1083
  %v1618 = vpack.c.b16 %v1088, %v1086
  %v1619 = vpack.c.b16 %v1089, %v1087
  %v1620 = vpack.c.b16 %v1092, %v1090
  %v1621 = vpack.c.b16 %v1093, %v1091
  %v1622 = vpack.c.b16 %v1096, %v1094
  %v1623 = vpack.c.b16 %v1097, %v1095
  %v1624 = vpack.c.b16 %v1100, %v1098
  %v1625 = vpack.c.b16 %v1101, %v1099
  %v1626 = vpack.c.b16 %v1104, %v1102
  %v1627 = vpack.c.b16 %v1105, %v1103
  %v1628 = vpack.c.b16 %v1108, %v1106
  %v1629 = vpack.c.b16 %v1109, %v1107
  %v1630 = vpack.c.b16 %v1112, %v1110
  %v1631 = vpack.c.b16 %v1113, %v1111
  %v1632 = vpack.c.b16 %v1116, %v1114
  %v1633 = vpack.c.b16 %v1117, %v1115
  %v1634 = vpack.c.b16 %v1120, %v1118
  %v1635 = vpack.c.b16 %v1121, %v1119
  %v1636 = vpack.c.b16 %v1124, %v1122
  %v1637 = vpack.c.b16 %v1125, %v1123
  %v1638 = vpack.c.b16 %v1128, %v1126
  %v1639 = vpack.c.b16 %v1129, %v1127
  %v1640 = vpack.c.b16 %v1132, %v1130
  %v1641 = vpack.c.b16 %v1133, %v1131
  %v1642 = vpack.c.b16 %v1136, %v1134
  %v1643 = vpack.c.b16 %v1137, %v1135
  %v1644 = vpack.c.b16 %v1140, %v1138
  %v1645 = vpack.c.b16 %v1141, %v1139
  %v1646 = vpack.c.b16 %v1144, %v1142
  %v1647 = vpack.c.b16 %v1145, %v1143
  %v1648 = vpack.c.b16 %v1148, %v1146
  %v1649 = vpack.c.b16 %v1149, %v1147
  %v1650 = vpack.c.b16 %v1152, %v1150
  %v1651 = vpack.c.b16 %v1153, %v1151
  %v1652 = vpack.c.b16 %v1156, %v1154
  %v1653 = vpack.c.b16 %v1157, %v1155
  %v1654 = vpack.c.b16 %v1160, %v1158
  %v1655 = vpack.c.b16 %v1161, %v1159
  %v1656 = vpack.c.b16 %v1164, %v1162
  %v1657 = vpack.c.b16 %v1165, %v1163
  %v1658 = vpack.c.b16 %v1168, %v1166
  %v1659 = vpack.c.b16 %v1169, %v1167
  %v1660 = vpack.c.b16 %v1172, %v1170
  %v1661 = vpack.c.b16 %v1173, %v1171
  %v1662 = vpack.c.b16 %v1176, %v1174
  %v1663 = vpack.c.b16 %v1177, %v1175
  %v1664 = vpack.c.b16 %v1180, %v1178
  %v1665 = vpack.c.b16 %v1181, %v1179
  %v1666 = vpack.c.b16 %v1184, %v1182
  %v1667 = vpack.c.b16 %v1185, %v1183
  %v1668 = vpack.c.b16 %v1188, %v1186
  %v1669 = vpack.c.b16 %v1189, %v1187
  %v1670 = vpack.c.b16 %v1192, %v1190
  %v1671 = vpack.c.b16 %v1193, %v1191
  %v1672 = vpack.c.b16 %v1196, %v1194
  %v1673 = vpack.c.b16 %v1197, %v1195
  %v1674 = vpack.c.b16 %v1200, %v1198
  %v1675 = vpack.c.b16 %v1201, %v1199
  %v1676 = vpack.c.b16 %v1204, %v1202
  %v1677 = vpack.c.b16 %v1205, %v1203
  %v1678 = vpack.c.b16 %v1208, %v1206
  %v1679 = vpack.c.b16 %v1209, %v1207
  %v1680 = vpack.c.b16 %v1212, %v1210
  %v1681 = vpack.c.b16 %v1213, %v1211
  %v1682 = vpack.c.b16 %v1216, %v1214
  %v1683 = vpack.c.b16 %v1217, %v1215
  %v1684 = vpack.c.b16 %v1220, %v1218
  %v1685 = vpack.c.b16 %v1221, %v1219
  %v1686 = vpack.c.b16 %v1224, %v1222
  %v1687 = vpack.c.b16 %v1225, %v1223
  %v1688 = vpack.c.b16 %v1228, %v1226
  %v1689 = vpack.c.b16 %v1229, %v1227
  %v1690 = vpack.c.b16 %v1232, %v1230
  %v1691 = vpack.c.b16 %v1233, %v1231
  %v1692 = vpack.c.b16 %v1236, %v1234
  %v1693 = vpack.c.b16 %v1237, %v1235
  %v1694 = vpack.c.b16 %v1240, %v1238
  %v1695 = vpack.c.b16 %v1241, %v1239
  %v1696 = vpack.c.b16 %v1244, %v1242
  %v1697 = vpack.c.b16 %v1245, %v1243
  %v1698 = vpack.c.b16 %v1248, %v1246
  %v1699 = vpack.c.b16 %v1249, %v1247
  %v1700 = vpack.c.b16 %v1252, %v1250
  %v1701 = vpack.c.b16 %v1253, %v1251
  %v1702 = vpack.c.b16 %v1256, %v1254
  %v1703 = vpack.c.b16 %v1257, %v1255
  %v1704 = vpack.c.b16 %v1260, %v1258
  %v1705 = vpack.c.b16 %v1261, %v1259
  %v1706 = vpack.c.b16 %v1264, %v1262
  %v1707 = vpack.c.b16 %v1265, %v1263
  %v1708 = vpack.c.b16 %v1268, %v1266
  %v1709 = vpack.c.b16 %v1269, %v1267
  %v1710 = vpack.c.b16 %v1272, %v1270
  %v1711 = vpack.c.b16 %v1273, %v1271
  %v1712 = vpack.c.b16 %v1276, %v1274
  %v1713 = vpack.c.b16 %v1277, %v1275
  %v1714 = vpack.c.b16 %v1280, %v1278
  %v1715 = vpack.c.b16 %v1281, %v1279
  %v1716 = vpack.c.b16 %v1284, %v1282
  %v1717 = vpack.c.b16 %v1285, %v1283
  %v1718 = vpack.c.b16 %v1288, %v1286
  %v1719 = vpack.c.b16 %v1289, %v1287
  %v1720 = vpack.c.b16 %v1292, %v1290
  %v1721 = vpack.c.b16 %v1293, %v1291
  %v1722 = vpack.c.b16 %v1296, %v1294
  %v1723 = vpack.c.b16 %v1297, %v1295
  %v1724 = vpack.c.b16 %v1300, %v1298
  %v1725 = vpack.c.b16 %v1301, %v1299
  %v1726 = vpack.c.b16 %v1304, %v1302
  %v1727 = vpack.c.b16 %v1305, %v1303
  %v1728 = vpack.c.b16 %v1308, %v1306
  %v1729 = vpack.c.b16 %v1309, %v1307
  %v1730 = vpack.c.b16 %v1312, %v1310
  %v1731 = vpack.c.b16 %v1313, %v1311
  %v1732 = vpack.c.b16 %v1316, %v1314
  %v1733 = vpack.c.b16 %v1317, %v1315
  %v1734 = vpack.c.b16 %v1320, %v1318
  %v1735 = vpack.c.b16 %v1321, %v1319
  %v1736 = vpack.c.b16 %v1324, %v1322
  %v1737 = vpack.c.b16 %v1325, %v1323
  %v1738 = vpack.c.b16 %v1328, %v1326
  %v1739 = vpack.c.b16 %v1329, %v1327
  %v1740 = vpack.c.b16 %v1332, %v1330
  %v1741 = vpack.c.b16 %v1333, %v1331
  %v1742 = vpack.c.b16 %v1336, %v1334
  %v1743 = vpack.c.b16 %v1337, %v1335
  %v1744 = vpack.c.b16 %v1340, %v1338
  %v1745 = vpack.c.b16 %v1341, %v1339
  %v1746 = vpack.c.b16 %v1344, %v1342
  %v1747 = vpack.c.b16 %v1345, %v1343
  %v1748 = vpack.c.b16 %v1348, %v1346
  %v1749 = vpack.c.b16 %v1349, %v1347
  %v1750 = vpack.c.b16 %v1352, %v1350
  %v1751 = vpack.c.b16 %v1353, %v1351
  %v1752 = vpack.c.b16 %v1356, %v1354
  %v1753 = vpack.c.b16 %v1357, %v1355
  %v1754 = vpack.c.b16 %v1360, %v1358
  %v1755 = vpack.c.b16 %v1361, %v1359
  %v1756 = vpack.c.b16 %v1364, %v1362
  %v1757 = vpack.c.b16 %v1365, %v1363
  %v1758 = vpack.c.b16 %v1368, %v1366
  %v1759 = vpack.c.b16 %v1369, %v1367
  %v1760 = vpack.c.b16 %v1372, %v1370
  %v1761 = vpack.c.b16 %v1373, %v1371
  %v1762 = vpack.c.b16 %v1376, %v1374
  %v1763 = vpack.c.b16 %v1377, %v1375
  %v1764 = vpack.c.b16 %v1380, %v1378
  %v1765 = vpack.c.b16 %v1381, %v1379
  %v1766 = vpack.c.b16 %v1384, %v1382
  %v1767 = vpack.c.b16 %v1385, %v1383
  %v1768 = vpack.c.b16 %v1388, %v1386
  %v1769 = vpack.c.b16 %v1389, %v1387
  %v1770 = vpack.c.b16 %v1392, %v1390
  %v1771 = vpack.c.b16 %v1393, %v1391
  %v1772 = vpack.c.b16 %v1396, %v1394
  %v1773 = vpack.c.b16 %v1397, %v1395
  %v1774 = vpack.c.b16 %v1400, %v1398
  %v1775 = vpack.c.b16 %v1401, %v1399
  %v1776 = vpack.c.b16 %v1404, %v1402
  %v1777 = vpack.c.b16 %v1405, %v1403
  %v1778 = vpack.c.b16 %v1408, %v1406
  %v1779 = vpack.c.b16 %v1409, %v1407
  %v1780 = vpack.c.b16 %v1412, %v1410
  %v1781 = vpack.c.b16 %v1413, %v1411
  %v1782 = vpack.c.b16 %v1416, %v1414
  %v1783 = vpack.c.b16 %v1417, %v1415
  %v1784 = vpack.c.b16 %v1420, %v1418
  %v1785 = vpack.c.b16 %v1421, %v1419
  %v1786 = vpack.c.b16 %v1424, %v1422
  %v1787 = vpack.c.b16 %v1425, %v1423
  %v1788 = vpack.c.b16 %v1428, %v1426
  %v1789 = vpack.c.b16 %v1429, %v1427
  %v1790 = vpack.c.b16 %v1432, %v1430
  %v1791 = vpack.c.b16 %v1433, %v1431
  %v1792 = vpack.c.b16 %v1436, %v1434
  %v1793 = vpack.c.b16 %v1437, %v1435
  %v1794 = vpack.c.b16 %v1440, %v1438
  %v1795 = vpack.c.b16 %v1441, %v1439
  %v1796 = vpack.c.b16 %v1444, %v1442
  %v1797 = vpack.c.b16 %v1445, %v1443
  %v1798 = vpack.c.b16 %v1448, %v1446
  %v1799 = vpack.c.b16 %v1449, %v1447
  %v1800 = vpack.c.b16 %v1452, %v1450
  %v1801 = vpack.c.b16 %v1453, %v1451
  %v1802 = vpack.c.b16 %v1456, %v1454
  %v1803 = vpack.c.b16 %v1457, %v1455
  %v1804 = vpack.c.b16 %v1460, %v1458
  %v1805 = vpack.c.b16 %v1461, %v1459
  %v1806 = vpack.c.b16 %v1464, %v1462
  %v1807 = vpack.c.b16 %v1465, %v1463
  %v1808 = vpack.c.b16 %v1468, %v1466
  %v1809 = vpack.c.b16 %v1469, %v1467
  %v1810 = vpack.c.b16 %v1472, %v1470
  %v1811 = vpack.c.b16 %v1473, %v1471
  %v1812 = vpack.c.b16 %v1476, %v1474
  %v1813 = vpack.c.b16 %v1477, %v1475
  %v1814 = vpack.c.b16 %v1480, %v1478
  %v1815 = vpack.c.b16 %v1481, %v1479
  %v1816 = vpack.c.b16 %v1484, %v1482
  %v1817 = vpack.c.b16 %v1485, %v1483
  %v1818 = vpack.c.b16 %v1488, %v1486
  %v1819 = vpack.c.b16 %v1489, %v1487
  %v1820 = vpack.c.b16 %v1492, %v1490
  %v1821 = vpack.c.b16 %v1493, %v1491
  %v1822 = vpack.c.b16 %v1496, %v1494
  %v1823 = vpack.c.b16 %v1497, %v1495
  %v1824 = vpack.c.b16 %v1500, %v1498
  %v1825 = vpack.c.b16 %v1501, %v1499
  %v1826 = vpack.c.b16 %v1504, %v1502
  %v1827 = vpack.c.b16 %v1505, %v1503
  %v1828 = vpack.c.b16 %v1508, %v1506
  %v1829 = vpack.c.b16 %v1509, %v1507
  %v1830 = vpack.c.b16 %v1512, %v1510
  %v1831 = vpack.c.b16 %v1513, %v1511
  %v1832 = vpack.c.b16 %v1516, %v1514
  %v1833 = vpack.c.b16 %v1517, %v1515
  %v1834 = vpack.c.b16 %v1520, %v1518
  %v1835 = vpack.c.b16 %v1521, %v1519
  %v1836 = vpack.c.b16 %v1524, %v1522
  %v1837 = vpack.c.b16 %v1525, %v1523
  %v1838 = vpack.c.b16 %v1528, %v1526
  %v1839 = vpack.c.b16 %v1529, %v1527
  %v1840 = vpack.c.b16 %v1532, %v1530
  %v1841 = vpack.c.b16 %v1533, %v1531
  %v1842 = vpack.c.b16 %v1536, %v1534
  %v1843 = vpack.c.b16 %v1537, %v1535
  %v1844 = vpack.c.b16 %v1540, %v1538
  %v1845 = vpack.c.b16 %v1541, %v1539
  %v1846 = vpack.c.b16 %v1544, %v1542
  %v1847 = vpack.c.b16 %v1545, %v1543
  %v1848 = vpack.c.b16 %v1548, %v1546
  %v1849 = vpack.c.b16 %v1549, %v1547
  %v1850 = vpack.c.b16 %v1552, %v1550
  %v1851 = vpack.c.b16 %v1553, %v1551
  %v1852 = vpack.c.b16 %v1556, %v1554
  %v1853 = vpack.c.b16 %v1557, %v1555
  %v1854 = vpack.c.b16 %v1560, %v1558
  %v1855 = vpack.c.b16 %v1561, %v1559
  %v1856 = vpack.c.b16 %v1564, %v1562
  %v1857 = vpack.c.b16 %v1565, %v1563
  %v1858 = vpack.c.b16 %v1568, %v1566
  %v1859 = vpack.c.b16 %v1569, %v1567
  %v1860 = vpack.c.b16 %v1572, %v1570
  %v1861 = vpack.c.b16 %v1573, %v1571
  %2150 = vmatprep.subr.bf16.mxu0 %v1589
  %2151 = vmatpush1.bf16.msra.mxu0 %v1588
  %2152 = vmatprep.subr.bf16.mxu0 %v1587
  %2153 = vmatpush1.bf16.msra.mxu0 %v1586
  %2154 = vmatprep.subr.bf16.mxu0 %v1585
  %2155 = vmatpush1.bf16.msra.mxu0 %v1584
  %2156 = vmatprep.subr.bf16.mxu0 %v1583
  %2157 = vmatpush1.bf16.msra.mxu0 %v1582
  %2158 = vmatprep.subr.bf16.mxu0 %v1581
  %2159 = vmatpush1.bf16.msra.mxu0 %v1580
  %2160 = vmatprep.subr.bf16.mxu0 %v1579
  %2161 = vmatpush1.bf16.msra.mxu0 %v1578
  %2162 = vmatprep.subr.bf16.mxu0 %v1577
  %2163 = vmatpush1.bf16.msra.mxu0 %v1576
  %2164 = vmatprep.subr.bf16.mxu0 %v1575
  %2165 = vmatpush1.bf16.msra.mxu0 %v1574
  %2166 = vmatprep.subr.bf16.mxu0 %v1605
  %2167 = vmatpush2.bf16.msra.mxu0 %v1604
  %2168 = vmatprep.subr.bf16.mxu0 %v1603
  %2169 = vmatpush2.bf16.msra.mxu0 %v1602
  %2170 = vmatprep.subr.bf16.mxu0 %v1601
  %2171 = vmatpush2.bf16.msra.mxu0 %v1600
  %2172 = vmatprep.subr.bf16.mxu0 %v1599
  %2173 = vmatpush2.bf16.msra.mxu0 %v1598
  %2174 = vmatprep.subr.bf16.mxu0 %v1597
  %2175 = vmatpush2.bf16.msra.mxu0 %v1596
  %2176 = vmatprep.subr.bf16.mxu0 %v1595
  %2177 = vmatpush2.bf16.msra.mxu0 %v1594
  %2178 = vmatprep.subr.bf16.mxu0 %v1593
  %2179 = vmatpush2.bf16.msra.mxu0 %v1592
  %2180 = vmatprep.subr.bf16.mxu0 %v1591
  %2181 = vmatpush2.bf16.msra.mxu0 %v1590
  %2182 = vmatprep.mubr.bf16.mxu0 %v567
  %2183 = vmatmul.mubr.bf16.gmra.mxu0 %v566
  %v2184 = vpop.f32.mrf.mxu0
  %v2185 = vadd.f32 %v370, %v2184
  %v2186 = vpop.f32.mrf.mxu0
  %v2187 = vadd.f32 %v374, %v2186
  %v2188 = vpop.f32.mrf.mxu0
  %v2189 = vadd.f32 %v370, %v2188
  %v2190 = vpop.f32.mrf.mxu0
  %v2191 = vadd.f32 %v374, %v2190
  %2192 = vmatprep.mubr.bf16.mxu0 %v585
  %2193 = vmatmul.mubr.bf16.gmra.mxu0 %v584
  %v2194 = vpop.f32.mrf.mxu0
  %v2195 = vadd.f32 %v370, %v2194
  %v2196 = vpop.f32.mrf.mxu0
  %v2197 = vadd.f32 %v374, %v2196
  %v2198 = vpop.f32.mrf.mxu0
  %v2199 = vadd.f32 %v370, %v2198
  %v2200 = vpop.f32.mrf.mxu0
  %v2201 = vadd.f32 %v374, %v2200
  %2202 = vmatprep.mubr.bf16.mxu0 %v603
  %2203 = vmatmul.mubr.bf16.gmra.mxu0 %v602
  %v2204 = vpop.f32.mrf.mxu0
  %v2205 = vadd.f32 %v370, %v2204
  %v2206 = vpop.f32.mrf.mxu0
  %v2207 = vadd.f32 %v374, %v2206
  %v2208 = vpop.f32.mrf.mxu0
  %v2209 = vadd.f32 %v370, %v2208
  %v2210 = vpop.f32.mrf.mxu0
  %v2211 = vadd.f32 %v374, %v2210
  %2212 = vmatprep.mubr.bf16.mxu0 %v621
  %2213 = vmatmul.mubr.bf16.gmra.mxu0 %v620
  %v2214 = vpop.f32.mrf.mxu0
  %v2215 = vadd.f32 %v370, %v2214
  %v2216 = vpop.f32.mrf.mxu0
  %v2217 = vadd.f32 %v374, %v2216
  %v2218 = vpop.f32.mrf.mxu0
  %v2219 = vpop.f32.mrf.mxu0
  %2220 = vdwg.mxu0
  %2221 = vmatprep.subr.bf16.mxu0 %v1621
  %2222 = vmatpush1.bf16.msra.mxu0 %v1620
  %2223 = vmatprep.subr.bf16.mxu0 %v1619
  %2224 = vmatpush1.bf16.msra.mxu0 %v1618
  %2225 = vmatprep.subr.bf16.mxu0 %v1617
  %2226 = vmatpush1.bf16.msra.mxu0 %v1616
  %2227 = vmatprep.subr.bf16.mxu0 %v1615
  %2228 = vmatpush1.bf16.msra.mxu0 %v1614
  %2229 = vmatprep.subr.bf16.mxu0 %v1613
  %2230 = vmatpush1.bf16.msra.mxu0 %v1612
  %2231 = vmatprep.subr.bf16.mxu0 %v1611
  %2232 = vmatpush1.bf16.msra.mxu0 %v1610
  %2233 = vmatprep.subr.bf16.mxu0 %v1609
  %2234 = vmatpush1.bf16.msra.mxu0 %v1608
  %2235 = vmatprep.subr.bf16.mxu0 %v1607
  %2236 = vmatpush1.bf16.msra.mxu0 %v1606
  %2237 = vmatprep.subr.bf16.mxu0 %v1637
  %2238 = vmatpush2.bf16.msra.mxu0 %v1636
  %2239 = vmatprep.subr.bf16.mxu0 %v1635
  %2240 = vmatpush2.bf16.msra.mxu0 %v1634
  %2241 = vmatprep.subr.bf16.mxu0 %v1633
  %2242 = vmatpush2.bf16.msra.mxu0 %v1632
  %2243 = vmatprep.subr.bf16.mxu0 %v1631
  %2244 = vmatpush2.bf16.msra.mxu0 %v1630
  %2245 = vmatprep.subr.bf16.mxu0 %v1629
  %2246 = vmatpush2.bf16.msra.mxu0 %v1628
  %2247 = vmatprep.subr.bf16.mxu0 %v1627
  %2248 = vmatpush2.bf16.msra.mxu0 %v1626
  %2249 = vmatprep.subr.bf16.mxu0 %v1625
  %2250 = vmatpush2.bf16.msra.mxu0 %v1624
  %2251 = vmatprep.subr.bf16.mxu0 %v1623
  %2252 = vmatpush2.bf16.msra.mxu0 %v1622
  %2253 = vmatprep.mubr.bf16.mxu0 %v569
  %2254 = vmatmul.mubr.bf16.gmra.mxu0 %v568
  %v2255 = vpop.f32.mrf.mxu0
  %v2256 = vadd.f32 %v2185, %v2255
  %v2257 = vpop.f32.mrf.mxu0
  %v2258 = vadd.f32 %v2187, %v2257
  %v2259 = vpop.f32.mrf.mxu0
  %v2260 = vadd.f32 %v2189, %v2259
  %v2261 = vpop.f32.mrf.mxu0
  %v2262 = vadd.f32 %v2191, %v2261
  %2263 = vmatprep.mubr.bf16.mxu0 %v587
  %2264 = vmatmul.mubr.bf16.gmra.mxu0 %v586
  %v2265 = vpop.f32.mrf.mxu0
  %v2266 = vadd.f32 %v2195, %v2265
  %v2267 = vpop.f32.mrf.mxu0
  %v2268 = vadd.f32 %v2197, %v2267
  %v2269 = vpop.f32.mrf.mxu0
  %v2270 = vadd.f32 %v2199, %v2269
  %v2271 = vpop.f32.mrf.mxu0
  %v2272 = vadd.f32 %v2201, %v2271
  %2273 = vmatprep.mubr.bf16.mxu0 %v605
  %2274 = vmatmul.mubr.bf16.gmra.mxu0 %v604
  %v2275 = vpop.f32.mrf.mxu0
  %v2276 = vadd.f32 %v2205, %v2275
  %v2277 = vpop.f32.mrf.mxu0
  %v2278 = vadd.f32 %v2207, %v2277
  %v2279 = vpop.f32.mrf.mxu0
  %v2280 = vadd.f32 %v2209, %v2279
  %v2281 = vpop.f32.mrf.mxu0
  %v2282 = vadd.f32 %v2211, %v2281
  %2283 = vmatprep.mubr.bf16.mxu0 %v623
  %2284 = vmatmul.mubr.bf16.gmra.mxu0 %v622
  %v2285 = vpop.f32.mrf.mxu0
  %v2286 = vadd.f32 %v2215, %v2285
  %v2287 = vpop.f32.mrf.mxu0
  %v2288 = vadd.f32 %v2217, %v2287
  %v2289 = vpop.f32.mrf.mxu0
  %v2290 = vpop.f32.mrf.mxu0
  %2291 = vdwg.mxu0
  %2292 = vmatprep.subr.bf16.mxu0 %v1653
  %2293 = vmatpush1.bf16.msra.mxu0 %v1652
  %2294 = vmatprep.subr.bf16.mxu0 %v1651
  %2295 = vmatpush1.bf16.msra.mxu0 %v1650
  %2296 = vmatprep.subr.bf16.mxu0 %v1649
  %2297 = vmatpush1.bf16.msra.mxu0 %v1648
  %2298 = vmatprep.subr.bf16.mxu0 %v1647
  %2299 = vmatpush1.bf16.msra.mxu0 %v1646
  %2300 = vmatprep.subr.bf16.mxu0 %v1645
  %2301 = vmatpush1.bf16.msra.mxu0 %v1644
  %2302 = vmatprep.subr.bf16.mxu0 %v1643
  %2303 = vmatpush1.bf16.msra.mxu0 %v1642
  %2304 = vmatprep.subr.bf16.mxu0 %v1641
  %2305 = vmatpush1.bf16.msra.mxu0 %v1640
  %2306 = vmatprep.subr.bf16.mxu0 %v1639
  %2307 = vmatpush1.bf16.msra.mxu0 %v1638
  %2308 = vmatprep.subr.bf16.mxu0 %v1669
  %2309 = vmatpush2.bf16.msra.mxu0 %v1668
  %2310 = vmatprep.subr.bf16.mxu0 %v1667
  %2311 = vmatpush2.bf16.msra.mxu0 %v1666
  %2312 = vmatprep.subr.bf16.mxu0 %v1665
  %2313 = vmatpush2.bf16.msra.mxu0 %v1664
  %2314 = vmatprep.subr.bf16.mxu0 %v1663
  %2315 = vmatpush2.bf16.msra.mxu0 %v1662
  %2316 = vmatprep.subr.bf16.mxu0 %v1661
  %2317 = vmatpush2.bf16.msra.mxu0 %v1660
  %2318 = vmatprep.subr.bf16.mxu0 %v1659
  %2319 = vmatpush2.bf16.msra.mxu0 %v1658
  %2320 = vmatprep.subr.bf16.mxu0 %v1657
  %2321 = vmatpush2.bf16.msra.mxu0 %v1656
  %2322 = vmatprep.subr.bf16.mxu0 %v1655
  %2323 = vmatpush2.bf16.msra.mxu0 %v1654
  %2324 = vmatprep.mubr.bf16.mxu0 %v571
  %2325 = vmatmul.mubr.bf16.gmra.mxu0 %v570
  %v2326 = vpop.f32.mrf.mxu0
  %v2327 = vadd.f32 %v2256, %v2326
  %v2328 = vpop.f32.mrf.mxu0
  %v2329 = vadd.f32 %v2258, %v2328
  %v2330 = vpop.f32.mrf.mxu0
  %v2331 = vadd.f32 %v2260, %v2330
  %v2332 = vpop.f32.mrf.mxu0
  %v2333 = vadd.f32 %v2262, %v2332
  %2334 = vmatprep.mubr.bf16.mxu0 %v589
  %2335 = vmatmul.mubr.bf16.gmra.mxu0 %v588
  %v2336 = vpop.f32.mrf.mxu0
  %v2337 = vadd.f32 %v2266, %v2336
  %v2338 = vpop.f32.mrf.mxu0
  %v2339 = vadd.f32 %v2268, %v2338
  %v2340 = vpop.f32.mrf.mxu0
  %v2341 = vadd.f32 %v2270, %v2340
  %v2342 = vpop.f32.mrf.mxu0
  %v2343 = vadd.f32 %v2272, %v2342
  %2344 = vmatprep.mubr.bf16.mxu0 %v607
  %2345 = vmatmul.mubr.bf16.gmra.mxu0 %v606
  %v2346 = vpop.f32.mrf.mxu0
  %v2347 = vadd.f32 %v2276, %v2346
  %v2348 = vpop.f32.mrf.mxu0
  %v2349 = vadd.f32 %v2278, %v2348
  %v2350 = vpop.f32.mrf.mxu0
  %v2351 = vadd.f32 %v2280, %v2350
  %v2352 = vpop.f32.mrf.mxu0
  %v2353 = vadd.f32 %v2282, %v2352
  %2354 = vmatprep.mubr.bf16.mxu0 %v625
  %2355 = vmatmul.mubr.bf16.gmra.mxu0 %v624
  %v2356 = vpop.f32.mrf.mxu0
  %v2357 = vadd.f32 %v2286, %v2356
  %v2358 = vpop.f32.mrf.mxu0
  %v2359 = vadd.f32 %v2288, %v2358
  %v2360 = vpop.f32.mrf.mxu0
  %v2361 = vpop.f32.mrf.mxu0
  %2362 = vdwg.mxu0
  %2363 = vmatprep.subr.bf16.mxu0 %v1685
  %2364 = vmatpush1.bf16.msra.mxu0 %v1684
  %2365 = vmatprep.subr.bf16.mxu0 %v1683
  %2366 = vmatpush1.bf16.msra.mxu0 %v1682
  %2367 = vmatprep.subr.bf16.mxu0 %v1681
  %2368 = vmatpush1.bf16.msra.mxu0 %v1680
  %2369 = vmatprep.subr.bf16.mxu0 %v1679
  %2370 = vmatpush1.bf16.msra.mxu0 %v1678
  %2371 = vmatprep.subr.bf16.mxu0 %v1677
  %2372 = vmatpush1.bf16.msra.mxu0 %v1676
  %2373 = vmatprep.subr.bf16.mxu0 %v1675
  %2374 = vmatpush1.bf16.msra.mxu0 %v1674
  %2375 = vmatprep.subr.bf16.mxu0 %v1673
  %2376 = vmatpush1.bf16.msra.mxu0 %v1672
  %2377 = vmatprep.subr.bf16.mxu0 %v1671
  %2378 = vmatpush1.bf16.msra.mxu0 %v1670
  %2379 = vmatprep.subr.bf16.mxu0 %v1701
  %2380 = vmatpush2.bf16.msra.mxu0 %v1700
  %2381 = vmatprep.subr.bf16.mxu0 %v1699
  %2382 = vmatpush2.bf16.msra.mxu0 %v1698
  %2383 = vmatprep.subr.bf16.mxu0 %v1697
  %2384 = vmatpush2.bf16.msra.mxu0 %v1696
  %2385 = vmatprep.subr.bf16.mxu0 %v1695
  %2386 = vmatpush2.bf16.msra.mxu0 %v1694
  %2387 = vmatprep.subr.bf16.mxu0 %v1693
  %2388 = vmatpush2.bf16.msra.mxu0 %v1692
  %2389 = vmatprep.subr.bf16.mxu0 %v1691
  %2390 = vmatpush2.bf16.msra.mxu0 %v1690
  %2391 = vmatprep.subr.bf16.mxu0 %v1689
  %2392 = vmatpush2.bf16.msra.mxu0 %v1688
  %2393 = vmatprep.subr.bf16.mxu0 %v1687
  %2394 = vmatpush2.bf16.msra.mxu0 %v1686
  %2395 = vmatprep.mubr.bf16.mxu0 %v573
  %2396 = vmatmul.mubr.bf16.gmra.mxu0 %v572
  %v2397 = vpop.f32.mrf.mxu0
  %v2398 = vadd.f32 %v2327, %v2397
  %v2399 = vpop.f32.mrf.mxu0
  %v2400 = vadd.f32 %v2329, %v2399
  %v2401 = vpop.f32.mrf.mxu0
  %v2402 = vadd.f32 %v2331, %v2401
  %v2403 = vpop.f32.mrf.mxu0
  %v2404 = vadd.f32 %v2333, %v2403
  %2405 = vmatprep.mubr.bf16.mxu0 %v591
  %2406 = vmatmul.mubr.bf16.gmra.mxu0 %v590
  %v2407 = vpop.f32.mrf.mxu0
  %v2408 = vadd.f32 %v2337, %v2407
  %v2409 = vpop.f32.mrf.mxu0
  %v2410 = vadd.f32 %v2339, %v2409
  %v2411 = vpop.f32.mrf.mxu0
  %v2412 = vadd.f32 %v2341, %v2411
  %v2413 = vpop.f32.mrf.mxu0
  %v2414 = vadd.f32 %v2343, %v2413
  %2415 = vmatprep.mubr.bf16.mxu0 %v609
  %2416 = vmatmul.mubr.bf16.gmra.mxu0 %v608
  %v2417 = vpop.f32.mrf.mxu0
  %v2418 = vadd.f32 %v2347, %v2417
  %v2419 = vpop.f32.mrf.mxu0
  %v2420 = vadd.f32 %v2349, %v2419
  %v2421 = vpop.f32.mrf.mxu0
  %v2422 = vadd.f32 %v2351, %v2421
  %v2423 = vpop.f32.mrf.mxu0
  %v2424 = vadd.f32 %v2353, %v2423
  %2425 = vmatprep.mubr.bf16.mxu0 %v627
  %2426 = vmatmul.mubr.bf16.gmra.mxu0 %v626
  %v2427 = vpop.f32.mrf.mxu0
  %v2428 = vadd.f32 %v2357, %v2427
  %v2429 = vpop.f32.mrf.mxu0
  %v2430 = vadd.f32 %v2359, %v2429
  %v2431 = vpop.f32.mrf.mxu0
  %v2432 = vpop.f32.mrf.mxu0
  %2433 = vdwg.mxu0
  %2434 = vmatprep.subr.bf16.mxu0 %v1717
  %2435 = vmatpush1.bf16.msra.mxu0 %v1716
  %2436 = vmatprep.subr.bf16.mxu0 %v1715
  %2437 = vmatpush1.bf16.msra.mxu0 %v1714
  %2438 = vmatprep.subr.bf16.mxu0 %v1713
  %2439 = vmatpush1.bf16.msra.mxu0 %v1712
  %2440 = vmatprep.subr.bf16.mxu0 %v1711
  %2441 = vmatpush1.bf16.msra.mxu0 %v1710
  %2442 = vmatprep.subr.bf16.mxu0 %v1709
  %2443 = vmatpush1.bf16.msra.mxu0 %v1708
  %2444 = vmatprep.subr.bf16.mxu0 %v1707
  %2445 = vmatpush1.bf16.msra.mxu0 %v1706
  %2446 = vmatprep.subr.bf16.mxu0 %v1705
  %2447 = vmatpush1.bf16.msra.mxu0 %v1704
  %2448 = vmatprep.subr.bf16.mxu0 %v1703
  %2449 = vmatpush1.bf16.msra.mxu0 %v1702
  %2450 = vmatprep.subr.bf16.mxu0 %v1733
  %2451 = vmatpush2.bf16.msra.mxu0 %v1732
  %2452 = vmatprep.subr.bf16.mxu0 %v1731
  %2453 = vmatpush2.bf16.msra.mxu0 %v1730
  %2454 = vmatprep.subr.bf16.mxu0 %v1729
  %2455 = vmatpush2.bf16.msra.mxu0 %v1728
  %2456 = vmatprep.subr.bf16.mxu0 %v1727
  %2457 = vmatpush2.bf16.msra.mxu0 %v1726
  %2458 = vmatprep.subr.bf16.mxu0 %v1725
  %2459 = vmatpush2.bf16.msra.mxu0 %v1724
  %2460 = vmatprep.subr.bf16.mxu0 %v1723
  %2461 = vmatpush2.bf16.msra.mxu0 %v1722
  %2462 = vmatprep.subr.bf16.mxu0 %v1721
  %2463 = vmatpush2.bf16.msra.mxu0 %v1720
  %2464 = vmatprep.subr.bf16.mxu0 %v1719
  %2465 = vmatpush2.bf16.msra.mxu0 %v1718
  %2466 = vmatprep.mubr.bf16.mxu0 %v575
  %2467 = vmatmul.mubr.bf16.gmra.mxu0 %v574
  %v2468 = vpop.f32.mrf.mxu0
  %v2469 = vadd.f32 %v2398, %v2468
  %v2470 = vpop.f32.mrf.mxu0
  %v2471 = vadd.f32 %v2400, %v2470
  %v2472 = vpop.f32.mrf.mxu0
  %v2473 = vadd.f32 %v2402, %v2472
  %v2474 = vpop.f32.mrf.mxu0
  %v2475 = vadd.f32 %v2404, %v2474
  %2476 = vmatprep.mubr.bf16.mxu0 %v593
  %2477 = vmatmul.mubr.bf16.gmra.mxu0 %v592
  %v2478 = vpop.f32.mrf.mxu0
  %v2479 = vadd.f32 %v2408, %v2478
  %v2480 = vpop.f32.mrf.mxu0
  %v2481 = vadd.f32 %v2410, %v2480
  %v2482 = vpop.f32.mrf.mxu0
  %v2483 = vadd.f32 %v2412, %v2482
  %v2484 = vpop.f32.mrf.mxu0
  %v2485 = vadd.f32 %v2414, %v2484
  %2486 = vmatprep.mubr.bf16.mxu0 %v611
  %2487 = vmatmul.mubr.bf16.gmra.mxu0 %v610
  %v2488 = vpop.f32.mrf.mxu0
  %v2489 = vadd.f32 %v2418, %v2488
  %v2490 = vpop.f32.mrf.mxu0
  %v2491 = vadd.f32 %v2420, %v2490
  %v2492 = vpop.f32.mrf.mxu0
  %v2493 = vadd.f32 %v2422, %v2492
  %v2494 = vpop.f32.mrf.mxu0
  %v2495 = vadd.f32 %v2424, %v2494
  %2496 = vmatprep.mubr.bf16.mxu0 %v629
  %2497 = vmatmul.mubr.bf16.gmra.mxu0 %v628
  %v2498 = vpop.f32.mrf.mxu0
  %v2499 = vadd.f32 %v2428, %v2498
  %v2500 = vpop.f32.mrf.mxu0
  %v2501 = vadd.f32 %v2430, %v2500
  %v2502 = vpop.f32.mrf.mxu0
  %v2503 = vpop.f32.mrf.mxu0
  %2504 = vdwg.mxu0
  %2505 = vmatprep.subr.bf16.mxu0 %v1749
  %2506 = vmatpush1.bf16.msra.mxu0 %v1748
  %2507 = vmatprep.subr.bf16.mxu0 %v1747
  %2508 = vmatpush1.bf16.msra.mxu0 %v1746
  %2509 = vmatprep.subr.bf16.mxu0 %v1745
  %2510 = vmatpush1.bf16.msra.mxu0 %v1744
  %2511 = vmatprep.subr.bf16.mxu0 %v1743
  %2512 = vmatpush1.bf16.msra.mxu0 %v1742
  %2513 = vmatprep.subr.bf16.mxu0 %v1741
  %2514 = vmatpush1.bf16.msra.mxu0 %v1740
  %2515 = vmatprep.subr.bf16.mxu0 %v1739
  %2516 = vmatpush1.bf16.msra.mxu0 %v1738
  %2517 = vmatprep.subr.bf16.mxu0 %v1737
  %2518 = vmatpush1.bf16.msra.mxu0 %v1736
  %2519 = vmatprep.subr.bf16.mxu0 %v1735
  %2520 = vmatpush1.bf16.msra.mxu0 %v1734
  %2521 = vmatprep.subr.bf16.mxu0 %v1765
  %2522 = vmatpush2.bf16.msra.mxu0 %v1764
  %2523 = vmatprep.subr.bf16.mxu0 %v1763
  %2524 = vmatpush2.bf16.msra.mxu0 %v1762
  %2525 = vmatprep.subr.bf16.mxu0 %v1761
  %2526 = vmatpush2.bf16.msra.mxu0 %v1760
  %2527 = vmatprep.subr.bf16.mxu0 %v1759
  %2528 = vmatpush2.bf16.msra.mxu0 %v1758
  %2529 = vmatprep.subr.bf16.mxu0 %v1757
  %2530 = vmatpush2.bf16.msra.mxu0 %v1756
  %2531 = vmatprep.subr.bf16.mxu0 %v1755
  %2532 = vmatpush2.bf16.msra.mxu0 %v1754
  %2533 = vmatprep.subr.bf16.mxu0 %v1753
  %2534 = vmatpush2.bf16.msra.mxu0 %v1752
  %2535 = vmatprep.subr.bf16.mxu0 %v1751
  %2536 = vmatpush2.bf16.msra.mxu0 %v1750
  %2537 = vmatprep.mubr.bf16.mxu0 %v577
  %2538 = vmatmul.mubr.bf16.gmra.mxu0 %v576
  %v2539 = vpop.f32.mrf.mxu0
  %v2540 = vadd.f32 %v2469, %v2539
  %v2541 = vpop.f32.mrf.mxu0
  %v2542 = vadd.f32 %v2471, %v2541
  %v2543 = vpop.f32.mrf.mxu0
  %v2544 = vadd.f32 %v2473, %v2543
  %v2545 = vpop.f32.mrf.mxu0
  %v2546 = vadd.f32 %v2475, %v2545
  %2547 = vmatprep.mubr.bf16.mxu0 %v595
  %2548 = vmatmul.mubr.bf16.gmra.mxu0 %v594
  %v2549 = vpop.f32.mrf.mxu0
  %v2550 = vadd.f32 %v2479, %v2549
  %v2551 = vpop.f32.mrf.mxu0
  %v2552 = vadd.f32 %v2481, %v2551
  %v2553 = vpop.f32.mrf.mxu0
  %v2554 = vadd.f32 %v2483, %v2553
  %v2555 = vpop.f32.mrf.mxu0
  %v2556 = vadd.f32 %v2485, %v2555
  %2557 = vmatprep.mubr.bf16.mxu0 %v613
  %2558 = vmatmul.mubr.bf16.gmra.mxu0 %v612
  %v2559 = vpop.f32.mrf.mxu0
  %v2560 = vadd.f32 %v2489, %v2559
  %v2561 = vpop.f32.mrf.mxu0
  %v2562 = vadd.f32 %v2491, %v2561
  %v2563 = vpop.f32.mrf.mxu0
  %v2564 = vadd.f32 %v2493, %v2563
  %v2565 = vpop.f32.mrf.mxu0
  %v2566 = vadd.f32 %v2495, %v2565
  %2567 = vmatprep.mubr.bf16.mxu0 %v631
  %2568 = vmatmul.mubr.bf16.gmra.mxu0 %v630
  %v2569 = vpop.f32.mrf.mxu0
  %v2570 = vadd.f32 %v2499, %v2569
  %v2571 = vpop.f32.mrf.mxu0
  %v2572 = vadd.f32 %v2501, %v2571
  %v2573 = vpop.f32.mrf.mxu0
  %v2574 = vpop.f32.mrf.mxu0
  %2575 = vdwg.mxu0
  %2576 = vmatprep.subr.bf16.mxu0 %v1781
  %2577 = vmatpush1.bf16.msra.mxu0 %v1780
  %2578 = vmatprep.subr.bf16.mxu0 %v1779
  %2579 = vmatpush1.bf16.msra.mxu0 %v1778
  %2580 = vmatprep.subr.bf16.mxu0 %v1777
  %2581 = vmatpush1.bf16.msra.mxu0 %v1776
  %2582 = vmatprep.subr.bf16.mxu0 %v1775
  %2583 = vmatpush1.bf16.msra.mxu0 %v1774
  %2584 = vmatprep.subr.bf16.mxu0 %v1773
  %2585 = vmatpush1.bf16.msra.mxu0 %v1772
  %2586 = vmatprep.subr.bf16.mxu0 %v1771
  %2587 = vmatpush1.bf16.msra.mxu0 %v1770
  %2588 = vmatprep.subr.bf16.mxu0 %v1769
  %2589 = vmatpush1.bf16.msra.mxu0 %v1768
  %2590 = vmatprep.subr.bf16.mxu0 %v1767
  %2591 = vmatpush1.bf16.msra.mxu0 %v1766
  %2592 = vmatprep.subr.bf16.mxu0 %v1797
  %2593 = vmatpush2.bf16.msra.mxu0 %v1796
  %2594 = vmatprep.subr.bf16.mxu0 %v1795
  %2595 = vmatpush2.bf16.msra.mxu0 %v1794
  %2596 = vmatprep.subr.bf16.mxu0 %v1793
  %2597 = vmatpush2.bf16.msra.mxu0 %v1792
  %2598 = vmatprep.subr.bf16.mxu0 %v1791
  %2599 = vmatpush2.bf16.msra.mxu0 %v1790
  %2600 = vmatprep.subr.bf16.mxu0 %v1789
  %2601 = vmatpush2.bf16.msra.mxu0 %v1788
  %2602 = vmatprep.subr.bf16.mxu0 %v1787
  %2603 = vmatpush2.bf16.msra.mxu0 %v1786
  %2604 = vmatprep.subr.bf16.mxu0 %v1785
  %2605 = vmatpush2.bf16.msra.mxu0 %v1784
  %2606 = vmatprep.subr.bf16.mxu0 %v1783
  %2607 = vmatpush2.bf16.msra.mxu0 %v1782
  %2608 = vmatprep.mubr.bf16.mxu0 %v579
  %2609 = vmatmul.mubr.bf16.gmra.mxu0 %v578
  %v2610 = vpop.f32.mrf.mxu0
  %v2611 = vadd.f32 %v2540, %v2610
  %v2612 = vpop.f32.mrf.mxu0
  %v2613 = vadd.f32 %v2542, %v2612
  %v2614 = vpop.f32.mrf.mxu0
  %v2615 = vadd.f32 %v2544, %v2614
  %v2616 = vpop.f32.mrf.mxu0
  %v2617 = vadd.f32 %v2546, %v2616
  %2618 = vmatprep.mubr.bf16.mxu0 %v597
  %2619 = vmatmul.mubr.bf16.gmra.mxu0 %v596
  %v2620 = vpop.f32.mrf.mxu0
  %v2621 = vadd.f32 %v2550, %v2620
  %v2622 = vpop.f32.mrf.mxu0
  %v2623 = vadd.f32 %v2552, %v2622
  %v2624 = vpop.f32.mrf.mxu0
  %v2625 = vadd.f32 %v2554, %v2624
  %v2626 = vpop.f32.mrf.mxu0
  %v2627 = vadd.f32 %v2556, %v2626
  %2628 = vmatprep.mubr.bf16.mxu0 %v615
  %2629 = vmatmul.mubr.bf16.gmra.mxu0 %v614
  %v2630 = vpop.f32.mrf.mxu0
  %v2631 = vadd.f32 %v2560, %v2630
  %v2632 = vpop.f32.mrf.mxu0
  %v2633 = vadd.f32 %v2562, %v2632
  %v2634 = vpop.f32.mrf.mxu0
  %v2635 = vadd.f32 %v2564, %v2634
  %v2636 = vpop.f32.mrf.mxu0
  %v2637 = vadd.f32 %v2566, %v2636
  %2638 = vmatprep.mubr.bf16.mxu0 %v633
  %2639 = vmatmul.mubr.bf16.gmra.mxu0 %v632
  %v2640 = vpop.f32.mrf.mxu0
  %v2641 = vadd.f32 %v2570, %v2640
  %v2642 = vpop.f32.mrf.mxu0
  %v2643 = vadd.f32 %v2572, %v2642
  %v2644 = vpop.f32.mrf.mxu0
  %v2645 = vpop.f32.mrf.mxu0
  %2646 = vdwg.mxu0
  %2647 = vmatprep.subr.bf16.mxu0 %v1813
  %2648 = vmatpush1.bf16.msra.mxu0 %v1812
  %2649 = vmatprep.subr.bf16.mxu0 %v1811
  %2650 = vmatpush1.bf16.msra.mxu0 %v1810
  %2651 = vmatprep.subr.bf16.mxu0 %v1809
  %2652 = vmatpush1.bf16.msra.mxu0 %v1808
  %2653 = vmatprep.subr.bf16.mxu0 %v1807
  %2654 = vmatpush1.bf16.msra.mxu0 %v1806
  %2655 = vmatprep.subr.bf16.mxu0 %v1805
  %2656 = vmatpush1.bf16.msra.mxu0 %v1804
  %2657 = vmatprep.subr.bf16.mxu0 %v1803
  %2658 = vmatpush1.bf16.msra.mxu0 %v1802
  %2659 = vmatprep.subr.bf16.mxu0 %v1801
  %2660 = vmatpush1.bf16.msra.mxu0 %v1800
  %2661 = vmatprep.subr.bf16.mxu0 %v1799
  %2662 = vmatpush1.bf16.msra.mxu0 %v1798
  %2663 = vmatprep.subr.bf16.mxu0 %v1829
  %2664 = vmatpush2.bf16.msra.mxu0 %v1828
  %2665 = vmatprep.subr.bf16.mxu0 %v1827
  %2666 = vmatpush2.bf16.msra.mxu0 %v1826
  %2667 = vmatprep.subr.bf16.mxu0 %v1825
  %2668 = vmatpush2.bf16.msra.mxu0 %v1824
  %2669 = vmatprep.subr.bf16.mxu0 %v1823
  %2670 = vmatpush2.bf16.msra.mxu0 %v1822
  %2671 = vmatprep.subr.bf16.mxu0 %v1821
  %2672 = vmatpush2.bf16.msra.mxu0 %v1820
  %2673 = vmatprep.subr.bf16.mxu0 %v1819
  %2674 = vmatpush2.bf16.msra.mxu0 %v1818
  %2675 = vmatprep.subr.bf16.mxu0 %v1817
  %2676 = vmatpush2.bf16.msra.mxu0 %v1816
  %2677 = vmatprep.subr.bf16.mxu0 %v1815
  %2678 = vmatpush2.bf16.msra.mxu0 %v1814
  %2679 = vmatprep.mubr.bf16.mxu0 %v581
  %2680 = vmatmul.mubr.bf16.gmra.mxu0 %v580
  %v2681 = vpop.f32.mrf.mxu0
  %v2682 = vadd.f32 %v2611, %v2681
  %v2683 = vpop.f32.mrf.mxu0
  %v2684 = vadd.f32 %v2613, %v2683
  %v2685 = vpop.f32.mrf.mxu0
  %v2686 = vadd.f32 %v2615, %v2685
  %v2687 = vpop.f32.mrf.mxu0
  %v2688 = vadd.f32 %v2617, %v2687
  %2689 = vmatprep.mubr.bf16.mxu0 %v599
  %2690 = vmatmul.mubr.bf16.gmra.mxu0 %v598
  %v2691 = vpop.f32.mrf.mxu0
  %v2692 = vadd.f32 %v2621, %v2691
  %v2693 = vpop.f32.mrf.mxu0
  %v2694 = vadd.f32 %v2623, %v2693
  %v2695 = vpop.f32.mrf.mxu0
  %v2696 = vadd.f32 %v2625, %v2695
  %v2697 = vpop.f32.mrf.mxu0
  %v2698 = vadd.f32 %v2627, %v2697
  %2699 = vmatprep.mubr.bf16.mxu0 %v617
  %2700 = vmatmul.mubr.bf16.gmra.mxu0 %v616
  %v2701 = vpop.f32.mrf.mxu0
  %v2702 = vadd.f32 %v2631, %v2701
  %v2703 = vpop.f32.mrf.mxu0
  %v2704 = vadd.f32 %v2633, %v2703
  %v2705 = vpop.f32.mrf.mxu0
  %v2706 = vadd.f32 %v2635, %v2705
  %v2707 = vpop.f32.mrf.mxu0
  %v2708 = vadd.f32 %v2637, %v2707
  %2709 = vmatprep.mubr.bf16.mxu0 %v635
  %2710 = vmatmul.mubr.bf16.gmra.mxu0 %v634
  %v2711 = vpop.f32.mrf.mxu0
  %v2712 = vadd.f32 %v2641, %v2711
  %v2713 = vpop.f32.mrf.mxu0
  %v2714 = vadd.f32 %v2643, %v2713
  %v2715 = vpop.f32.mrf.mxu0
  %v2716 = vpop.f32.mrf.mxu0
  %2717 = vdwg.mxu0
  %2718 = vmatprep.subr.bf16.mxu0 %v1845
  %2719 = vmatpush1.bf16.msra.mxu0 %v1844
  %2720 = vmatprep.subr.bf16.mxu0 %v1843
  %2721 = vmatpush1.bf16.msra.mxu0 %v1842
  %2722 = vmatprep.subr.bf16.mxu0 %v1841
  %2723 = vmatpush1.bf16.msra.mxu0 %v1840
  %2724 = vmatprep.subr.bf16.mxu0 %v1839
  %2725 = vmatpush1.bf16.msra.mxu0 %v1838
  %2726 = vmatprep.subr.bf16.mxu0 %v1837
  %2727 = vmatpush1.bf16.msra.mxu0 %v1836
  %2728 = vmatprep.subr.bf16.mxu0 %v1835
  %2729 = vmatpush1.bf16.msra.mxu0 %v1834
  %2730 = vmatprep.subr.bf16.mxu0 %v1833
  %2731 = vmatpush1.bf16.msra.mxu0 %v1832
  %2732 = vmatprep.subr.bf16.mxu0 %v1831
  %2733 = vmatpush1.bf16.msra.mxu0 %v1830
  %2734 = vmatprep.subr.bf16.mxu0 %v1861
  %2735 = vmatpush2.bf16.msra.mxu0 %v1860
  %2736 = vmatprep.subr.bf16.mxu0 %v1859
  %2737 = vmatpush2.bf16.msra.mxu0 %v1858
  %2738 = vmatprep.subr.bf16.mxu0 %v1857
  %2739 = vmatpush2.bf16.msra.mxu0 %v1856
  %2740 = vmatprep.subr.bf16.mxu0 %v1855
  %2741 = vmatpush2.bf16.msra.mxu0 %v1854
  %2742 = vmatprep.subr.bf16.mxu0 %v1853
  %2743 = vmatpush2.bf16.msra.mxu0 %v1852
  %2744 = vmatprep.subr.bf16.mxu0 %v1851
  %2745 = vmatpush2.bf16.msra.mxu0 %v1850
  %2746 = vmatprep.subr.bf16.mxu0 %v1849
  %2747 = vmatpush2.bf16.msra.mxu0 %v1848
  %2748 = vmatprep.subr.bf16.mxu0 %v1847
  %2749 = vmatpush2.bf16.msra.mxu0 %v1846
  %2750 = vmatprep.mubr.bf16.mxu0 %v583
  %2751 = vmatmul.mubr.bf16.gmra.mxu0 %v582
  %v2752 = vpop.f32.mrf.mxu0
  %v2753 = vadd.f32 %v2682, %v2752
  %v2754 = vpop.f32.mrf.mxu0
  %v2755 = vadd.f32 %v2684, %v2754
  %v2756 = vpop.f32.mrf.mxu0
  %v2757 = vadd.f32 %v2686, %v2756
  %v2758 = vpop.f32.mrf.mxu0
  %v2759 = vadd.f32 %v2688, %v2758
  %2760 = vmatprep.mubr.bf16.mxu0 %v601
  %2761 = vmatmul.mubr.bf16.gmra.mxu0 %v600
  %v2762 = vpop.f32.mrf.mxu0
  %v2763 = vadd.f32 %v2692, %v2762
  %v2764 = vpop.f32.mrf.mxu0
  %v2765 = vadd.f32 %v2694, %v2764
  %v2766 = vpop.f32.mrf.mxu0
  %v2767 = vadd.f32 %v2696, %v2766
  %v2768 = vpop.f32.mrf.mxu0
  %v2769 = vadd.f32 %v2698, %v2768
  %2770 = vmatprep.mubr.bf16.mxu0 %v619
  %2771 = vmatmul.mubr.bf16.gmra.mxu0 %v618
  %v2772 = vpop.f32.mrf.mxu0
  %v2773 = vadd.f32 %v2702, %v2772
  %v2774 = vpop.f32.mrf.mxu0
  %v2775 = vadd.f32 %v2704, %v2774
  %v2776 = vpop.f32.mrf.mxu0
  %v2777 = vadd.f32 %v2706, %v2776
  %v2778 = vpop.f32.mrf.mxu0
  %v2779 = vadd.f32 %v2708, %v2778
  %2780 = vmatprep.mubr.bf16.mxu0 %v637
  %2781 = vmatmul.mubr.bf16.gmra.mxu0 %v636
  %v2782 = vpop.f32.mrf.mxu0
  %v2783 = vadd.f32 %v2712, %v2782
  %v2784 = vpop.f32.mrf.mxu0
  %v2785 = vadd.f32 %v2714, %v2784
  %v2786 = vpop.f32.mrf.mxu0
  %v2787 = vpop.f32.mrf.mxu0
  %2788 = vdwg.mxu0
  %v2789 = vmax.f32 %v2753, 0.0
  %v2790 = vmax.f32 %v2755, 0.0
  %v2791 = vmax.f32 %v2757, 0.0
  %v2792 = vmax.f32 %v2759, 0.0
  %v2793 = vmax.f32 %v2763, 0.0
  %v2794 = vmax.f32 %v2765, 0.0
  %v2795 = vmax.f32 %v2767, 0.0
  %v2796 = vmax.f32 %v2769, 0.0
  %v2797 = vmax.f32 %v2773, 0.0
  %v2798 = vmax.f32 %v2775, 0.0
  %v2799 = vmax.f32 %v2777, 0.0
  %v2800 = vmax.f32 %v2779, 0.0
  %v2801 = vmax.f32 %v2783, 0.0
  %v2802 = vmax.f32 %v2785, 0.0
  %2803 = vst [vmem:[%s3] sm:$0xff] %v2789
  %2804 = vst [vmem:[%s3 + $0x8] sm:$0xff] %v2790
  %2805 = vst [vmem:[%s3 + $0x10] sm:$0xff] %v2791
  %2806 = vst [vmem:[%s3 + $0x18] sm:$0xff] %v2792
  %2807 = vst [vmem:[%s3 + $0x20] sm:$0xff] %v2793
  %2808 = vst [vmem:[%s3 + $0x28] sm:$0xff] %v2794
  %2809 = vst [vmem:[%s3 + $0x30] sm:$0xff] %v2795
  %2810 = vst [vmem:[%s3 + $0x38] sm:$0xff] %v2796
  %2811 = vst [vmem:[%s3 + $0x40] sm:$0xff] %v2797
  %2812 = vst [vmem:[%s3 + $0x48] sm:$0xff] %v2798
  %2813 = vst [vmem:[%s3 + $0x50] sm:$0xff] %v2799
  %2814 = vst [vmem:[%s3 + $0x58] sm:$0xff] %v2800
  %2815 = vst [vmem:[%s3 + $0x60] sm:$0xff] %v2801
  %2816 = vst [vmem:[%s3 + $0x68] sm:$0xff] %v2802
  // Predicated region
  $region14: #{_lambda_.9} parent=0 // pred_check
    _
  $region15: #{_lambda_.9} parent=0 // pred_check_branch
    %2818 = sbr.rel (0) target = $region17
  $region16: #{_lambda_.9} parent=0 // pred_region
    _
  $region17: #{_lambda_.9} parent=0 // pred_fallthru
    _
  // Predicated region
  $region18: #{_lambda_.9} parent=0 // pred_check
    _
  $region19: #{_lambda_.9} parent=0 // pred_check_branch
    %2820 = sbr.rel (0) target = $region21
  $region20: #{_lambda_.9} parent=0 // pred_region
    _
  $region21: #{_lambda_.9} parent=0 // pred_fallthru
    _

</llo_original>
